<compile_context>
chip_gen: v6e
topology: v6e:2x2x1
jax: 0.10.0
libtpu: 0.0.40
codegen_flags: <defaults>
</compile_context>

<pallas_src>
import functools

import jax
import jax.numpy as jnp
from jax.experimental import pallas as pl
from jax.experimental.pallas import tpu as pltpu


def _round_up(x, m):
    return (x + m - 1) // m * m


def _transe_kernel(pos_ref, neg_ref, table_ref, out_ref, *, norm, margin, rel_offset):
    table = table_ref[...]                      # (K_pad, D): resident across grid steps
    compute_dtype = table.dtype
    tb = pos_ref.shape[0]
    k = table.shape[0]

    # Stack positive & negative ids along the batch axis -> one fused MXU gather.
    h = jnp.concatenate([pos_ref[:, 0:1], neg_ref[:, 0:1]], axis=0)               # (2TB, 1)
    r = jnp.concatenate([pos_ref[:, 1:2], neg_ref[:, 1:2]], axis=0) + rel_offset  # (2TB, 1)
    t = jnp.concatenate([pos_ref[:, 2:3], neg_ref[:, 2:3]], axis=0)               # (2TB, 1)

    iota = jax.lax.broadcasted_iota(jnp.int32, (2 * tb, k), 1)
    # Signed selection: +1 at head row, +1 at (rel_offset + rel) row, -1 at tail
    # row.  +/-1 and 0 are exact in bf16.  NOTE: out-of-range ids are not
    # checked (the PyTorch embedding lookup would raise); validate upstream.
    sel = ((h == iota).astype(compute_dtype)
           + (r == iota).astype(compute_dtype)
           - (t == iota).astype(compute_dtype))                                   # (2TB, K_pad)

    # Single MXU gather: residual e_h + e_r - e_t for pos and neg, f32 accum.
    res = jnp.dot(sel, table, preferred_element_type=jnp.float32)                 # (2TB, D)

    pos_res = res[:tb, :]
    neg_res = res[tb:, :]
    if norm == 1:
        pos_dist = jnp.sum(jnp.abs(pos_res), axis=1)
        neg_dist = jnp.sum(jnp.abs(neg_res), axis=1)
    else:  # p == 2
        pos_dist = jnp.sqrt(jnp.sum(pos_res * pos_res, axis=1))
        neg_dist = jnp.sqrt(jnp.sum(neg_res * neg_res, axis=1))

    # MarginRankingLoss(margin, reduction='none') with target = -1:
    #   loss = max(0, -target*(pos - neg) + margin) = max(0, pos - neg + margin)
    out_ref[0, :] = jnp.maximum(pos_dist - neg_dist + margin, 0.0)
    out_ref[1, :] = pos_dist
    out_ref[2, :] = neg_dist


def _default_vmem_limit_bytes():
    # Generation-keyed VMEM budget: ~3/4 of physical, capped at 100 MiB
    # (-> ~96-100 MiB on v5e/v6e's 128 MiB, ~48 MiB on v7x's 64 MiB).
    try:
        cap = int(pltpu.get_tpu_info().vmem_capacity_bytes)
    except Exception:
        cap = 64 * 1024 * 1024
    return int(min(cap * 3 // 4, 100 * 1024 * 1024))


def transe_forward(entities_emb, relations_emb, positive_triplets, negative_triplets,
                   *, norm=1, margin=24.0, tile_b=512, table_dtype=jnp.bfloat16):
    """Returns (loss, positive_distances, negative_distances), all shape (B,)."""
    assert positive_triplets.shape[1] == 3
    assert negative_triplets.shape[1] == 3
    B = positive_triplets.shape[0]
    E, D = entities_emb.shape
    R, D2 = relations_emb.shape
    assert D == D2

    # Batch tile: multiple of 128 (lane-dense output stores), clamped for small B.
    tile = min(int(tile_b), _round_up(B, 128))
    B_pad = _round_up(B, tile)

    # Combined entity+relation table; contraction dim padded to a 128 multiple
    # so the one-hot matrices are lane-dense and the MXU K dim is fully fed.
    K = E + R
    K_pad = _round_up(K, 128)
    table = jnp.concatenate(
        [entities_emb.astype(jnp.float32), relations_emb.astype(jnp.float32)], axis=0)
    table = jnp.pad(table, ((0, K_pad - K), (0, 0))).astype(table_dtype)

    pos = jnp.pad(positive_triplets.astype(jnp.int32), ((0, B_pad - B), (0, 0)))
    neg = jnp.pad(negative_triplets.astype(jnp.int32), ((0, B_pad - B), (0, 0)))

    kernel = functools.partial(
        _transe_kernel, norm=int(norm), margin=float(margin), rel_offset=E)

    flops = 2 * (2 * B_pad) * K_pad * D                 # fused one-hot gather on the MXU
    bytes_accessed = (2 * B_pad * 3 * 4                  # index streams
                      + K_pad * D * jnp.dtype(table_dtype).itemsize   # resident table
                      + 3 * B_pad * 4)                   # packed outputs

    out = pl.pallas_call(
        kernel,
        out_shape=jax.ShapeDtypeStruct((3, B_pad), jnp.float32),
        grid_spec=pltpu.PrefetchScalarGridSpec(
            num_scalar_prefetch=0,
            grid=(B_pad // tile,),
            in_specs=[
                pl.BlockSpec((tile, 3), lambda i: (i, 0)),     # positive triplet ids
                pl.BlockSpec((tile, 3), lambda i: (i, 0)),     # negative triplet ids
                pl.BlockSpec((K_pad, D), lambda i: (0, 0)),    # combined table (resident)
            ],
            out_specs=pl.BlockSpec((3, tile), lambda i: (0, i)),
        ),
        compiler_params=pltpu.CompilerParams(
            dimension_semantics=("parallel",),
            vmem_limit_bytes=_default_vmem_limit_bytes(),
        ),
        cost_estimate=pl.CostEstimate(
            flops=flops, transcendentals=0, bytes_accessed=bytes_accessed),
    )(pos, neg, table)

    return out[0, :B], out[1, :B], out[2, :B]


def init_params(key, entity_count, relation_count, dim):
    """Deterministic re-implementation of the PyTorch __init__ (synthetic weights)."""
    k1, k2 = jax.random.split(key)
    uniform_range = 6.0 / jnp.sqrt(jnp.float32(dim))

    entities = jax.random.uniform(
        k1, (entity_count, dim), jnp.float32, -uniform_range, uniform_range)
    # normalize all but last row by L2 norm
    ent_norm = jnp.linalg.norm(entities[:-1, :], ord=2, axis=1, keepdims=True)
    entities = jnp.concatenate([entities[:-1, :] / ent_norm, entities[-1:, :]], axis=0)

    relations = jax.random.uniform(
        k2, (relation_count, dim), jnp.float32, -uniform_range, uniform_range)
    # normalize all but last row by L1 norm
    rel_norm = jnp.sum(jnp.abs(relations[:-1, :]), axis=1, keepdims=True)
    relations = jnp.concatenate([relations[:-1, :] / rel_norm, relations[-1:, :]], axis=0)

    return entities, relations


if __name__ == "__main__":
    entity_count = 50
    relation_count = 10
    dim = 32
    batch = 200          # deliberately NOT a multiple of the batch tile
    margin = 24.0

    key = jax.random.PRNGKey(0)
    kp, kt1, kt2, kt3, kt4 = jax.random.split(key, 5)

    entities_emb, relations_emb = init_params(kp, entity_count, relation_count, dim)

    pos_heads = jax.random.randint(kt1, (batch,), 0, entity_count)
    pos_rels = jax.random.randint(kt2, (batch,), 0, relation_count)
    pos_tails = jax.random.randint(kt3, (batch,), 0, entity_count)
    positive_triplets = jnp.stack([pos_heads, pos_rels, pos_tails], axis=1)

    neg_tails = jax.random.randint(kt4, (batch,), 0, entity_count)
    negative_triplets = jnp.stack([pos_heads, pos_rels, neg_tails], axis=1)

    # Pure-JAX reference (PyTorch forward semantics).
    def ref_forward(ent, rel, ptrip, ntrip, norm):
        def dist(trip):
            h = ent[trip[:, 0]]
            r = rel[trip[:, 1]]
            t = ent[trip[:, 2]]
            res = h + r - t
            if norm == 1:
                return jnp.sum(jnp.abs(res), axis=1)
            return jnp.sqrt(jnp.sum(res * res, axis=1))
        pd = dist(ptrip)
        nd = dist(ntrip)
        return jnp.maximum(pd - nd + margin, 0.0), pd, nd

    # bf16-rounded tables for checking the (default) bf16 kernel path.
    ent_bf = entities_emb.astype(jnp.bfloat16).astype(jnp.float32)
    rel_bf = relations_emb.astype(jnp.bfloat16).astype(jnp.float32)

    for norm in (1, 2):
        # f32-table path: faithful to the PyTorch reference numerics.
        out_f32 = transe_forward(
            entities_emb, relations_emb, positive_triplets, negative_triplets,
            norm=norm, margin=margin, table_dtype=jnp.float32)
        jax.block_until_ready(out_f32)
        ref_f32 = ref_forward(entities_emb, relations_emb,
                              positive_triplets, negative_triplets, norm)
        for got, want, name in zip(out_f32, ref_f32, ("loss", "pos_dist", "neg_dist")):
            assert jnp.allclose(got, want, atol=1e-4, rtol=1e-4), \
                f"f32 {name} mismatch (norm={norm})"

        # bf16-table path (default / fast): check against a bf16-rounded reference.
        out_bf = transe_forward(
            entities_emb, relations_emb, positive_triplets, negative_triplets,
            norm=norm, margin=margin, table_dtype=jnp.bfloat16)
        jax.block_until_ready(out_bf)
        ref_bf = ref_forward(ent_bf, rel_bf,
                             positive_triplets, negative_triplets, norm)
        for got, want, name in zip(out_bf, ref_bf, ("loss", "pos_dist", "neg_dist")):
            assert jnp.allclose(got, want, atol=2e-3, rtol=2e-3), \
                f"bf16 {name} mismatch (norm={norm})"

    print("KERNEL_OK")
</pallas_src>

<mosaic_0001>
module attributes {stable_mosaic.version = 11 : i64} {
  func.func @_transe_kernel(%arg0: i32, %arg1: memref<256x3xi32, #tpu.memory_space<vmem>>, %arg2: memref<256x3xi32, #tpu.memory_space<vmem>>, %arg3: memref<128x32xf32, #tpu.memory_space<vmem>>, %arg4: memref<3x256xf32, #tpu.memory_space<vmem>>) attributes {dimension_semantics = [#tpu.dimension_semantics<parallel>], iteration_bounds = array<i64: 1>, scalar_prefetch = 0 : i64, scratch_operands = 0 : i64, tpu.core_type = #tpu.core_type<tc>, window_params = [{transform_indices = @transform_0, window_bounds = array<i64: 256, 3>}, {transform_indices = @transform_1, window_bounds = array<i64: 256, 3>}, {pipeline_mode = #tpu.pipeline_mode<synchronous>, transform_indices = @transform_2, window_bounds = array<i64: 128, 32>}, {transform_indices = @transform_3, window_bounds = array<i64: 3, 256>}]} {
    %c0 = arith.constant 0 : index
    %c0_0 = arith.constant 0 : index
    %0 = vector.load %arg3[%c0, %c0_0] : memref<128x32xf32, #tpu.memory_space<vmem>>, vector<128x32xf32>
    %c0_1 = arith.constant 0 : index
    %c0_2 = arith.constant 0 : index
    %1 = vector.load %arg1[%c0_1, %c0_2] : memref<256x3xi32, #tpu.memory_space<vmem>>, vector<256x1xi32>
    %c0_3 = arith.constant 0 : index
    %c0_4 = arith.constant 0 : index
    %2 = vector.load %arg2[%c0_3, %c0_4] : memref<256x3xi32, #tpu.memory_space<vmem>>, vector<256x1xi32>
    %3 = tpu.concatenate %1, %2 in 0 : vector<256x1xi32>, vector<256x1xi32> -> vector<512x1xi32>
    %c0_5 = arith.constant 0 : index
    %c1 = arith.constant 1 : index
    %4 = vector.load %arg1[%c0_5, %c1] : memref<256x3xi32, #tpu.memory_space<vmem>>, vector<256x1xi32>
    %c0_6 = arith.constant 0 : index
    %c1_7 = arith.constant 1 : index
    %5 = vector.load %arg2[%c0_6, %c1_7] : memref<256x3xi32, #tpu.memory_space<vmem>>, vector<256x1xi32>
    %6 = tpu.concatenate %4, %5 in 0 : vector<256x1xi32>, vector<256x1xi32> -> vector<512x1xi32>
    %c50_i32 = arith.constant 50 : i32
    %7 = vector.broadcast %c50_i32 : i32 to vector<512x1xi32>
    %8 = arith.addi %6, %7 : vector<512x1xi32>
    %c0_8 = arith.constant 0 : index
    %c2 = arith.constant 2 : index
    %9 = vector.load %arg1[%c0_8, %c2] : memref<256x3xi32, #tpu.memory_space<vmem>>, vector<256x1xi32>
    %c0_9 = arith.constant 0 : index
    %c2_10 = arith.constant 2 : index
    %10 = vector.load %arg2[%c0_9, %c2_10] : memref<256x3xi32, #tpu.memory_space<vmem>>, vector<256x1xi32>
    %11 = tpu.concatenate %9, %10 in 0 : vector<256x1xi32>, vector<256x1xi32> -> vector<512x1xi32>
    %12 = tpu.iota {dimensions = array<i32: 1>} : vector<512x128xi32>
    %13 = vector.broadcast %3 : vector<512x1xi32> to vector<512x128xi32>
    %14 = arith.cmpi eq, %13, %12 : vector<512x128xi32>
    %15 = arith.extui %14 : vector<512x128xi1> to vector<512x128xi32>
    %16 = arith.sitofp %15 : vector<512x128xi32> to vector<512x128xf32>
    %17 = vector.broadcast %8 : vector<512x1xi32> to vector<512x128xi32>
    %18 = arith.cmpi eq, %17, %12 : vector<512x128xi32>
    %19 = arith.extui %18 : vector<512x128xi1> to vector<512x128xi32>
    %20 = arith.sitofp %19 : vector<512x128xi32> to vector<512x128xf32>
    %21 = arith.addf %16, %20 : vector<512x128xf32>
    %22 = vector.broadcast %11 : vector<512x1xi32> to vector<512x128xi32>
    %23 = arith.cmpi eq, %22, %12 : vector<512x128xi32>
    %24 = arith.extui %23 : vector<512x128xi1> to vector<512x128xi32>
    %25 = arith.sitofp %24 : vector<512x128xi32> to vector<512x128xf32>
    %26 = arith.subf %21, %25 : vector<512x128xf32>
    %cst = arith.constant dense<0.000000e+00> : vector<512x32xf32>
    %27 = tpu.matmul %26, %0, %cst {dimension_numbers = #tpu.dot_dimension_numbers<[1], [0], [0], [1], [0, 0, 1, 1], [], []>} : vector<512x128xf32>, vector<128x32xf32>, vector<512x32xf32> -> vector<512x32xf32>
    %28 = vector.extract_strided_slice %27 {offsets = [0, 0], sizes = [256, 32], strides = [1, 1]} : vector<512x32xf32> to vector<256x32xf32>
    %29 = vector.extract_strided_slice %27 {offsets = [256, 0], sizes = [256, 32], strides = [1, 1]} : vector<512x32xf32> to vector<256x32xf32>
    %30 = math.absf %28 : vector<256x32xf32>
    %cst_11 = arith.constant dense<0.000000e+00> : vector<256xf32>
    %31 = vector.multi_reduction <add>, %30, %cst_11 [1] : vector<256x32xf32> to vector<256xf32>
    %32 = math.absf %29 : vector<256x32xf32>
    %cst_12 = arith.constant dense<0.000000e+00> : vector<256xf32>
    %33 = vector.multi_reduction <add>, %32, %cst_12 [1] : vector<256x32xf32> to vector<256xf32>
    %34 = arith.subf %31, %33 : vector<256xf32>
    %cst_13 = arith.constant 2.400000e+01 : f32
    %35 = vector.broadcast %cst_13 : f32 to vector<256xf32>
    %36 = arith.addf %34, %35 : vector<256xf32>
    %cst_14 = arith.constant 0.000000e+00 : f32
    %37 = vector.broadcast %cst_14 : f32 to vector<256xf32>
    %38 = arith.maximumf %36, %37 : vector<256xf32>
    %c0_15 = arith.constant 0 : index
    %c0_16 = arith.constant 0 : index
    %39 = vector.load %arg4[%c0_15, %c0_16] : memref<3x256xf32, #tpu.memory_space<vmem>>, vector<1x256xf32>
    %40 = vector.shape_cast %39 : vector<1x256xf32> to vector<256xf32>
    %41 = vector.shape_cast %38 : vector<256xf32> to vector<1x256xf32>
    tpu.vector_store %arg4[%c0_15, %c0_16], %41 {strides = array<i32>} : memref<3x256xf32, #tpu.memory_space<vmem>>, vector<1x256xf32>,
    %c1_17 = arith.constant 1 : index
    %c0_18 = arith.constant 0 : index
    %42 = vector.load %arg4[%c1_17, %c0_18] : memref<3x256xf32, #tpu.memory_space<vmem>>, vector<1x256xf32>
    %43 = vector.shape_cast %42 : vector<1x256xf32> to vector<256xf32>
    %44 = vector.shape_cast %31 : vector<256xf32> to vector<1x256xf32>
    tpu.vector_store %arg4[%c1_17, %c0_18], %44 {strides = array<i32>} : memref<3x256xf32, #tpu.memory_space<vmem>>, vector<1x256xf32>,
    %c2_19 = arith.constant 2 : index
    %c0_20 = arith.constant 0 : index
    %45 = vector.load %arg4[%c2_19, %c0_20] : memref<3x256xf32, #tpu.memory_space<vmem>>, vector<1x256xf32>
    %46 = vector.shape_cast %45 : vector<1x256xf32> to vector<256xf32>
    %47 = vector.shape_cast %33 : vector<256xf32> to vector<1x256xf32>
    tpu.vector_store %arg4[%c2_19, %c0_20], %47 {strides = array<i32>} : memref<3x256xf32, #tpu.memory_space<vmem>>, vector<1x256xf32>,
    return
  }
  func.func @transform_0(%arg0: i32) -> (i32, i32) {
    %c0_i32 = arith.constant 0 : i32
    %c0_i32_0 = arith.constant 0 : i32
    return %arg0, %c0_i32 : i32, i32
  }
  func.func @transform_1(%arg0: i32) -> (i32, i32) {
    %c0_i32 = arith.constant 0 : i32
    %c0_i32_0 = arith.constant 0 : i32
    return %arg0, %c0_i32 : i32, i32
  }
  func.func @transform_2(%arg0: i32) -> (i32, i32) {
    %c0_i32 = arith.constant 0 : i32
    %c0_i32_0 = arith.constant 0 : i32
    %c0_i32_1 = arith.constant 0 : i32
    return %c0_i32, %c0_i32_0 : i32, i32
  }
  func.func @transform_3(%arg0: i32) -> (i32, i32) {
    %c0_i32 = arith.constant 0 : i32
    %c0_i32_0 = arith.constant 0 : i32
    return %c0_i32, %arg0 : i32, i32
  }
}

</mosaic_0001>

<llo_original>
// kernel: tpu_custom_call.1
$region0: #{tpu_custom_call.1}
  #allocation0 [shape = 'u32[]', space=smem, size = 0x4, offset = 0x4, fixed_abs, tag = 'smem constant byte address 0x4 - core index']
  #allocation1 [shape = 'u32[144,128]{1,0:T(1,128)}', space=vmem, size = 0x12000, scoped, tag = 'internal scratch']
  %s0 = inlined_call_operand.vmem [shape: s32[256,3], index: 0, kind: input, shape index: {}]
  %s1 = inlined_call_operand.vmem [shape: s32[256,3], index: 1, kind: input, shape index: {}]
  %s2 = inlined_call_operand.vmem [shape: f32[128,32], index: 2, kind: input, shape index: {}]
  %s3 = inlined_call_operand.hbm [shape: f32[3,256], index: 3, kind: output, shape index: {}]
  %s4 = sld [smem:[#allocation0]]
  $region22: #{tpu_custom_call.1} parent=0
    _
  %s6 = ssub.s32 1, %s4
  %s7 = scalar_select 0, %s6, %s4
  $region1: #{tpu_custom_call.1} parent=0
    #allocation2 [shape = 'u8[4096]{0}', space=vmem, size = 0x1000, scoped, tag = 'output window, operand 0, single buffered']
    #allocation3 [shape = 's32[1]{0}', space=sflag, size = 0x4, scoped, tag = 'scoped memory for tpu_custom_call.1']
    %8 = vsyncpa [#allocation3], 0
    // Predicated region
    $region2: #{tpu_custom_call.1} parent=1 // pred_check
      _
    $region3: #{tpu_custom_call.1} parent=1 // pred_check_branch
      %10 = sbr.rel (0) target = $region5
    $region4: #{tpu_custom_call.1} parent=1 // pred_region
      _
    $region5: #{tpu_custom_call.1} parent=1 // pred_fallthru
      _
    // Predicated region
    $region6: #{tpu_custom_call.1} parent=1 // pred_check
      _
    $region7: #{tpu_custom_call.1} parent=1 // pred_check_branch
      %12 = sbr.rel (0) target = $region9
    $region8: #{tpu_custom_call.1} parent=1 // pred_region
      _
    $region9: #{tpu_custom_call.1} parent=1 // pred_fallthru
      _
    // Predicated region
    $region10: #{tpu_custom_call.1} parent=1 // pred_check
      _
    $region11: #{tpu_custom_call.1} parent=1 // pred_check_branch
      %14 = sbr.rel (0) target = $region13
    $region12: #{tpu_custom_call.1} parent=1 // pred_region
      _
    $region13: #{tpu_custom_call.1} parent=1 // pred_fallthru
      _
    %v15 = vld [vmem:[%s2] sm:$0xff]
    %v16 = vld [vmem:[%s2 + $0x8] sm:$0xff]
    %v17 = vld [vmem:[%s2 + $0x10] sm:$0xff]
    %v18 = vld [vmem:[%s2 + $0x18] sm:$0xff]
    %v19 = vld [vmem:[%s2 + $0x20] sm:$0xff]
    %v20 = vld [vmem:[%s2 + $0x28] sm:$0xff]
    %v21 = vld [vmem:[%s2 + $0x30] sm:$0xff]
    %v22 = vld [vmem:[%s2 + $0x38] sm:$0xff]
    %v23 = vld [vmem:[%s2 + $0x40] sm:$0xff]
    %v24 = vld [vmem:[%s2 + $0x48] sm:$0xff]
    %v25 = vld [vmem:[%s2 + $0x50] sm:$0xff]
    %v26 = vld [vmem:[%s2 + $0x58] sm:$0xff]
    %v27 = vld [vmem:[%s2 + $0x60] sm:$0xff]
    %v28 = vld [vmem:[%s2 + $0x68] sm:$0xff]
    %v29 = vld [vmem:[%s2 + $0x70] sm:$0xff]
    %v30 = vld [vmem:[%s2 + $0x78] sm:$0xff]
    %v31 = vld [vmem:[%s0] sm:$0xff]
    %v32 = vld [vmem:[%s0 + $0x8] sm:$0xff]
    %v33 = vld [vmem:[%s0 + $0x10] sm:$0xff]
    %v34 = vld [vmem:[%s0 + $0x18] sm:$0xff]
    %v35 = vld [vmem:[%s0 + $0x20] sm:$0xff]
    %v36 = vld [vmem:[%s0 + $0x28] sm:$0xff]
    %v37 = vld [vmem:[%s0 + $0x30] sm:$0xff]
    %v38 = vld [vmem:[%s0 + $0x38] sm:$0xff]
    %v39 = vld [vmem:[%s0 + $0x40] sm:$0xff]
    %v40 = vld [vmem:[%s0 + $0x48] sm:$0xff]
    %v41 = vld [vmem:[%s0 + $0x50] sm:$0xff]
    %v42 = vld [vmem:[%s0 + $0x58] sm:$0xff]
    %v43 = vld [vmem:[%s0 + $0x60] sm:$0xff]
    %v44 = vld [vmem:[%s0 + $0x68] sm:$0xff]
    %v45 = vld [vmem:[%s0 + $0x70] sm:$0xff]
    %v46 = vld [vmem:[%s0 + $0x78] sm:$0xff]
    %v47 = vld [vmem:[%s0 + $0x80] sm:$0xff]
    %v48 = vld [vmem:[%s0 + $0x88] sm:$0xff]
    %v49 = vld [vmem:[%s0 + $0x90] sm:$0xff]
    %v50 = vld [vmem:[%s0 + $0x98] sm:$0xff]
    %v51 = vld [vmem:[%s0 + $0xa0] sm:$0xff]
    %v52 = vld [vmem:[%s0 + $0xa8] sm:$0xff]
    %v53 = vld [vmem:[%s0 + $0xb0] sm:$0xff]
    %v54 = vld [vmem:[%s0 + $0xb8] sm:$0xff]
    %v55 = vld [vmem:[%s0 + $0xc0] sm:$0xff]
    %v56 = vld [vmem:[%s0 + $0xc8] sm:$0xff]
    %v57 = vld [vmem:[%s0 + $0xd0] sm:$0xff]
    %v58 = vld [vmem:[%s0 + $0xd8] sm:$0xff]
    %v59 = vld [vmem:[%s0 + $0xe0] sm:$0xff]
    %v60 = vld [vmem:[%s0 + $0xe8] sm:$0xff]
    %v61 = vld [vmem:[%s0 + $0xf0] sm:$0xff]
    %v62 = vld [vmem:[%s0 + $0xf8] sm:$0xff]
    %v63 = vld [vmem:[%s1] sm:$0xff]
    %v64 = vld [vmem:[%s1 + $0x8] sm:$0xff]
    %v65 = vld [vmem:[%s1 + $0x10] sm:$0xff]
    %v66 = vld [vmem:[%s1 + $0x18] sm:$0xff]
    %v67 = vld [vmem:[%s1 + $0x20] sm:$0xff]
    %v68 = vld [vmem:[%s1 + $0x28] sm:$0xff]
    %v69 = vld [vmem:[%s1 + $0x30] sm:$0xff]
    %v70 = vld [vmem:[%s1 + $0x38] sm:$0xff]
    %v71 = vld [vmem:[%s1 + $0x40] sm:$0xff]
    %v72 = vld [vmem:[%s1 + $0x48] sm:$0xff]
    %v73 = vld [vmem:[%s1 + $0x50] sm:$0xff]
    %v74 = vld [vmem:[%s1 + $0x58] sm:$0xff]
    %v75 = vld [vmem:[%s1 + $0x60] sm:$0xff]
    %v76 = vld [vmem:[%s1 + $0x68] sm:$0xff]
    %v77 = vld [vmem:[%s1 + $0x70] sm:$0xff]
    %v78 = vld [vmem:[%s1 + $0x78] sm:$0xff]
    %v79 = vld [vmem:[%s1 + $0x80] sm:$0xff]
    %v80 = vld [vmem:[%s1 + $0x88] sm:$0xff]
    %v81 = vld [vmem:[%s1 + $0x90] sm:$0xff]
    %v82 = vld [vmem:[%s1 + $0x98] sm:$0xff]
    %v83 = vld [vmem:[%s1 + $0xa0] sm:$0xff]
    %v84 = vld [vmem:[%s1 + $0xa8] sm:$0xff]
    %v85 = vld [vmem:[%s1 + $0xb0] sm:$0xff]
    %v86 = vld [vmem:[%s1 + $0xb8] sm:$0xff]
    %v87 = vld [vmem:[%s1 + $0xc0] sm:$0xff]
    %v88 = vld [vmem:[%s1 + $0xc8] sm:$0xff]
    %v89 = vld [vmem:[%s1 + $0xd0] sm:$0xff]
    %v90 = vld [vmem:[%s1 + $0xd8] sm:$0xff]
    %v91 = vld [vmem:[%s1 + $0xe0] sm:$0xff]
    %v92 = vld [vmem:[%s1 + $0xe8] sm:$0xff]
    %v93 = vld [vmem:[%s1 + $0xf0] sm:$0xff]
    %v94 = vld [vmem:[%s1 + $0xf8] sm:$0xff]
    %v95 = vadd.s32 %v31, 50
    %v96 = vadd.s32 %v32, 50
    %v97 = vadd.s32 %v33, 50
    %v98 = vadd.s32 %v34, 50
    %v99 = vadd.s32 %v35, 50
    %v100 = vadd.s32 %v36, 50
    %v101 = vadd.s32 %v37, 50
    %v102 = vadd.s32 %v38, 50
    %v103 = vadd.s32 %v39, 50
    %v104 = vadd.s32 %v40, 50
    %v105 = vadd.s32 %v41, 50
    %v106 = vadd.s32 %v42, 50
    %v107 = vadd.s32 %v43, 50
    %v108 = vadd.s32 %v44, 50
    %v109 = vadd.s32 %v45, 50
    %v110 = vadd.s32 %v46, 50
    %v111 = vadd.s32 %v47, 50
    %v112 = vadd.s32 %v48, 50
    %v113 = vadd.s32 %v49, 50
    %v114 = vadd.s32 %v50, 50
    %v115 = vadd.s32 %v51, 50
    %v116 = vadd.s32 %v52, 50
    %v117 = vadd.s32 %v53, 50
    %v118 = vadd.s32 %v54, 50
    %v119 = vadd.s32 %v55, 50
    %v120 = vadd.s32 %v56, 50
    %v121 = vadd.s32 %v57, 50
    %v122 = vadd.s32 %v58, 50
    %v123 = vadd.s32 %v59, 50
    %v124 = vadd.s32 %v60, 50
    %v125 = vadd.s32 %v61, 50
    %v126 = vadd.s32 %v62, 50
    %v127 = vadd.s32 %v63, 50
    %v128 = vadd.s32 %v64, 50
    %v129 = vadd.s32 %v65, 50
    %v130 = vadd.s32 %v66, 50
    %v131 = vadd.s32 %v67, 50
    %v132 = vadd.s32 %v68, 50
    %v133 = vadd.s32 %v69, 50
    %v134 = vadd.s32 %v70, 50
    %v135 = vadd.s32 %v71, 50
    %v136 = vadd.s32 %v72, 50
    %v137 = vadd.s32 %v73, 50
    %v138 = vadd.s32 %v74, 50
    %v139 = vadd.s32 %v75, 50
    %v140 = vadd.s32 %v76, 50
    %v141 = vadd.s32 %v77, 50
    %v142 = vadd.s32 %v78, 50
    %v143 = vadd.s32 %v79, 50
    %v144 = vadd.s32 %v80, 50
    %v145 = vadd.s32 %v81, 50
    %v146 = vadd.s32 %v82, 50
    %v147 = vadd.s32 %v83, 50
    %v148 = vadd.s32 %v84, 50
    %v149 = vadd.s32 %v85, 50
    %v150 = vadd.s32 %v86, 50
    %v151 = vadd.s32 %v87, 50
    %v152 = vadd.s32 %v88, 50
    %v153 = vadd.s32 %v89, 50
    %v154 = vadd.s32 %v90, 50
    %v155 = vadd.s32 %v91, 50
    %v156 = vadd.s32 %v92, 50
    %v157 = vadd.s32 %v93, 50
    %v158 = vadd.s32 %v94, 50
    %v159 = vlaneseq
    %v160 = vand.u32 %v159, 127
    %161 = vset.pattern.permute.xlu0 0
    %162 = vperm.xlu0 %161, %v31
    %v163 = vpop.permute.xlu0 %162
    %164 = vset.pattern.permute.xlu0 0
    %165 = vperm.xlu0 %164, %v32
    %v166 = vpop.permute.xlu0 %165
    %167 = vset.pattern.permute.xlu0 0
    %168 = vperm.xlu0 %167, %v33
    %v169 = vpop.permute.xlu0 %168
    %170 = vset.pattern.permute.xlu0 0
    %171 = vperm.xlu0 %170, %v34
    %v172 = vpop.permute.xlu0 %171
    %173 = vset.pattern.permute.xlu0 0
    %174 = vperm.xlu0 %173, %v35
    %v175 = vpop.permute.xlu0 %174
    %176 = vset.pattern.permute.xlu0 0
    %177 = vperm.xlu0 %176, %v36
    %v178 = vpop.permute.xlu0 %177
    %179 = vset.pattern.permute.xlu0 0
    %180 = vperm.xlu0 %179, %v37
    %v181 = vpop.permute.xlu0 %180
    %182 = vset.pattern.permute.xlu0 0
    %183 = vperm.xlu0 %182, %v38
    %v184 = vpop.permute.xlu0 %183
    %185 = vset.pattern.permute.xlu0 0
    %186 = vperm.xlu0 %185, %v39
    %v187 = vpop.permute.xlu0 %186
    %188 = vset.pattern.permute.xlu0 0
    %189 = vperm.xlu0 %188, %v40
    %v190 = vpop.permute.xlu0 %189
    %191 = vset.pattern.permute.xlu0 0
    %192 = vperm.xlu0 %191, %v41
    %v193 = vpop.permute.xlu0 %192
    %194 = vset.pattern.permute.xlu0 0
    %195 = vperm.xlu0 %194, %v42
    %v196 = vpop.permute.xlu0 %195
    %197 = vset.pattern.permute.xlu0 0
    %198 = vperm.xlu0 %197, %v43
    %v199 = vpop.permute.xlu0 %198
    %200 = vset.pattern.permute.xlu0 0
    %201 = vperm.xlu0 %200, %v44
    %v202 = vpop.permute.xlu0 %201
    %203 = vset.pattern.permute.xlu0 0
    %204 = vperm.xlu0 %203, %v45
    %v205 = vpop.permute.xlu0 %204
    %206 = vset.pattern.permute.xlu0 0
    %207 = vperm.xlu0 %206, %v46
    %v208 = vpop.permute.xlu0 %207
    %209 = vset.pattern.permute.xlu0 0
    %210 = vperm.xlu0 %209, %v47
    %v211 = vpop.permute.xlu0 %210
    %212 = vset.pattern.permute.xlu0 0
    %213 = vperm.xlu0 %212, %v48
    %v214 = vpop.permute.xlu0 %213
    %215 = vset.pattern.permute.xlu0 0
    %216 = vperm.xlu0 %215, %v49
    %v217 = vpop.permute.xlu0 %216
    %218 = vset.pattern.permute.xlu0 0
    %219 = vperm.xlu0 %218, %v50
    %v220 = vpop.permute.xlu0 %219
    %221 = vset.pattern.permute.xlu0 0
    %222 = vperm.xlu0 %221, %v51
    %v223 = vpop.permute.xlu0 %222
    %224 = vset.pattern.permute.xlu0 0
    %225 = vperm.xlu0 %224, %v52
    %v226 = vpop.permute.xlu0 %225
    %227 = vset.pattern.permute.xlu0 0
    %228 = vperm.xlu0 %227, %v53
    %v229 = vpop.permute.xlu0 %228
    %230 = vset.pattern.permute.xlu0 0
    %231 = vperm.xlu0 %230, %v54
    %v232 = vpop.permute.xlu0 %231
    %233 = vset.pattern.permute.xlu0 0
    %234 = vperm.xlu0 %233, %v55
    %v235 = vpop.permute.xlu0 %234
    %236 = vset.pattern.permute.xlu0 0
    %237 = vperm.xlu0 %236, %v56
    %v238 = vpop.permute.xlu0 %237
    %239 = vset.pattern.permute.xlu0 0
    %240 = vperm.xlu0 %239, %v57
    %v241 = vpop.permute.xlu0 %240
    %242 = vset.pattern.permute.xlu0 0
    %243 = vperm.xlu0 %242, %v58
    %v244 = vpop.permute.xlu0 %243
    %245 = vset.pattern.permute.xlu0 0
    %246 = vperm.xlu0 %245, %v59
    %v247 = vpop.permute.xlu0 %246
    %248 = vset.pattern.permute.xlu0 0
    %249 = vperm.xlu0 %248, %v60
    %v250 = vpop.permute.xlu0 %249
    %251 = vset.pattern.permute.xlu0 0
    %252 = vperm.xlu0 %251, %v61
    %v253 = vpop.permute.xlu0 %252
    %254 = vset.pattern.permute.xlu0 0
    %255 = vperm.xlu0 %254, %v62
    %v256 = vpop.permute.xlu0 %255
    %257 = vset.pattern.permute.xlu0 0
    %258 = vperm.xlu0 %257, %v63
    %v259 = vpop.permute.xlu0 %258
    %260 = vset.pattern.permute.xlu0 0
    %261 = vperm.xlu0 %260, %v64
    %v262 = vpop.permute.xlu0 %261
    %263 = vset.pattern.permute.xlu0 0
    %264 = vperm.xlu0 %263, %v65
    %v265 = vpop.permute.xlu0 %264
    %266 = vset.pattern.permute.xlu0 0
    %267 = vperm.xlu0 %266, %v66
    %v268 = vpop.permute.xlu0 %267
    %269 = vset.pattern.permute.xlu0 0
    %270 = vperm.xlu0 %269, %v67
    %v271 = vpop.permute.xlu0 %270
    %272 = vset.pattern.permute.xlu0 0
    %273 = vperm.xlu0 %272, %v68
    %v274 = vpop.permute.xlu0 %273
    %275 = vset.pattern.permute.xlu0 0
    %276 = vperm.xlu0 %275, %v69
    %v277 = vpop.permute.xlu0 %276
    %278 = vset.pattern.permute.xlu0 0
    %279 = vperm.xlu0 %278, %v70
    %v280 = vpop.permute.xlu0 %279
    %281 = vset.pattern.permute.xlu0 0
    %282 = vperm.xlu0 %281, %v71
    %v283 = vpop.permute.xlu0 %282
    %284 = vset.pattern.permute.xlu0 0
    %285 = vperm.xlu0 %284, %v72
    %v286 = vpop.permute.xlu0 %285
    %287 = vset.pattern.permute.xlu0 0
    %288 = vperm.xlu0 %287, %v73
    %v289 = vpop.permute.xlu0 %288
    %290 = vset.pattern.permute.xlu0 0
    %291 = vperm.xlu0 %290, %v74
    %v292 = vpop.permute.xlu0 %291
    %293 = vset.pattern.permute.xlu0 0
    %294 = vperm.xlu0 %293, %v75
    %v295 = vpop.permute.xlu0 %294
    %296 = vset.pattern.permute.xlu0 0
    %297 = vperm.xlu0 %296, %v76
    %v298 = vpop.permute.xlu0 %297
    %299 = vset.pattern.permute.xlu0 0
    %300 = vperm.xlu0 %299, %v77
    %v301 = vpop.permute.xlu0 %300
    %302 = vset.pattern.permute.xlu0 0
    %303 = vperm.xlu0 %302, %v78
    %v304 = vpop.permute.xlu0 %303
    %305 = vset.pattern.permute.xlu0 0
    %306 = vperm.xlu0 %305, %v79
    %v307 = vpop.permute.xlu0 %306
    %308 = vset.pattern.permute.xlu0 0
    %309 = vperm.xlu0 %308, %v80
    %v310 = vpop.permute.xlu0 %309
    %311 = vset.pattern.permute.xlu0 0
    %312 = vperm.xlu0 %311, %v81
    %v313 = vpop.permute.xlu0 %312
    %314 = vset.pattern.permute.xlu0 0
    %315 = vperm.xlu0 %314, %v82
    %v316 = vpop.permute.xlu0 %315
    %317 = vset.pattern.permute.xlu0 0
    %318 = vperm.xlu0 %317, %v83
    %v319 = vpop.permute.xlu0 %318
    %320 = vset.pattern.permute.xlu0 0
    %321 = vperm.xlu0 %320, %v84
    %v322 = vpop.permute.xlu0 %321
    %323 = vset.pattern.permute.xlu0 0
    %324 = vperm.xlu0 %323, %v85
    %v325 = vpop.permute.xlu0 %324
    %326 = vset.pattern.permute.xlu0 0
    %327 = vperm.xlu0 %326, %v86
    %v328 = vpop.permute.xlu0 %327
    %329 = vset.pattern.permute.xlu0 0
    %330 = vperm.xlu0 %329, %v87
    %v331 = vpop.permute.xlu0 %330
    %332 = vset.pattern.permute.xlu0 0
    %333 = vperm.xlu0 %332, %v88
    %v334 = vpop.permute.xlu0 %333
    %335 = vset.pattern.permute.xlu0 0
    %336 = vperm.xlu0 %335, %v89
    %v337 = vpop.permute.xlu0 %336
    %338 = vset.pattern.permute.xlu0 0
    %339 = vperm.xlu0 %338, %v90
    %v340 = vpop.permute.xlu0 %339
    %341 = vset.pattern.permute.xlu0 0
    %342 = vperm.xlu0 %341, %v91
    %v343 = vpop.permute.xlu0 %342
    %344 = vset.pattern.permute.xlu0 0
    %345 = vperm.xlu0 %344, %v92
    %v346 = vpop.permute.xlu0 %345
    %347 = vset.pattern.permute.xlu0 0
    %348 = vperm.xlu0 %347, %v93
    %v349 = vpop.permute.xlu0 %348
    %350 = vset.pattern.permute.xlu0 0
    %351 = vperm.xlu0 %350, %v94
    %v352 = vpop.permute.xlu0 %351
    %vm353 = vcmp.eq.s32.totalorder %v163, %v160
    %vm354 = vcmp.eq.s32.totalorder %v166, %v160
    %vm355 = vcmp.eq.s32.totalorder %v169, %v160
    %vm356 = vcmp.eq.s32.totalorder %v172, %v160
    %vm357 = vcmp.eq.s32.totalorder %v175, %v160
    %vm358 = vcmp.eq.s32.totalorder %v178, %v160
    %vm359 = vcmp.eq.s32.totalorder %v181, %v160
    %vm360 = vcmp.eq.s32.totalorder %v184, %v160
    %vm361 = vcmp.eq.s32.totalorder %v187, %v160
    %vm362 = vcmp.eq.s32.totalorder %v190, %v160
    %vm363 = vcmp.eq.s32.totalorder %v193, %v160
    %vm364 = vcmp.eq.s32.totalorder %v196, %v160
    %vm365 = vcmp.eq.s32.totalorder %v199, %v160
    %vm366 = vcmp.eq.s32.totalorder %v202, %v160
    %vm367 = vcmp.eq.s32.totalorder %v205, %v160
    %vm368 = vcmp.eq.s32.totalorder %v208, %v160
    %vm369 = vcmp.eq.s32.totalorder %v211, %v160
    %vm370 = vcmp.eq.s32.totalorder %v214, %v160
    %vm371 = vcmp.eq.s32.totalorder %v217, %v160
    %vm372 = vcmp.eq.s32.totalorder %v220, %v160
    %vm373 = vcmp.eq.s32.totalorder %v223, %v160
    %vm374 = vcmp.eq.s32.totalorder %v226, %v160
    %vm375 = vcmp.eq.s32.totalorder %v229, %v160
    %vm376 = vcmp.eq.s32.totalorder %v232, %v160
    %vm377 = vcmp.eq.s32.totalorder %v235, %v160
    %vm378 = vcmp.eq.s32.totalorder %v238, %v160
    %vm379 = vcmp.eq.s32.totalorder %v241, %v160
    %vm380 = vcmp.eq.s32.totalorder %v244, %v160
    %vm381 = vcmp.eq.s32.totalorder %v247, %v160
    %vm382 = vcmp.eq.s32.totalorder %v250, %v160
    %vm383 = vcmp.eq.s32.totalorder %v253, %v160
    %vm384 = vcmp.eq.s32.totalorder %v256, %v160
    %vm385 = vcmp.eq.s32.totalorder %v259, %v160
    %vm386 = vcmp.eq.s32.totalorder %v262, %v160
    %vm387 = vcmp.eq.s32.totalorder %v265, %v160
    %vm388 = vcmp.eq.s32.totalorder %v268, %v160
    %vm389 = vcmp.eq.s32.totalorder %v271, %v160
    %vm390 = vcmp.eq.s32.totalorder %v274, %v160
    %vm391 = vcmp.eq.s32.totalorder %v277, %v160
    %vm392 = vcmp.eq.s32.totalorder %v280, %v160
    %vm393 = vcmp.eq.s32.totalorder %v283, %v160
    %vm394 = vcmp.eq.s32.totalorder %v286, %v160
    %vm395 = vcmp.eq.s32.totalorder %v289, %v160
    %vm396 = vcmp.eq.s32.totalorder %v292, %v160
    %vm397 = vcmp.eq.s32.totalorder %v295, %v160
    %vm398 = vcmp.eq.s32.totalorder %v298, %v160
    %vm399 = vcmp.eq.s32.totalorder %v301, %v160
    %vm400 = vcmp.eq.s32.totalorder %v304, %v160
    %vm401 = vcmp.eq.s32.totalorder %v307, %v160
    %vm402 = vcmp.eq.s32.totalorder %v310, %v160
    %vm403 = vcmp.eq.s32.totalorder %v313, %v160
    %vm404 = vcmp.eq.s32.totalorder %v316, %v160
    %vm405 = vcmp.eq.s32.totalorder %v319, %v160
    %vm406 = vcmp.eq.s32.totalorder %v322, %v160
    %vm407 = vcmp.eq.s32.totalorder %v325, %v160
    %vm408 = vcmp.eq.s32.totalorder %v328, %v160
    %vm409 = vcmp.eq.s32.totalorder %v331, %v160
    %vm410 = vcmp.eq.s32.totalorder %v334, %v160
    %vm411 = vcmp.eq.s32.totalorder %v337, %v160
    %vm412 = vcmp.eq.s32.totalorder %v340, %v160
    %vm413 = vcmp.eq.s32.totalorder %v343, %v160
    %vm414 = vcmp.eq.s32.totalorder %v346, %v160
    %vm415 = vcmp.eq.s32.totalorder %v349, %v160
    %vm416 = vcmp.eq.s32.totalorder %v352, %v160
    %v417 = vsel %vm353, 1, 0
    %v418 = vsel %vm354, 1, 0
    %v419 = vsel %vm355, 1, 0
    %v420 = vsel %vm356, 1, 0
    %v421 = vsel %vm357, 1, 0
    %v422 = vsel %vm358, 1, 0
    %v423 = vsel %vm359, 1, 0
    %v424 = vsel %vm360, 1, 0
    %v425 = vsel %vm361, 1, 0
    %v426 = vsel %vm362, 1, 0
    %v427 = vsel %vm363, 1, 0
    %v428 = vsel %vm364, 1, 0
    %v429 = vsel %vm365, 1, 0
    %v430 = vsel %vm366, 1, 0
    %v431 = vsel %vm367, 1, 0
    %v432 = vsel %vm368, 1, 0
    %v433 = vsel %vm369, 1, 0
    %v434 = vsel %vm370, 1, 0
    %v435 = vsel %vm371, 1, 0
    %v436 = vsel %vm372, 1, 0
    %v437 = vsel %vm373, 1, 0
    %v438 = vsel %vm374, 1, 0
    %v439 = vsel %vm375, 1, 0
    %v440 = vsel %vm376, 1, 0
    %v441 = vsel %vm377, 1, 0
    %v442 = vsel %vm378, 1, 0
    %v443 = vsel %vm379, 1, 0
    %v444 = vsel %vm380, 1, 0
    %v445 = vsel %vm381, 1, 0
    %v446 = vsel %vm382, 1, 0
    %v447 = vsel %vm383, 1, 0
    %v448 = vsel %vm384, 1, 0
    %v449 = vsel %vm385, 1, 0
    %v450 = vsel %vm386, 1, 0
    %v451 = vsel %vm387, 1, 0
    %v452 = vsel %vm388, 1, 0
    %v453 = vsel %vm389, 1, 0
    %v454 = vsel %vm390, 1, 0
    %v455 = vsel %vm391, 1, 0
    %v456 = vsel %vm392, 1, 0
    %v457 = vsel %vm393, 1, 0
    %v458 = vsel %vm394, 1, 0
    %v459 = vsel %vm395, 1, 0
    %v460 = vsel %vm396, 1, 0
    %v461 = vsel %vm397, 1, 0
    %v462 = vsel %vm398, 1, 0
    %v463 = vsel %vm399, 1, 0
    %v464 = vsel %vm400, 1, 0
    %v465 = vsel %vm401, 1, 0
    %v466 = vsel %vm402, 1, 0
    %v467 = vsel %vm403, 1, 0
    %v468 = vsel %vm404, 1, 0
    %v469 = vsel %vm405, 1, 0
    %v470 = vsel %vm406, 1, 0
    %v471 = vsel %vm407, 1, 0
    %v472 = vsel %vm408, 1, 0
    %v473 = vsel %vm409, 1, 0
    %v474 = vsel %vm410, 1, 0
    %v475 = vsel %vm411, 1, 0
    %v476 = vsel %vm412, 1, 0
    %v477 = vsel %vm413, 1, 0
    %v478 = vsel %vm414, 1, 0
    %v479 = vsel %vm415, 1, 0
    %v480 = vsel %vm416, 1, 0
    %v481 = vcvt.s32.f32 %v417
    %v482 = vcvt.s32.f32 %v418
    %v483 = vcvt.s32.f32 %v419
    %v484 = vcvt.s32.f32 %v420
    %v485 = vcvt.s32.f32 %v421
    %v486 = vcvt.s32.f32 %v422
    %v487 = vcvt.s32.f32 %v423
    %v488 = vcvt.s32.f32 %v424
    %v489 = vcvt.s32.f32 %v425
    %v490 = vcvt.s32.f32 %v426
    %v491 = vcvt.s32.f32 %v427
    %v492 = vcvt.s32.f32 %v428
    %v493 = vcvt.s32.f32 %v429
    %v494 = vcvt.s32.f32 %v430
    %v495 = vcvt.s32.f32 %v431
    %v496 = vcvt.s32.f32 %v432
    %v497 = vcvt.s32.f32 %v433
    %v498 = vcvt.s32.f32 %v434
    %v499 = vcvt.s32.f32 %v435
    %v500 = vcvt.s32.f32 %v436
    %v501 = vcvt.s32.f32 %v437
    %v502 = vcvt.s32.f32 %v438
    %v503 = vcvt.s32.f32 %v439
    %v504 = vcvt.s32.f32 %v440
    %v505 = vcvt.s32.f32 %v441
    %v506 = vcvt.s32.f32 %v442
    %v507 = vcvt.s32.f32 %v443
    %v508 = vcvt.s32.f32 %v444
    %v509 = vcvt.s32.f32 %v445
    %v510 = vcvt.s32.f32 %v446
    %v511 = vcvt.s32.f32 %v447
    %v512 = vcvt.s32.f32 %v448
    %v513 = vcvt.s32.f32 %v449
    %v514 = vcvt.s32.f32 %v450
    %v515 = vcvt.s32.f32 %v451
    %v516 = vcvt.s32.f32 %v452
    %v517 = vcvt.s32.f32 %v453
    %v518 = vcvt.s32.f32 %v454
    %v519 = vcvt.s32.f32 %v455
    %v520 = vcvt.s32.f32 %v456
    %v521 = vcvt.s32.f32 %v457
    %v522 = vcvt.s32.f32 %v458
    %v523 = vcvt.s32.f32 %v459
    %v524 = vcvt.s32.f32 %v460
    %v525 = vcvt.s32.f32 %v461
    %v526 = vcvt.s32.f32 %v462
    %v527 = vcvt.s32.f32 %v463
    %v528 = vcvt.s32.f32 %v464
    %v529 = vcvt.s32.f32 %v465
    %v530 = vcvt.s32.f32 %v466
    %v531 = vcvt.s32.f32 %v467
    %v532 = vcvt.s32.f32 %v468
    %v533 = vcvt.s32.f32 %v469
    %v534 = vcvt.s32.f32 %v470
    %v535 = vcvt.s32.f32 %v471
    %v536 = vcvt.s32.f32 %v472
    %v537 = vcvt.s32.f32 %v473
    %v538 = vcvt.s32.f32 %v474
    %v539 = vcvt.s32.f32 %v475
    %v540 = vcvt.s32.f32 %v476
    %v541 = vcvt.s32.f32 %v477
    %v542 = vcvt.s32.f32 %v478
    %v543 = vcvt.s32.f32 %v479
    %v544 = vcvt.s32.f32 %v480
    %545 = vset.pattern.permute.xlu0 1
    %546 = vperm.xlu0 %545, %v95
    %v547 = vpop.permute.xlu0 %546
    %548 = vset.pattern.permute.xlu0 1
    %549 = vperm.xlu0 %548, %v96
    %v550 = vpop.permute.xlu0 %549
    %551 = vset.pattern.permute.xlu0 1
    %552 = vperm.xlu0 %551, %v97
    %v553 = vpop.permute.xlu0 %552
    %554 = vset.pattern.permute.xlu0 1
    %555 = vperm.xlu0 %554, %v98
    %v556 = vpop.permute.xlu0 %555
    %557 = vset.pattern.permute.xlu0 1
    %558 = vperm.xlu0 %557, %v99
    %v559 = vpop.permute.xlu0 %558
    %560 = vset.pattern.permute.xlu0 1
    %561 = vperm.xlu0 %560, %v100
    %v562 = vpop.permute.xlu0 %561
    %563 = vset.pattern.permute.xlu0 1
    %564 = vperm.xlu0 %563, %v101
    %v565 = vpop.permute.xlu0 %564
    %566 = vset.pattern.permute.xlu0 1
    %567 = vperm.xlu0 %566, %v102
    %v568 = vpop.permute.xlu0 %567
    %569 = vset.pattern.permute.xlu0 1
    %570 = vperm.xlu0 %569, %v103
    %v571 = vpop.permute.xlu0 %570
    %572 = vset.pattern.permute.xlu0 1
    %573 = vperm.xlu0 %572, %v104
    %v574 = vpop.permute.xlu0 %573
    %575 = vset.pattern.permute.xlu0 1
    %576 = vperm.xlu0 %575, %v105
    %v577 = vpop.permute.xlu0 %576
    %578 = vset.pattern.permute.xlu0 1
    %579 = vperm.xlu0 %578, %v106
    %v580 = vpop.permute.xlu0 %579
    %581 = vset.pattern.permute.xlu0 1
    %582 = vperm.xlu0 %581, %v107
    %v583 = vpop.permute.xlu0 %582
    %584 = vset.pattern.permute.xlu0 1
    %585 = vperm.xlu0 %584, %v108
    %v586 = vpop.permute.xlu0 %585
    %587 = vset.pattern.permute.xlu0 1
    %588 = vperm.xlu0 %587, %v109
    %v589 = vpop.permute.xlu0 %588
    %590 = vset.pattern.permute.xlu0 1
    %591 = vperm.xlu0 %590, %v110
    %v592 = vpop.permute.xlu0 %591
    %593 = vset.pattern.permute.xlu0 1
    %594 = vperm.xlu0 %593, %v111
    %v595 = vpop.permute.xlu0 %594
    %596 = vset.pattern.permute.xlu0 1
    %597 = vperm.xlu0 %596, %v112
    %v598 = vpop.permute.xlu0 %597
    %599 = vset.pattern.permute.xlu0 1
    %600 = vperm.xlu0 %599, %v113
    %v601 = vpop.permute.xlu0 %600
    %602 = vset.pattern.permute.xlu0 1
    %603 = vperm.xlu0 %602, %v114
    %v604 = vpop.permute.xlu0 %603
    %605 = vset.pattern.permute.xlu0 1
    %606 = vperm.xlu0 %605, %v115
    %v607 = vpop.permute.xlu0 %606
    %608 = vset.pattern.permute.xlu0 1
    %609 = vperm.xlu0 %608, %v116
    %v610 = vpop.permute.xlu0 %609
    %611 = vset.pattern.permute.xlu0 1
    %612 = vperm.xlu0 %611, %v117
    %v613 = vpop.permute.xlu0 %612
    %614 = vset.pattern.permute.xlu0 1
    %615 = vperm.xlu0 %614, %v118
    %v616 = vpop.permute.xlu0 %615
    %617 = vset.pattern.permute.xlu0 1
    %618 = vperm.xlu0 %617, %v119
    %v619 = vpop.permute.xlu0 %618
    %620 = vset.pattern.permute.xlu0 1
    %621 = vperm.xlu0 %620, %v120
    %v622 = vpop.permute.xlu0 %621
    %623 = vset.pattern.permute.xlu0 1
    %624 = vperm.xlu0 %623, %v121
    %v625 = vpop.permute.xlu0 %624
    %626 = vset.pattern.permute.xlu0 1
    %627 = vperm.xlu0 %626, %v122
    %v628 = vpop.permute.xlu0 %627
    %629 = vset.pattern.permute.xlu0 1
    %630 = vperm.xlu0 %629, %v123
    %v631 = vpop.permute.xlu0 %630
    %632 = vset.pattern.permute.xlu0 1
    %633 = vperm.xlu0 %632, %v124
    %v634 = vpop.permute.xlu0 %633
    %635 = vset.pattern.permute.xlu0 1
    %636 = vperm.xlu0 %635, %v125
    %v637 = vpop.permute.xlu0 %636
    %638 = vset.pattern.permute.xlu0 1
    %639 = vperm.xlu0 %638, %v126
    %v640 = vpop.permute.xlu0 %639
    %641 = vset.pattern.permute.xlu0 1
    %642 = vperm.xlu0 %641, %v127
    %v643 = vpop.permute.xlu0 %642
    %644 = vset.pattern.permute.xlu0 1
    %645 = vperm.xlu0 %644, %v128
    %v646 = vpop.permute.xlu0 %645
    %647 = vset.pattern.permute.xlu0 1
    %648 = vperm.xlu0 %647, %v129
    %v649 = vpop.permute.xlu0 %648
    %650 = vset.pattern.permute.xlu0 1
    %651 = vperm.xlu0 %650, %v130
    %v652 = vpop.permute.xlu0 %651
    %653 = vset.pattern.permute.xlu0 1
    %654 = vperm.xlu0 %653, %v131
    %v655 = vpop.permute.xlu0 %654
    %656 = vset.pattern.permute.xlu0 1
    %657 = vperm.xlu0 %656, %v132
    %v658 = vpop.permute.xlu0 %657
    %659 = vset.pattern.permute.xlu0 1
    %660 = vperm.xlu0 %659, %v133
    %v661 = vpop.permute.xlu0 %660
    %662 = vset.pattern.permute.xlu0 1
    %663 = vperm.xlu0 %662, %v134
    %v664 = vpop.permute.xlu0 %663
    %665 = vset.pattern.permute.xlu0 1
    %666 = vperm.xlu0 %665, %v135
    %v667 = vpop.permute.xlu0 %666
    %668 = vset.pattern.permute.xlu0 1
    %669 = vperm.xlu0 %668, %v136
    %v670 = vpop.permute.xlu0 %669
    %671 = vset.pattern.permute.xlu0 1
    %672 = vperm.xlu0 %671, %v137
    %v673 = vpop.permute.xlu0 %672
    %674 = vset.pattern.permute.xlu0 1
    %675 = vperm.xlu0 %674, %v138
    %v676 = vpop.permute.xlu0 %675
    %677 = vset.pattern.permute.xlu0 1
    %678 = vperm.xlu0 %677, %v139
    %v679 = vpop.permute.xlu0 %678
    %680 = vset.pattern.permute.xlu0 1
    %681 = vperm.xlu0 %680, %v140
    %v682 = vpop.permute.xlu0 %681
    %683 = vset.pattern.permute.xlu0 1
    %684 = vperm.xlu0 %683, %v141
    %v685 = vpop.permute.xlu0 %684
    %686 = vset.pattern.permute.xlu0 1
    %687 = vperm.xlu0 %686, %v142
    %v688 = vpop.permute.xlu0 %687
    %689 = vset.pattern.permute.xlu0 1
    %690 = vperm.xlu0 %689, %v143
    %v691 = vpop.permute.xlu0 %690
    %692 = vset.pattern.permute.xlu0 1
    %693 = vperm.xlu0 %692, %v144
    %v694 = vpop.permute.xlu0 %693
    %695 = vset.pattern.permute.xlu0 1
    %696 = vperm.xlu0 %695, %v145
    %v697 = vpop.permute.xlu0 %696
    %698 = vset.pattern.permute.xlu0 1
    %699 = vperm.xlu0 %698, %v146
    %v700 = vpop.permute.xlu0 %699
    %701 = vset.pattern.permute.xlu0 1
    %702 = vperm.xlu0 %701, %v147
    %v703 = vpop.permute.xlu0 %702
    %704 = vset.pattern.permute.xlu0 1
    %705 = vperm.xlu0 %704, %v148
    %v706 = vpop.permute.xlu0 %705
    %707 = vset.pattern.permute.xlu0 1
    %708 = vperm.xlu0 %707, %v149
    %v709 = vpop.permute.xlu0 %708
    %710 = vset.pattern.permute.xlu0 1
    %711 = vperm.xlu0 %710, %v150
    %v712 = vpop.permute.xlu0 %711
    %713 = vset.pattern.permute.xlu0 1
    %714 = vperm.xlu0 %713, %v151
    %v715 = vpop.permute.xlu0 %714
    %716 = vset.pattern.permute.xlu0 1
    %717 = vperm.xlu0 %716, %v152
    %v718 = vpop.permute.xlu0 %717
    %719 = vset.pattern.permute.xlu0 1
    %720 = vperm.xlu0 %719, %v153
    %v721 = vpop.permute.xlu0 %720
    %722 = vset.pattern.permute.xlu0 1
    %723 = vperm.xlu0 %722, %v154
    %v724 = vpop.permute.xlu0 %723
    %725 = vset.pattern.permute.xlu0 1
    %726 = vperm.xlu0 %725, %v155
    %v727 = vpop.permute.xlu0 %726
    %728 = vset.pattern.permute.xlu0 1
    %729 = vperm.xlu0 %728, %v156
    %v730 = vpop.permute.xlu0 %729
    %731 = vset.pattern.permute.xlu0 1
    %732 = vperm.xlu0 %731, %v157
    %v733 = vpop.permute.xlu0 %732
    %734 = vset.pattern.permute.xlu0 1
    %735 = vperm.xlu0 %734, %v158
    %v736 = vpop.permute.xlu0 %735
    %vm737 = vcmp.eq.s32.totalorder %v547, %v160
    %vm738 = vcmp.eq.s32.totalorder %v550, %v160
    %vm739 = vcmp.eq.s32.totalorder %v553, %v160
    %vm740 = vcmp.eq.s32.totalorder %v556, %v160
    %vm741 = vcmp.eq.s32.totalorder %v559, %v160
    %vm742 = vcmp.eq.s32.totalorder %v562, %v160
    %vm743 = vcmp.eq.s32.totalorder %v565, %v160
    %vm744 = vcmp.eq.s32.totalorder %v568, %v160
    %vm745 = vcmp.eq.s32.totalorder %v571, %v160
    %vm746 = vcmp.eq.s32.totalorder %v574, %v160
    %vm747 = vcmp.eq.s32.totalorder %v577, %v160
    %vm748 = vcmp.eq.s32.totalorder %v580, %v160
    %vm749 = vcmp.eq.s32.totalorder %v583, %v160
    %vm750 = vcmp.eq.s32.totalorder %v586, %v160
    %vm751 = vcmp.eq.s32.totalorder %v589, %v160
    %vm752 = vcmp.eq.s32.totalorder %v592, %v160
    %vm753 = vcmp.eq.s32.totalorder %v595, %v160
    %vm754 = vcmp.eq.s32.totalorder %v598, %v160
    %vm755 = vcmp.eq.s32.totalorder %v601, %v160
    %vm756 = vcmp.eq.s32.totalorder %v604, %v160
    %vm757 = vcmp.eq.s32.totalorder %v607, %v160
    %vm758 = vcmp.eq.s32.totalorder %v610, %v160
    %vm759 = vcmp.eq.s32.totalorder %v613, %v160
    %vm760 = vcmp.eq.s32.totalorder %v616, %v160
    %vm761 = vcmp.eq.s32.totalorder %v619, %v160
    %vm762 = vcmp.eq.s32.totalorder %v622, %v160
    %vm763 = vcmp.eq.s32.totalorder %v625, %v160
    %vm764 = vcmp.eq.s32.totalorder %v628, %v160
    %vm765 = vcmp.eq.s32.totalorder %v631, %v160
    %vm766 = vcmp.eq.s32.totalorder %v634, %v160
    %vm767 = vcmp.eq.s32.totalorder %v637, %v160
    %vm768 = vcmp.eq.s32.totalorder %v640, %v160
    %vm769 = vcmp.eq.s32.totalorder %v643, %v160
    %vm770 = vcmp.eq.s32.totalorder %v646, %v160
    %vm771 = vcmp.eq.s32.totalorder %v649, %v160
    %vm772 = vcmp.eq.s32.totalorder %v652, %v160
    %vm773 = vcmp.eq.s32.totalorder %v655, %v160
    %vm774 = vcmp.eq.s32.totalorder %v658, %v160
    %vm775 = vcmp.eq.s32.totalorder %v661, %v160
    %vm776 = vcmp.eq.s32.totalorder %v664, %v160
    %vm777 = vcmp.eq.s32.totalorder %v667, %v160
    %vm778 = vcmp.eq.s32.totalorder %v670, %v160
    %vm779 = vcmp.eq.s32.totalorder %v673, %v160
    %vm780 = vcmp.eq.s32.totalorder %v676, %v160
    %vm781 = vcmp.eq.s32.totalorder %v679, %v160
    %vm782 = vcmp.eq.s32.totalorder %v682, %v160
    %vm783 = vcmp.eq.s32.totalorder %v685, %v160
    %vm784 = vcmp.eq.s32.totalorder %v688, %v160
    %vm785 = vcmp.eq.s32.totalorder %v691, %v160
    %vm786 = vcmp.eq.s32.totalorder %v694, %v160
    %vm787 = vcmp.eq.s32.totalorder %v697, %v160
    %vm788 = vcmp.eq.s32.totalorder %v700, %v160
    %vm789 = vcmp.eq.s32.totalorder %v703, %v160
    %vm790 = vcmp.eq.s32.totalorder %v706, %v160
    %vm791 = vcmp.eq.s32.totalorder %v709, %v160
    %vm792 = vcmp.eq.s32.totalorder %v712, %v160
    %vm793 = vcmp.eq.s32.totalorder %v715, %v160
    %vm794 = vcmp.eq.s32.totalorder %v718, %v160
    %vm795 = vcmp.eq.s32.totalorder %v721, %v160
    %vm796 = vcmp.eq.s32.totalorder %v724, %v160
    %vm797 = vcmp.eq.s32.totalorder %v727, %v160
    %vm798 = vcmp.eq.s32.totalorder %v730, %v160
    %vm799 = vcmp.eq.s32.totalorder %v733, %v160
    %vm800 = vcmp.eq.s32.totalorder %v736, %v160
    %v801 = vsel %vm737, 1, 0
    %v802 = vsel %vm738, 1, 0
    %v803 = vsel %vm739, 1, 0
    %v804 = vsel %vm740, 1, 0
    %v805 = vsel %vm741, 1, 0
    %v806 = vsel %vm742, 1, 0
    %v807 = vsel %vm743, 1, 0
    %v808 = vsel %vm744, 1, 0
    %v809 = vsel %vm745, 1, 0
    %v810 = vsel %vm746, 1, 0
    %v811 = vsel %vm747, 1, 0
    %v812 = vsel %vm748, 1, 0
    %v813 = vsel %vm749, 1, 0
    %v814 = vsel %vm750, 1, 0
    %v815 = vsel %vm751, 1, 0
    %v816 = vsel %vm752, 1, 0
    %v817 = vsel %vm753, 1, 0
    %v818 = vsel %vm754, 1, 0
    %v819 = vsel %vm755, 1, 0
    %v820 = vsel %vm756, 1, 0
    %v821 = vsel %vm757, 1, 0
    %v822 = vsel %vm758, 1, 0
    %v823 = vsel %vm759, 1, 0
    %v824 = vsel %vm760, 1, 0
    %v825 = vsel %vm761, 1, 0
    %v826 = vsel %vm762, 1, 0
    %v827 = vsel %vm763, 1, 0
    %v828 = vsel %vm764, 1, 0
    %v829 = vsel %vm765, 1, 0
    %v830 = vsel %vm766, 1, 0
    %v831 = vsel %vm767, 1, 0
    %v832 = vsel %vm768, 1, 0
    %v833 = vsel %vm769, 1, 0
    %v834 = vsel %vm770, 1, 0
    %v835 = vsel %vm771, 1, 0
    %v836 = vsel %vm772, 1, 0
    %v837 = vsel %vm773, 1, 0
    %v838 = vsel %vm774, 1, 0
    %v839 = vsel %vm775, 1, 0
    %v840 = vsel %vm776, 1, 0
    %v841 = vsel %vm777, 1, 0
    %v842 = vsel %vm778, 1, 0
    %v843 = vsel %vm779, 1, 0
    %v844 = vsel %vm780, 1, 0
    %v845 = vsel %vm781, 1, 0
    %v846 = vsel %vm782, 1, 0
    %v847 = vsel %vm783, 1, 0
    %v848 = vsel %vm784, 1, 0
    %v849 = vsel %vm785, 1, 0
    %v850 = vsel %vm786, 1, 0
    %v851 = vsel %vm787, 1, 0
    %v852 = vsel %vm788, 1, 0
    %v853 = vsel %vm789, 1, 0
    %v854 = vsel %vm790, 1, 0
    %v855 = vsel %vm791, 1, 0
    %v856 = vsel %vm792, 1, 0
    %v857 = vsel %vm793, 1, 0
    %v858 = vsel %vm794, 1, 0
    %v859 = vsel %vm795, 1, 0
    %v860 = vsel %vm796, 1, 0
    %v861 = vsel %vm797, 1, 0
    %v862 = vsel %vm798, 1, 0
    %v863 = vsel %vm799, 1, 0
    %v864 = vsel %vm800, 1, 0
    %v865 = vcvt.s32.f32 %v801
    %v866 = vcvt.s32.f32 %v802
    %v867 = vcvt.s32.f32 %v803
    %v868 = vcvt.s32.f32 %v804
    %v869 = vcvt.s32.f32 %v805
    %v870 = vcvt.s32.f32 %v806
    %v871 = vcvt.s32.f32 %v807
    %v872 = vcvt.s32.f32 %v808
    %v873 = vcvt.s32.f32 %v809
    %v874 = vcvt.s32.f32 %v810
    %v875 = vcvt.s32.f32 %v811
    %v876 = vcvt.s32.f32 %v812
    %v877 = vcvt.s32.f32 %v813
    %v878 = vcvt.s32.f32 %v814
    %v879 = vcvt.s32.f32 %v815
    %v880 = vcvt.s32.f32 %v816
    %v881 = vcvt.s32.f32 %v817
    %v882 = vcvt.s32.f32 %v818
    %v883 = vcvt.s32.f32 %v819
    %v884 = vcvt.s32.f32 %v820
    %v885 = vcvt.s32.f32 %v821
    %v886 = vcvt.s32.f32 %v822
    %v887 = vcvt.s32.f32 %v823
    %v888 = vcvt.s32.f32 %v824
    %v889 = vcvt.s32.f32 %v825
    %v890 = vcvt.s32.f32 %v826
    %v891 = vcvt.s32.f32 %v827
    %v892 = vcvt.s32.f32 %v828
    %v893 = vcvt.s32.f32 %v829
    %v894 = vcvt.s32.f32 %v830
    %v895 = vcvt.s32.f32 %v831
    %v896 = vcvt.s32.f32 %v832
    %v897 = vcvt.s32.f32 %v833
    %v898 = vcvt.s32.f32 %v834
    %v899 = vcvt.s32.f32 %v835
    %v900 = vcvt.s32.f32 %v836
    %v901 = vcvt.s32.f32 %v837
    %v902 = vcvt.s32.f32 %v838
    %v903 = vcvt.s32.f32 %v839
    %v904 = vcvt.s32.f32 %v840
    %v905 = vcvt.s32.f32 %v841
    %v906 = vcvt.s32.f32 %v842
    %v907 = vcvt.s32.f32 %v843
    %v908 = vcvt.s32.f32 %v844
    %v909 = vcvt.s32.f32 %v845
    %v910 = vcvt.s32.f32 %v846
    %v911 = vcvt.s32.f32 %v847
    %v912 = vcvt.s32.f32 %v848
    %v913 = vcvt.s32.f32 %v849
    %v914 = vcvt.s32.f32 %v850
    %v915 = vcvt.s32.f32 %v851
    %v916 = vcvt.s32.f32 %v852
    %v917 = vcvt.s32.f32 %v853
    %v918 = vcvt.s32.f32 %v854
    %v919 = vcvt.s32.f32 %v855
    %v920 = vcvt.s32.f32 %v856
    %v921 = vcvt.s32.f32 %v857
    %v922 = vcvt.s32.f32 %v858
    %v923 = vcvt.s32.f32 %v859
    %v924 = vcvt.s32.f32 %v860
    %v925 = vcvt.s32.f32 %v861
    %v926 = vcvt.s32.f32 %v862
    %v927 = vcvt.s32.f32 %v863
    %v928 = vcvt.s32.f32 %v864
    %v929 = vadd.f32 %v481, %v865
    %v930 = vadd.f32 %v482, %v866
    %v931 = vadd.f32 %v483, %v867
    %v932 = vadd.f32 %v484, %v868
    %v933 = vadd.f32 %v485, %v869
    %v934 = vadd.f32 %v486, %v870
    %v935 = vadd.f32 %v487, %v871
    %v936 = vadd.f32 %v488, %v872
    %v937 = vadd.f32 %v489, %v873
    %v938 = vadd.f32 %v490, %v874
    %v939 = vadd.f32 %v491, %v875
    %v940 = vadd.f32 %v492, %v876
    %v941 = vadd.f32 %v493, %v877
    %v942 = vadd.f32 %v494, %v878
    %v943 = vadd.f32 %v495, %v879
    %v944 = vadd.f32 %v496, %v880
    %v945 = vadd.f32 %v497, %v881
    %v946 = vadd.f32 %v498, %v882
    %v947 = vadd.f32 %v499, %v883
    %v948 = vadd.f32 %v500, %v884
    %v949 = vadd.f32 %v501, %v885
    %v950 = vadd.f32 %v502, %v886
    %v951 = vadd.f32 %v503, %v887
    %v952 = vadd.f32 %v504, %v888
    %v953 = vadd.f32 %v505, %v889
    %v954 = vadd.f32 %v506, %v890
    %v955 = vadd.f32 %v507, %v891
    %v956 = vadd.f32 %v508, %v892
    %v957 = vadd.f32 %v509, %v893
    %v958 = vadd.f32 %v510, %v894
    %v959 = vadd.f32 %v511, %v895
    %v960 = vadd.f32 %v512, %v896
    %v961 = vadd.f32 %v513, %v897
    %v962 = vadd.f32 %v514, %v898
    %v963 = vadd.f32 %v515, %v899
    %v964 = vadd.f32 %v516, %v900
    %v965 = vadd.f32 %v517, %v901
    %v966 = vadd.f32 %v518, %v902
    %v967 = vadd.f32 %v519, %v903
    %v968 = vadd.f32 %v520, %v904
    %v969 = vadd.f32 %v521, %v905
    %v970 = vadd.f32 %v522, %v906
    %v971 = vadd.f32 %v523, %v907
    %v972 = vadd.f32 %v524, %v908
    %v973 = vadd.f32 %v525, %v909
    %v974 = vadd.f32 %v526, %v910
    %v975 = vadd.f32 %v527, %v911
    %v976 = vadd.f32 %v528, %v912
    %v977 = vadd.f32 %v529, %v913
    %v978 = vadd.f32 %v530, %v914
    %v979 = vadd.f32 %v531, %v915
    %v980 = vadd.f32 %v532, %v916
    %v981 = vadd.f32 %v533, %v917
    %v982 = vadd.f32 %v534, %v918
    %v983 = vadd.f32 %v535, %v919
    %v984 = vadd.f32 %v536, %v920
    %v985 = vadd.f32 %v537, %v921
    %v986 = vadd.f32 %v538, %v922
    %v987 = vadd.f32 %v539, %v923
    %v988 = vadd.f32 %v540, %v924
    %v989 = vadd.f32 %v541, %v925
    %v990 = vadd.f32 %v542, %v926
    %v991 = vadd.f32 %v543, %v927
    %v992 = vadd.f32 %v544, %v928
    %993 = vset.pattern.permute.xlu0 2
    %994 = vperm.xlu0 %993, %v31
    %v995 = vpop.permute.xlu0 %994
    %996 = vset.pattern.permute.xlu0 2
    %997 = vperm.xlu0 %996, %v32
    %v998 = vpop.permute.xlu0 %997
    %999 = vset.pattern.permute.xlu0 2
    %1000 = vperm.xlu0 %999, %v33
    %v1001 = vpop.permute.xlu0 %1000
    %1002 = vset.pattern.permute.xlu0 2
    %1003 = vperm.xlu0 %1002, %v34
    %v1004 = vpop.permute.xlu0 %1003
    %1005 = vset.pattern.permute.xlu0 2
    %1006 = vperm.xlu0 %1005, %v35
    %v1007 = vpop.permute.xlu0 %1006
    %1008 = vset.pattern.permute.xlu0 2
    %1009 = vperm.xlu0 %1008, %v36
    %v1010 = vpop.permute.xlu0 %1009
    %1011 = vset.pattern.permute.xlu0 2
    %1012 = vperm.xlu0 %1011, %v37
    %v1013 = vpop.permute.xlu0 %1012
    %1014 = vset.pattern.permute.xlu0 2
    %1015 = vperm.xlu0 %1014, %v38
    %v1016 = vpop.permute.xlu0 %1015
    %1017 = vset.pattern.permute.xlu0 2
    %1018 = vperm.xlu0 %1017, %v39
    %v1019 = vpop.permute.xlu0 %1018
    %1020 = vset.pattern.permute.xlu0 2
    %1021 = vperm.xlu0 %1020, %v40
    %v1022 = vpop.permute.xlu0 %1021
    %1023 = vset.pattern.permute.xlu0 2
    %1024 = vperm.xlu0 %1023, %v41
    %v1025 = vpop.permute.xlu0 %1024
    %1026 = vset.pattern.permute.xlu0 2
    %1027 = vperm.xlu0 %1026, %v42
    %v1028 = vpop.permute.xlu0 %1027
    %1029 = vset.pattern.permute.xlu0 2
    %1030 = vperm.xlu0 %1029, %v43
    %v1031 = vpop.permute.xlu0 %1030
    %1032 = vset.pattern.permute.xlu0 2
    %1033 = vperm.xlu0 %1032, %v44
    %v1034 = vpop.permute.xlu0 %1033
    %1035 = vset.pattern.permute.xlu0 2
    %1036 = vperm.xlu0 %1035, %v45
    %v1037 = vpop.permute.xlu0 %1036
    %1038 = vset.pattern.permute.xlu0 2
    %1039 = vperm.xlu0 %1038, %v46
    %v1040 = vpop.permute.xlu0 %1039
    %1041 = vset.pattern.permute.xlu0 2
    %1042 = vperm.xlu0 %1041, %v47
    %v1043 = vpop.permute.xlu0 %1042
    %1044 = vset.pattern.permute.xlu0 2
    %1045 = vperm.xlu0 %1044, %v48
    %v1046 = vpop.permute.xlu0 %1045
    %1047 = vset.pattern.permute.xlu0 2
    %1048 = vperm.xlu0 %1047, %v49
    %v1049 = vpop.permute.xlu0 %1048
    %1050 = vset.pattern.permute.xlu0 2
    %1051 = vperm.xlu0 %1050, %v50
    %v1052 = vpop.permute.xlu0 %1051
    %1053 = vset.pattern.permute.xlu0 2
    %1054 = vperm.xlu0 %1053, %v51
    %v1055 = vpop.permute.xlu0 %1054
    %1056 = vset.pattern.permute.xlu0 2
    %1057 = vperm.xlu0 %1056, %v52
    %v1058 = vpop.permute.xlu0 %1057
    %1059 = vset.pattern.permute.xlu0 2
    %1060 = vperm.xlu0 %1059, %v53
    %v1061 = vpop.permute.xlu0 %1060
    %1062 = vset.pattern.permute.xlu0 2
    %1063 = vperm.xlu0 %1062, %v54
    %v1064 = vpop.permute.xlu0 %1063
    %1065 = vset.pattern.permute.xlu0 2
    %1066 = vperm.xlu0 %1065, %v55
    %v1067 = vpop.permute.xlu0 %1066
    %1068 = vset.pattern.permute.xlu0 2
    %1069 = vperm.xlu0 %1068, %v56
    %v1070 = vpop.permute.xlu0 %1069
    %1071 = vset.pattern.permute.xlu0 2
    %1072 = vperm.xlu0 %1071, %v57
    %v1073 = vpop.permute.xlu0 %1072
    %1074 = vset.pattern.permute.xlu0 2
    %1075 = vperm.xlu0 %1074, %v58
    %v1076 = vpop.permute.xlu0 %1075
    %1077 = vset.pattern.permute.xlu0 2
    %1078 = vperm.xlu0 %1077, %v59
    %v1079 = vpop.permute.xlu0 %1078
    %1080 = vset.pattern.permute.xlu0 2
    %1081 = vperm.xlu0 %1080, %v60
    %v1082 = vpop.permute.xlu0 %1081
    %1083 = vset.pattern.permute.xlu0 2
    %1084 = vperm.xlu0 %1083, %v61
    %v1085 = vpop.permute.xlu0 %1084
    %1086 = vset.pattern.permute.xlu0 2
    %1087 = vperm.xlu0 %1086, %v62
    %v1088 = vpop.permute.xlu0 %1087
    %1089 = vset.pattern.permute.xlu0 2
    %1090 = vperm.xlu0 %1089, %v63
    %v1091 = vpop.permute.xlu0 %1090
    %1092 = vset.pattern.permute.xlu0 2
    %1093 = vperm.xlu0 %1092, %v64
    %v1094 = vpop.permute.xlu0 %1093
    %1095 = vset.pattern.permute.xlu0 2
    %1096 = vperm.xlu0 %1095, %v65
    %v1097 = vpop.permute.xlu0 %1096
    %1098 = vset.pattern.permute.xlu0 2
    %1099 = vperm.xlu0 %1098, %v66
    %v1100 = vpop.permute.xlu0 %1099
    %1101 = vset.pattern.permute.xlu0 2
    %1102 = vperm.xlu0 %1101, %v67
    %v1103 = vpop.permute.xlu0 %1102
    %1104 = vset.pattern.permute.xlu0 2
    %1105 = vperm.xlu0 %1104, %v68
    %v1106 = vpop.permute.xlu0 %1105
    %1107 = vset.pattern.permute.xlu0 2
    %1108 = vperm.xlu0 %1107, %v69
    %v1109 = vpop.permute.xlu0 %1108
    %1110 = vset.pattern.permute.xlu0 2
    %1111 = vperm.xlu0 %1110, %v70
    %v1112 = vpop.permute.xlu0 %1111
    %1113 = vset.pattern.permute.xlu0 2
    %1114 = vperm.xlu0 %1113, %v71
    %v1115 = vpop.permute.xlu0 %1114
    %1116 = vset.pattern.permute.xlu0 2
    %1117 = vperm.xlu0 %1116, %v72
    %v1118 = vpop.permute.xlu0 %1117
    %1119 = vset.pattern.permute.xlu0 2
    %1120 = vperm.xlu0 %1119, %v73
    %v1121 = vpop.permute.xlu0 %1120
    %1122 = vset.pattern.permute.xlu0 2
    %1123 = vperm.xlu0 %1122, %v74
    %v1124 = vpop.permute.xlu0 %1123
    %1125 = vset.pattern.permute.xlu0 2
    %1126 = vperm.xlu0 %1125, %v75
    %v1127 = vpop.permute.xlu0 %1126
    %1128 = vset.pattern.permute.xlu0 2
    %1129 = vperm.xlu0 %1128, %v76
    %v1130 = vpop.permute.xlu0 %1129
    %1131 = vset.pattern.permute.xlu0 2
    %1132 = vperm.xlu0 %1131, %v77
    %v1133 = vpop.permute.xlu0 %1132
    %1134 = vset.pattern.permute.xlu0 2
    %1135 = vperm.xlu0 %1134, %v78
    %v1136 = vpop.permute.xlu0 %1135
    %1137 = vset.pattern.permute.xlu0 2
    %1138 = vperm.xlu0 %1137, %v79
    %v1139 = vpop.permute.xlu0 %1138
    %1140 = vset.pattern.permute.xlu0 2
    %1141 = vperm.xlu0 %1140, %v80
    %v1142 = vpop.permute.xlu0 %1141
    %1143 = vset.pattern.permute.xlu0 2
    %1144 = vperm.xlu0 %1143, %v81
    %v1145 = vpop.permute.xlu0 %1144
    %1146 = vset.pattern.permute.xlu0 2
    %1147 = vperm.xlu0 %1146, %v82
    %v1148 = vpop.permute.xlu0 %1147
    %1149 = vset.pattern.permute.xlu0 2
    %1150 = vperm.xlu0 %1149, %v83
    %v1151 = vpop.permute.xlu0 %1150
    %1152 = vset.pattern.permute.xlu0 2
    %1153 = vperm.xlu0 %1152, %v84
    %v1154 = vpop.permute.xlu0 %1153
    %1155 = vset.pattern.permute.xlu0 2
    %1156 = vperm.xlu0 %1155, %v85
    %v1157 = vpop.permute.xlu0 %1156
    %1158 = vset.pattern.permute.xlu0 2
    %1159 = vperm.xlu0 %1158, %v86
    %v1160 = vpop.permute.xlu0 %1159
    %1161 = vset.pattern.permute.xlu0 2
    %1162 = vperm.xlu0 %1161, %v87
    %v1163 = vpop.permute.xlu0 %1162
    %1164 = vset.pattern.permute.xlu0 2
    %1165 = vperm.xlu0 %1164, %v88
    %v1166 = vpop.permute.xlu0 %1165
    %1167 = vset.pattern.permute.xlu0 2
    %1168 = vperm.xlu0 %1167, %v89
    %v1169 = vpop.permute.xlu0 %1168
    %1170 = vset.pattern.permute.xlu0 2
    %1171 = vperm.xlu0 %1170, %v90
    %v1172 = vpop.permute.xlu0 %1171
    %1173 = vset.pattern.permute.xlu0 2
    %1174 = vperm.xlu0 %1173, %v91
    %v1175 = vpop.permute.xlu0 %1174
    %1176 = vset.pattern.permute.xlu0 2
    %1177 = vperm.xlu0 %1176, %v92
    %v1178 = vpop.permute.xlu0 %1177
    %1179 = vset.pattern.permute.xlu0 2
    %1180 = vperm.xlu0 %1179, %v93
    %v1181 = vpop.permute.xlu0 %1180
    %1182 = vset.pattern.permute.xlu0 2
    %1183 = vperm.xlu0 %1182, %v94
    %v1184 = vpop.permute.xlu0 %1183
    %vm1185 = vcmp.eq.s32.totalorder %v995, %v160
    %vm1186 = vcmp.eq.s32.totalorder %v998, %v160
    %vm1187 = vcmp.eq.s32.totalorder %v1001, %v160
    %vm1188 = vcmp.eq.s32.totalorder %v1004, %v160
    %vm1189 = vcmp.eq.s32.totalorder %v1007, %v160
    %vm1190 = vcmp.eq.s32.totalorder %v1010, %v160
    %vm1191 = vcmp.eq.s32.totalorder %v1013, %v160
    %vm1192 = vcmp.eq.s32.totalorder %v1016, %v160
    %vm1193 = vcmp.eq.s32.totalorder %v1019, %v160
    %vm1194 = vcmp.eq.s32.totalorder %v1022, %v160
    %vm1195 = vcmp.eq.s32.totalorder %v1025, %v160
    %vm1196 = vcmp.eq.s32.totalorder %v1028, %v160
    %vm1197 = vcmp.eq.s32.totalorder %v1031, %v160
    %vm1198 = vcmp.eq.s32.totalorder %v1034, %v160
    %vm1199 = vcmp.eq.s32.totalorder %v1037, %v160
    %vm1200 = vcmp.eq.s32.totalorder %v1040, %v160
    %vm1201 = vcmp.eq.s32.totalorder %v1043, %v160
    %vm1202 = vcmp.eq.s32.totalorder %v1046, %v160
    %vm1203 = vcmp.eq.s32.totalorder %v1049, %v160
    %vm1204 = vcmp.eq.s32.totalorder %v1052, %v160
    %vm1205 = vcmp.eq.s32.totalorder %v1055, %v160
    %vm1206 = vcmp.eq.s32.totalorder %v1058, %v160
    %vm1207 = vcmp.eq.s32.totalorder %v1061, %v160
    %vm1208 = vcmp.eq.s32.totalorder %v1064, %v160
    %vm1209 = vcmp.eq.s32.totalorder %v1067, %v160
    %vm1210 = vcmp.eq.s32.totalorder %v1070, %v160
    %vm1211 = vcmp.eq.s32.totalorder %v1073, %v160
    %vm1212 = vcmp.eq.s32.totalorder %v1076, %v160
    %vm1213 = vcmp.eq.s32.totalorder %v1079, %v160
    %vm1214 = vcmp.eq.s32.totalorder %v1082, %v160
    %vm1215 = vcmp.eq.s32.totalorder %v1085, %v160
    %vm1216 = vcmp.eq.s32.totalorder %v1088, %v160
    %vm1217 = vcmp.eq.s32.totalorder %v1091, %v160
    %vm1218 = vcmp.eq.s32.totalorder %v1094, %v160
    %vm1219 = vcmp.eq.s32.totalorder %v1097, %v160
    %vm1220 = vcmp.eq.s32.totalorder %v1100, %v160
    %vm1221 = vcmp.eq.s32.totalorder %v1103, %v160
    %vm1222 = vcmp.eq.s32.totalorder %v1106, %v160
    %vm1223 = vcmp.eq.s32.totalorder %v1109, %v160
    %vm1224 = vcmp.eq.s32.totalorder %v1112, %v160
    %vm1225 = vcmp.eq.s32.totalorder %v1115, %v160
    %vm1226 = vcmp.eq.s32.totalorder %v1118, %v160
    %vm1227 = vcmp.eq.s32.totalorder %v1121, %v160
    %vm1228 = vcmp.eq.s32.totalorder %v1124, %v160
    %vm1229 = vcmp.eq.s32.totalorder %v1127, %v160
    %vm1230 = vcmp.eq.s32.totalorder %v1130, %v160
    %vm1231 = vcmp.eq.s32.totalorder %v1133, %v160
    %vm1232 = vcmp.eq.s32.totalorder %v1136, %v160
    %vm1233 = vcmp.eq.s32.totalorder %v1139, %v160
    %vm1234 = vcmp.eq.s32.totalorder %v1142, %v160
    %vm1235 = vcmp.eq.s32.totalorder %v1145, %v160
    %vm1236 = vcmp.eq.s32.totalorder %v1148, %v160
    %vm1237 = vcmp.eq.s32.totalorder %v1151, %v160
    %vm1238 = vcmp.eq.s32.totalorder %v1154, %v160
    %vm1239 = vcmp.eq.s32.totalorder %v1157, %v160
    %vm1240 = vcmp.eq.s32.totalorder %v1160, %v160
    %vm1241 = vcmp.eq.s32.totalorder %v1163, %v160
    %vm1242 = vcmp.eq.s32.totalorder %v1166, %v160
    %vm1243 = vcmp.eq.s32.totalorder %v1169, %v160
    %vm1244 = vcmp.eq.s32.totalorder %v1172, %v160
    %vm1245 = vcmp.eq.s32.totalorder %v1175, %v160
    %vm1246 = vcmp.eq.s32.totalorder %v1178, %v160
    %vm1247 = vcmp.eq.s32.totalorder %v1181, %v160
    %vm1248 = vcmp.eq.s32.totalorder %v1184, %v160
    %v1249 = vsel %vm1185, 1, 0
    %v1250 = vsel %vm1186, 1, 0
    %v1251 = vsel %vm1187, 1, 0
    %v1252 = vsel %vm1188, 1, 0
    %v1253 = vsel %vm1189, 1, 0
    %v1254 = vsel %vm1190, 1, 0
    %v1255 = vsel %vm1191, 1, 0
    %v1256 = vsel %vm1192, 1, 0
    %v1257 = vsel %vm1193, 1, 0
    %v1258 = vsel %vm1194, 1, 0
    %v1259 = vsel %vm1195, 1, 0
    %v1260 = vsel %vm1196, 1, 0
    %v1261 = vsel %vm1197, 1, 0
    %v1262 = vsel %vm1198, 1, 0
    %v1263 = vsel %vm1199, 1, 0
    %v1264 = vsel %vm1200, 1, 0
    %v1265 = vsel %vm1201, 1, 0
    %v1266 = vsel %vm1202, 1, 0
    %v1267 = vsel %vm1203, 1, 0
    %v1268 = vsel %vm1204, 1, 0
    %v1269 = vsel %vm1205, 1, 0
    %v1270 = vsel %vm1206, 1, 0
    %v1271 = vsel %vm1207, 1, 0
    %v1272 = vsel %vm1208, 1, 0
    %v1273 = vsel %vm1209, 1, 0
    %v1274 = vsel %vm1210, 1, 0
    %v1275 = vsel %vm1211, 1, 0
    %v1276 = vsel %vm1212, 1, 0
    %v1277 = vsel %vm1213, 1, 0
    %v1278 = vsel %vm1214, 1, 0
    %v1279 = vsel %vm1215, 1, 0
    %v1280 = vsel %vm1216, 1, 0
    %v1281 = vsel %vm1217, 1, 0
    %v1282 = vsel %vm1218, 1, 0
    %v1283 = vsel %vm1219, 1, 0
    %v1284 = vsel %vm1220, 1, 0
    %v1285 = vsel %vm1221, 1, 0
    %v1286 = vsel %vm1222, 1, 0
    %v1287 = vsel %vm1223, 1, 0
    %v1288 = vsel %vm1224, 1, 0
    %v1289 = vsel %vm1225, 1, 0
    %v1290 = vsel %vm1226, 1, 0
    %v1291 = vsel %vm1227, 1, 0
    %v1292 = vsel %vm1228, 1, 0
    %v1293 = vsel %vm1229, 1, 0
    %v1294 = vsel %vm1230, 1, 0
    %v1295 = vsel %vm1231, 1, 0
    %v1296 = vsel %vm1232, 1, 0
    %v1297 = vsel %vm1233, 1, 0
    %v1298 = vsel %vm1234, 1, 0
    %v1299 = vsel %vm1235, 1, 0
    %v1300 = vsel %vm1236, 1, 0
    %v1301 = vsel %vm1237, 1, 0
    %v1302 = vsel %vm1238, 1, 0
    %v1303 = vsel %vm1239, 1, 0
    %v1304 = vsel %vm1240, 1, 0
    %v1305 = vsel %vm1241, 1, 0
    %v1306 = vsel %vm1242, 1, 0
    %v1307 = vsel %vm1243, 1, 0
    %v1308 = vsel %vm1244, 1, 0
    %v1309 = vsel %vm1245, 1, 0
    %v1310 = vsel %vm1246, 1, 0
    %v1311 = vsel %vm1247, 1, 0
    %v1312 = vsel %vm1248, 1, 0
    %v1313 = vcvt.s32.f32 %v1249
    %v1314 = vcvt.s32.f32 %v1250
    %v1315 = vcvt.s32.f32 %v1251
    %v1316 = vcvt.s32.f32 %v1252
    %v1317 = vcvt.s32.f32 %v1253
    %v1318 = vcvt.s32.f32 %v1254
    %v1319 = vcvt.s32.f32 %v1255
    %v1320 = vcvt.s32.f32 %v1256
    %v1321 = vcvt.s32.f32 %v1257
    %v1322 = vcvt.s32.f32 %v1258
    %v1323 = vcvt.s32.f32 %v1259
    %v1324 = vcvt.s32.f32 %v1260
    %v1325 = vcvt.s32.f32 %v1261
    %v1326 = vcvt.s32.f32 %v1262
    %v1327 = vcvt.s32.f32 %v1263
    %v1328 = vcvt.s32.f32 %v1264
    %v1329 = vcvt.s32.f32 %v1265
    %v1330 = vcvt.s32.f32 %v1266
    %v1331 = vcvt.s32.f32 %v1267
    %v1332 = vcvt.s32.f32 %v1268
    %v1333 = vcvt.s32.f32 %v1269
    %v1334 = vcvt.s32.f32 %v1270
    %v1335 = vcvt.s32.f32 %v1271
    %v1336 = vcvt.s32.f32 %v1272
    %v1337 = vcvt.s32.f32 %v1273
    %v1338 = vcvt.s32.f32 %v1274
    %v1339 = vcvt.s32.f32 %v1275
    %v1340 = vcvt.s32.f32 %v1276
    %v1341 = vcvt.s32.f32 %v1277
    %v1342 = vcvt.s32.f32 %v1278
    %v1343 = vcvt.s32.f32 %v1279
    %v1344 = vcvt.s32.f32 %v1280
    %v1345 = vcvt.s32.f32 %v1281
    %v1346 = vcvt.s32.f32 %v1282
    %v1347 = vcvt.s32.f32 %v1283
    %v1348 = vcvt.s32.f32 %v1284
    %v1349 = vcvt.s32.f32 %v1285
    %v1350 = vcvt.s32.f32 %v1286
    %v1351 = vcvt.s32.f32 %v1287
    %v1352 = vcvt.s32.f32 %v1288
    %v1353 = vcvt.s32.f32 %v1289
    %v1354 = vcvt.s32.f32 %v1290
    %v1355 = vcvt.s32.f32 %v1291
    %v1356 = vcvt.s32.f32 %v1292
    %v1357 = vcvt.s32.f32 %v1293
    %v1358 = vcvt.s32.f32 %v1294
    %v1359 = vcvt.s32.f32 %v1295
    %v1360 = vcvt.s32.f32 %v1296
    %v1361 = vcvt.s32.f32 %v1297
    %v1362 = vcvt.s32.f32 %v1298
    %v1363 = vcvt.s32.f32 %v1299
    %v1364 = vcvt.s32.f32 %v1300
    %v1365 = vcvt.s32.f32 %v1301
    %v1366 = vcvt.s32.f32 %v1302
    %v1367 = vcvt.s32.f32 %v1303
    %v1368 = vcvt.s32.f32 %v1304
    %v1369 = vcvt.s32.f32 %v1305
    %v1370 = vcvt.s32.f32 %v1306
    %v1371 = vcvt.s32.f32 %v1307
    %v1372 = vcvt.s32.f32 %v1308
    %v1373 = vcvt.s32.f32 %v1309
    %v1374 = vcvt.s32.f32 %v1310
    %v1375 = vcvt.s32.f32 %v1311
    %v1376 = vcvt.s32.f32 %v1312
    %v1377 = vsub.f32 %v929, %v1313
    %v1378 = vsub.f32 %v930, %v1314
    %v1379 = vsub.f32 %v931, %v1315
    %v1380 = vsub.f32 %v932, %v1316
    %v1381 = vsub.f32 %v933, %v1317
    %v1382 = vsub.f32 %v934, %v1318
    %v1383 = vsub.f32 %v935, %v1319
    %v1384 = vsub.f32 %v936, %v1320
    %v1385 = vsub.f32 %v937, %v1321
    %v1386 = vsub.f32 %v938, %v1322
    %v1387 = vsub.f32 %v939, %v1323
    %v1388 = vsub.f32 %v940, %v1324
    %v1389 = vsub.f32 %v941, %v1325
    %v1390 = vsub.f32 %v942, %v1326
    %v1391 = vsub.f32 %v943, %v1327
    %v1392 = vsub.f32 %v944, %v1328
    %v1393 = vsub.f32 %v945, %v1329
    %v1394 = vsub.f32 %v946, %v1330
    %v1395 = vsub.f32 %v947, %v1331
    %v1396 = vsub.f32 %v948, %v1332
    %v1397 = vsub.f32 %v949, %v1333
    %v1398 = vsub.f32 %v950, %v1334
    %v1399 = vsub.f32 %v951, %v1335
    %v1400 = vsub.f32 %v952, %v1336
    %v1401 = vsub.f32 %v953, %v1337
    %v1402 = vsub.f32 %v954, %v1338
    %v1403 = vsub.f32 %v955, %v1339
    %v1404 = vsub.f32 %v956, %v1340
    %v1405 = vsub.f32 %v957, %v1341
    %v1406 = vsub.f32 %v958, %v1342
    %v1407 = vsub.f32 %v959, %v1343
    %v1408 = vsub.f32 %v960, %v1344
    %v1409 = vsub.f32 %v961, %v1345
    %v1410 = vsub.f32 %v962, %v1346
    %v1411 = vsub.f32 %v963, %v1347
    %v1412 = vsub.f32 %v964, %v1348
    %v1413 = vsub.f32 %v965, %v1349
    %v1414 = vsub.f32 %v966, %v1350
    %v1415 = vsub.f32 %v967, %v1351
    %v1416 = vsub.f32 %v968, %v1352
    %v1417 = vsub.f32 %v969, %v1353
    %v1418 = vsub.f32 %v970, %v1354
    %v1419 = vsub.f32 %v971, %v1355
    %v1420 = vsub.f32 %v972, %v1356
    %v1421 = vsub.f32 %v973, %v1357
    %v1422 = vsub.f32 %v974, %v1358
    %v1423 = vsub.f32 %v975, %v1359
    %v1424 = vsub.f32 %v976, %v1360
    %v1425 = vsub.f32 %v977, %v1361
    %v1426 = vsub.f32 %v978, %v1362
    %v1427 = vsub.f32 %v979, %v1363
    %v1428 = vsub.f32 %v980, %v1364
    %v1429 = vsub.f32 %v981, %v1365
    %v1430 = vsub.f32 %v982, %v1366
    %v1431 = vsub.f32 %v983, %v1367
    %v1432 = vsub.f32 %v984, %v1368
    %v1433 = vsub.f32 %v985, %v1369
    %v1434 = vsub.f32 %v986, %v1370
    %v1435 = vsub.f32 %v987, %v1371
    %v1436 = vsub.f32 %v988, %v1372
    %v1437 = vsub.f32 %v989, %v1373
    %v1438 = vsub.f32 %v990, %v1374
    %v1439 = vsub.f32 %v991, %v1375
    %v1440 = vsub.f32 %v992, %v1376
    %1441 = vmatprep.subr.mxu0 0.0
    %1442 = vmatpush1.msra.mxu0 %v30
    %1443 = vmatprep.subr.mxu0 0.0
    %1444 = vmatpush1.msra.mxu0 %v29
    %1445 = vmatprep.subr.mxu0 0.0
    %1446 = vmatpush1.msra.mxu0 %v28
    %1447 = vmatprep.subr.mxu0 0.0
    %1448 = vmatpush1.msra.mxu0 %v27
    %1449 = vmatprep.subr.mxu0 0.0
    %1450 = vmatpush1.msra.mxu0 %v26
    %1451 = vmatprep.subr.mxu0 0.0
    %1452 = vmatpush1.msra.mxu0 %v25
    %1453 = vmatprep.subr.mxu0 0.0
    %1454 = vmatpush1.msra.mxu0 %v24
    %1455 = vmatprep.subr.mxu0 0.0
    %1456 = vmatpush1.msra.mxu0 %v23
    %1457 = vmatprep.subr.mxu0 0.0
    %1458 = vmatpush1.msra.mxu0 %v22
    %1459 = vmatprep.subr.mxu0 0.0
    %1460 = vmatpush1.msra.mxu0 %v21
    %1461 = vmatprep.subr.mxu0 0.0
    %1462 = vmatpush1.msra.mxu0 %v20
    %1463 = vmatprep.subr.mxu0 0.0
    %1464 = vmatpush1.msra.mxu0 %v19
    %1465 = vmatprep.subr.mxu0 0.0
    %1466 = vmatpush1.msra.mxu0 %v18
    %1467 = vmatprep.subr.mxu0 0.0
    %1468 = vmatpush1.msra.mxu0 %v17
    %1469 = vmatprep.subr.mxu0 0.0
    %1470 = vmatpush1.msra.mxu0 %v16
    %1471 = vmatprep.subr.mxu0 0.0
    %1472 = vmatpush1.msra.mxu0 %v15
    %1473 = vmatprep.subr.mxu0 0.0
    %1474 = vmatpush2.msra.mxu0 0.0
    %1475 = vmatprep.subr.mxu0 0.0
    %1476 = vmatpush2.msra.mxu0 0.0
    %1477 = vmatprep.subr.mxu0 0.0
    %1478 = vmatpush2.msra.mxu0 0.0
    %1479 = vmatprep.subr.mxu0 0.0
    %1480 = vmatpush2.msra.mxu0 0.0
    %1481 = vmatprep.subr.mxu0 0.0
    %1482 = vmatpush2.msra.mxu0 0.0
    %1483 = vmatprep.subr.mxu0 0.0
    %1484 = vmatpush2.msra.mxu0 0.0
    %1485 = vmatprep.subr.mxu0 0.0
    %1486 = vmatpush2.msra.mxu0 0.0
    %1487 = vmatprep.subr.mxu0 0.0
    %1488 = vmatpush2.msra.mxu0 0.0
    %1489 = vmatprep.subr.mxu0 0.0
    %1490 = vmatpush2.msra.mxu0 0.0
    %1491 = vmatprep.subr.mxu0 0.0
    %1492 = vmatpush2.msra.mxu0 0.0
    %1493 = vmatprep.subr.mxu0 0.0
    %1494 = vmatpush2.msra.mxu0 0.0
    %1495 = vmatprep.subr.mxu0 0.0
    %1496 = vmatpush2.msra.mxu0 0.0
    %1497 = vmatprep.subr.mxu0 0.0
    %1498 = vmatpush2.msra.mxu0 0.0
    %1499 = vmatprep.subr.mxu0 0.0
    %1500 = vmatpush2.msra.mxu0 0.0
    %1501 = vmatprep.subr.mxu0 0.0
    %1502 = vmatpush2.msra.mxu0 0.0
    %1503 = vmatprep.subr.mxu0 0.0
    %1504 = vmatpush2.msra.mxu0 0.0
    %1505 = vmatprep.mubr.f32.mxu0 0.0
    %1506 = vmatmul.mubr.f32.gmra.mxu0 %v1377
    %v1507 = vpop.f32.mrf.mxu0
    %v1508 = vadd.f32 0.0, %v1507
    %v1509 = vpop.f32.mrf.mxu0
    %1510 = vmatprep.mubr.f32.mxu0 0.0
    %1511 = vmatmul.mubr.f32.gmra.mxu0 %v1378
    %v1512 = vpop.f32.mrf.mxu0
    %v1513 = vadd.f32 0.0, %v1512
    %v1514 = vpop.f32.mrf.mxu0
    %1515 = vmatprep.mubr.f32.mxu0 0.0
    %1516 = vmatmul.mubr.f32.gmra.mxu0 %v1379
    %v1517 = vpop.f32.mrf.mxu0
    %v1518 = vadd.f32 0.0, %v1517
    %v1519 = vpop.f32.mrf.mxu0
    %1520 = vmatprep.mubr.f32.mxu0 0.0
    %1521 = vmatmul.mubr.f32.gmra.mxu0 %v1380
    %v1522 = vpop.f32.mrf.mxu0
    %v1523 = vadd.f32 0.0, %v1522
    %v1524 = vpop.f32.mrf.mxu0
    %1525 = vmatprep.mubr.f32.mxu0 0.0
    %1526 = vmatmul.mubr.f32.gmra.mxu0 %v1381
    %v1527 = vpop.f32.mrf.mxu0
    %v1528 = vadd.f32 0.0, %v1527
    %v1529 = vpop.f32.mrf.mxu0
    %1530 = vmatprep.mubr.f32.mxu0 0.0
    %1531 = vmatmul.mubr.f32.gmra.mxu0 %v1382
    %v1532 = vpop.f32.mrf.mxu0
    %v1533 = vadd.f32 0.0, %v1532
    %v1534 = vpop.f32.mrf.mxu0
    %1535 = vmatprep.mubr.f32.mxu0 0.0
    %1536 = vmatmul.mubr.f32.gmra.mxu0 %v1383
    %v1537 = vpop.f32.mrf.mxu0
    %v1538 = vadd.f32 0.0, %v1537
    %v1539 = vpop.f32.mrf.mxu0
    %1540 = vmatprep.mubr.f32.mxu0 0.0
    %1541 = vmatmul.mubr.f32.gmra.mxu0 %v1384
    %v1542 = vpop.f32.mrf.mxu0
    %v1543 = vadd.f32 0.0, %v1542
    %v1544 = vpop.f32.mrf.mxu0
    %1545 = vmatprep.mubr.f32.mxu0 0.0
    %1546 = vmatmul.mubr.f32.gmra.mxu0 %v1385
    %v1547 = vpop.f32.mrf.mxu0
    %v1548 = vadd.f32 0.0, %v1547
    %v1549 = vpop.f32.mrf.mxu0
    %1550 = vmatprep.mubr.f32.mxu0 0.0
    %1551 = vmatmul.mubr.f32.gmra.mxu0 %v1386
    %v1552 = vpop.f32.mrf.mxu0
    %v1553 = vadd.f32 0.0, %v1552
    %v1554 = vpop.f32.mrf.mxu0
    %1555 = vmatprep.mubr.f32.mxu0 0.0
    %1556 = vmatmul.mubr.f32.gmra.mxu0 %v1387
    %v1557 = vpop.f32.mrf.mxu0
    %v1558 = vadd.f32 0.0, %v1557
    %v1559 = vpop.f32.mrf.mxu0
    %1560 = vmatprep.mubr.f32.mxu0 0.0
    %1561 = vmatmul.mubr.f32.gmra.mxu0 %v1388
    %v1562 = vpop.f32.mrf.mxu0
    %v1563 = vadd.f32 0.0, %v1562
    %v1564 = vpop.f32.mrf.mxu0
    %1565 = vmatprep.mubr.f32.mxu0 0.0
    %1566 = vmatmul.mubr.f32.gmra.mxu0 %v1389
    %v1567 = vpop.f32.mrf.mxu0
    %v1568 = vadd.f32 0.0, %v1567
    %v1569 = vpop.f32.mrf.mxu0
    %1570 = vmatprep.mubr.f32.mxu0 0.0
    %1571 = vmatmul.mubr.f32.gmra.mxu0 %v1390
    %v1572 = vpop.f32.mrf.mxu0
    %v1573 = vadd.f32 0.0, %v1572
    %v1574 = vpop.f32.mrf.mxu0
    %1575 = vmatprep.mubr.f32.mxu0 0.0
    %1576 = vmatmul.mubr.f32.gmra.mxu0 %v1391
    %v1577 = vpop.f32.mrf.mxu0
    %v1578 = vadd.f32 0.0, %v1577
    %v1579 = vpop.f32.mrf.mxu0
    %1580 = vmatprep.mubr.f32.mxu0 0.0
    %1581 = vmatmul.mubr.f32.gmra.mxu0 %v1392
    %v1582 = vpop.f32.mrf.mxu0
    %v1583 = vadd.f32 0.0, %v1582
    %v1584 = vpop.f32.mrf.mxu0
    %1585 = vmatprep.mubr.f32.mxu0 0.0
    %1586 = vmatmul.mubr.f32.gmra.mxu0 %v1393
    %v1587 = vpop.f32.mrf.mxu0
    %v1588 = vadd.f32 0.0, %v1587
    %v1589 = vpop.f32.mrf.mxu0
    %1590 = vmatprep.mubr.f32.mxu0 0.0
    %1591 = vmatmul.mubr.f32.gmra.mxu0 %v1394
    %v1592 = vpop.f32.mrf.mxu0
    %v1593 = vadd.f32 0.0, %v1592
    %v1594 = vpop.f32.mrf.mxu0
    %1595 = vmatprep.mubr.f32.mxu0 0.0
    %1596 = vmatmul.mubr.f32.gmra.mxu0 %v1395
    %v1597 = vpop.f32.mrf.mxu0
    %v1598 = vadd.f32 0.0, %v1597
    %v1599 = vpop.f32.mrf.mxu0
    %1600 = vmatprep.mubr.f32.mxu0 0.0
    %1601 = vmatmul.mubr.f32.gmra.mxu0 %v1396
    %v1602 = vpop.f32.mrf.mxu0
    %v1603 = vadd.f32 0.0, %v1602
    %v1604 = vpop.f32.mrf.mxu0
    %1605 = vmatprep.mubr.f32.mxu0 0.0
    %1606 = vmatmul.mubr.f32.gmra.mxu0 %v1397
    %v1607 = vpop.f32.mrf.mxu0
    %v1608 = vadd.f32 0.0, %v1607
    %v1609 = vpop.f32.mrf.mxu0
    %1610 = vmatprep.mubr.f32.mxu0 0.0
    %1611 = vmatmul.mubr.f32.gmra.mxu0 %v1398
    %v1612 = vpop.f32.mrf.mxu0
    %v1613 = vadd.f32 0.0, %v1612
    %v1614 = vpop.f32.mrf.mxu0
    %1615 = vmatprep.mubr.f32.mxu0 0.0
    %1616 = vmatmul.mubr.f32.gmra.mxu0 %v1399
    %v1617 = vpop.f32.mrf.mxu0
    %v1618 = vadd.f32 0.0, %v1617
    %v1619 = vpop.f32.mrf.mxu0
    %1620 = vmatprep.mubr.f32.mxu0 0.0
    %1621 = vmatmul.mubr.f32.gmra.mxu0 %v1400
    %v1622 = vpop.f32.mrf.mxu0
    %v1623 = vadd.f32 0.0, %v1622
    %v1624 = vpop.f32.mrf.mxu0
    %1625 = vmatprep.mubr.f32.mxu0 0.0
    %1626 = vmatmul.mubr.f32.gmra.mxu0 %v1401
    %v1627 = vpop.f32.mrf.mxu0
    %v1628 = vadd.f32 0.0, %v1627
    %v1629 = vpop.f32.mrf.mxu0
    %1630 = vmatprep.mubr.f32.mxu0 0.0
    %1631 = vmatmul.mubr.f32.gmra.mxu0 %v1402
    %v1632 = vpop.f32.mrf.mxu0
    %v1633 = vadd.f32 0.0, %v1632
    %v1634 = vpop.f32.mrf.mxu0
    %1635 = vmatprep.mubr.f32.mxu0 0.0
    %1636 = vmatmul.mubr.f32.gmra.mxu0 %v1403
    %v1637 = vpop.f32.mrf.mxu0
    %v1638 = vadd.f32 0.0, %v1637
    %v1639 = vpop.f32.mrf.mxu0
    %1640 = vmatprep.mubr.f32.mxu0 0.0
    %1641 = vmatmul.mubr.f32.gmra.mxu0 %v1404
    %v1642 = vpop.f32.mrf.mxu0
    %v1643 = vadd.f32 0.0, %v1642
    %v1644 = vpop.f32.mrf.mxu0
    %1645 = vmatprep.mubr.f32.mxu0 0.0
    %1646 = vmatmul.mubr.f32.gmra.mxu0 %v1405
    %v1647 = vpop.f32.mrf.mxu0
    %v1648 = vadd.f32 0.0, %v1647
    %v1649 = vpop.f32.mrf.mxu0
    %1650 = vmatprep.mubr.f32.mxu0 0.0
    %1651 = vmatmul.mubr.f32.gmra.mxu0 %v1406
    %v1652 = vpop.f32.mrf.mxu0
    %v1653 = vadd.f32 0.0, %v1652
    %v1654 = vpop.f32.mrf.mxu0
    %1655 = vmatprep.mubr.f32.mxu0 0.0
    %1656 = vmatmul.mubr.f32.gmra.mxu0 %v1407
    %v1657 = vpop.f32.mrf.mxu0
    %v1658 = vadd.f32 0.0, %v1657
    %v1659 = vpop.f32.mrf.mxu0
    %1660 = vmatprep.mubr.f32.mxu0 0.0
    %1661 = vmatmul.mubr.f32.gmra.mxu0 %v1408
    %v1662 = vpop.f32.mrf.mxu0
    %v1663 = vadd.f32 0.0, %v1662
    %v1664 = vpop.f32.mrf.mxu0
    %1665 = vmatprep.mubr.f32.mxu0 0.0
    %1666 = vmatmul.mubr.f32.gmra.mxu0 %v1409
    %v1667 = vpop.f32.mrf.mxu0
    %v1668 = vadd.f32 0.0, %v1667
    %v1669 = vpop.f32.mrf.mxu0
    %1670 = vmatprep.mubr.f32.mxu0 0.0
    %1671 = vmatmul.mubr.f32.gmra.mxu0 %v1410
    %v1672 = vpop.f32.mrf.mxu0
    %v1673 = vadd.f32 0.0, %v1672
    %v1674 = vpop.f32.mrf.mxu0
    %1675 = vmatprep.mubr.f32.mxu0 0.0
    %1676 = vmatmul.mubr.f32.gmra.mxu0 %v1411
    %v1677 = vpop.f32.mrf.mxu0
    %v1678 = vadd.f32 0.0, %v1677
    %v1679 = vpop.f32.mrf.mxu0
    %1680 = vmatprep.mubr.f32.mxu0 0.0
    %1681 = vmatmul.mubr.f32.gmra.mxu0 %v1412
    %v1682 = vpop.f32.mrf.mxu0
    %v1683 = vadd.f32 0.0, %v1682
    %v1684 = vpop.f32.mrf.mxu0
    %1685 = vmatprep.mubr.f32.mxu0 0.0
    %1686 = vmatmul.mubr.f32.gmra.mxu0 %v1413
    %v1687 = vpop.f32.mrf.mxu0
    %v1688 = vadd.f32 0.0, %v1687
    %v1689 = vpop.f32.mrf.mxu0
    %1690 = vmatprep.mubr.f32.mxu0 0.0
    %1691 = vmatmul.mubr.f32.gmra.mxu0 %v1414
    %v1692 = vpop.f32.mrf.mxu0
    %v1693 = vadd.f32 0.0, %v1692
    %v1694 = vpop.f32.mrf.mxu0
    %1695 = vmatprep.mubr.f32.mxu0 0.0
    %1696 = vmatmul.mubr.f32.gmra.mxu0 %v1415
    %v1697 = vpop.f32.mrf.mxu0
    %v1698 = vadd.f32 0.0, %v1697
    %v1699 = vpop.f32.mrf.mxu0
    %1700 = vmatprep.mubr.f32.mxu0 0.0
    %1701 = vmatmul.mubr.f32.gmra.mxu0 %v1416
    %v1702 = vpop.f32.mrf.mxu0
    %v1703 = vadd.f32 0.0, %v1702
    %v1704 = vpop.f32.mrf.mxu0
    %1705 = vmatprep.mubr.f32.mxu0 0.0
    %1706 = vmatmul.mubr.f32.gmra.mxu0 %v1417
    %v1707 = vpop.f32.mrf.mxu0
    %v1708 = vadd.f32 0.0, %v1707
    %v1709 = vpop.f32.mrf.mxu0
    %1710 = vmatprep.mubr.f32.mxu0 0.0
    %1711 = vmatmul.mubr.f32.gmra.mxu0 %v1418
    %v1712 = vpop.f32.mrf.mxu0
    %v1713 = vadd.f32 0.0, %v1712
    %v1714 = vpop.f32.mrf.mxu0
    %1715 = vmatprep.mubr.f32.mxu0 0.0
    %1716 = vmatmul.mubr.f32.gmra.mxu0 %v1419
    %v1717 = vpop.f32.mrf.mxu0
    %v1718 = vadd.f32 0.0, %v1717
    %v1719 = vpop.f32.mrf.mxu0
    %1720 = vmatprep.mubr.f32.mxu0 0.0
    %1721 = vmatmul.mubr.f32.gmra.mxu0 %v1420
    %v1722 = vpop.f32.mrf.mxu0
    %v1723 = vadd.f32 0.0, %v1722
    %v1724 = vpop.f32.mrf.mxu0
    %1725 = vmatprep.mubr.f32.mxu0 0.0
    %1726 = vmatmul.mubr.f32.gmra.mxu0 %v1421
    %v1727 = vpop.f32.mrf.mxu0
    %v1728 = vadd.f32 0.0, %v1727
    %v1729 = vpop.f32.mrf.mxu0
    %1730 = vmatprep.mubr.f32.mxu0 0.0
    %1731 = vmatmul.mubr.f32.gmra.mxu0 %v1422
    %v1732 = vpop.f32.mrf.mxu0
    %v1733 = vadd.f32 0.0, %v1732
    %v1734 = vpop.f32.mrf.mxu0
    %1735 = vmatprep.mubr.f32.mxu0 0.0
    %1736 = vmatmul.mubr.f32.gmra.mxu0 %v1423
    %v1737 = vpop.f32.mrf.mxu0
    %v1738 = vadd.f32 0.0, %v1737
    %v1739 = vpop.f32.mrf.mxu0
    %1740 = vmatprep.mubr.f32.mxu0 0.0
    %1741 = vmatmul.mubr.f32.gmra.mxu0 %v1424
    %v1742 = vpop.f32.mrf.mxu0
    %v1743 = vadd.f32 0.0, %v1742
    %v1744 = vpop.f32.mrf.mxu0
    %1745 = vmatprep.mubr.f32.mxu0 0.0
    %1746 = vmatmul.mubr.f32.gmra.mxu0 %v1425
    %v1747 = vpop.f32.mrf.mxu0
    %v1748 = vadd.f32 0.0, %v1747
    %v1749 = vpop.f32.mrf.mxu0
    %1750 = vmatprep.mubr.f32.mxu0 0.0
    %1751 = vmatmul.mubr.f32.gmra.mxu0 %v1426
    %v1752 = vpop.f32.mrf.mxu0
    %v1753 = vadd.f32 0.0, %v1752
    %v1754 = vpop.f32.mrf.mxu0
    %1755 = vmatprep.mubr.f32.mxu0 0.0
    %1756 = vmatmul.mubr.f32.gmra.mxu0 %v1427
    %v1757 = vpop.f32.mrf.mxu0
    %v1758 = vadd.f32 0.0, %v1757
    %v1759 = vpop.f32.mrf.mxu0
    %1760 = vmatprep.mubr.f32.mxu0 0.0
    %1761 = vmatmul.mubr.f32.gmra.mxu0 %v1428
    %v1762 = vpop.f32.mrf.mxu0
    %v1763 = vadd.f32 0.0, %v1762
    %v1764 = vpop.f32.mrf.mxu0
    %1765 = vmatprep.mubr.f32.mxu0 0.0
    %1766 = vmatmul.mubr.f32.gmra.mxu0 %v1429
    %v1767 = vpop.f32.mrf.mxu0
    %v1768 = vadd.f32 0.0, %v1767
    %v1769 = vpop.f32.mrf.mxu0
    %1770 = vmatprep.mubr.f32.mxu0 0.0
    %1771 = vmatmul.mubr.f32.gmra.mxu0 %v1430
    %v1772 = vpop.f32.mrf.mxu0
    %v1773 = vadd.f32 0.0, %v1772
    %v1774 = vpop.f32.mrf.mxu0
    %1775 = vmatprep.mubr.f32.mxu0 0.0
    %1776 = vmatmul.mubr.f32.gmra.mxu0 %v1431
    %v1777 = vpop.f32.mrf.mxu0
    %v1778 = vadd.f32 0.0, %v1777
    %v1779 = vpop.f32.mrf.mxu0
    %1780 = vmatprep.mubr.f32.mxu0 0.0
    %1781 = vmatmul.mubr.f32.gmra.mxu0 %v1432
    %v1782 = vpop.f32.mrf.mxu0
    %v1783 = vadd.f32 0.0, %v1782
    %v1784 = vpop.f32.mrf.mxu0
    %1785 = vmatprep.mubr.f32.mxu0 0.0
    %1786 = vmatmul.mubr.f32.gmra.mxu0 %v1433
    %v1787 = vpop.f32.mrf.mxu0
    %v1788 = vadd.f32 0.0, %v1787
    %v1789 = vpop.f32.mrf.mxu0
    %1790 = vmatprep.mubr.f32.mxu0 0.0
    %1791 = vmatmul.mubr.f32.gmra.mxu0 %v1434
    %v1792 = vpop.f32.mrf.mxu0
    %v1793 = vadd.f32 0.0, %v1792
    %v1794 = vpop.f32.mrf.mxu0
    %1795 = vmatprep.mubr.f32.mxu0 0.0
    %1796 = vmatmul.mubr.f32.gmra.mxu0 %v1435
    %v1797 = vpop.f32.mrf.mxu0
    %v1798 = vadd.f32 0.0, %v1797
    %v1799 = vpop.f32.mrf.mxu0
    %1800 = vmatprep.mubr.f32.mxu0 0.0
    %1801 = vmatmul.mubr.f32.gmra.mxu0 %v1436
    %v1802 = vpop.f32.mrf.mxu0
    %v1803 = vadd.f32 0.0, %v1802
    %v1804 = vpop.f32.mrf.mxu0
    %1805 = vmatprep.mubr.f32.mxu0 0.0
    %1806 = vmatmul.mubr.f32.gmra.mxu0 %v1437
    %v1807 = vpop.f32.mrf.mxu0
    %v1808 = vadd.f32 0.0, %v1807
    %v1809 = vpop.f32.mrf.mxu0
    %1810 = vmatprep.mubr.f32.mxu0 0.0
    %1811 = vmatmul.mubr.f32.gmra.mxu0 %v1438
    %v1812 = vpop.f32.mrf.mxu0
    %v1813 = vadd.f32 0.0, %v1812
    %v1814 = vpop.f32.mrf.mxu0
    %1815 = vmatprep.mubr.f32.mxu0 0.0
    %1816 = vmatmul.mubr.f32.gmra.mxu0 %v1439
    %v1817 = vpop.f32.mrf.mxu0
    %v1818 = vadd.f32 0.0, %v1817
    %v1819 = vpop.f32.mrf.mxu0
    %1820 = vmatprep.mubr.f32.mxu0 0.0
    %1821 = vmatmul.mubr.f32.gmra.mxu0 %v1440
    %v1822 = vpop.f32.mrf.mxu0
    %v1823 = vadd.f32 0.0, %v1822
    %v1824 = vpop.f32.mrf.mxu0
    %1825 = vdwg.mxu0
    %v1826 = vand.u32 2147483647, %v1508
    %v1827 = vand.u32 2147483647, %v1513
    %v1828 = vand.u32 2147483647, %v1518
    %v1829 = vand.u32 2147483647, %v1523
    %v1830 = vand.u32 2147483647, %v1528
    %v1831 = vand.u32 2147483647, %v1533
    %v1832 = vand.u32 2147483647, %v1538
    %v1833 = vand.u32 2147483647, %v1543
    %v1834 = vand.u32 2147483647, %v1548
    %v1835 = vand.u32 2147483647, %v1553
    %v1836 = vand.u32 2147483647, %v1558
    %v1837 = vand.u32 2147483647, %v1563
    %v1838 = vand.u32 2147483647, %v1568
    %v1839 = vand.u32 2147483647, %v1573
    %v1840 = vand.u32 2147483647, %v1578
    %v1841 = vand.u32 2147483647, %v1583
    %v1842 = vand.u32 2147483647, %v1588
    %v1843 = vand.u32 2147483647, %v1593
    %v1844 = vand.u32 2147483647, %v1598
    %v1845 = vand.u32 2147483647, %v1603
    %v1846 = vand.u32 2147483647, %v1608
    %v1847 = vand.u32 2147483647, %v1613
    %v1848 = vand.u32 2147483647, %v1618
    %v1849 = vand.u32 2147483647, %v1623
    %v1850 = vand.u32 2147483647, %v1628
    %v1851 = vand.u32 2147483647, %v1633
    %v1852 = vand.u32 2147483647, %v1638
    %v1853 = vand.u32 2147483647, %v1643
    %v1854 = vand.u32 2147483647, %v1648
    %v1855 = vand.u32 2147483647, %v1653
    %v1856 = vand.u32 2147483647, %v1658
    %v1857 = vand.u32 2147483647, %v1663
    %vm1858 = vcmask 261120
    %v1859 = vsel %vm1858, %v1826, 0.0
    %1860 = vadd.xlane.f32.xlu0 %v1859
    %v1861 = vpop.xlane.xlu0 %1860
    %v1862 = vsel %vm1858, %v1827, 0.0
    %1863 = vadd.xlane.f32.xlu0 %v1862
    %v1864 = vpop.xlane.xlu0 %1863
    %v1865 = vsel %vm1858, %v1828, 0.0
    %1866 = vadd.xlane.f32.xlu0 %v1865
    %v1867 = vpop.xlane.xlu0 %1866
    %v1868 = vsel %vm1858, %v1829, 0.0
    %1869 = vadd.xlane.f32.xlu0 %v1868
    %v1870 = vpop.xlane.xlu0 %1869
    %v1871 = vsel %vm1858, %v1830, 0.0
    %1872 = vadd.xlane.f32.xlu0 %v1871
    %v1873 = vpop.xlane.xlu0 %1872
    %v1874 = vsel %vm1858, %v1831, 0.0
    %1875 = vadd.xlane.f32.xlu0 %v1874
    %v1876 = vpop.xlane.xlu0 %1875
    %v1877 = vsel %vm1858, %v1832, 0.0
    %1878 = vadd.xlane.f32.xlu0 %v1877
    %v1879 = vpop.xlane.xlu0 %1878
    %v1880 = vsel %vm1858, %v1833, 0.0
    %1881 = vadd.xlane.f32.xlu0 %v1880
    %v1882 = vpop.xlane.xlu0 %1881
    %v1883 = vsel %vm1858, %v1834, 0.0
    %1884 = vadd.xlane.f32.xlu0 %v1883
    %v1885 = vpop.xlane.xlu0 %1884
    %v1886 = vsel %vm1858, %v1835, 0.0
    %1887 = vadd.xlane.f32.xlu0 %v1886
    %v1888 = vpop.xlane.xlu0 %1887
    %v1889 = vsel %vm1858, %v1836, 0.0
    %1890 = vadd.xlane.f32.xlu0 %v1889
    %v1891 = vpop.xlane.xlu0 %1890
    %v1892 = vsel %vm1858, %v1837, 0.0
    %1893 = vadd.xlane.f32.xlu0 %v1892
    %v1894 = vpop.xlane.xlu0 %1893
    %v1895 = vsel %vm1858, %v1838, 0.0
    %1896 = vadd.xlane.f32.xlu0 %v1895
    %v1897 = vpop.xlane.xlu0 %1896
    %v1898 = vsel %vm1858, %v1839, 0.0
    %1899 = vadd.xlane.f32.xlu0 %v1898
    %v1900 = vpop.xlane.xlu0 %1899
    %v1901 = vsel %vm1858, %v1840, 0.0
    %1902 = vadd.xlane.f32.xlu0 %v1901
    %v1903 = vpop.xlane.xlu0 %1902
    %v1904 = vsel %vm1858, %v1841, 0.0
    %1905 = vadd.xlane.f32.xlu0 %v1904
    %v1906 = vpop.xlane.xlu0 %1905
    %v1907 = vsel %vm1858, %v1842, 0.0
    %1908 = vadd.xlane.f32.xlu0 %v1907
    %v1909 = vpop.xlane.xlu0 %1908
    %v1910 = vsel %vm1858, %v1843, 0.0
    %1911 = vadd.xlane.f32.xlu0 %v1910
    %v1912 = vpop.xlane.xlu0 %1911
    %v1913 = vsel %vm1858, %v1844, 0.0
    %1914 = vadd.xlane.f32.xlu0 %v1913
    %v1915 = vpop.xlane.xlu0 %1914
    %v1916 = vsel %vm1858, %v1845, 0.0
    %1917 = vadd.xlane.f32.xlu0 %v1916
    %v1918 = vpop.xlane.xlu0 %1917
    %v1919 = vsel %vm1858, %v1846, 0.0
    %1920 = vadd.xlane.f32.xlu0 %v1919
    %v1921 = vpop.xlane.xlu0 %1920
    %v1922 = vsel %vm1858, %v1847, 0.0
    %1923 = vadd.xlane.f32.xlu0 %v1922
    %v1924 = vpop.xlane.xlu0 %1923
    %v1925 = vsel %vm1858, %v1848, 0.0
    %1926 = vadd.xlane.f32.xlu0 %v1925
    %v1927 = vpop.xlane.xlu0 %1926
    %v1928 = vsel %vm1858, %v1849, 0.0
    %1929 = vadd.xlane.f32.xlu0 %v1928
    %v1930 = vpop.xlane.xlu0 %1929
    %v1931 = vsel %vm1858, %v1850, 0.0
    %1932 = vadd.xlane.f32.xlu0 %v1931
    %v1933 = vpop.xlane.xlu0 %1932
    %v1934 = vsel %vm1858, %v1851, 0.0
    %1935 = vadd.xlane.f32.xlu0 %v1934
    %v1936 = vpop.xlane.xlu0 %1935
    %v1937 = vsel %vm1858, %v1852, 0.0
    %1938 = vadd.xlane.f32.xlu0 %v1937
    %v1939 = vpop.xlane.xlu0 %1938
    %v1940 = vsel %vm1858, %v1853, 0.0
    %1941 = vadd.xlane.f32.xlu0 %v1940
    %v1942 = vpop.xlane.xlu0 %1941
    %v1943 = vsel %vm1858, %v1854, 0.0
    %1944 = vadd.xlane.f32.xlu0 %v1943
    %v1945 = vpop.xlane.xlu0 %1944
    %v1946 = vsel %vm1858, %v1855, 0.0
    %1947 = vadd.xlane.f32.xlu0 %v1946
    %v1948 = vpop.xlane.xlu0 %1947
    %v1949 = vsel %vm1858, %v1856, 0.0
    %1950 = vadd.xlane.f32.xlu0 %v1949
    %v1951 = vpop.xlane.xlu0 %1950
    %v1952 = vsel %vm1858, %v1857, 0.0
    %1953 = vadd.xlane.f32.xlu0 %v1952
    %v1954 = vpop.xlane.xlu0 %1953
    %v1955 = vand.u32 2147483647, %v1668
    %v1956 = vand.u32 2147483647, %v1673
    %v1957 = vand.u32 2147483647, %v1678
    %v1958 = vand.u32 2147483647, %v1683
    %v1959 = vand.u32 2147483647, %v1688
    %v1960 = vand.u32 2147483647, %v1693
    %v1961 = vand.u32 2147483647, %v1698
    %v1962 = vand.u32 2147483647, %v1703
    %v1963 = vand.u32 2147483647, %v1708
    %v1964 = vand.u32 2147483647, %v1713
    %v1965 = vand.u32 2147483647, %v1718
    %v1966 = vand.u32 2147483647, %v1723
    %v1967 = vand.u32 2147483647, %v1728
    %v1968 = vand.u32 2147483647, %v1733
    %v1969 = vand.u32 2147483647, %v1738
    %v1970 = vand.u32 2147483647, %v1743
    %v1971 = vand.u32 2147483647, %v1748
    %v1972 = vand.u32 2147483647, %v1753
    %v1973 = vand.u32 2147483647, %v1758
    %v1974 = vand.u32 2147483647, %v1763
    %v1975 = vand.u32 2147483647, %v1768
    %v1976 = vand.u32 2147483647, %v1773
    %v1977 = vand.u32 2147483647, %v1778
    %v1978 = vand.u32 2147483647, %v1783
    %v1979 = vand.u32 2147483647, %v1788
    %v1980 = vand.u32 2147483647, %v1793
    %v1981 = vand.u32 2147483647, %v1798
    %v1982 = vand.u32 2147483647, %v1803
    %v1983 = vand.u32 2147483647, %v1808
    %v1984 = vand.u32 2147483647, %v1813
    %v1985 = vand.u32 2147483647, %v1818
    %v1986 = vand.u32 2147483647, %v1823
    %v1987 = vsel %vm1858, %v1955, 0.0
    %1988 = vadd.xlane.f32.xlu0 %v1987
    %v1989 = vpop.xlane.xlu0 %1988
    %v1990 = vsel %vm1858, %v1956, 0.0
    %1991 = vadd.xlane.f32.xlu0 %v1990
    %v1992 = vpop.xlane.xlu0 %1991
    %v1993 = vsel %vm1858, %v1957, 0.0
    %1994 = vadd.xlane.f32.xlu0 %v1993
    %v1995 = vpop.xlane.xlu0 %1994
    %v1996 = vsel %vm1858, %v1958, 0.0
    %1997 = vadd.xlane.f32.xlu0 %v1996
    %v1998 = vpop.xlane.xlu0 %1997
    %v1999 = vsel %vm1858, %v1959, 0.0
    %2000 = vadd.xlane.f32.xlu0 %v1999
    %v2001 = vpop.xlane.xlu0 %2000
    %v2002 = vsel %vm1858, %v1960, 0.0
    %2003 = vadd.xlane.f32.xlu0 %v2002
    %v2004 = vpop.xlane.xlu0 %2003
    %v2005 = vsel %vm1858, %v1961, 0.0
    %2006 = vadd.xlane.f32.xlu0 %v2005
    %v2007 = vpop.xlane.xlu0 %2006
    %v2008 = vsel %vm1858, %v1962, 0.0
    %2009 = vadd.xlane.f32.xlu0 %v2008
    %v2010 = vpop.xlane.xlu0 %2009
    %v2011 = vsel %vm1858, %v1963, 0.0
    %2012 = vadd.xlane.f32.xlu0 %v2011
    %v2013 = vpop.xlane.xlu0 %2012
    %v2014 = vsel %vm1858, %v1964, 0.0
    %2015 = vadd.xlane.f32.xlu0 %v2014
    %v2016 = vpop.xlane.xlu0 %2015
    %v2017 = vsel %vm1858, %v1965, 0.0
    %2018 = vadd.xlane.f32.xlu0 %v2017
    %v2019 = vpop.xlane.xlu0 %2018
    %v2020 = vsel %vm1858, %v1966, 0.0
    %2021 = vadd.xlane.f32.xlu0 %v2020
    %v2022 = vpop.xlane.xlu0 %2021
    %v2023 = vsel %vm1858, %v1967, 0.0
    %2024 = vadd.xlane.f32.xlu0 %v2023
    %v2025 = vpop.xlane.xlu0 %2024
    %v2026 = vsel %vm1858, %v1968, 0.0
    %2027 = vadd.xlane.f32.xlu0 %v2026
    %v2028 = vpop.xlane.xlu0 %2027
    %v2029 = vsel %vm1858, %v1969, 0.0
    %2030 = vadd.xlane.f32.xlu0 %v2029
    %v2031 = vpop.xlane.xlu0 %2030
    %v2032 = vsel %vm1858, %v1970, 0.0
    %2033 = vadd.xlane.f32.xlu0 %v2032
    %v2034 = vpop.xlane.xlu0 %2033
    %v2035 = vsel %vm1858, %v1971, 0.0
    %2036 = vadd.xlane.f32.xlu0 %v2035
    %v2037 = vpop.xlane.xlu0 %2036
    %v2038 = vsel %vm1858, %v1972, 0.0
    %2039 = vadd.xlane.f32.xlu0 %v2038
    %v2040 = vpop.xlane.xlu0 %2039
    %v2041 = vsel %vm1858, %v1973, 0.0
    %2042 = vadd.xlane.f32.xlu0 %v2041
    %v2043 = vpop.xlane.xlu0 %2042
    %v2044 = vsel %vm1858, %v1974, 0.0
    %2045 = vadd.xlane.f32.xlu0 %v2044
    %v2046 = vpop.xlane.xlu0 %2045
    %v2047 = vsel %vm1858, %v1975, 0.0
    %2048 = vadd.xlane.f32.xlu0 %v2047
    %v2049 = vpop.xlane.xlu0 %2048
    %v2050 = vsel %vm1858, %v1976, 0.0
    %2051 = vadd.xlane.f32.xlu0 %v2050
    %v2052 = vpop.xlane.xlu0 %2051
    %v2053 = vsel %vm1858, %v1977, 0.0
    %2054 = vadd.xlane.f32.xlu0 %v2053
    %v2055 = vpop.xlane.xlu0 %2054
    %v2056 = vsel %vm1858, %v1978, 0.0
    %2057 = vadd.xlane.f32.xlu0 %v2056
    %v2058 = vpop.xlane.xlu0 %2057
    %v2059 = vsel %vm1858, %v1979, 0.0
    %2060 = vadd.xlane.f32.xlu0 %v2059
    %v2061 = vpop.xlane.xlu0 %2060
    %v2062 = vsel %vm1858, %v1980, 0.0
    %2063 = vadd.xlane.f32.xlu0 %v2062
    %v2064 = vpop.xlane.xlu0 %2063
    %v2065 = vsel %vm1858, %v1981, 0.0
    %2066 = vadd.xlane.f32.xlu0 %v2065
    %v2067 = vpop.xlane.xlu0 %2066
    %v2068 = vsel %vm1858, %v1982, 0.0
    %2069 = vadd.xlane.f32.xlu0 %v2068
    %v2070 = vpop.xlane.xlu0 %2069
    %v2071 = vsel %vm1858, %v1983, 0.0
    %2072 = vadd.xlane.f32.xlu0 %v2071
    %v2073 = vpop.xlane.xlu0 %2072
    %v2074 = vsel %vm1858, %v1984, 0.0
    %2075 = vadd.xlane.f32.xlu0 %v2074
    %v2076 = vpop.xlane.xlu0 %2075
    %v2077 = vsel %vm1858, %v1985, 0.0
    %2078 = vadd.xlane.f32.xlu0 %v2077
    %v2079 = vpop.xlane.xlu0 %2078
    %v2080 = vsel %vm1858, %v1986, 0.0
    %2081 = vadd.xlane.f32.xlu0 %v2080
    %v2082 = vpop.xlane.xlu0 %2081
    %v2083 = vsub.f32 %v1861, %v1989
    %v2084 = vsub.f32 %v1864, %v1992
    %v2085 = vsub.f32 %v1867, %v1995
    %v2086 = vsub.f32 %v1870, %v1998
    %v2087 = vsub.f32 %v1873, %v2001
    %v2088 = vsub.f32 %v1876, %v2004
    %v2089 = vsub.f32 %v1879, %v2007
    %v2090 = vsub.f32 %v1882, %v2010
    %v2091 = vsub.f32 %v1885, %v2013
    %v2092 = vsub.f32 %v1888, %v2016
    %v2093 = vsub.f32 %v1891, %v2019
    %v2094 = vsub.f32 %v1894, %v2022
    %v2095 = vsub.f32 %v1897, %v2025
    %v2096 = vsub.f32 %v1900, %v2028
    %v2097 = vsub.f32 %v1903, %v2031
    %v2098 = vsub.f32 %v1906, %v2034
    %v2099 = vsub.f32 %v1909, %v2037
    %v2100 = vsub.f32 %v1912, %v2040
    %v2101 = vsub.f32 %v1915, %v2043
    %v2102 = vsub.f32 %v1918, %v2046
    %v2103 = vsub.f32 %v1921, %v2049
    %v2104 = vsub.f32 %v1924, %v2052
    %v2105 = vsub.f32 %v1927, %v2055
    %v2106 = vsub.f32 %v1930, %v2058
    %v2107 = vsub.f32 %v1933, %v2061
    %v2108 = vsub.f32 %v1936, %v2064
    %v2109 = vsub.f32 %v1939, %v2067
    %v2110 = vsub.f32 %v1942, %v2070
    %v2111 = vsub.f32 %v1945, %v2073
    %v2112 = vsub.f32 %v1948, %v2076
    %v2113 = vsub.f32 %v1951, %v2079
    %v2114 = vsub.f32 %v1954, %v2082
    %v2115 = vadd.f32 %v2083, 24.0
    %v2116 = vadd.f32 %v2084, 24.0
    %v2117 = vadd.f32 %v2085, 24.0
    %v2118 = vadd.f32 %v2086, 24.0
    %v2119 = vadd.f32 %v2087, 24.0
    %v2120 = vadd.f32 %v2088, 24.0
    %v2121 = vadd.f32 %v2089, 24.0
    %v2122 = vadd.f32 %v2090, 24.0
    %v2123 = vadd.f32 %v2091, 24.0
    %v2124 = vadd.f32 %v2092, 24.0
    %v2125 = vadd.f32 %v2093, 24.0
    %v2126 = vadd.f32 %v2094, 24.0
    %v2127 = vadd.f32 %v2095, 24.0
    %v2128 = vadd.f32 %v2096, 24.0
    %v2129 = vadd.f32 %v2097, 24.0
    %v2130 = vadd.f32 %v2098, 24.0
    %v2131 = vadd.f32 %v2099, 24.0
    %v2132 = vadd.f32 %v2100, 24.0
    %v2133 = vadd.f32 %v2101, 24.0
    %v2134 = vadd.f32 %v2102, 24.0
    %v2135 = vadd.f32 %v2103, 24.0
    %v2136 = vadd.f32 %v2104, 24.0
    %v2137 = vadd.f32 %v2105, 24.0
    %v2138 = vadd.f32 %v2106, 24.0
    %v2139 = vadd.f32 %v2107, 24.0
    %v2140 = vadd.f32 %v2108, 24.0
    %v2141 = vadd.f32 %v2109, 24.0
    %v2142 = vadd.f32 %v2110, 24.0
    %v2143 = vadd.f32 %v2111, 24.0
    %v2144 = vadd.f32 %v2112, 24.0
    %v2145 = vadd.f32 %v2113, 24.0
    %v2146 = vadd.f32 %v2114, 24.0
    %v2147 = vmax.f32 %v2115, 0.0
    %v2148 = vmax.f32 %v2116, 0.0
    %v2149 = vmax.f32 %v2117, 0.0
    %v2150 = vmax.f32 %v2118, 0.0
    %v2151 = vmax.f32 %v2119, 0.0
    %v2152 = vmax.f32 %v2120, 0.0
    %v2153 = vmax.f32 %v2121, 0.0
    %v2154 = vmax.f32 %v2122, 0.0
    %v2155 = vmax.f32 %v2123, 0.0
    %v2156 = vmax.f32 %v2124, 0.0
    %v2157 = vmax.f32 %v2125, 0.0
    %v2158 = vmax.f32 %v2126, 0.0
    %v2159 = vmax.f32 %v2127, 0.0
    %v2160 = vmax.f32 %v2128, 0.0
    %v2161 = vmax.f32 %v2129, 0.0
    %v2162 = vmax.f32 %v2130, 0.0
    %v2163 = vmax.f32 %v2131, 0.0
    %v2164 = vmax.f32 %v2132, 0.0
    %v2165 = vmax.f32 %v2133, 0.0
    %v2166 = vmax.f32 %v2134, 0.0
    %v2167 = vmax.f32 %v2135, 0.0
    %v2168 = vmax.f32 %v2136, 0.0
    %v2169 = vmax.f32 %v2137, 0.0
    %v2170 = vmax.f32 %v2138, 0.0
    %v2171 = vmax.f32 %v2139, 0.0
    %v2172 = vmax.f32 %v2140, 0.0
    %v2173 = vmax.f32 %v2141, 0.0
    %v2174 = vmax.f32 %v2142, 0.0
    %v2175 = vmax.f32 %v2143, 0.0
    %v2176 = vmax.f32 %v2144, 0.0
    %v2177 = vmax.f32 %v2145, 0.0
    %v2178 = vmax.f32 %v2146, 0.0
    %v2211 = vlaneseq
    %v2212 = vshrl.u32 %v2211, 7
    %v2213 = vsub.s32 0, %v2212
    %v2214 = vrot.slane %v2147, %v2213
    %v2215 = vlaneseq
    %v2216 = vshrl.u32 %v2215, 7
    %v2217 = vsub.s32 1, %v2216
    %v2218 = vrot.slane %v2147, %v2217
    %v2219 = vlaneseq
    %v2220 = vshrl.u32 %v2219, 7
    %v2221 = vsub.s32 2, %v2220
    %v2222 = vrot.slane %v2147, %v2221
    %v2223 = vlaneseq
    %v2224 = vshrl.u32 %v2223, 7
    %v2225 = vsub.s32 3, %v2224
    %v2226 = vrot.slane %v2147, %v2225
    %v2227 = vlaneseq
    %v2228 = vshrl.u32 %v2227, 7
    %v2229 = vsub.s32 4, %v2228
    %v2230 = vrot.slane %v2147, %v2229
    %v2231 = vlaneseq
    %v2232 = vshrl.u32 %v2231, 7
    %v2233 = vsub.s32 5, %v2232
    %v2234 = vrot.slane %v2147, %v2233
    %v2235 = vlaneseq
    %v2236 = vshrl.u32 %v2235, 7
    %v2237 = vsub.s32 6, %v2236
    %v2238 = vrot.slane %v2147, %v2237
    %v2239 = vlaneseq
    %v2240 = vshrl.u32 %v2239, 7
    %v2241 = vsub.s32 7, %v2240
    %v2242 = vrot.slane %v2147, %v2241
    %v2243 = vlaneseq
    %v2244 = vshrl.u32 %v2243, 7
    %v2245 = vsub.s32 0, %v2244
    %v2246 = vrot.slane %v2148, %v2245
    %v2247 = vlaneseq
    %v2248 = vshrl.u32 %v2247, 7
    %v2249 = vsub.s32 1, %v2248
    %v2250 = vrot.slane %v2148, %v2249
    %v2251 = vlaneseq
    %v2252 = vshrl.u32 %v2251, 7
    %v2253 = vsub.s32 2, %v2252
    %v2254 = vrot.slane %v2148, %v2253
    %v2255 = vlaneseq
    %v2256 = vshrl.u32 %v2255, 7
    %v2257 = vsub.s32 3, %v2256
    %v2258 = vrot.slane %v2148, %v2257
    %v2259 = vlaneseq
    %v2260 = vshrl.u32 %v2259, 7
    %v2261 = vsub.s32 4, %v2260
    %v2262 = vrot.slane %v2148, %v2261
    %v2263 = vlaneseq
    %v2264 = vshrl.u32 %v2263, 7
    %v2265 = vsub.s32 5, %v2264
    %v2266 = vrot.slane %v2148, %v2265
    %v2267 = vlaneseq
    %v2268 = vshrl.u32 %v2267, 7
    %v2269 = vsub.s32 6, %v2268
    %v2270 = vrot.slane %v2148, %v2269
    %v2271 = vlaneseq
    %v2272 = vshrl.u32 %v2271, 7
    %v2273 = vsub.s32 7, %v2272
    %v2274 = vrot.slane %v2148, %v2273
    %v2275 = vlaneseq
    %v2276 = vshrl.u32 %v2275, 7
    %v2277 = vsub.s32 0, %v2276
    %v2278 = vrot.slane %v2149, %v2277
    %v2279 = vlaneseq
    %v2280 = vshrl.u32 %v2279, 7
    %v2281 = vsub.s32 1, %v2280
    %v2282 = vrot.slane %v2149, %v2281
    %v2283 = vlaneseq
    %v2284 = vshrl.u32 %v2283, 7
    %v2285 = vsub.s32 2, %v2284
    %v2286 = vrot.slane %v2149, %v2285
    %v2287 = vlaneseq
    %v2288 = vshrl.u32 %v2287, 7
    %v2289 = vsub.s32 3, %v2288
    %v2290 = vrot.slane %v2149, %v2289
    %v2291 = vlaneseq
    %v2292 = vshrl.u32 %v2291, 7
    %v2293 = vsub.s32 4, %v2292
    %v2294 = vrot.slane %v2149, %v2293
    %v2295 = vlaneseq
    %v2296 = vshrl.u32 %v2295, 7
    %v2297 = vsub.s32 5, %v2296
    %v2298 = vrot.slane %v2149, %v2297
    %v2299 = vlaneseq
    %v2300 = vshrl.u32 %v2299, 7
    %v2301 = vsub.s32 6, %v2300
    %v2302 = vrot.slane %v2149, %v2301
    %v2303 = vlaneseq
    %v2304 = vshrl.u32 %v2303, 7
    %v2305 = vsub.s32 7, %v2304
    %v2306 = vrot.slane %v2149, %v2305
    %v2307 = vlaneseq
    %v2308 = vshrl.u32 %v2307, 7
    %v2309 = vsub.s32 0, %v2308
    %v2310 = vrot.slane %v2150, %v2309
    %v2311 = vlaneseq
    %v2312 = vshrl.u32 %v2311, 7
    %v2313 = vsub.s32 1, %v2312
    %v2314 = vrot.slane %v2150, %v2313
    %v2315 = vlaneseq
    %v2316 = vshrl.u32 %v2315, 7
    %v2317 = vsub.s32 2, %v2316
    %v2318 = vrot.slane %v2150, %v2317
    %v2319 = vlaneseq
    %v2320 = vshrl.u32 %v2319, 7
    %v2321 = vsub.s32 3, %v2320
    %v2322 = vrot.slane %v2150, %v2321
    %v2323 = vlaneseq
    %v2324 = vshrl.u32 %v2323, 7
    %v2325 = vsub.s32 4, %v2324
    %v2326 = vrot.slane %v2150, %v2325
    %v2327 = vlaneseq
    %v2328 = vshrl.u32 %v2327, 7
    %v2329 = vsub.s32 5, %v2328
    %v2330 = vrot.slane %v2150, %v2329
    %v2331 = vlaneseq
    %v2332 = vshrl.u32 %v2331, 7
    %v2333 = vsub.s32 6, %v2332
    %v2334 = vrot.slane %v2150, %v2333
    %v2335 = vlaneseq
    %v2336 = vshrl.u32 %v2335, 7
    %v2337 = vsub.s32 7, %v2336
    %v2338 = vrot.slane %v2150, %v2337
    %v2339 = vlaneseq
    %v2340 = vshrl.u32 %v2339, 7
    %v2341 = vsub.s32 0, %v2340
    %v2342 = vrot.slane %v2151, %v2341
    %v2343 = vlaneseq
    %v2344 = vshrl.u32 %v2343, 7
    %v2345 = vsub.s32 1, %v2344
    %v2346 = vrot.slane %v2151, %v2345
    %v2347 = vlaneseq
    %v2348 = vshrl.u32 %v2347, 7
    %v2349 = vsub.s32 2, %v2348
    %v2350 = vrot.slane %v2151, %v2349
    %v2351 = vlaneseq
    %v2352 = vshrl.u32 %v2351, 7
    %v2353 = vsub.s32 3, %v2352
    %v2354 = vrot.slane %v2151, %v2353
    %v2355 = vlaneseq
    %v2356 = vshrl.u32 %v2355, 7
    %v2357 = vsub.s32 4, %v2356
    %v2358 = vrot.slane %v2151, %v2357
    %v2359 = vlaneseq
    %v2360 = vshrl.u32 %v2359, 7
    %v2361 = vsub.s32 5, %v2360
    %v2362 = vrot.slane %v2151, %v2361
    %v2363 = vlaneseq
    %v2364 = vshrl.u32 %v2363, 7
    %v2365 = vsub.s32 6, %v2364
    %v2366 = vrot.slane %v2151, %v2365
    %v2367 = vlaneseq
    %v2368 = vshrl.u32 %v2367, 7
    %v2369 = vsub.s32 7, %v2368
    %v2370 = vrot.slane %v2151, %v2369
    %v2371 = vlaneseq
    %v2372 = vshrl.u32 %v2371, 7
    %v2373 = vsub.s32 0, %v2372
    %v2374 = vrot.slane %v2152, %v2373
    %v2375 = vlaneseq
    %v2376 = vshrl.u32 %v2375, 7
    %v2377 = vsub.s32 1, %v2376
    %v2378 = vrot.slane %v2152, %v2377
    %v2379 = vlaneseq
    %v2380 = vshrl.u32 %v2379, 7
    %v2381 = vsub.s32 2, %v2380
    %v2382 = vrot.slane %v2152, %v2381
    %v2383 = vlaneseq
    %v2384 = vshrl.u32 %v2383, 7
    %v2385 = vsub.s32 3, %v2384
    %v2386 = vrot.slane %v2152, %v2385
    %v2387 = vlaneseq
    %v2388 = vshrl.u32 %v2387, 7
    %v2389 = vsub.s32 4, %v2388
    %v2390 = vrot.slane %v2152, %v2389
    %v2391 = vlaneseq
    %v2392 = vshrl.u32 %v2391, 7
    %v2393 = vsub.s32 5, %v2392
    %v2394 = vrot.slane %v2152, %v2393
    %v2395 = vlaneseq
    %v2396 = vshrl.u32 %v2395, 7
    %v2397 = vsub.s32 6, %v2396
    %v2398 = vrot.slane %v2152, %v2397
    %v2399 = vlaneseq
    %v2400 = vshrl.u32 %v2399, 7
    %v2401 = vsub.s32 7, %v2400
    %v2402 = vrot.slane %v2152, %v2401
    %v2403 = vlaneseq
    %v2404 = vshrl.u32 %v2403, 7
    %v2405 = vsub.s32 0, %v2404
    %v2406 = vrot.slane %v2153, %v2405
    %v2407 = vlaneseq
    %v2408 = vshrl.u32 %v2407, 7
    %v2409 = vsub.s32 1, %v2408
    %v2410 = vrot.slane %v2153, %v2409
    %v2411 = vlaneseq
    %v2412 = vshrl.u32 %v2411, 7
    %v2413 = vsub.s32 2, %v2412
    %v2414 = vrot.slane %v2153, %v2413
    %v2415 = vlaneseq
    %v2416 = vshrl.u32 %v2415, 7
    %v2417 = vsub.s32 3, %v2416
    %v2418 = vrot.slane %v2153, %v2417
    %v2419 = vlaneseq
    %v2420 = vshrl.u32 %v2419, 7
    %v2421 = vsub.s32 4, %v2420
    %v2422 = vrot.slane %v2153, %v2421
    %v2423 = vlaneseq
    %v2424 = vshrl.u32 %v2423, 7
    %v2425 = vsub.s32 5, %v2424
    %v2426 = vrot.slane %v2153, %v2425
    %v2427 = vlaneseq
    %v2428 = vshrl.u32 %v2427, 7
    %v2429 = vsub.s32 6, %v2428
    %v2430 = vrot.slane %v2153, %v2429
    %v2431 = vlaneseq
    %v2432 = vshrl.u32 %v2431, 7
    %v2433 = vsub.s32 7, %v2432
    %v2434 = vrot.slane %v2153, %v2433
    %v2435 = vlaneseq
    %v2436 = vshrl.u32 %v2435, 7
    %v2437 = vsub.s32 0, %v2436
    %v2438 = vrot.slane %v2154, %v2437
    %v2439 = vlaneseq
    %v2440 = vshrl.u32 %v2439, 7
    %v2441 = vsub.s32 1, %v2440
    %v2442 = vrot.slane %v2154, %v2441
    %v2443 = vlaneseq
    %v2444 = vshrl.u32 %v2443, 7
    %v2445 = vsub.s32 2, %v2444
    %v2446 = vrot.slane %v2154, %v2445
    %v2447 = vlaneseq
    %v2448 = vshrl.u32 %v2447, 7
    %v2449 = vsub.s32 3, %v2448
    %v2450 = vrot.slane %v2154, %v2449
    %v2451 = vlaneseq
    %v2452 = vshrl.u32 %v2451, 7
    %v2453 = vsub.s32 4, %v2452
    %v2454 = vrot.slane %v2154, %v2453
    %v2455 = vlaneseq
    %v2456 = vshrl.u32 %v2455, 7
    %v2457 = vsub.s32 5, %v2456
    %v2458 = vrot.slane %v2154, %v2457
    %v2459 = vlaneseq
    %v2460 = vshrl.u32 %v2459, 7
    %v2461 = vsub.s32 6, %v2460
    %v2462 = vrot.slane %v2154, %v2461
    %v2463 = vlaneseq
    %v2464 = vshrl.u32 %v2463, 7
    %v2465 = vsub.s32 7, %v2464
    %v2466 = vrot.slane %v2154, %v2465
    %v2467 = vlaneseq
    %v2468 = vshrl.u32 %v2467, 7
    %v2469 = vsub.s32 0, %v2468
    %v2470 = vrot.slane %v2155, %v2469
    %v2471 = vlaneseq
    %v2472 = vshrl.u32 %v2471, 7
    %v2473 = vsub.s32 1, %v2472
    %v2474 = vrot.slane %v2155, %v2473
    %v2475 = vlaneseq
    %v2476 = vshrl.u32 %v2475, 7
    %v2477 = vsub.s32 2, %v2476
    %v2478 = vrot.slane %v2155, %v2477
    %v2479 = vlaneseq
    %v2480 = vshrl.u32 %v2479, 7
    %v2481 = vsub.s32 3, %v2480
    %v2482 = vrot.slane %v2155, %v2481
    %v2483 = vlaneseq
    %v2484 = vshrl.u32 %v2483, 7
    %v2485 = vsub.s32 4, %v2484
    %v2486 = vrot.slane %v2155, %v2485
    %v2487 = vlaneseq
    %v2488 = vshrl.u32 %v2487, 7
    %v2489 = vsub.s32 5, %v2488
    %v2490 = vrot.slane %v2155, %v2489
    %v2491 = vlaneseq
    %v2492 = vshrl.u32 %v2491, 7
    %v2493 = vsub.s32 6, %v2492
    %v2494 = vrot.slane %v2155, %v2493
    %v2495 = vlaneseq
    %v2496 = vshrl.u32 %v2495, 7
    %v2497 = vsub.s32 7, %v2496
    %v2498 = vrot.slane %v2155, %v2497
    %v2499 = vlaneseq
    %v2500 = vshrl.u32 %v2499, 7
    %v2501 = vsub.s32 0, %v2500
    %v2502 = vrot.slane %v2156, %v2501
    %v2503 = vlaneseq
    %v2504 = vshrl.u32 %v2503, 7
    %v2505 = vsub.s32 1, %v2504
    %v2506 = vrot.slane %v2156, %v2505
    %v2507 = vlaneseq
    %v2508 = vshrl.u32 %v2507, 7
    %v2509 = vsub.s32 2, %v2508
    %v2510 = vrot.slane %v2156, %v2509
    %v2511 = vlaneseq
    %v2512 = vshrl.u32 %v2511, 7
    %v2513 = vsub.s32 3, %v2512
    %v2514 = vrot.slane %v2156, %v2513
    %v2515 = vlaneseq
    %v2516 = vshrl.u32 %v2515, 7
    %v2517 = vsub.s32 4, %v2516
    %v2518 = vrot.slane %v2156, %v2517
    %v2519 = vlaneseq
    %v2520 = vshrl.u32 %v2519, 7
    %v2521 = vsub.s32 5, %v2520
    %v2522 = vrot.slane %v2156, %v2521
    %v2523 = vlaneseq
    %v2524 = vshrl.u32 %v2523, 7
    %v2525 = vsub.s32 6, %v2524
    %v2526 = vrot.slane %v2156, %v2525
    %v2527 = vlaneseq
    %v2528 = vshrl.u32 %v2527, 7
    %v2529 = vsub.s32 7, %v2528
    %v2530 = vrot.slane %v2156, %v2529
    %v2531 = vlaneseq
    %v2532 = vshrl.u32 %v2531, 7
    %v2533 = vsub.s32 0, %v2532
    %v2534 = vrot.slane %v2157, %v2533
    %v2535 = vlaneseq
    %v2536 = vshrl.u32 %v2535, 7
    %v2537 = vsub.s32 1, %v2536
    %v2538 = vrot.slane %v2157, %v2537
    %v2539 = vlaneseq
    %v2540 = vshrl.u32 %v2539, 7
    %v2541 = vsub.s32 2, %v2540
    %v2542 = vrot.slane %v2157, %v2541
    %v2543 = vlaneseq
    %v2544 = vshrl.u32 %v2543, 7
    %v2545 = vsub.s32 3, %v2544
    %v2546 = vrot.slane %v2157, %v2545
    %v2547 = vlaneseq
    %v2548 = vshrl.u32 %v2547, 7
    %v2549 = vsub.s32 4, %v2548
    %v2550 = vrot.slane %v2157, %v2549
    %v2551 = vlaneseq
    %v2552 = vshrl.u32 %v2551, 7
    %v2553 = vsub.s32 5, %v2552
    %v2554 = vrot.slane %v2157, %v2553
    %v2555 = vlaneseq
    %v2556 = vshrl.u32 %v2555, 7
    %v2557 = vsub.s32 6, %v2556
    %v2558 = vrot.slane %v2157, %v2557
    %v2559 = vlaneseq
    %v2560 = vshrl.u32 %v2559, 7
    %v2561 = vsub.s32 7, %v2560
    %v2562 = vrot.slane %v2157, %v2561
    %v2563 = vlaneseq
    %v2564 = vshrl.u32 %v2563, 7
    %v2565 = vsub.s32 0, %v2564
    %v2566 = vrot.slane %v2158, %v2565
    %v2567 = vlaneseq
    %v2568 = vshrl.u32 %v2567, 7
    %v2569 = vsub.s32 1, %v2568
    %v2570 = vrot.slane %v2158, %v2569
    %v2571 = vlaneseq
    %v2572 = vshrl.u32 %v2571, 7
    %v2573 = vsub.s32 2, %v2572
    %v2574 = vrot.slane %v2158, %v2573
    %v2575 = vlaneseq
    %v2576 = vshrl.u32 %v2575, 7
    %v2577 = vsub.s32 3, %v2576
    %v2578 = vrot.slane %v2158, %v2577
    %v2579 = vlaneseq
    %v2580 = vshrl.u32 %v2579, 7
    %v2581 = vsub.s32 4, %v2580
    %v2582 = vrot.slane %v2158, %v2581
    %v2583 = vlaneseq
    %v2584 = vshrl.u32 %v2583, 7
    %v2585 = vsub.s32 5, %v2584
    %v2586 = vrot.slane %v2158, %v2585
    %v2587 = vlaneseq
    %v2588 = vshrl.u32 %v2587, 7
    %v2589 = vsub.s32 6, %v2588
    %v2590 = vrot.slane %v2158, %v2589
    %v2591 = vlaneseq
    %v2592 = vshrl.u32 %v2591, 7
    %v2593 = vsub.s32 7, %v2592
    %v2594 = vrot.slane %v2158, %v2593
    %v2595 = vlaneseq
    %v2596 = vshrl.u32 %v2595, 7
    %v2597 = vsub.s32 0, %v2596
    %v2598 = vrot.slane %v2159, %v2597
    %v2599 = vlaneseq
    %v2600 = vshrl.u32 %v2599, 7
    %v2601 = vsub.s32 1, %v2600
    %v2602 = vrot.slane %v2159, %v2601
    %v2603 = vlaneseq
    %v2604 = vshrl.u32 %v2603, 7
    %v2605 = vsub.s32 2, %v2604
    %v2606 = vrot.slane %v2159, %v2605
    %v2607 = vlaneseq
    %v2608 = vshrl.u32 %v2607, 7
    %v2609 = vsub.s32 3, %v2608
    %v2610 = vrot.slane %v2159, %v2609
    %v2611 = vlaneseq
    %v2612 = vshrl.u32 %v2611, 7
    %v2613 = vsub.s32 4, %v2612
    %v2614 = vrot.slane %v2159, %v2613
    %v2615 = vlaneseq
    %v2616 = vshrl.u32 %v2615, 7
    %v2617 = vsub.s32 5, %v2616
    %v2618 = vrot.slane %v2159, %v2617
    %v2619 = vlaneseq
    %v2620 = vshrl.u32 %v2619, 7
    %v2621 = vsub.s32 6, %v2620
    %v2622 = vrot.slane %v2159, %v2621
    %v2623 = vlaneseq
    %v2624 = vshrl.u32 %v2623, 7
    %v2625 = vsub.s32 7, %v2624
    %v2626 = vrot.slane %v2159, %v2625
    %v2627 = vlaneseq
    %v2628 = vshrl.u32 %v2627, 7
    %v2629 = vsub.s32 0, %v2628
    %v2630 = vrot.slane %v2160, %v2629
    %v2631 = vlaneseq
    %v2632 = vshrl.u32 %v2631, 7
    %v2633 = vsub.s32 1, %v2632
    %v2634 = vrot.slane %v2160, %v2633
    %v2635 = vlaneseq
    %v2636 = vshrl.u32 %v2635, 7
    %v2637 = vsub.s32 2, %v2636
    %v2638 = vrot.slane %v2160, %v2637
    %v2639 = vlaneseq
    %v2640 = vshrl.u32 %v2639, 7
    %v2641 = vsub.s32 3, %v2640
    %v2642 = vrot.slane %v2160, %v2641
    %v2643 = vlaneseq
    %v2644 = vshrl.u32 %v2643, 7
    %v2645 = vsub.s32 4, %v2644
    %v2646 = vrot.slane %v2160, %v2645
    %v2647 = vlaneseq
    %v2648 = vshrl.u32 %v2647, 7
    %v2649 = vsub.s32 5, %v2648
    %v2650 = vrot.slane %v2160, %v2649
    %v2651 = vlaneseq
    %v2652 = vshrl.u32 %v2651, 7
    %v2653 = vsub.s32 6, %v2652
    %v2654 = vrot.slane %v2160, %v2653
    %v2655 = vlaneseq
    %v2656 = vshrl.u32 %v2655, 7
    %v2657 = vsub.s32 7, %v2656
    %v2658 = vrot.slane %v2160, %v2657
    %v2659 = vlaneseq
    %v2660 = vshrl.u32 %v2659, 7
    %v2661 = vsub.s32 0, %v2660
    %v2662 = vrot.slane %v2161, %v2661
    %v2663 = vlaneseq
    %v2664 = vshrl.u32 %v2663, 7
    %v2665 = vsub.s32 1, %v2664
    %v2666 = vrot.slane %v2161, %v2665
    %v2667 = vlaneseq
    %v2668 = vshrl.u32 %v2667, 7
    %v2669 = vsub.s32 2, %v2668
    %v2670 = vrot.slane %v2161, %v2669
    %v2671 = vlaneseq
    %v2672 = vshrl.u32 %v2671, 7
    %v2673 = vsub.s32 3, %v2672
    %v2674 = vrot.slane %v2161, %v2673
    %v2675 = vlaneseq
    %v2676 = vshrl.u32 %v2675, 7
    %v2677 = vsub.s32 4, %v2676
    %v2678 = vrot.slane %v2161, %v2677
    %v2679 = vlaneseq
    %v2680 = vshrl.u32 %v2679, 7
    %v2681 = vsub.s32 5, %v2680
    %v2682 = vrot.slane %v2161, %v2681
    %v2683 = vlaneseq
    %v2684 = vshrl.u32 %v2683, 7
    %v2685 = vsub.s32 6, %v2684
    %v2686 = vrot.slane %v2161, %v2685
    %v2687 = vlaneseq
    %v2688 = vshrl.u32 %v2687, 7
    %v2689 = vsub.s32 7, %v2688
    %v2690 = vrot.slane %v2161, %v2689
    %v2691 = vlaneseq
    %v2692 = vshrl.u32 %v2691, 7
    %v2693 = vsub.s32 0, %v2692
    %v2694 = vrot.slane %v2162, %v2693
    %v2695 = vlaneseq
    %v2696 = vshrl.u32 %v2695, 7
    %v2697 = vsub.s32 1, %v2696
    %v2698 = vrot.slane %v2162, %v2697
    %v2699 = vlaneseq
    %v2700 = vshrl.u32 %v2699, 7
    %v2701 = vsub.s32 2, %v2700
    %v2702 = vrot.slane %v2162, %v2701
    %v2703 = vlaneseq
    %v2704 = vshrl.u32 %v2703, 7
    %v2705 = vsub.s32 3, %v2704
    %v2706 = vrot.slane %v2162, %v2705
    %v2707 = vlaneseq
    %v2708 = vshrl.u32 %v2707, 7
    %v2709 = vsub.s32 4, %v2708
    %v2710 = vrot.slane %v2162, %v2709
    %v2711 = vlaneseq
    %v2712 = vshrl.u32 %v2711, 7
    %v2713 = vsub.s32 5, %v2712
    %v2714 = vrot.slane %v2162, %v2713
    %v2715 = vlaneseq
    %v2716 = vshrl.u32 %v2715, 7
    %v2717 = vsub.s32 6, %v2716
    %v2718 = vrot.slane %v2162, %v2717
    %v2719 = vlaneseq
    %v2720 = vshrl.u32 %v2719, 7
    %v2721 = vsub.s32 7, %v2720
    %v2722 = vrot.slane %v2162, %v2721
    %v2723 = vlaneseq
    %v2724 = vshrl.u32 %v2723, 7
    %v2725 = vsub.s32 0, %v2724
    %v2726 = vrot.slane %v2163, %v2725
    %v2727 = vlaneseq
    %v2728 = vshrl.u32 %v2727, 7
    %v2729 = vsub.s32 1, %v2728
    %v2730 = vrot.slane %v2163, %v2729
    %v2731 = vlaneseq
    %v2732 = vshrl.u32 %v2731, 7
    %v2733 = vsub.s32 2, %v2732
    %v2734 = vrot.slane %v2163, %v2733
    %v2735 = vlaneseq
    %v2736 = vshrl.u32 %v2735, 7
    %v2737 = vsub.s32 3, %v2736
    %v2738 = vrot.slane %v2163, %v2737
    %v2739 = vlaneseq
    %v2740 = vshrl.u32 %v2739, 7
    %v2741 = vsub.s32 4, %v2740
    %v2742 = vrot.slane %v2163, %v2741
    %v2743 = vlaneseq
    %v2744 = vshrl.u32 %v2743, 7
    %v2745 = vsub.s32 5, %v2744
    %v2746 = vrot.slane %v2163, %v2745
    %v2747 = vlaneseq
    %v2748 = vshrl.u32 %v2747, 7
    %v2749 = vsub.s32 6, %v2748
    %v2750 = vrot.slane %v2163, %v2749
    %v2751 = vlaneseq
    %v2752 = vshrl.u32 %v2751, 7
    %v2753 = vsub.s32 7, %v2752
    %v2754 = vrot.slane %v2163, %v2753
    %v2755 = vlaneseq
    %v2756 = vshrl.u32 %v2755, 7
    %v2757 = vsub.s32 0, %v2756
    %v2758 = vrot.slane %v2164, %v2757
    %v2759 = vlaneseq
    %v2760 = vshrl.u32 %v2759, 7
    %v2761 = vsub.s32 1, %v2760
    %v2762 = vrot.slane %v2164, %v2761
    %v2763 = vlaneseq
    %v2764 = vshrl.u32 %v2763, 7
    %v2765 = vsub.s32 2, %v2764
    %v2766 = vrot.slane %v2164, %v2765
    %v2767 = vlaneseq
    %v2768 = vshrl.u32 %v2767, 7
    %v2769 = vsub.s32 3, %v2768
    %v2770 = vrot.slane %v2164, %v2769
    %v2771 = vlaneseq
    %v2772 = vshrl.u32 %v2771, 7
    %v2773 = vsub.s32 4, %v2772
    %v2774 = vrot.slane %v2164, %v2773
    %v2775 = vlaneseq
    %v2776 = vshrl.u32 %v2775, 7
    %v2777 = vsub.s32 5, %v2776
    %v2778 = vrot.slane %v2164, %v2777
    %v2779 = vlaneseq
    %v2780 = vshrl.u32 %v2779, 7
    %v2781 = vsub.s32 6, %v2780
    %v2782 = vrot.slane %v2164, %v2781
    %v2783 = vlaneseq
    %v2784 = vshrl.u32 %v2783, 7
    %v2785 = vsub.s32 7, %v2784
    %v2786 = vrot.slane %v2164, %v2785
    %v2787 = vlaneseq
    %v2788 = vshrl.u32 %v2787, 7
    %v2789 = vsub.s32 0, %v2788
    %v2790 = vrot.slane %v2165, %v2789
    %v2791 = vlaneseq
    %v2792 = vshrl.u32 %v2791, 7
    %v2793 = vsub.s32 1, %v2792
    %v2794 = vrot.slane %v2165, %v2793
    %v2795 = vlaneseq
    %v2796 = vshrl.u32 %v2795, 7
    %v2797 = vsub.s32 2, %v2796
    %v2798 = vrot.slane %v2165, %v2797
    %v2799 = vlaneseq
    %v2800 = vshrl.u32 %v2799, 7
    %v2801 = vsub.s32 3, %v2800
    %v2802 = vrot.slane %v2165, %v2801
    %v2803 = vlaneseq
    %v2804 = vshrl.u32 %v2803, 7
    %v2805 = vsub.s32 4, %v2804
    %v2806 = vrot.slane %v2165, %v2805
    %v2807 = vlaneseq
    %v2808 = vshrl.u32 %v2807, 7
    %v2809 = vsub.s32 5, %v2808
    %v2810 = vrot.slane %v2165, %v2809
    %v2811 = vlaneseq
    %v2812 = vshrl.u32 %v2811, 7
    %v2813 = vsub.s32 6, %v2812
    %v2814 = vrot.slane %v2165, %v2813
    %v2815 = vlaneseq
    %v2816 = vshrl.u32 %v2815, 7
    %v2817 = vsub.s32 7, %v2816
    %v2818 = vrot.slane %v2165, %v2817
    %v2819 = vlaneseq
    %v2820 = vshrl.u32 %v2819, 7
    %v2821 = vsub.s32 0, %v2820
    %v2822 = vrot.slane %v2166, %v2821
    %v2823 = vlaneseq
    %v2824 = vshrl.u32 %v2823, 7
    %v2825 = vsub.s32 1, %v2824
    %v2826 = vrot.slane %v2166, %v2825
    %v2827 = vlaneseq
    %v2828 = vshrl.u32 %v2827, 7
    %v2829 = vsub.s32 2, %v2828
    %v2830 = vrot.slane %v2166, %v2829
    %v2831 = vlaneseq
    %v2832 = vshrl.u32 %v2831, 7
    %v2833 = vsub.s32 3, %v2832
    %v2834 = vrot.slane %v2166, %v2833
    %v2835 = vlaneseq
    %v2836 = vshrl.u32 %v2835, 7
    %v2837 = vsub.s32 4, %v2836
    %v2838 = vrot.slane %v2166, %v2837
    %v2839 = vlaneseq
    %v2840 = vshrl.u32 %v2839, 7
    %v2841 = vsub.s32 5, %v2840
    %v2842 = vrot.slane %v2166, %v2841
    %v2843 = vlaneseq
    %v2844 = vshrl.u32 %v2843, 7
    %v2845 = vsub.s32 6, %v2844
    %v2846 = vrot.slane %v2166, %v2845
    %v2847 = vlaneseq
    %v2848 = vshrl.u32 %v2847, 7
    %v2849 = vsub.s32 7, %v2848
    %v2850 = vrot.slane %v2166, %v2849
    %v2851 = vlaneseq
    %v2852 = vshrl.u32 %v2851, 7
    %v2853 = vsub.s32 0, %v2852
    %v2854 = vrot.slane %v2167, %v2853
    %v2855 = vlaneseq
    %v2856 = vshrl.u32 %v2855, 7
    %v2857 = vsub.s32 1, %v2856
    %v2858 = vrot.slane %v2167, %v2857
    %v2859 = vlaneseq
    %v2860 = vshrl.u32 %v2859, 7
    %v2861 = vsub.s32 2, %v2860
    %v2862 = vrot.slane %v2167, %v2861
    %v2863 = vlaneseq
    %v2864 = vshrl.u32 %v2863, 7
    %v2865 = vsub.s32 3, %v2864
    %v2866 = vrot.slane %v2167, %v2865
    %v2867 = vlaneseq
    %v2868 = vshrl.u32 %v2867, 7
    %v2869 = vsub.s32 4, %v2868
    %v2870 = vrot.slane %v2167, %v2869
    %v2871 = vlaneseq
    %v2872 = vshrl.u32 %v2871, 7
    %v2873 = vsub.s32 5, %v2872
    %v2874 = vrot.slane %v2167, %v2873
    %v2875 = vlaneseq
    %v2876 = vshrl.u32 %v2875, 7
    %v2877 = vsub.s32 6, %v2876
    %v2878 = vrot.slane %v2167, %v2877
    %v2879 = vlaneseq
    %v2880 = vshrl.u32 %v2879, 7
    %v2881 = vsub.s32 7, %v2880
    %v2882 = vrot.slane %v2167, %v2881
    %v2883 = vlaneseq
    %v2884 = vshrl.u32 %v2883, 7
    %v2885 = vsub.s32 0, %v2884
    %v2886 = vrot.slane %v2168, %v2885
    %v2887 = vlaneseq
    %v2888 = vshrl.u32 %v2887, 7
    %v2889 = vsub.s32 1, %v2888
    %v2890 = vrot.slane %v2168, %v2889
    %v2891 = vlaneseq
    %v2892 = vshrl.u32 %v2891, 7
    %v2893 = vsub.s32 2, %v2892
    %v2894 = vrot.slane %v2168, %v2893
    %v2895 = vlaneseq
    %v2896 = vshrl.u32 %v2895, 7
    %v2897 = vsub.s32 3, %v2896
    %v2898 = vrot.slane %v2168, %v2897
    %v2899 = vlaneseq
    %v2900 = vshrl.u32 %v2899, 7
    %v2901 = vsub.s32 4, %v2900
    %v2902 = vrot.slane %v2168, %v2901
    %v2903 = vlaneseq
    %v2904 = vshrl.u32 %v2903, 7
    %v2905 = vsub.s32 5, %v2904
    %v2906 = vrot.slane %v2168, %v2905
    %v2907 = vlaneseq
    %v2908 = vshrl.u32 %v2907, 7
    %v2909 = vsub.s32 6, %v2908
    %v2910 = vrot.slane %v2168, %v2909
    %v2911 = vlaneseq
    %v2912 = vshrl.u32 %v2911, 7
    %v2913 = vsub.s32 7, %v2912
    %v2914 = vrot.slane %v2168, %v2913
    %v2915 = vlaneseq
    %v2916 = vshrl.u32 %v2915, 7
    %v2917 = vsub.s32 0, %v2916
    %v2918 = vrot.slane %v2169, %v2917
    %v2919 = vlaneseq
    %v2920 = vshrl.u32 %v2919, 7
    %v2921 = vsub.s32 1, %v2920
    %v2922 = vrot.slane %v2169, %v2921
    %v2923 = vlaneseq
    %v2924 = vshrl.u32 %v2923, 7
    %v2925 = vsub.s32 2, %v2924
    %v2926 = vrot.slane %v2169, %v2925
    %v2927 = vlaneseq
    %v2928 = vshrl.u32 %v2927, 7
    %v2929 = vsub.s32 3, %v2928
    %v2930 = vrot.slane %v2169, %v2929
    %v2931 = vlaneseq
    %v2932 = vshrl.u32 %v2931, 7
    %v2933 = vsub.s32 4, %v2932
    %v2934 = vrot.slane %v2169, %v2933
    %v2935 = vlaneseq
    %v2936 = vshrl.u32 %v2935, 7
    %v2937 = vsub.s32 5, %v2936
    %v2938 = vrot.slane %v2169, %v2937
    %v2939 = vlaneseq
    %v2940 = vshrl.u32 %v2939, 7
    %v2941 = vsub.s32 6, %v2940
    %v2942 = vrot.slane %v2169, %v2941
    %v2943 = vlaneseq
    %v2944 = vshrl.u32 %v2943, 7
    %v2945 = vsub.s32 7, %v2944
    %v2946 = vrot.slane %v2169, %v2945
    %v2947 = vlaneseq
    %v2948 = vshrl.u32 %v2947, 7
    %v2949 = vsub.s32 0, %v2948
    %v2950 = vrot.slane %v2170, %v2949
    %v2951 = vlaneseq
    %v2952 = vshrl.u32 %v2951, 7
    %v2953 = vsub.s32 1, %v2952
    %v2954 = vrot.slane %v2170, %v2953
    %v2955 = vlaneseq
    %v2956 = vshrl.u32 %v2955, 7
    %v2957 = vsub.s32 2, %v2956
    %v2958 = vrot.slane %v2170, %v2957
    %v2959 = vlaneseq
    %v2960 = vshrl.u32 %v2959, 7
    %v2961 = vsub.s32 3, %v2960
    %v2962 = vrot.slane %v2170, %v2961
    %v2963 = vlaneseq
    %v2964 = vshrl.u32 %v2963, 7
    %v2965 = vsub.s32 4, %v2964
    %v2966 = vrot.slane %v2170, %v2965
    %v2967 = vlaneseq
    %v2968 = vshrl.u32 %v2967, 7
    %v2969 = vsub.s32 5, %v2968
    %v2970 = vrot.slane %v2170, %v2969
    %v2971 = vlaneseq
    %v2972 = vshrl.u32 %v2971, 7
    %v2973 = vsub.s32 6, %v2972
    %v2974 = vrot.slane %v2170, %v2973
    %v2975 = vlaneseq
    %v2976 = vshrl.u32 %v2975, 7
    %v2977 = vsub.s32 7, %v2976
    %v2978 = vrot.slane %v2170, %v2977
    %v2979 = vlaneseq
    %v2980 = vshrl.u32 %v2979, 7
    %v2981 = vsub.s32 0, %v2980
    %v2982 = vrot.slane %v2171, %v2981
    %v2983 = vlaneseq
    %v2984 = vshrl.u32 %v2983, 7
    %v2985 = vsub.s32 1, %v2984
    %v2986 = vrot.slane %v2171, %v2985
    %v2987 = vlaneseq
    %v2988 = vshrl.u32 %v2987, 7
    %v2989 = vsub.s32 2, %v2988
    %v2990 = vrot.slane %v2171, %v2989
    %v2991 = vlaneseq
    %v2992 = vshrl.u32 %v2991, 7
    %v2993 = vsub.s32 3, %v2992
    %v2994 = vrot.slane %v2171, %v2993
    %v2995 = vlaneseq
    %v2996 = vshrl.u32 %v2995, 7
    %v2997 = vsub.s32 4, %v2996
    %v2998 = vrot.slane %v2171, %v2997
    %v2999 = vlaneseq
    %v3000 = vshrl.u32 %v2999, 7
    %v3001 = vsub.s32 5, %v3000
    %v3002 = vrot.slane %v2171, %v3001
    %v3003 = vlaneseq
    %v3004 = vshrl.u32 %v3003, 7
    %v3005 = vsub.s32 6, %v3004
    %v3006 = vrot.slane %v2171, %v3005
    %v3007 = vlaneseq
    %v3008 = vshrl.u32 %v3007, 7
    %v3009 = vsub.s32 7, %v3008
    %v3010 = vrot.slane %v2171, %v3009
    %v3011 = vlaneseq
    %v3012 = vshrl.u32 %v3011, 7
    %v3013 = vsub.s32 0, %v3012
    %v3014 = vrot.slane %v2172, %v3013
    %v3015 = vlaneseq
    %v3016 = vshrl.u32 %v3015, 7
    %v3017 = vsub.s32 1, %v3016
    %v3018 = vrot.slane %v2172, %v3017
    %v3019 = vlaneseq
    %v3020 = vshrl.u32 %v3019, 7
    %v3021 = vsub.s32 2, %v3020
    %v3022 = vrot.slane %v2172, %v3021
    %v3023 = vlaneseq
    %v3024 = vshrl.u32 %v3023, 7
    %v3025 = vsub.s32 3, %v3024
    %v3026 = vrot.slane %v2172, %v3025
    %v3027 = vlaneseq
    %v3028 = vshrl.u32 %v3027, 7
    %v3029 = vsub.s32 4, %v3028
    %v3030 = vrot.slane %v2172, %v3029
    %v3031 = vlaneseq
    %v3032 = vshrl.u32 %v3031, 7
    %v3033 = vsub.s32 5, %v3032
    %v3034 = vrot.slane %v2172, %v3033
    %v3035 = vlaneseq
    %v3036 = vshrl.u32 %v3035, 7
    %v3037 = vsub.s32 6, %v3036
    %v3038 = vrot.slane %v2172, %v3037
    %v3039 = vlaneseq
    %v3040 = vshrl.u32 %v3039, 7
    %v3041 = vsub.s32 7, %v3040
    %v3042 = vrot.slane %v2172, %v3041
    %v3043 = vlaneseq
    %v3044 = vshrl.u32 %v3043, 7
    %v3045 = vsub.s32 0, %v3044
    %v3046 = vrot.slane %v2173, %v3045
    %v3047 = vlaneseq
    %v3048 = vshrl.u32 %v3047, 7
    %v3049 = vsub.s32 1, %v3048
    %v3050 = vrot.slane %v2173, %v3049
    %v3051 = vlaneseq
    %v3052 = vshrl.u32 %v3051, 7
    %v3053 = vsub.s32 2, %v3052
    %v3054 = vrot.slane %v2173, %v3053
    %v3055 = vlaneseq
    %v3056 = vshrl.u32 %v3055, 7
    %v3057 = vsub.s32 3, %v3056
    %v3058 = vrot.slane %v2173, %v3057
    %v3059 = vlaneseq
    %v3060 = vshrl.u32 %v3059, 7
    %v3061 = vsub.s32 4, %v3060
    %v3062 = vrot.slane %v2173, %v3061
    %v3063 = vlaneseq
    %v3064 = vshrl.u32 %v3063, 7
    %v3065 = vsub.s32 5, %v3064
    %v3066 = vrot.slane %v2173, %v3065
    %v3067 = vlaneseq
    %v3068 = vshrl.u32 %v3067, 7
    %v3069 = vsub.s32 6, %v3068
    %v3070 = vrot.slane %v2173, %v3069
    %v3071 = vlaneseq
    %v3072 = vshrl.u32 %v3071, 7
    %v3073 = vsub.s32 7, %v3072
    %v3074 = vrot.slane %v2173, %v3073
    %v3075 = vlaneseq
    %v3076 = vshrl.u32 %v3075, 7
    %v3077 = vsub.s32 0, %v3076
    %v3078 = vrot.slane %v2174, %v3077
    %v3079 = vlaneseq
    %v3080 = vshrl.u32 %v3079, 7
    %v3081 = vsub.s32 1, %v3080
    %v3082 = vrot.slane %v2174, %v3081
    %v3083 = vlaneseq
    %v3084 = vshrl.u32 %v3083, 7
    %v3085 = vsub.s32 2, %v3084
    %v3086 = vrot.slane %v2174, %v3085
    %v3087 = vlaneseq
    %v3088 = vshrl.u32 %v3087, 7
    %v3089 = vsub.s32 3, %v3088
    %v3090 = vrot.slane %v2174, %v3089
    %v3091 = vlaneseq
    %v3092 = vshrl.u32 %v3091, 7
    %v3093 = vsub.s32 4, %v3092
    %v3094 = vrot.slane %v2174, %v3093
    %v3095 = vlaneseq
    %v3096 = vshrl.u32 %v3095, 7
    %v3097 = vsub.s32 5, %v3096
    %v3098 = vrot.slane %v2174, %v3097
    %v3099 = vlaneseq
    %v3100 = vshrl.u32 %v3099, 7
    %v3101 = vsub.s32 6, %v3100
    %v3102 = vrot.slane %v2174, %v3101
    %v3103 = vlaneseq
    %v3104 = vshrl.u32 %v3103, 7
    %v3105 = vsub.s32 7, %v3104
    %v3106 = vrot.slane %v2174, %v3105
    %v3107 = vlaneseq
    %v3108 = vshrl.u32 %v3107, 7
    %v3109 = vsub.s32 0, %v3108
    %v3110 = vrot.slane %v2175, %v3109
    %v3111 = vlaneseq
    %v3112 = vshrl.u32 %v3111, 7
    %v3113 = vsub.s32 1, %v3112
    %v3114 = vrot.slane %v2175, %v3113
    %v3115 = vlaneseq
    %v3116 = vshrl.u32 %v3115, 7
    %v3117 = vsub.s32 2, %v3116
    %v3118 = vrot.slane %v2175, %v3117
    %v3119 = vlaneseq
    %v3120 = vshrl.u32 %v3119, 7
    %v3121 = vsub.s32 3, %v3120
    %v3122 = vrot.slane %v2175, %v3121
    %v3123 = vlaneseq
    %v3124 = vshrl.u32 %v3123, 7
    %v3125 = vsub.s32 4, %v3124
    %v3126 = vrot.slane %v2175, %v3125
    %v3127 = vlaneseq
    %v3128 = vshrl.u32 %v3127, 7
    %v3129 = vsub.s32 5, %v3128
    %v3130 = vrot.slane %v2175, %v3129
    %v3131 = vlaneseq
    %v3132 = vshrl.u32 %v3131, 7
    %v3133 = vsub.s32 6, %v3132
    %v3134 = vrot.slane %v2175, %v3133
    %v3135 = vlaneseq
    %v3136 = vshrl.u32 %v3135, 7
    %v3137 = vsub.s32 7, %v3136
    %v3138 = vrot.slane %v2175, %v3137
    %v3139 = vlaneseq
    %v3140 = vshrl.u32 %v3139, 7
    %v3141 = vsub.s32 0, %v3140
    %v3142 = vrot.slane %v2176, %v3141
    %v3143 = vlaneseq
    %v3144 = vshrl.u32 %v3143, 7
    %v3145 = vsub.s32 1, %v3144
    %v3146 = vrot.slane %v2176, %v3145
    %v3147 = vlaneseq
    %v3148 = vshrl.u32 %v3147, 7
    %v3149 = vsub.s32 2, %v3148
    %v3150 = vrot.slane %v2176, %v3149
    %v3151 = vlaneseq
    %v3152 = vshrl.u32 %v3151, 7
    %v3153 = vsub.s32 3, %v3152
    %v3154 = vrot.slane %v2176, %v3153
    %v3155 = vlaneseq
    %v3156 = vshrl.u32 %v3155, 7
    %v3157 = vsub.s32 4, %v3156
    %v3158 = vrot.slane %v2176, %v3157
    %v3159 = vlaneseq
    %v3160 = vshrl.u32 %v3159, 7
    %v3161 = vsub.s32 5, %v3160
    %v3162 = vrot.slane %v2176, %v3161
    %v3163 = vlaneseq
    %v3164 = vshrl.u32 %v3163, 7
    %v3165 = vsub.s32 6, %v3164
    %v3166 = vrot.slane %v2176, %v3165
    %v3167 = vlaneseq
    %v3168 = vshrl.u32 %v3167, 7
    %v3169 = vsub.s32 7, %v3168
    %v3170 = vrot.slane %v2176, %v3169
    %v3171 = vlaneseq
    %v3172 = vshrl.u32 %v3171, 7
    %v3173 = vsub.s32 0, %v3172
    %v3174 = vrot.slane %v2177, %v3173
    %v3175 = vlaneseq
    %v3176 = vshrl.u32 %v3175, 7
    %v3177 = vsub.s32 1, %v3176
    %v3178 = vrot.slane %v2177, %v3177
    %v3179 = vlaneseq
    %v3180 = vshrl.u32 %v3179, 7
    %v3181 = vsub.s32 2, %v3180
    %v3182 = vrot.slane %v2177, %v3181
    %v3183 = vlaneseq
    %v3184 = vshrl.u32 %v3183, 7
    %v3185 = vsub.s32 3, %v3184
    %v3186 = vrot.slane %v2177, %v3185
    %v3187 = vlaneseq
    %v3188 = vshrl.u32 %v3187, 7
    %v3189 = vsub.s32 4, %v3188
    %v3190 = vrot.slane %v2177, %v3189
    %v3191 = vlaneseq
    %v3192 = vshrl.u32 %v3191, 7
    %v3193 = vsub.s32 5, %v3192
    %v3194 = vrot.slane %v2177, %v3193
    %v3195 = vlaneseq
    %v3196 = vshrl.u32 %v3195, 7
    %v3197 = vsub.s32 6, %v3196
    %v3198 = vrot.slane %v2177, %v3197
    %v3199 = vlaneseq
    %v3200 = vshrl.u32 %v3199, 7
    %v3201 = vsub.s32 7, %v3200
    %v3202 = vrot.slane %v2177, %v3201
    %v3203 = vlaneseq
    %v3204 = vshrl.u32 %v3203, 7
    %v3205 = vsub.s32 0, %v3204
    %v3206 = vrot.slane %v2178, %v3205
    %v3207 = vlaneseq
    %v3208 = vshrl.u32 %v3207, 7
    %v3209 = vsub.s32 1, %v3208
    %v3210 = vrot.slane %v2178, %v3209
    %v3211 = vlaneseq
    %v3212 = vshrl.u32 %v3211, 7
    %v3213 = vsub.s32 2, %v3212
    %v3214 = vrot.slane %v2178, %v3213
    %v3215 = vlaneseq
    %v3216 = vshrl.u32 %v3215, 7
    %v3217 = vsub.s32 3, %v3216
    %v3218 = vrot.slane %v2178, %v3217
    %v3219 = vlaneseq
    %v3220 = vshrl.u32 %v3219, 7
    %v3221 = vsub.s32 4, %v3220
    %v3222 = vrot.slane %v2178, %v3221
    %v3223 = vlaneseq
    %v3224 = vshrl.u32 %v3223, 7
    %v3225 = vsub.s32 5, %v3224
    %v3226 = vrot.slane %v2178, %v3225
    %v3227 = vlaneseq
    %v3228 = vshrl.u32 %v3227, 7
    %v3229 = vsub.s32 6, %v3228
    %v3230 = vrot.slane %v2178, %v3229
    %v3231 = vlaneseq
    %v3232 = vshrl.u32 %v3231, 7
    %v3233 = vsub.s32 7, %v3232
    %v3234 = vrot.slane %v2178, %v3233
    %v3235 = vcombine.low %v2214, %v2218
    %v3236 = vcombine.low %v2222, %v2226
    %v3237 = vcombine.low %v2230, %v2234
    %v3238 = vcombine.low %v2238, %v2242
    %v3240 = vunpack.c.l.s4 1966171168
    %v3241 = vunpack.c.0.s8 %v3240
    %v3242 = vlaneseq
    %v3243 = vshrl.u32 %v3242, 7
    %v3244 = vsub.s32 %v3241, %v3243
    %v3245 = vrot.slane %v3235, %v3244
    %v3247 = vunpack.c.l.s4 1966171168
    %v3248 = vunpack.c.0.s8 %v3247
    %v3249 = vlaneseq
    %v3250 = vshrl.u32 %v3249, 7
    %v3251 = vsub.s32 %v3248, %v3250
    %v3252 = vrot.slane %v3236, %v3251
    %v3254 = vunpack.c.l.s4 1966171168
    %v3255 = vunpack.c.0.s8 %v3254
    %v3256 = vlaneseq
    %v3257 = vshrl.u32 %v3256, 7
    %v3258 = vsub.s32 %v3255, %v3257
    %v3259 = vrot.slane %v3237, %v3258
    %v3261 = vunpack.c.l.s4 1966171168
    %v3262 = vunpack.c.0.s8 %v3261
    %v3263 = vlaneseq
    %v3264 = vshrl.u32 %v3263, 7
    %v3265 = vsub.s32 %v3262, %v3264
    %v3266 = vrot.slane %v3238, %v3265
    %v3267 = vcombine.low %v3245, %v3252
    %v3268 = vcombine.low %v3259, %v3266
    %v3270 = vunpack.c.l.s4 1966171168
    %v3271 = vunpack.c.0.s8 %v3270
    %v3272 = vlaneseq
    %v3273 = vshrl.u32 %v3272, 7
    %v3274 = vsub.s32 %v3271, %v3273
    %v3275 = vrot.slane %v3267, %v3274
    %v3277 = vunpack.c.l.s4 1966171168
    %v3278 = vunpack.c.0.s8 %v3277
    %v3279 = vlaneseq
    %v3280 = vshrl.u32 %v3279, 7
    %v3281 = vsub.s32 %v3278, %v3280
    %v3282 = vrot.slane %v3268, %v3281
    %v3283 = vcombine.low %v3275, %v3282
    %v3284 = vcombine.low %v2246, %v2250
    %v3285 = vcombine.low %v2254, %v2258
    %v3286 = vcombine.low %v2262, %v2266
    %v3287 = vcombine.low %v2270, %v2274
    %v3289 = vunpack.c.l.s4 1966171168
    %v3290 = vunpack.c.0.s8 %v3289
    %v3291 = vlaneseq
    %v3292 = vshrl.u32 %v3291, 7
    %v3293 = vsub.s32 %v3290, %v3292
    %v3294 = vrot.slane %v3284, %v3293
    %v3296 = vunpack.c.l.s4 1966171168
    %v3297 = vunpack.c.0.s8 %v3296
    %v3298 = vlaneseq
    %v3299 = vshrl.u32 %v3298, 7
    %v3300 = vsub.s32 %v3297, %v3299
    %v3301 = vrot.slane %v3285, %v3300
    %v3303 = vunpack.c.l.s4 1966171168
    %v3304 = vunpack.c.0.s8 %v3303
    %v3305 = vlaneseq
    %v3306 = vshrl.u32 %v3305, 7
    %v3307 = vsub.s32 %v3304, %v3306
    %v3308 = vrot.slane %v3286, %v3307
    %v3310 = vunpack.c.l.s4 1966171168
    %v3311 = vunpack.c.0.s8 %v3310
    %v3312 = vlaneseq
    %v3313 = vshrl.u32 %v3312, 7
    %v3314 = vsub.s32 %v3311, %v3313
    %v3315 = vrot.slane %v3287, %v3314
    %v3316 = vcombine.low %v3294, %v3301
    %v3317 = vcombine.low %v3308, %v3315
    %v3319 = vunpack.c.l.s4 1966171168
    %v3320 = vunpack.c.0.s8 %v3319
    %v3321 = vlaneseq
    %v3322 = vshrl.u32 %v3321, 7
    %v3323 = vsub.s32 %v3320, %v3322
    %v3324 = vrot.slane %v3316, %v3323
    %v3326 = vunpack.c.l.s4 1966171168
    %v3327 = vunpack.c.0.s8 %v3326
    %v3328 = vlaneseq
    %v3329 = vshrl.u32 %v3328, 7
    %v3330 = vsub.s32 %v3327, %v3329
    %v3331 = vrot.slane %v3317, %v3330
    %v3332 = vcombine.low %v3324, %v3331
    %v3333 = vcombine.low %v2278, %v2282
    %v3334 = vcombine.low %v2286, %v2290
    %v3335 = vcombine.low %v2294, %v2298
    %v3336 = vcombine.low %v2302, %v2306
    %v3338 = vunpack.c.l.s4 1966171168
    %v3339 = vunpack.c.0.s8 %v3338
    %v3340 = vlaneseq
    %v3341 = vshrl.u32 %v3340, 7
    %v3342 = vsub.s32 %v3339, %v3341
    %v3343 = vrot.slane %v3333, %v3342
    %v3345 = vunpack.c.l.s4 1966171168
    %v3346 = vunpack.c.0.s8 %v3345
    %v3347 = vlaneseq
    %v3348 = vshrl.u32 %v3347, 7
    %v3349 = vsub.s32 %v3346, %v3348
    %v3350 = vrot.slane %v3334, %v3349
    %v3352 = vunpack.c.l.s4 1966171168
    %v3353 = vunpack.c.0.s8 %v3352
    %v3354 = vlaneseq
    %v3355 = vshrl.u32 %v3354, 7
    %v3356 = vsub.s32 %v3353, %v3355
    %v3357 = vrot.slane %v3335, %v3356
    %v3359 = vunpack.c.l.s4 1966171168
    %v3360 = vunpack.c.0.s8 %v3359
    %v3361 = vlaneseq
    %v3362 = vshrl.u32 %v3361, 7
    %v3363 = vsub.s32 %v3360, %v3362
    %v3364 = vrot.slane %v3336, %v3363
    %v3365 = vcombine.low %v3343, %v3350
    %v3366 = vcombine.low %v3357, %v3364
    %v3368 = vunpack.c.l.s4 1966171168
    %v3369 = vunpack.c.0.s8 %v3368
    %v3370 = vlaneseq
    %v3371 = vshrl.u32 %v3370, 7
    %v3372 = vsub.s32 %v3369, %v3371
    %v3373 = vrot.slane %v3365, %v3372
    %v3375 = vunpack.c.l.s4 1966171168
    %v3376 = vunpack.c.0.s8 %v3375
    %v3377 = vlaneseq
    %v3378 = vshrl.u32 %v3377, 7
    %v3379 = vsub.s32 %v3376, %v3378
    %v3380 = vrot.slane %v3366, %v3379
    %v3381 = vcombine.low %v3373, %v3380
    %v3382 = vcombine.low %v2310, %v2314
    %v3383 = vcombine.low %v2318, %v2322
    %v3384 = vcombine.low %v2326, %v2330
    %v3385 = vcombine.low %v2334, %v2338
    %v3387 = vunpack.c.l.s4 1966171168
    %v3388 = vunpack.c.0.s8 %v3387
    %v3389 = vlaneseq
    %v3390 = vshrl.u32 %v3389, 7
    %v3391 = vsub.s32 %v3388, %v3390
    %v3392 = vrot.slane %v3382, %v3391
    %v3394 = vunpack.c.l.s4 1966171168
    %v3395 = vunpack.c.0.s8 %v3394
    %v3396 = vlaneseq
    %v3397 = vshrl.u32 %v3396, 7
    %v3398 = vsub.s32 %v3395, %v3397
    %v3399 = vrot.slane %v3383, %v3398
    %v3401 = vunpack.c.l.s4 1966171168
    %v3402 = vunpack.c.0.s8 %v3401
    %v3403 = vlaneseq
    %v3404 = vshrl.u32 %v3403, 7
    %v3405 = vsub.s32 %v3402, %v3404
    %v3406 = vrot.slane %v3384, %v3405
    %v3408 = vunpack.c.l.s4 1966171168
    %v3409 = vunpack.c.0.s8 %v3408
    %v3410 = vlaneseq
    %v3411 = vshrl.u32 %v3410, 7
    %v3412 = vsub.s32 %v3409, %v3411
    %v3413 = vrot.slane %v3385, %v3412
    %v3414 = vcombine.low %v3392, %v3399
    %v3415 = vcombine.low %v3406, %v3413
    %v3417 = vunpack.c.l.s4 1966171168
    %v3418 = vunpack.c.0.s8 %v3417
    %v3419 = vlaneseq
    %v3420 = vshrl.u32 %v3419, 7
    %v3421 = vsub.s32 %v3418, %v3420
    %v3422 = vrot.slane %v3414, %v3421
    %v3424 = vunpack.c.l.s4 1966171168
    %v3425 = vunpack.c.0.s8 %v3424
    %v3426 = vlaneseq
    %v3427 = vshrl.u32 %v3426, 7
    %v3428 = vsub.s32 %v3425, %v3427
    %v3429 = vrot.slane %v3415, %v3428
    %v3430 = vcombine.low %v3422, %v3429
    %v3431 = vcombine.low %v2342, %v2346
    %v3432 = vcombine.low %v2350, %v2354
    %v3433 = vcombine.low %v2358, %v2362
    %v3434 = vcombine.low %v2366, %v2370
    %v3436 = vunpack.c.l.s4 1966171168
    %v3437 = vunpack.c.0.s8 %v3436
    %v3438 = vlaneseq
    %v3439 = vshrl.u32 %v3438, 7
    %v3440 = vsub.s32 %v3437, %v3439
    %v3441 = vrot.slane %v3431, %v3440
    %v3443 = vunpack.c.l.s4 1966171168
    %v3444 = vunpack.c.0.s8 %v3443
    %v3445 = vlaneseq
    %v3446 = vshrl.u32 %v3445, 7
    %v3447 = vsub.s32 %v3444, %v3446
    %v3448 = vrot.slane %v3432, %v3447
    %v3450 = vunpack.c.l.s4 1966171168
    %v3451 = vunpack.c.0.s8 %v3450
    %v3452 = vlaneseq
    %v3453 = vshrl.u32 %v3452, 7
    %v3454 = vsub.s32 %v3451, %v3453
    %v3455 = vrot.slane %v3433, %v3454
    %v3457 = vunpack.c.l.s4 1966171168
    %v3458 = vunpack.c.0.s8 %v3457
    %v3459 = vlaneseq
    %v3460 = vshrl.u32 %v3459, 7
    %v3461 = vsub.s32 %v3458, %v3460
    %v3462 = vrot.slane %v3434, %v3461
    %v3463 = vcombine.low %v3441, %v3448
    %v3464 = vcombine.low %v3455, %v3462
    %v3466 = vunpack.c.l.s4 1966171168
    %v3467 = vunpack.c.0.s8 %v3466
    %v3468 = vlaneseq
    %v3469 = vshrl.u32 %v3468, 7
    %v3470 = vsub.s32 %v3467, %v3469
    %v3471 = vrot.slane %v3463, %v3470
    %v3473 = vunpack.c.l.s4 1966171168
    %v3474 = vunpack.c.0.s8 %v3473
    %v3475 = vlaneseq
    %v3476 = vshrl.u32 %v3475, 7
    %v3477 = vsub.s32 %v3474, %v3476
    %v3478 = vrot.slane %v3464, %v3477
    %v3479 = vcombine.low %v3471, %v3478
    %v3480 = vcombine.low %v2374, %v2378
    %v3481 = vcombine.low %v2382, %v2386
    %v3482 = vcombine.low %v2390, %v2394
    %v3483 = vcombine.low %v2398, %v2402
    %v3485 = vunpack.c.l.s4 1966171168
    %v3486 = vunpack.c.0.s8 %v3485
    %v3487 = vlaneseq
    %v3488 = vshrl.u32 %v3487, 7
    %v3489 = vsub.s32 %v3486, %v3488
    %v3490 = vrot.slane %v3480, %v3489
    %v3492 = vunpack.c.l.s4 1966171168
    %v3493 = vunpack.c.0.s8 %v3492
    %v3494 = vlaneseq
    %v3495 = vshrl.u32 %v3494, 7
    %v3496 = vsub.s32 %v3493, %v3495
    %v3497 = vrot.slane %v3481, %v3496
    %v3499 = vunpack.c.l.s4 1966171168
    %v3500 = vunpack.c.0.s8 %v3499
    %v3501 = vlaneseq
    %v3502 = vshrl.u32 %v3501, 7
    %v3503 = vsub.s32 %v3500, %v3502
    %v3504 = vrot.slane %v3482, %v3503
    %v3506 = vunpack.c.l.s4 1966171168
    %v3507 = vunpack.c.0.s8 %v3506
    %v3508 = vlaneseq
    %v3509 = vshrl.u32 %v3508, 7
    %v3510 = vsub.s32 %v3507, %v3509
    %v3511 = vrot.slane %v3483, %v3510
    %v3512 = vcombine.low %v3490, %v3497
    %v3513 = vcombine.low %v3504, %v3511
    %v3515 = vunpack.c.l.s4 1966171168
    %v3516 = vunpack.c.0.s8 %v3515
    %v3517 = vlaneseq
    %v3518 = vshrl.u32 %v3517, 7
    %v3519 = vsub.s32 %v3516, %v3518
    %v3520 = vrot.slane %v3512, %v3519
    %v3522 = vunpack.c.l.s4 1966171168
    %v3523 = vunpack.c.0.s8 %v3522
    %v3524 = vlaneseq
    %v3525 = vshrl.u32 %v3524, 7
    %v3526 = vsub.s32 %v3523, %v3525
    %v3527 = vrot.slane %v3513, %v3526
    %v3528 = vcombine.low %v3520, %v3527
    %v3529 = vcombine.low %v2406, %v2410
    %v3530 = vcombine.low %v2414, %v2418
    %v3531 = vcombine.low %v2422, %v2426
    %v3532 = vcombine.low %v2430, %v2434
    %v3534 = vunpack.c.l.s4 1966171168
    %v3535 = vunpack.c.0.s8 %v3534
    %v3536 = vlaneseq
    %v3537 = vshrl.u32 %v3536, 7
    %v3538 = vsub.s32 %v3535, %v3537
    %v3539 = vrot.slane %v3529, %v3538
    %v3541 = vunpack.c.l.s4 1966171168
    %v3542 = vunpack.c.0.s8 %v3541
    %v3543 = vlaneseq
    %v3544 = vshrl.u32 %v3543, 7
    %v3545 = vsub.s32 %v3542, %v3544
    %v3546 = vrot.slane %v3530, %v3545
    %v3548 = vunpack.c.l.s4 1966171168
    %v3549 = vunpack.c.0.s8 %v3548
    %v3550 = vlaneseq
    %v3551 = vshrl.u32 %v3550, 7
    %v3552 = vsub.s32 %v3549, %v3551
    %v3553 = vrot.slane %v3531, %v3552
    %v3555 = vunpack.c.l.s4 1966171168
    %v3556 = vunpack.c.0.s8 %v3555
    %v3557 = vlaneseq
    %v3558 = vshrl.u32 %v3557, 7
    %v3559 = vsub.s32 %v3556, %v3558
    %v3560 = vrot.slane %v3532, %v3559
    %v3561 = vcombine.low %v3539, %v3546
    %v3562 = vcombine.low %v3553, %v3560
    %v3564 = vunpack.c.l.s4 1966171168
    %v3565 = vunpack.c.0.s8 %v3564
    %v3566 = vlaneseq
    %v3567 = vshrl.u32 %v3566, 7
    %v3568 = vsub.s32 %v3565, %v3567
    %v3569 = vrot.slane %v3561, %v3568
    %v3571 = vunpack.c.l.s4 1966171168
    %v3572 = vunpack.c.0.s8 %v3571
    %v3573 = vlaneseq
    %v3574 = vshrl.u32 %v3573, 7
    %v3575 = vsub.s32 %v3572, %v3574
    %v3576 = vrot.slane %v3562, %v3575
    %v3577 = vcombine.low %v3569, %v3576
    %v3578 = vcombine.low %v2438, %v2442
    %v3579 = vcombine.low %v2446, %v2450
    %v3580 = vcombine.low %v2454, %v2458
    %v3581 = vcombine.low %v2462, %v2466
    %v3583 = vunpack.c.l.s4 1966171168
    %v3584 = vunpack.c.0.s8 %v3583
    %v3585 = vlaneseq
    %v3586 = vshrl.u32 %v3585, 7
    %v3587 = vsub.s32 %v3584, %v3586
    %v3588 = vrot.slane %v3578, %v3587
    %v3590 = vunpack.c.l.s4 1966171168
    %v3591 = vunpack.c.0.s8 %v3590
    %v3592 = vlaneseq
    %v3593 = vshrl.u32 %v3592, 7
    %v3594 = vsub.s32 %v3591, %v3593
    %v3595 = vrot.slane %v3579, %v3594
    %v3597 = vunpack.c.l.s4 1966171168
    %v3598 = vunpack.c.0.s8 %v3597
    %v3599 = vlaneseq
    %v3600 = vshrl.u32 %v3599, 7
    %v3601 = vsub.s32 %v3598, %v3600
    %v3602 = vrot.slane %v3580, %v3601
    %v3604 = vunpack.c.l.s4 1966171168
    %v3605 = vunpack.c.0.s8 %v3604
    %v3606 = vlaneseq
    %v3607 = vshrl.u32 %v3606, 7
    %v3608 = vsub.s32 %v3605, %v3607
    %v3609 = vrot.slane %v3581, %v3608
    %v3610 = vcombine.low %v3588, %v3595
    %v3611 = vcombine.low %v3602, %v3609
    %v3613 = vunpack.c.l.s4 1966171168
    %v3614 = vunpack.c.0.s8 %v3613
    %v3615 = vlaneseq
    %v3616 = vshrl.u32 %v3615, 7
    %v3617 = vsub.s32 %v3614, %v3616
    %v3618 = vrot.slane %v3610, %v3617
    %v3620 = vunpack.c.l.s4 1966171168
    %v3621 = vunpack.c.0.s8 %v3620
    %v3622 = vlaneseq
    %v3623 = vshrl.u32 %v3622, 7
    %v3624 = vsub.s32 %v3621, %v3623
    %v3625 = vrot.slane %v3611, %v3624
    %v3626 = vcombine.low %v3618, %v3625
    %v3627 = vcombine.low %v2470, %v2474
    %v3628 = vcombine.low %v2478, %v2482
    %v3629 = vcombine.low %v2486, %v2490
    %v3630 = vcombine.low %v2494, %v2498
    %v3632 = vunpack.c.l.s4 1966171168
    %v3633 = vunpack.c.0.s8 %v3632
    %v3634 = vlaneseq
    %v3635 = vshrl.u32 %v3634, 7
    %v3636 = vsub.s32 %v3633, %v3635
    %v3637 = vrot.slane %v3627, %v3636
    %v3639 = vunpack.c.l.s4 1966171168
    %v3640 = vunpack.c.0.s8 %v3639
    %v3641 = vlaneseq
    %v3642 = vshrl.u32 %v3641, 7
    %v3643 = vsub.s32 %v3640, %v3642
    %v3644 = vrot.slane %v3628, %v3643
    %v3646 = vunpack.c.l.s4 1966171168
    %v3647 = vunpack.c.0.s8 %v3646
    %v3648 = vlaneseq
    %v3649 = vshrl.u32 %v3648, 7
    %v3650 = vsub.s32 %v3647, %v3649
    %v3651 = vrot.slane %v3629, %v3650
    %v3653 = vunpack.c.l.s4 1966171168
    %v3654 = vunpack.c.0.s8 %v3653
    %v3655 = vlaneseq
    %v3656 = vshrl.u32 %v3655, 7
    %v3657 = vsub.s32 %v3654, %v3656
    %v3658 = vrot.slane %v3630, %v3657
    %v3659 = vcombine.low %v3637, %v3644
    %v3660 = vcombine.low %v3651, %v3658
    %v3662 = vunpack.c.l.s4 1966171168
    %v3663 = vunpack.c.0.s8 %v3662
    %v3664 = vlaneseq
    %v3665 = vshrl.u32 %v3664, 7
    %v3666 = vsub.s32 %v3663, %v3665
    %v3667 = vrot.slane %v3659, %v3666
    %v3669 = vunpack.c.l.s4 1966171168
    %v3670 = vunpack.c.0.s8 %v3669
    %v3671 = vlaneseq
    %v3672 = vshrl.u32 %v3671, 7
    %v3673 = vsub.s32 %v3670, %v3672
    %v3674 = vrot.slane %v3660, %v3673
    %v3675 = vcombine.low %v3667, %v3674
    %v3676 = vcombine.low %v2502, %v2506
    %v3677 = vcombine.low %v2510, %v2514
    %v3678 = vcombine.low %v2518, %v2522
    %v3679 = vcombine.low %v2526, %v2530
    %v3681 = vunpack.c.l.s4 1966171168
    %v3682 = vunpack.c.0.s8 %v3681
    %v3683 = vlaneseq
    %v3684 = vshrl.u32 %v3683, 7
    %v3685 = vsub.s32 %v3682, %v3684
    %v3686 = vrot.slane %v3676, %v3685
    %v3688 = vunpack.c.l.s4 1966171168
    %v3689 = vunpack.c.0.s8 %v3688
    %v3690 = vlaneseq
    %v3691 = vshrl.u32 %v3690, 7
    %v3692 = vsub.s32 %v3689, %v3691
    %v3693 = vrot.slane %v3677, %v3692
    %v3695 = vunpack.c.l.s4 1966171168
    %v3696 = vunpack.c.0.s8 %v3695
    %v3697 = vlaneseq
    %v3698 = vshrl.u32 %v3697, 7
    %v3699 = vsub.s32 %v3696, %v3698
    %v3700 = vrot.slane %v3678, %v3699
    %v3702 = vunpack.c.l.s4 1966171168
    %v3703 = vunpack.c.0.s8 %v3702
    %v3704 = vlaneseq
    %v3705 = vshrl.u32 %v3704, 7
    %v3706 = vsub.s32 %v3703, %v3705
    %v3707 = vrot.slane %v3679, %v3706
    %v3708 = vcombine.low %v3686, %v3693
    %v3709 = vcombine.low %v3700, %v3707
    %v3711 = vunpack.c.l.s4 1966171168
    %v3712 = vunpack.c.0.s8 %v3711
    %v3713 = vlaneseq
    %v3714 = vshrl.u32 %v3713, 7
    %v3715 = vsub.s32 %v3712, %v3714
    %v3716 = vrot.slane %v3708, %v3715
    %v3718 = vunpack.c.l.s4 1966171168
    %v3719 = vunpack.c.0.s8 %v3718
    %v3720 = vlaneseq
    %v3721 = vshrl.u32 %v3720, 7
    %v3722 = vsub.s32 %v3719, %v3721
    %v3723 = vrot.slane %v3709, %v3722
    %v3724 = vcombine.low %v3716, %v3723
    %v3725 = vcombine.low %v2534, %v2538
    %v3726 = vcombine.low %v2542, %v2546
    %v3727 = vcombine.low %v2550, %v2554
    %v3728 = vcombine.low %v2558, %v2562
    %v3730 = vunpack.c.l.s4 1966171168
    %v3731 = vunpack.c.0.s8 %v3730
    %v3732 = vlaneseq
    %v3733 = vshrl.u32 %v3732, 7
    %v3734 = vsub.s32 %v3731, %v3733
    %v3735 = vrot.slane %v3725, %v3734
    %v3737 = vunpack.c.l.s4 1966171168
    %v3738 = vunpack.c.0.s8 %v3737
    %v3739 = vlaneseq
    %v3740 = vshrl.u32 %v3739, 7
    %v3741 = vsub.s32 %v3738, %v3740
    %v3742 = vrot.slane %v3726, %v3741
    %v3744 = vunpack.c.l.s4 1966171168
    %v3745 = vunpack.c.0.s8 %v3744
    %v3746 = vlaneseq
    %v3747 = vshrl.u32 %v3746, 7
    %v3748 = vsub.s32 %v3745, %v3747
    %v3749 = vrot.slane %v3727, %v3748
    %v3751 = vunpack.c.l.s4 1966171168
    %v3752 = vunpack.c.0.s8 %v3751
    %v3753 = vlaneseq
    %v3754 = vshrl.u32 %v3753, 7
    %v3755 = vsub.s32 %v3752, %v3754
    %v3756 = vrot.slane %v3728, %v3755
    %v3757 = vcombine.low %v3735, %v3742
    %v3758 = vcombine.low %v3749, %v3756
    %v3760 = vunpack.c.l.s4 1966171168
    %v3761 = vunpack.c.0.s8 %v3760
    %v3762 = vlaneseq
    %v3763 = vshrl.u32 %v3762, 7
    %v3764 = vsub.s32 %v3761, %v3763
    %v3765 = vrot.slane %v3757, %v3764
    %v3767 = vunpack.c.l.s4 1966171168
    %v3768 = vunpack.c.0.s8 %v3767
    %v3769 = vlaneseq
    %v3770 = vshrl.u32 %v3769, 7
    %v3771 = vsub.s32 %v3768, %v3770
    %v3772 = vrot.slane %v3758, %v3771
    %v3773 = vcombine.low %v3765, %v3772
    %v3774 = vcombine.low %v2566, %v2570
    %v3775 = vcombine.low %v2574, %v2578
    %v3776 = vcombine.low %v2582, %v2586
    %v3777 = vcombine.low %v2590, %v2594
    %v3779 = vunpack.c.l.s4 1966171168
    %v3780 = vunpack.c.0.s8 %v3779
    %v3781 = vlaneseq
    %v3782 = vshrl.u32 %v3781, 7
    %v3783 = vsub.s32 %v3780, %v3782
    %v3784 = vrot.slane %v3774, %v3783
    %v3786 = vunpack.c.l.s4 1966171168
    %v3787 = vunpack.c.0.s8 %v3786
    %v3788 = vlaneseq
    %v3789 = vshrl.u32 %v3788, 7
    %v3790 = vsub.s32 %v3787, %v3789
    %v3791 = vrot.slane %v3775, %v3790
    %v3793 = vunpack.c.l.s4 1966171168
    %v3794 = vunpack.c.0.s8 %v3793
    %v3795 = vlaneseq
    %v3796 = vshrl.u32 %v3795, 7
    %v3797 = vsub.s32 %v3794, %v3796
    %v3798 = vrot.slane %v3776, %v3797
    %v3800 = vunpack.c.l.s4 1966171168
    %v3801 = vunpack.c.0.s8 %v3800
    %v3802 = vlaneseq
    %v3803 = vshrl.u32 %v3802, 7
    %v3804 = vsub.s32 %v3801, %v3803
    %v3805 = vrot.slane %v3777, %v3804
    %v3806 = vcombine.low %v3784, %v3791
    %v3807 = vcombine.low %v3798, %v3805
    %v3809 = vunpack.c.l.s4 1966171168
    %v3810 = vunpack.c.0.s8 %v3809
    %v3811 = vlaneseq
    %v3812 = vshrl.u32 %v3811, 7
    %v3813 = vsub.s32 %v3810, %v3812
    %v3814 = vrot.slane %v3806, %v3813
    %v3816 = vunpack.c.l.s4 1966171168
    %v3817 = vunpack.c.0.s8 %v3816
    %v3818 = vlaneseq
    %v3819 = vshrl.u32 %v3818, 7
    %v3820 = vsub.s32 %v3817, %v3819
    %v3821 = vrot.slane %v3807, %v3820
    %v3822 = vcombine.low %v3814, %v3821
    %v3823 = vcombine.low %v2598, %v2602
    %v3824 = vcombine.low %v2606, %v2610
    %v3825 = vcombine.low %v2614, %v2618
    %v3826 = vcombine.low %v2622, %v2626
    %v3828 = vunpack.c.l.s4 1966171168
    %v3829 = vunpack.c.0.s8 %v3828
    %v3830 = vlaneseq
    %v3831 = vshrl.u32 %v3830, 7
    %v3832 = vsub.s32 %v3829, %v3831
    %v3833 = vrot.slane %v3823, %v3832
    %v3835 = vunpack.c.l.s4 1966171168
    %v3836 = vunpack.c.0.s8 %v3835
    %v3837 = vlaneseq
    %v3838 = vshrl.u32 %v3837, 7
    %v3839 = vsub.s32 %v3836, %v3838
    %v3840 = vrot.slane %v3824, %v3839
    %v3842 = vunpack.c.l.s4 1966171168
    %v3843 = vunpack.c.0.s8 %v3842
    %v3844 = vlaneseq
    %v3845 = vshrl.u32 %v3844, 7
    %v3846 = vsub.s32 %v3843, %v3845
    %v3847 = vrot.slane %v3825, %v3846
    %v3849 = vunpack.c.l.s4 1966171168
    %v3850 = vunpack.c.0.s8 %v3849
    %v3851 = vlaneseq
    %v3852 = vshrl.u32 %v3851, 7
    %v3853 = vsub.s32 %v3850, %v3852
    %v3854 = vrot.slane %v3826, %v3853
    %v3855 = vcombine.low %v3833, %v3840
    %v3856 = vcombine.low %v3847, %v3854
    %v3858 = vunpack.c.l.s4 1966171168
    %v3859 = vunpack.c.0.s8 %v3858
    %v3860 = vlaneseq
    %v3861 = vshrl.u32 %v3860, 7
    %v3862 = vsub.s32 %v3859, %v3861
    %v3863 = vrot.slane %v3855, %v3862
    %v3865 = vunpack.c.l.s4 1966171168
    %v3866 = vunpack.c.0.s8 %v3865
    %v3867 = vlaneseq
    %v3868 = vshrl.u32 %v3867, 7
    %v3869 = vsub.s32 %v3866, %v3868
    %v3870 = vrot.slane %v3856, %v3869
    %v3871 = vcombine.low %v3863, %v3870
    %v3872 = vcombine.low %v2630, %v2634
    %v3873 = vcombine.low %v2638, %v2642
    %v3874 = vcombine.low %v2646, %v2650
    %v3875 = vcombine.low %v2654, %v2658
    %v3877 = vunpack.c.l.s4 1966171168
    %v3878 = vunpack.c.0.s8 %v3877
    %v3879 = vlaneseq
    %v3880 = vshrl.u32 %v3879, 7
    %v3881 = vsub.s32 %v3878, %v3880
    %v3882 = vrot.slane %v3872, %v3881
    %v3884 = vunpack.c.l.s4 1966171168
    %v3885 = vunpack.c.0.s8 %v3884
    %v3886 = vlaneseq
    %v3887 = vshrl.u32 %v3886, 7
    %v3888 = vsub.s32 %v3885, %v3887
    %v3889 = vrot.slane %v3873, %v3888
    %v3891 = vunpack.c.l.s4 1966171168
    %v3892 = vunpack.c.0.s8 %v3891
    %v3893 = vlaneseq
    %v3894 = vshrl.u32 %v3893, 7
    %v3895 = vsub.s32 %v3892, %v3894
    %v3896 = vrot.slane %v3874, %v3895
    %v3898 = vunpack.c.l.s4 1966171168
    %v3899 = vunpack.c.0.s8 %v3898
    %v3900 = vlaneseq
    %v3901 = vshrl.u32 %v3900, 7
    %v3902 = vsub.s32 %v3899, %v3901
    %v3903 = vrot.slane %v3875, %v3902
    %v3904 = vcombine.low %v3882, %v3889
    %v3905 = vcombine.low %v3896, %v3903
    %v3907 = vunpack.c.l.s4 1966171168
    %v3908 = vunpack.c.0.s8 %v3907
    %v3909 = vlaneseq
    %v3910 = vshrl.u32 %v3909, 7
    %v3911 = vsub.s32 %v3908, %v3910
    %v3912 = vrot.slane %v3904, %v3911
    %v3914 = vunpack.c.l.s4 1966171168
    %v3915 = vunpack.c.0.s8 %v3914
    %v3916 = vlaneseq
    %v3917 = vshrl.u32 %v3916, 7
    %v3918 = vsub.s32 %v3915, %v3917
    %v3919 = vrot.slane %v3905, %v3918
    %v3920 = vcombine.low %v3912, %v3919
    %v3921 = vcombine.low %v2662, %v2666
    %v3922 = vcombine.low %v2670, %v2674
    %v3923 = vcombine.low %v2678, %v2682
    %v3924 = vcombine.low %v2686, %v2690
    %v3926 = vunpack.c.l.s4 1966171168
    %v3927 = vunpack.c.0.s8 %v3926
    %v3928 = vlaneseq
    %v3929 = vshrl.u32 %v3928, 7
    %v3930 = vsub.s32 %v3927, %v3929
    %v3931 = vrot.slane %v3921, %v3930
    %v3933 = vunpack.c.l.s4 1966171168
    %v3934 = vunpack.c.0.s8 %v3933
    %v3935 = vlaneseq
    %v3936 = vshrl.u32 %v3935, 7
    %v3937 = vsub.s32 %v3934, %v3936
    %v3938 = vrot.slane %v3922, %v3937
    %v3940 = vunpack.c.l.s4 1966171168
    %v3941 = vunpack.c.0.s8 %v3940
    %v3942 = vlaneseq
    %v3943 = vshrl.u32 %v3942, 7
    %v3944 = vsub.s32 %v3941, %v3943
    %v3945 = vrot.slane %v3923, %v3944
    %v3947 = vunpack.c.l.s4 1966171168
    %v3948 = vunpack.c.0.s8 %v3947
    %v3949 = vlaneseq
    %v3950 = vshrl.u32 %v3949, 7
    %v3951 = vsub.s32 %v3948, %v3950
    %v3952 = vrot.slane %v3924, %v3951
    %v3953 = vcombine.low %v3931, %v3938
    %v3954 = vcombine.low %v3945, %v3952
    %v3956 = vunpack.c.l.s4 1966171168
    %v3957 = vunpack.c.0.s8 %v3956
    %v3958 = vlaneseq
    %v3959 = vshrl.u32 %v3958, 7
    %v3960 = vsub.s32 %v3957, %v3959
    %v3961 = vrot.slane %v3953, %v3960
    %v3963 = vunpack.c.l.s4 1966171168
    %v3964 = vunpack.c.0.s8 %v3963
    %v3965 = vlaneseq
    %v3966 = vshrl.u32 %v3965, 7
    %v3967 = vsub.s32 %v3964, %v3966
    %v3968 = vrot.slane %v3954, %v3967
    %v3969 = vcombine.low %v3961, %v3968
    %v3970 = vcombine.low %v2694, %v2698
    %v3971 = vcombine.low %v2702, %v2706
    %v3972 = vcombine.low %v2710, %v2714
    %v3973 = vcombine.low %v2718, %v2722
    %v3975 = vunpack.c.l.s4 1966171168
    %v3976 = vunpack.c.0.s8 %v3975
    %v3977 = vlaneseq
    %v3978 = vshrl.u32 %v3977, 7
    %v3979 = vsub.s32 %v3976, %v3978
    %v3980 = vrot.slane %v3970, %v3979
    %v3982 = vunpack.c.l.s4 1966171168
    %v3983 = vunpack.c.0.s8 %v3982
    %v3984 = vlaneseq
    %v3985 = vshrl.u32 %v3984, 7
    %v3986 = vsub.s32 %v3983, %v3985
    %v3987 = vrot.slane %v3971, %v3986
    %v3989 = vunpack.c.l.s4 1966171168
    %v3990 = vunpack.c.0.s8 %v3989
    %v3991 = vlaneseq
    %v3992 = vshrl.u32 %v3991, 7
    %v3993 = vsub.s32 %v3990, %v3992
    %v3994 = vrot.slane %v3972, %v3993
    %v3996 = vunpack.c.l.s4 1966171168
    %v3997 = vunpack.c.0.s8 %v3996
    %v3998 = vlaneseq
    %v3999 = vshrl.u32 %v3998, 7
    %v4000 = vsub.s32 %v3997, %v3999
    %v4001 = vrot.slane %v3973, %v4000
    %v4002 = vcombine.low %v3980, %v3987
    %v4003 = vcombine.low %v3994, %v4001
    %v4005 = vunpack.c.l.s4 1966171168
    %v4006 = vunpack.c.0.s8 %v4005
    %v4007 = vlaneseq
    %v4008 = vshrl.u32 %v4007, 7
    %v4009 = vsub.s32 %v4006, %v4008
    %v4010 = vrot.slane %v4002, %v4009
    %v4012 = vunpack.c.l.s4 1966171168
    %v4013 = vunpack.c.0.s8 %v4012
    %v4014 = vlaneseq
    %v4015 = vshrl.u32 %v4014, 7
    %v4016 = vsub.s32 %v4013, %v4015
    %v4017 = vrot.slane %v4003, %v4016
    %v4018 = vcombine.low %v4010, %v4017
    %v4019 = vcombine.low %v2726, %v2730
    %v4020 = vcombine.low %v2734, %v2738
    %v4021 = vcombine.low %v2742, %v2746
    %v4022 = vcombine.low %v2750, %v2754
    %v4024 = vunpack.c.l.s4 1966171168
    %v4025 = vunpack.c.0.s8 %v4024
    %v4026 = vlaneseq
    %v4027 = vshrl.u32 %v4026, 7
    %v4028 = vsub.s32 %v4025, %v4027
    %v4029 = vrot.slane %v4019, %v4028
    %v4031 = vunpack.c.l.s4 1966171168
    %v4032 = vunpack.c.0.s8 %v4031
    %v4033 = vlaneseq
    %v4034 = vshrl.u32 %v4033, 7
    %v4035 = vsub.s32 %v4032, %v4034
    %v4036 = vrot.slane %v4020, %v4035
    %v4038 = vunpack.c.l.s4 1966171168
    %v4039 = vunpack.c.0.s8 %v4038
    %v4040 = vlaneseq
    %v4041 = vshrl.u32 %v4040, 7
    %v4042 = vsub.s32 %v4039, %v4041
    %v4043 = vrot.slane %v4021, %v4042
    %v4045 = vunpack.c.l.s4 1966171168
    %v4046 = vunpack.c.0.s8 %v4045
    %v4047 = vlaneseq
    %v4048 = vshrl.u32 %v4047, 7
    %v4049 = vsub.s32 %v4046, %v4048
    %v4050 = vrot.slane %v4022, %v4049
    %v4051 = vcombine.low %v4029, %v4036
    %v4052 = vcombine.low %v4043, %v4050
    %v4054 = vunpack.c.l.s4 1966171168
    %v4055 = vunpack.c.0.s8 %v4054
    %v4056 = vlaneseq
    %v4057 = vshrl.u32 %v4056, 7
    %v4058 = vsub.s32 %v4055, %v4057
    %v4059 = vrot.slane %v4051, %v4058
    %v4061 = vunpack.c.l.s4 1966171168
    %v4062 = vunpack.c.0.s8 %v4061
    %v4063 = vlaneseq
    %v4064 = vshrl.u32 %v4063, 7
    %v4065 = vsub.s32 %v4062, %v4064
    %v4066 = vrot.slane %v4052, %v4065
    %v4067 = vcombine.low %v4059, %v4066
    %v4068 = vcombine.low %v2758, %v2762
    %v4069 = vcombine.low %v2766, %v2770
    %v4070 = vcombine.low %v2774, %v2778
    %v4071 = vcombine.low %v2782, %v2786
    %v4073 = vunpack.c.l.s4 1966171168
    %v4074 = vunpack.c.0.s8 %v4073
    %v4075 = vlaneseq
    %v4076 = vshrl.u32 %v4075, 7
    %v4077 = vsub.s32 %v4074, %v4076
    %v4078 = vrot.slane %v4068, %v4077
    %v4080 = vunpack.c.l.s4 1966171168
    %v4081 = vunpack.c.0.s8 %v4080
    %v4082 = vlaneseq
    %v4083 = vshrl.u32 %v4082, 7
    %v4084 = vsub.s32 %v4081, %v4083
    %v4085 = vrot.slane %v4069, %v4084
    %v4087 = vunpack.c.l.s4 1966171168
    %v4088 = vunpack.c.0.s8 %v4087
    %v4089 = vlaneseq
    %v4090 = vshrl.u32 %v4089, 7
    %v4091 = vsub.s32 %v4088, %v4090
    %v4092 = vrot.slane %v4070, %v4091
    %v4094 = vunpack.c.l.s4 1966171168
    %v4095 = vunpack.c.0.s8 %v4094
    %v4096 = vlaneseq
    %v4097 = vshrl.u32 %v4096, 7
    %v4098 = vsub.s32 %v4095, %v4097
    %v4099 = vrot.slane %v4071, %v4098
    %v4100 = vcombine.low %v4078, %v4085
    %v4101 = vcombine.low %v4092, %v4099
    %v4103 = vunpack.c.l.s4 1966171168
    %v4104 = vunpack.c.0.s8 %v4103
    %v4105 = vlaneseq
    %v4106 = vshrl.u32 %v4105, 7
    %v4107 = vsub.s32 %v4104, %v4106
    %v4108 = vrot.slane %v4100, %v4107
    %v4110 = vunpack.c.l.s4 1966171168
    %v4111 = vunpack.c.0.s8 %v4110
    %v4112 = vlaneseq
    %v4113 = vshrl.u32 %v4112, 7
    %v4114 = vsub.s32 %v4111, %v4113
    %v4115 = vrot.slane %v4101, %v4114
    %v4116 = vcombine.low %v4108, %v4115
    %v4117 = vcombine.low %v2790, %v2794
    %v4118 = vcombine.low %v2798, %v2802
    %v4119 = vcombine.low %v2806, %v2810
    %v4120 = vcombine.low %v2814, %v2818
    %v4122 = vunpack.c.l.s4 1966171168
    %v4123 = vunpack.c.0.s8 %v4122
    %v4124 = vlaneseq
    %v4125 = vshrl.u32 %v4124, 7
    %v4126 = vsub.s32 %v4123, %v4125
    %v4127 = vrot.slane %v4117, %v4126
    %v4129 = vunpack.c.l.s4 1966171168
    %v4130 = vunpack.c.0.s8 %v4129
    %v4131 = vlaneseq
    %v4132 = vshrl.u32 %v4131, 7
    %v4133 = vsub.s32 %v4130, %v4132
    %v4134 = vrot.slane %v4118, %v4133
    %v4136 = vunpack.c.l.s4 1966171168
    %v4137 = vunpack.c.0.s8 %v4136
    %v4138 = vlaneseq
    %v4139 = vshrl.u32 %v4138, 7
    %v4140 = vsub.s32 %v4137, %v4139
    %v4141 = vrot.slane %v4119, %v4140
    %v4143 = vunpack.c.l.s4 1966171168
    %v4144 = vunpack.c.0.s8 %v4143
    %v4145 = vlaneseq
    %v4146 = vshrl.u32 %v4145, 7
    %v4147 = vsub.s32 %v4144, %v4146
    %v4148 = vrot.slane %v4120, %v4147
    %v4149 = vcombine.low %v4127, %v4134
    %v4150 = vcombine.low %v4141, %v4148
    %v4152 = vunpack.c.l.s4 1966171168
    %v4153 = vunpack.c.0.s8 %v4152
    %v4154 = vlaneseq
    %v4155 = vshrl.u32 %v4154, 7
    %v4156 = vsub.s32 %v4153, %v4155
    %v4157 = vrot.slane %v4149, %v4156
    %v4159 = vunpack.c.l.s4 1966171168
    %v4160 = vunpack.c.0.s8 %v4159
    %v4161 = vlaneseq
    %v4162 = vshrl.u32 %v4161, 7
    %v4163 = vsub.s32 %v4160, %v4162
    %v4164 = vrot.slane %v4150, %v4163
    %v4165 = vcombine.low %v4157, %v4164
    %v4166 = vcombine.low %v2822, %v2826
    %v4167 = vcombine.low %v2830, %v2834
    %v4168 = vcombine.low %v2838, %v2842
    %v4169 = vcombine.low %v2846, %v2850
    %v4171 = vunpack.c.l.s4 1966171168
    %v4172 = vunpack.c.0.s8 %v4171
    %v4173 = vlaneseq
    %v4174 = vshrl.u32 %v4173, 7
    %v4175 = vsub.s32 %v4172, %v4174
    %v4176 = vrot.slane %v4166, %v4175
    %v4178 = vunpack.c.l.s4 1966171168
    %v4179 = vunpack.c.0.s8 %v4178
    %v4180 = vlaneseq
    %v4181 = vshrl.u32 %v4180, 7
    %v4182 = vsub.s32 %v4179, %v4181
    %v4183 = vrot.slane %v4167, %v4182
    %v4185 = vunpack.c.l.s4 1966171168
    %v4186 = vunpack.c.0.s8 %v4185
    %v4187 = vlaneseq
    %v4188 = vshrl.u32 %v4187, 7
    %v4189 = vsub.s32 %v4186, %v4188
    %v4190 = vrot.slane %v4168, %v4189
    %v4192 = vunpack.c.l.s4 1966171168
    %v4193 = vunpack.c.0.s8 %v4192
    %v4194 = vlaneseq
    %v4195 = vshrl.u32 %v4194, 7
    %v4196 = vsub.s32 %v4193, %v4195
    %v4197 = vrot.slane %v4169, %v4196
    %v4198 = vcombine.low %v4176, %v4183
    %v4199 = vcombine.low %v4190, %v4197
    %v4201 = vunpack.c.l.s4 1966171168
    %v4202 = vunpack.c.0.s8 %v4201
    %v4203 = vlaneseq
    %v4204 = vshrl.u32 %v4203, 7
    %v4205 = vsub.s32 %v4202, %v4204
    %v4206 = vrot.slane %v4198, %v4205
    %v4208 = vunpack.c.l.s4 1966171168
    %v4209 = vunpack.c.0.s8 %v4208
    %v4210 = vlaneseq
    %v4211 = vshrl.u32 %v4210, 7
    %v4212 = vsub.s32 %v4209, %v4211
    %v4213 = vrot.slane %v4199, %v4212
    %v4214 = vcombine.low %v4206, %v4213
    %v4215 = vcombine.low %v2854, %v2858
    %v4216 = vcombine.low %v2862, %v2866
    %v4217 = vcombine.low %v2870, %v2874
    %v4218 = vcombine.low %v2878, %v2882
    %v4220 = vunpack.c.l.s4 1966171168
    %v4221 = vunpack.c.0.s8 %v4220
    %v4222 = vlaneseq
    %v4223 = vshrl.u32 %v4222, 7
    %v4224 = vsub.s32 %v4221, %v4223
    %v4225 = vrot.slane %v4215, %v4224
    %v4227 = vunpack.c.l.s4 1966171168
    %v4228 = vunpack.c.0.s8 %v4227
    %v4229 = vlaneseq
    %v4230 = vshrl.u32 %v4229, 7
    %v4231 = vsub.s32 %v4228, %v4230
    %v4232 = vrot.slane %v4216, %v4231
    %v4234 = vunpack.c.l.s4 1966171168
    %v4235 = vunpack.c.0.s8 %v4234
    %v4236 = vlaneseq
    %v4237 = vshrl.u32 %v4236, 7
    %v4238 = vsub.s32 %v4235, %v4237
    %v4239 = vrot.slane %v4217, %v4238
    %v4241 = vunpack.c.l.s4 1966171168
    %v4242 = vunpack.c.0.s8 %v4241
    %v4243 = vlaneseq
    %v4244 = vshrl.u32 %v4243, 7
    %v4245 = vsub.s32 %v4242, %v4244
    %v4246 = vrot.slane %v4218, %v4245
    %v4247 = vcombine.low %v4225, %v4232
    %v4248 = vcombine.low %v4239, %v4246
    %v4250 = vunpack.c.l.s4 1966171168
    %v4251 = vunpack.c.0.s8 %v4250
    %v4252 = vlaneseq
    %v4253 = vshrl.u32 %v4252, 7
    %v4254 = vsub.s32 %v4251, %v4253
    %v4255 = vrot.slane %v4247, %v4254
    %v4257 = vunpack.c.l.s4 1966171168
    %v4258 = vunpack.c.0.s8 %v4257
    %v4259 = vlaneseq
    %v4260 = vshrl.u32 %v4259, 7
    %v4261 = vsub.s32 %v4258, %v4260
    %v4262 = vrot.slane %v4248, %v4261
    %v4263 = vcombine.low %v4255, %v4262
    %v4264 = vcombine.low %v2886, %v2890
    %v4265 = vcombine.low %v2894, %v2898
    %v4266 = vcombine.low %v2902, %v2906
    %v4267 = vcombine.low %v2910, %v2914
    %v4269 = vunpack.c.l.s4 1966171168
    %v4270 = vunpack.c.0.s8 %v4269
    %v4271 = vlaneseq
    %v4272 = vshrl.u32 %v4271, 7
    %v4273 = vsub.s32 %v4270, %v4272
    %v4274 = vrot.slane %v4264, %v4273
    %v4276 = vunpack.c.l.s4 1966171168
    %v4277 = vunpack.c.0.s8 %v4276
    %v4278 = vlaneseq
    %v4279 = vshrl.u32 %v4278, 7
    %v4280 = vsub.s32 %v4277, %v4279
    %v4281 = vrot.slane %v4265, %v4280
    %v4283 = vunpack.c.l.s4 1966171168
    %v4284 = vunpack.c.0.s8 %v4283
    %v4285 = vlaneseq
    %v4286 = vshrl.u32 %v4285, 7
    %v4287 = vsub.s32 %v4284, %v4286
    %v4288 = vrot.slane %v4266, %v4287
    %v4290 = vunpack.c.l.s4 1966171168
    %v4291 = vunpack.c.0.s8 %v4290
    %v4292 = vlaneseq
    %v4293 = vshrl.u32 %v4292, 7
    %v4294 = vsub.s32 %v4291, %v4293
    %v4295 = vrot.slane %v4267, %v4294
    %v4296 = vcombine.low %v4274, %v4281
    %v4297 = vcombine.low %v4288, %v4295
    %v4299 = vunpack.c.l.s4 1966171168
    %v4300 = vunpack.c.0.s8 %v4299
    %v4301 = vlaneseq
    %v4302 = vshrl.u32 %v4301, 7
    %v4303 = vsub.s32 %v4300, %v4302
    %v4304 = vrot.slane %v4296, %v4303
    %v4306 = vunpack.c.l.s4 1966171168
    %v4307 = vunpack.c.0.s8 %v4306
    %v4308 = vlaneseq
    %v4309 = vshrl.u32 %v4308, 7
    %v4310 = vsub.s32 %v4307, %v4309
    %v4311 = vrot.slane %v4297, %v4310
    %v4312 = vcombine.low %v4304, %v4311
    %v4313 = vcombine.low %v2918, %v2922
    %v4314 = vcombine.low %v2926, %v2930
    %v4315 = vcombine.low %v2934, %v2938
    %v4316 = vcombine.low %v2942, %v2946
    %v4318 = vunpack.c.l.s4 1966171168
    %v4319 = vunpack.c.0.s8 %v4318
    %v4320 = vlaneseq
    %v4321 = vshrl.u32 %v4320, 7
    %v4322 = vsub.s32 %v4319, %v4321
    %v4323 = vrot.slane %v4313, %v4322
    %v4325 = vunpack.c.l.s4 1966171168
    %v4326 = vunpack.c.0.s8 %v4325
    %v4327 = vlaneseq
    %v4328 = vshrl.u32 %v4327, 7
    %v4329 = vsub.s32 %v4326, %v4328
    %v4330 = vrot.slane %v4314, %v4329
    %v4332 = vunpack.c.l.s4 1966171168
    %v4333 = vunpack.c.0.s8 %v4332
    %v4334 = vlaneseq
    %v4335 = vshrl.u32 %v4334, 7
    %v4336 = vsub.s32 %v4333, %v4335
    %v4337 = vrot.slane %v4315, %v4336
    %v4339 = vunpack.c.l.s4 1966171168
    %v4340 = vunpack.c.0.s8 %v4339
    %v4341 = vlaneseq
    %v4342 = vshrl.u32 %v4341, 7
    %v4343 = vsub.s32 %v4340, %v4342
    %v4344 = vrot.slane %v4316, %v4343
    %v4345 = vcombine.low %v4323, %v4330
    %v4346 = vcombine.low %v4337, %v4344
    %v4348 = vunpack.c.l.s4 1966171168
    %v4349 = vunpack.c.0.s8 %v4348
    %v4350 = vlaneseq
    %v4351 = vshrl.u32 %v4350, 7
    %v4352 = vsub.s32 %v4349, %v4351
    %v4353 = vrot.slane %v4345, %v4352
    %v4355 = vunpack.c.l.s4 1966171168
    %v4356 = vunpack.c.0.s8 %v4355
    %v4357 = vlaneseq
    %v4358 = vshrl.u32 %v4357, 7
    %v4359 = vsub.s32 %v4356, %v4358
    %v4360 = vrot.slane %v4346, %v4359
    %v4361 = vcombine.low %v4353, %v4360
    %v4362 = vcombine.low %v2950, %v2954
    %v4363 = vcombine.low %v2958, %v2962
    %v4364 = vcombine.low %v2966, %v2970
    %v4365 = vcombine.low %v2974, %v2978
    %v4367 = vunpack.c.l.s4 1966171168
    %v4368 = vunpack.c.0.s8 %v4367
    %v4369 = vlaneseq
    %v4370 = vshrl.u32 %v4369, 7
    %v4371 = vsub.s32 %v4368, %v4370
    %v4372 = vrot.slane %v4362, %v4371
    %v4374 = vunpack.c.l.s4 1966171168
    %v4375 = vunpack.c.0.s8 %v4374
    %v4376 = vlaneseq
    %v4377 = vshrl.u32 %v4376, 7
    %v4378 = vsub.s32 %v4375, %v4377
    %v4379 = vrot.slane %v4363, %v4378
    %v4381 = vunpack.c.l.s4 1966171168
    %v4382 = vunpack.c.0.s8 %v4381
    %v4383 = vlaneseq
    %v4384 = vshrl.u32 %v4383, 7
    %v4385 = vsub.s32 %v4382, %v4384
    %v4386 = vrot.slane %v4364, %v4385
    %v4388 = vunpack.c.l.s4 1966171168
    %v4389 = vunpack.c.0.s8 %v4388
    %v4390 = vlaneseq
    %v4391 = vshrl.u32 %v4390, 7
    %v4392 = vsub.s32 %v4389, %v4391
    %v4393 = vrot.slane %v4365, %v4392
    %v4394 = vcombine.low %v4372, %v4379
    %v4395 = vcombine.low %v4386, %v4393
    %v4397 = vunpack.c.l.s4 1966171168
    %v4398 = vunpack.c.0.s8 %v4397
    %v4399 = vlaneseq
    %v4400 = vshrl.u32 %v4399, 7
    %v4401 = vsub.s32 %v4398, %v4400
    %v4402 = vrot.slane %v4394, %v4401
    %v4404 = vunpack.c.l.s4 1966171168
    %v4405 = vunpack.c.0.s8 %v4404
    %v4406 = vlaneseq
    %v4407 = vshrl.u32 %v4406, 7
    %v4408 = vsub.s32 %v4405, %v4407
    %v4409 = vrot.slane %v4395, %v4408
    %v4410 = vcombine.low %v4402, %v4409
    %v4411 = vcombine.low %v2982, %v2986
    %v4412 = vcombine.low %v2990, %v2994
    %v4413 = vcombine.low %v2998, %v3002
    %v4414 = vcombine.low %v3006, %v3010
    %v4416 = vunpack.c.l.s4 1966171168
    %v4417 = vunpack.c.0.s8 %v4416
    %v4418 = vlaneseq
    %v4419 = vshrl.u32 %v4418, 7
    %v4420 = vsub.s32 %v4417, %v4419
    %v4421 = vrot.slane %v4411, %v4420
    %v4423 = vunpack.c.l.s4 1966171168
    %v4424 = vunpack.c.0.s8 %v4423
    %v4425 = vlaneseq
    %v4426 = vshrl.u32 %v4425, 7
    %v4427 = vsub.s32 %v4424, %v4426
    %v4428 = vrot.slane %v4412, %v4427
    %v4430 = vunpack.c.l.s4 1966171168
    %v4431 = vunpack.c.0.s8 %v4430
    %v4432 = vlaneseq
    %v4433 = vshrl.u32 %v4432, 7
    %v4434 = vsub.s32 %v4431, %v4433
    %v4435 = vrot.slane %v4413, %v4434
    %v4437 = vunpack.c.l.s4 1966171168
    %v4438 = vunpack.c.0.s8 %v4437
    %v4439 = vlaneseq
    %v4440 = vshrl.u32 %v4439, 7
    %v4441 = vsub.s32 %v4438, %v4440
    %v4442 = vrot.slane %v4414, %v4441
    %v4443 = vcombine.low %v4421, %v4428
    %v4444 = vcombine.low %v4435, %v4442
    %v4446 = vunpack.c.l.s4 1966171168
    %v4447 = vunpack.c.0.s8 %v4446
    %v4448 = vlaneseq
    %v4449 = vshrl.u32 %v4448, 7
    %v4450 = vsub.s32 %v4447, %v4449
    %v4451 = vrot.slane %v4443, %v4450
    %v4453 = vunpack.c.l.s4 1966171168
    %v4454 = vunpack.c.0.s8 %v4453
    %v4455 = vlaneseq
    %v4456 = vshrl.u32 %v4455, 7
    %v4457 = vsub.s32 %v4454, %v4456
    %v4458 = vrot.slane %v4444, %v4457
    %v4459 = vcombine.low %v4451, %v4458
    %v4460 = vcombine.low %v3014, %v3018
    %v4461 = vcombine.low %v3022, %v3026
    %v4462 = vcombine.low %v3030, %v3034
    %v4463 = vcombine.low %v3038, %v3042
    %v4465 = vunpack.c.l.s4 1966171168
    %v4466 = vunpack.c.0.s8 %v4465
    %v4467 = vlaneseq
    %v4468 = vshrl.u32 %v4467, 7
    %v4469 = vsub.s32 %v4466, %v4468
    %v4470 = vrot.slane %v4460, %v4469
    %v4472 = vunpack.c.l.s4 1966171168
    %v4473 = vunpack.c.0.s8 %v4472
    %v4474 = vlaneseq
    %v4475 = vshrl.u32 %v4474, 7
    %v4476 = vsub.s32 %v4473, %v4475
    %v4477 = vrot.slane %v4461, %v4476
    %v4479 = vunpack.c.l.s4 1966171168
    %v4480 = vunpack.c.0.s8 %v4479
    %v4481 = vlaneseq
    %v4482 = vshrl.u32 %v4481, 7
    %v4483 = vsub.s32 %v4480, %v4482
    %v4484 = vrot.slane %v4462, %v4483
    %v4486 = vunpack.c.l.s4 1966171168
    %v4487 = vunpack.c.0.s8 %v4486
    %v4488 = vlaneseq
    %v4489 = vshrl.u32 %v4488, 7
    %v4490 = vsub.s32 %v4487, %v4489
    %v4491 = vrot.slane %v4463, %v4490
    %v4492 = vcombine.low %v4470, %v4477
    %v4493 = vcombine.low %v4484, %v4491
    %v4495 = vunpack.c.l.s4 1966171168
    %v4496 = vunpack.c.0.s8 %v4495
    %v4497 = vlaneseq
    %v4498 = vshrl.u32 %v4497, 7
    %v4499 = vsub.s32 %v4496, %v4498
    %v4500 = vrot.slane %v4492, %v4499
    %v4502 = vunpack.c.l.s4 1966171168
    %v4503 = vunpack.c.0.s8 %v4502
    %v4504 = vlaneseq
    %v4505 = vshrl.u32 %v4504, 7
    %v4506 = vsub.s32 %v4503, %v4505
    %v4507 = vrot.slane %v4493, %v4506
    %v4508 = vcombine.low %v4500, %v4507
    %v4509 = vcombine.low %v3046, %v3050
    %v4510 = vcombine.low %v3054, %v3058
    %v4511 = vcombine.low %v3062, %v3066
    %v4512 = vcombine.low %v3070, %v3074
    %v4514 = vunpack.c.l.s4 1966171168
    %v4515 = vunpack.c.0.s8 %v4514
    %v4516 = vlaneseq
    %v4517 = vshrl.u32 %v4516, 7
    %v4518 = vsub.s32 %v4515, %v4517
    %v4519 = vrot.slane %v4509, %v4518
    %v4521 = vunpack.c.l.s4 1966171168
    %v4522 = vunpack.c.0.s8 %v4521
    %v4523 = vlaneseq
    %v4524 = vshrl.u32 %v4523, 7
    %v4525 = vsub.s32 %v4522, %v4524
    %v4526 = vrot.slane %v4510, %v4525
    %v4528 = vunpack.c.l.s4 1966171168
    %v4529 = vunpack.c.0.s8 %v4528
    %v4530 = vlaneseq
    %v4531 = vshrl.u32 %v4530, 7
    %v4532 = vsub.s32 %v4529, %v4531
    %v4533 = vrot.slane %v4511, %v4532
    %v4535 = vunpack.c.l.s4 1966171168
    %v4536 = vunpack.c.0.s8 %v4535
    %v4537 = vlaneseq
    %v4538 = vshrl.u32 %v4537, 7
    %v4539 = vsub.s32 %v4536, %v4538
    %v4540 = vrot.slane %v4512, %v4539
    %v4541 = vcombine.low %v4519, %v4526
    %v4542 = vcombine.low %v4533, %v4540
    %v4544 = vunpack.c.l.s4 1966171168
    %v4545 = vunpack.c.0.s8 %v4544
    %v4546 = vlaneseq
    %v4547 = vshrl.u32 %v4546, 7
    %v4548 = vsub.s32 %v4545, %v4547
    %v4549 = vrot.slane %v4541, %v4548
    %v4551 = vunpack.c.l.s4 1966171168
    %v4552 = vunpack.c.0.s8 %v4551
    %v4553 = vlaneseq
    %v4554 = vshrl.u32 %v4553, 7
    %v4555 = vsub.s32 %v4552, %v4554
    %v4556 = vrot.slane %v4542, %v4555
    %v4557 = vcombine.low %v4549, %v4556
    %v4558 = vcombine.low %v3078, %v3082
    %v4559 = vcombine.low %v3086, %v3090
    %v4560 = vcombine.low %v3094, %v3098
    %v4561 = vcombine.low %v3102, %v3106
    %v4563 = vunpack.c.l.s4 1966171168
    %v4564 = vunpack.c.0.s8 %v4563
    %v4565 = vlaneseq
    %v4566 = vshrl.u32 %v4565, 7
    %v4567 = vsub.s32 %v4564, %v4566
    %v4568 = vrot.slane %v4558, %v4567
    %v4570 = vunpack.c.l.s4 1966171168
    %v4571 = vunpack.c.0.s8 %v4570
    %v4572 = vlaneseq
    %v4573 = vshrl.u32 %v4572, 7
    %v4574 = vsub.s32 %v4571, %v4573
    %v4575 = vrot.slane %v4559, %v4574
    %v4577 = vunpack.c.l.s4 1966171168
    %v4578 = vunpack.c.0.s8 %v4577
    %v4579 = vlaneseq
    %v4580 = vshrl.u32 %v4579, 7
    %v4581 = vsub.s32 %v4578, %v4580
    %v4582 = vrot.slane %v4560, %v4581
    %v4584 = vunpack.c.l.s4 1966171168
    %v4585 = vunpack.c.0.s8 %v4584
    %v4586 = vlaneseq
    %v4587 = vshrl.u32 %v4586, 7
    %v4588 = vsub.s32 %v4585, %v4587
    %v4589 = vrot.slane %v4561, %v4588
    %v4590 = vcombine.low %v4568, %v4575
    %v4591 = vcombine.low %v4582, %v4589
    %v4593 = vunpack.c.l.s4 1966171168
    %v4594 = vunpack.c.0.s8 %v4593
    %v4595 = vlaneseq
    %v4596 = vshrl.u32 %v4595, 7
    %v4597 = vsub.s32 %v4594, %v4596
    %v4598 = vrot.slane %v4590, %v4597
    %v4600 = vunpack.c.l.s4 1966171168
    %v4601 = vunpack.c.0.s8 %v4600
    %v4602 = vlaneseq
    %v4603 = vshrl.u32 %v4602, 7
    %v4604 = vsub.s32 %v4601, %v4603
    %v4605 = vrot.slane %v4591, %v4604
    %v4606 = vcombine.low %v4598, %v4605
    %v4607 = vcombine.low %v3110, %v3114
    %v4608 = vcombine.low %v3118, %v3122
    %v4609 = vcombine.low %v3126, %v3130
    %v4610 = vcombine.low %v3134, %v3138
    %v4612 = vunpack.c.l.s4 1966171168
    %v4613 = vunpack.c.0.s8 %v4612
    %v4614 = vlaneseq
    %v4615 = vshrl.u32 %v4614, 7
    %v4616 = vsub.s32 %v4613, %v4615
    %v4617 = vrot.slane %v4607, %v4616
    %v4619 = vunpack.c.l.s4 1966171168
    %v4620 = vunpack.c.0.s8 %v4619
    %v4621 = vlaneseq
    %v4622 = vshrl.u32 %v4621, 7
    %v4623 = vsub.s32 %v4620, %v4622
    %v4624 = vrot.slane %v4608, %v4623
    %v4626 = vunpack.c.l.s4 1966171168
    %v4627 = vunpack.c.0.s8 %v4626
    %v4628 = vlaneseq
    %v4629 = vshrl.u32 %v4628, 7
    %v4630 = vsub.s32 %v4627, %v4629
    %v4631 = vrot.slane %v4609, %v4630
    %v4633 = vunpack.c.l.s4 1966171168
    %v4634 = vunpack.c.0.s8 %v4633
    %v4635 = vlaneseq
    %v4636 = vshrl.u32 %v4635, 7
    %v4637 = vsub.s32 %v4634, %v4636
    %v4638 = vrot.slane %v4610, %v4637
    %v4639 = vcombine.low %v4617, %v4624
    %v4640 = vcombine.low %v4631, %v4638
    %v4642 = vunpack.c.l.s4 1966171168
    %v4643 = vunpack.c.0.s8 %v4642
    %v4644 = vlaneseq
    %v4645 = vshrl.u32 %v4644, 7
    %v4646 = vsub.s32 %v4643, %v4645
    %v4647 = vrot.slane %v4639, %v4646
    %v4649 = vunpack.c.l.s4 1966171168
    %v4650 = vunpack.c.0.s8 %v4649
    %v4651 = vlaneseq
    %v4652 = vshrl.u32 %v4651, 7
    %v4653 = vsub.s32 %v4650, %v4652
    %v4654 = vrot.slane %v4640, %v4653
    %v4655 = vcombine.low %v4647, %v4654
    %v4656 = vcombine.low %v3142, %v3146
    %v4657 = vcombine.low %v3150, %v3154
    %v4658 = vcombine.low %v3158, %v3162
    %v4659 = vcombine.low %v3166, %v3170
    %v4661 = vunpack.c.l.s4 1966171168
    %v4662 = vunpack.c.0.s8 %v4661
    %v4663 = vlaneseq
    %v4664 = vshrl.u32 %v4663, 7
    %v4665 = vsub.s32 %v4662, %v4664
    %v4666 = vrot.slane %v4656, %v4665
    %v4668 = vunpack.c.l.s4 1966171168
    %v4669 = vunpack.c.0.s8 %v4668
    %v4670 = vlaneseq
    %v4671 = vshrl.u32 %v4670, 7
    %v4672 = vsub.s32 %v4669, %v4671
    %v4673 = vrot.slane %v4657, %v4672
    %v4675 = vunpack.c.l.s4 1966171168
    %v4676 = vunpack.c.0.s8 %v4675
    %v4677 = vlaneseq
    %v4678 = vshrl.u32 %v4677, 7
    %v4679 = vsub.s32 %v4676, %v4678
    %v4680 = vrot.slane %v4658, %v4679
    %v4682 = vunpack.c.l.s4 1966171168
    %v4683 = vunpack.c.0.s8 %v4682
    %v4684 = vlaneseq
    %v4685 = vshrl.u32 %v4684, 7
    %v4686 = vsub.s32 %v4683, %v4685
    %v4687 = vrot.slane %v4659, %v4686
    %v4688 = vcombine.low %v4666, %v4673
    %v4689 = vcombine.low %v4680, %v4687
    %v4691 = vunpack.c.l.s4 1966171168
    %v4692 = vunpack.c.0.s8 %v4691
    %v4693 = vlaneseq
    %v4694 = vshrl.u32 %v4693, 7
    %v4695 = vsub.s32 %v4692, %v4694
    %v4696 = vrot.slane %v4688, %v4695
    %v4698 = vunpack.c.l.s4 1966171168
    %v4699 = vunpack.c.0.s8 %v4698
    %v4700 = vlaneseq
    %v4701 = vshrl.u32 %v4700, 7
    %v4702 = vsub.s32 %v4699, %v4701
    %v4703 = vrot.slane %v4689, %v4702
    %v4704 = vcombine.low %v4696, %v4703
    %v4705 = vcombine.low %v3174, %v3178
    %v4706 = vcombine.low %v3182, %v3186
    %v4707 = vcombine.low %v3190, %v3194
    %v4708 = vcombine.low %v3198, %v3202
    %v4710 = vunpack.c.l.s4 1966171168
    %v4711 = vunpack.c.0.s8 %v4710
    %v4712 = vlaneseq
    %v4713 = vshrl.u32 %v4712, 7
    %v4714 = vsub.s32 %v4711, %v4713
    %v4715 = vrot.slane %v4705, %v4714
    %v4717 = vunpack.c.l.s4 1966171168
    %v4718 = vunpack.c.0.s8 %v4717
    %v4719 = vlaneseq
    %v4720 = vshrl.u32 %v4719, 7
    %v4721 = vsub.s32 %v4718, %v4720
    %v4722 = vrot.slane %v4706, %v4721
    %v4724 = vunpack.c.l.s4 1966171168
    %v4725 = vunpack.c.0.s8 %v4724
    %v4726 = vlaneseq
    %v4727 = vshrl.u32 %v4726, 7
    %v4728 = vsub.s32 %v4725, %v4727
    %v4729 = vrot.slane %v4707, %v4728
    %v4731 = vunpack.c.l.s4 1966171168
    %v4732 = vunpack.c.0.s8 %v4731
    %v4733 = vlaneseq
    %v4734 = vshrl.u32 %v4733, 7
    %v4735 = vsub.s32 %v4732, %v4734
    %v4736 = vrot.slane %v4708, %v4735
    %v4737 = vcombine.low %v4715, %v4722
    %v4738 = vcombine.low %v4729, %v4736
    %v4740 = vunpack.c.l.s4 1966171168
    %v4741 = vunpack.c.0.s8 %v4740
    %v4742 = vlaneseq
    %v4743 = vshrl.u32 %v4742, 7
    %v4744 = vsub.s32 %v4741, %v4743
    %v4745 = vrot.slane %v4737, %v4744
    %v4747 = vunpack.c.l.s4 1966171168
    %v4748 = vunpack.c.0.s8 %v4747
    %v4749 = vlaneseq
    %v4750 = vshrl.u32 %v4749, 7
    %v4751 = vsub.s32 %v4748, %v4750
    %v4752 = vrot.slane %v4738, %v4751
    %v4753 = vcombine.low %v4745, %v4752
    %v4754 = vcombine.low %v3206, %v3210
    %v4755 = vcombine.low %v3214, %v3218
    %v4756 = vcombine.low %v3222, %v3226
    %v4757 = vcombine.low %v3230, %v3234
    %v4759 = vunpack.c.l.s4 1966171168
    %v4760 = vunpack.c.0.s8 %v4759
    %v4761 = vlaneseq
    %v4762 = vshrl.u32 %v4761, 7
    %v4763 = vsub.s32 %v4760, %v4762
    %v4764 = vrot.slane %v4754, %v4763
    %v4766 = vunpack.c.l.s4 1966171168
    %v4767 = vunpack.c.0.s8 %v4766
    %v4768 = vlaneseq
    %v4769 = vshrl.u32 %v4768, 7
    %v4770 = vsub.s32 %v4767, %v4769
    %v4771 = vrot.slane %v4755, %v4770
    %v4773 = vunpack.c.l.s4 1966171168
    %v4774 = vunpack.c.0.s8 %v4773
    %v4775 = vlaneseq
    %v4776 = vshrl.u32 %v4775, 7
    %v4777 = vsub.s32 %v4774, %v4776
    %v4778 = vrot.slane %v4756, %v4777
    %v4780 = vunpack.c.l.s4 1966171168
    %v4781 = vunpack.c.0.s8 %v4780
    %v4782 = vlaneseq
    %v4783 = vshrl.u32 %v4782, 7
    %v4784 = vsub.s32 %v4781, %v4783
    %v4785 = vrot.slane %v4757, %v4784
    %v4786 = vcombine.low %v4764, %v4771
    %v4787 = vcombine.low %v4778, %v4785
    %v4789 = vunpack.c.l.s4 1966171168
    %v4790 = vunpack.c.0.s8 %v4789
    %v4791 = vlaneseq
    %v4792 = vshrl.u32 %v4791, 7
    %v4793 = vsub.s32 %v4790, %v4792
    %v4794 = vrot.slane %v4786, %v4793
    %v4796 = vunpack.c.l.s4 1966171168
    %v4797 = vunpack.c.0.s8 %v4796
    %v4798 = vlaneseq
    %v4799 = vshrl.u32 %v4798, 7
    %v4800 = vsub.s32 %v4797, %v4799
    %v4801 = vrot.slane %v4787, %v4800
    %v4802 = vcombine.low %v4794, %v4801
    %4803 = vset.pattern.permute.xlu0 0
    %4804 = vperm.xlu0 %4803, %v3283
    %v4805 = vpop.permute.xlu0 %4804
    %4806 = vset.pattern.permute.xlu0 0
    %4807 = vperm.xlu0 %4806, %v3332
    %v4808 = vpop.permute.xlu0 %4807
    %4809 = vset.pattern.permute.xlu0 0
    %4810 = vperm.xlu0 %4809, %v3381
    %v4811 = vpop.permute.xlu0 %4810
    %4812 = vset.pattern.permute.xlu0 0
    %4813 = vperm.xlu0 %4812, %v3430
    %v4814 = vpop.permute.xlu0 %4813
    %4815 = vset.pattern.permute.xlu0 0
    %4816 = vperm.xlu0 %4815, %v3479
    %v4817 = vpop.permute.xlu0 %4816
    %4818 = vset.pattern.permute.xlu0 0
    %4819 = vperm.xlu0 %4818, %v3528
    %v4820 = vpop.permute.xlu0 %4819
    %4821 = vset.pattern.permute.xlu0 0
    %4822 = vperm.xlu0 %4821, %v3577
    %v4823 = vpop.permute.xlu0 %4822
    %4824 = vset.pattern.permute.xlu0 0
    %4825 = vperm.xlu0 %4824, %v3626
    %v4826 = vpop.permute.xlu0 %4825
    %4827 = vset.pattern.permute.xlu0 0
    %4828 = vperm.xlu0 %4827, %v3675
    %v4829 = vpop.permute.xlu0 %4828
    %4830 = vset.pattern.permute.xlu0 0
    %4831 = vperm.xlu0 %4830, %v3724
    %v4832 = vpop.permute.xlu0 %4831
    %4833 = vset.pattern.permute.xlu0 0
    %4834 = vperm.xlu0 %4833, %v3773
    %v4835 = vpop.permute.xlu0 %4834
    %4836 = vset.pattern.permute.xlu0 0
    %4837 = vperm.xlu0 %4836, %v3822
    %v4838 = vpop.permute.xlu0 %4837
    %4839 = vset.pattern.permute.xlu0 0
    %4840 = vperm.xlu0 %4839, %v3871
    %v4841 = vpop.permute.xlu0 %4840
    %4842 = vset.pattern.permute.xlu0 0
    %4843 = vperm.xlu0 %4842, %v3920
    %v4844 = vpop.permute.xlu0 %4843
    %4845 = vset.pattern.permute.xlu0 0
    %4846 = vperm.xlu0 %4845, %v3969
    %v4847 = vpop.permute.xlu0 %4846
    %4848 = vset.pattern.permute.xlu0 0
    %4849 = vperm.xlu0 %4848, %v4018
    %v4850 = vpop.permute.xlu0 %4849
    %4851 = vset.pattern.permute.xlu0 0
    %4852 = vperm.xlu0 %4851, %v4067
    %v4853 = vpop.permute.xlu0 %4852
    %4854 = vset.pattern.permute.xlu0 0
    %4855 = vperm.xlu0 %4854, %v4116
    %v4856 = vpop.permute.xlu0 %4855
    %4857 = vset.pattern.permute.xlu0 0
    %4858 = vperm.xlu0 %4857, %v4165
    %v4859 = vpop.permute.xlu0 %4858
    %4860 = vset.pattern.permute.xlu0 0
    %4861 = vperm.xlu0 %4860, %v4214
    %v4862 = vpop.permute.xlu0 %4861
    %4863 = vset.pattern.permute.xlu0 0
    %4864 = vperm.xlu0 %4863, %v4263
    %v4865 = vpop.permute.xlu0 %4864
    %4866 = vset.pattern.permute.xlu0 0
    %4867 = vperm.xlu0 %4866, %v4312
    %v4868 = vpop.permute.xlu0 %4867
    %4869 = vset.pattern.permute.xlu0 0
    %4870 = vperm.xlu0 %4869, %v4361
    %v4871 = vpop.permute.xlu0 %4870
    %4872 = vset.pattern.permute.xlu0 0
    %4873 = vperm.xlu0 %4872, %v4410
    %v4874 = vpop.permute.xlu0 %4873
    %4875 = vset.pattern.permute.xlu0 0
    %4876 = vperm.xlu0 %4875, %v4459
    %v4877 = vpop.permute.xlu0 %4876
    %4878 = vset.pattern.permute.xlu0 0
    %4879 = vperm.xlu0 %4878, %v4508
    %v4880 = vpop.permute.xlu0 %4879
    %4881 = vset.pattern.permute.xlu0 0
    %4882 = vperm.xlu0 %4881, %v4557
    %v4883 = vpop.permute.xlu0 %4882
    %4884 = vset.pattern.permute.xlu0 0
    %4885 = vperm.xlu0 %4884, %v4606
    %v4886 = vpop.permute.xlu0 %4885
    %4887 = vset.pattern.permute.xlu0 0
    %4888 = vperm.xlu0 %4887, %v4655
    %v4889 = vpop.permute.xlu0 %4888
    %4890 = vset.pattern.permute.xlu0 0
    %4891 = vperm.xlu0 %4890, %v4704
    %v4892 = vpop.permute.xlu0 %4891
    %4893 = vset.pattern.permute.xlu0 0
    %4894 = vperm.xlu0 %4893, %v4753
    %v4895 = vpop.permute.xlu0 %4894
    %4896 = vset.pattern.permute.xlu0 0
    %4897 = vperm.xlu0 %4896, %v4802
    %v4898 = vpop.permute.xlu0 %4897
    %v4899 = vlaneseq
    %v4900 = vshrl.u32 %v4899, 7
    %v4901 = vsub.s32 %v160, %v4900
    %v4902 = vrot.slane %v4805, %v4901
    %v4903 = vadd.s32 %v160, 4294967288
    %v4904 = vlaneseq
    %v4905 = vshrl.u32 %v4904, 7
    %v4906 = vsub.s32 %v4903, %v4905
    %v4907 = vrot.slane %v4808, %v4906
    %vm4908 = vcmask 130112
    %v4909 = vsel %vm4908, %v4907, %v4902
    %v4910 = vadd.s32 %v160, 4294967280
    %v4911 = vlaneseq
    %v4912 = vshrl.u32 %v4911, 7
    %v4913 = vsub.s32 %v4910, %v4912
    %v4914 = vrot.slane %v4811, %v4913
    %vm4915 = vcmask 195712
    %v4916 = vsel %vm4915, %v4914, %v4909
    %v4917 = vadd.s32 %v160, 4294967272
    %v4918 = vlaneseq
    %v4919 = vshrl.u32 %v4918, 7
    %v4920 = vsub.s32 %v4917, %v4919
    %v4921 = vrot.slane %v4814, %v4920
    %vm4922 = vcmask 261312
    %v4923 = vsel %vm4922, %v4921, %v4916
    %v4924 = vadd.s32 %v160, 4294967264
    %v4925 = vlaneseq
    %v4926 = vshrl.u32 %v4925, 7
    %v4927 = vsub.s32 %v4924, %v4926
    %v4928 = vrot.slane %v4817, %v4927
    %vm4929 = vcmask 326912
    %v4930 = vsel %vm4929, %v4928, %v4923
    %v4931 = vadd.s32 %v160, 4294967256
    %v4932 = vlaneseq
    %v4933 = vshrl.u32 %v4932, 7
    %v4934 = vsub.s32 %v4931, %v4933
    %v4935 = vrot.slane %v4820, %v4934
    %vm4936 = vcmask 392512
    %v4937 = vsel %vm4936, %v4935, %v4930
    %v4938 = vadd.s32 %v160, 4294967248
    %v4939 = vlaneseq
    %v4940 = vshrl.u32 %v4939, 7
    %v4941 = vsub.s32 %v4938, %v4940
    %v4942 = vrot.slane %v4823, %v4941
    %vm4943 = vcmask 458112
    %v4944 = vsel %vm4943, %v4942, %v4937
    %v4945 = vadd.s32 %v160, 4294967240
    %v4946 = vlaneseq
    %v4947 = vshrl.u32 %v4946, 7
    %v4948 = vsub.s32 %v4945, %v4947
    %v4949 = vrot.slane %v4826, %v4948
    %vm4950 = vcmask 523712
    %v4951 = vsel %vm4950, %v4949, %v4944
    %v4952 = vadd.s32 %v160, 4294967232
    %v4953 = vlaneseq
    %v4954 = vshrl.u32 %v4953, 7
    %v4955 = vsub.s32 %v4952, %v4954
    %v4956 = vrot.slane %v4829, %v4955
    %vm4957 = vcmask 589312
    %v4958 = vsel %vm4957, %v4956, %v4951
    %v4959 = vadd.s32 %v160, 4294967224
    %v4960 = vlaneseq
    %v4961 = vshrl.u32 %v4960, 7
    %v4962 = vsub.s32 %v4959, %v4961
    %v4963 = vrot.slane %v4832, %v4962
    %vm4964 = vcmask 654912
    %v4965 = vsel %vm4964, %v4963, %v4958
    %v4966 = vadd.s32 %v160, 4294967216
    %v4967 = vlaneseq
    %v4968 = vshrl.u32 %v4967, 7
    %v4969 = vsub.s32 %v4966, %v4968
    %v4970 = vrot.slane %v4835, %v4969
    %vm4971 = vcmask 720512
    %v4972 = vsel %vm4971, %v4970, %v4965
    %v4973 = vadd.s32 %v160, 4294967208
    %v4974 = vlaneseq
    %v4975 = vshrl.u32 %v4974, 7
    %v4976 = vsub.s32 %v4973, %v4975
    %v4977 = vrot.slane %v4838, %v4976
    %vm4978 = vcmask 786112
    %v4979 = vsel %vm4978, %v4977, %v4972
    %v4980 = vadd.s32 %v160, 4294967200
    %v4981 = vlaneseq
    %v4982 = vshrl.u32 %v4981, 7
    %v4983 = vsub.s32 %v4980, %v4982
    %v4984 = vrot.slane %v4841, %v4983
    %vm4985 = vcmask 851712
    %v4986 = vsel %vm4985, %v4984, %v4979
    %v4987 = vadd.s32 %v160, 4294967192
    %v4988 = vlaneseq
    %v4989 = vshrl.u32 %v4988, 7
    %v4990 = vsub.s32 %v4987, %v4989
    %v4991 = vrot.slane %v4844, %v4990
    %vm4992 = vcmask 917312
    %v4993 = vsel %vm4992, %v4991, %v4986
    %v4994 = vadd.s32 %v160, 4294967184
    %v4995 = vlaneseq
    %v4996 = vshrl.u32 %v4995, 7
    %v4997 = vsub.s32 %v4994, %v4996
    %v4998 = vrot.slane %v4847, %v4997
    %vm4999 = vcmask 982912
    %v5000 = vsel %vm4999, %v4998, %v4993
    %v5001 = vadd.s32 %v160, 4294967176
    %v5002 = vlaneseq
    %v5003 = vshrl.u32 %v5002, 7
    %v5004 = vsub.s32 %v5001, %v5003
    %v5005 = vrot.slane %v4850, %v5004
    %vm5006 = vcmask 1048512
    %v5007 = vsel %vm5006, %v5005, %v5000
    %v5008 = vlaneseq
    %v5009 = vshrl.u32 %v5008, 7
    %v5010 = vsub.s32 %v160, %v5009
    %v5011 = vrot.slane %v4853, %v5010
    %v5012 = vlaneseq
    %v5013 = vshrl.u32 %v5012, 7
    %v5014 = vsub.s32 %v4903, %v5013
    %v5015 = vrot.slane %v4856, %v5014
    %v5016 = vsel %vm4908, %v5015, %v5011
    %v5017 = vlaneseq
    %v5018 = vshrl.u32 %v5017, 7
    %v5019 = vsub.s32 %v4910, %v5018
    %v5020 = vrot.slane %v4859, %v5019
    %v5021 = vsel %vm4915, %v5020, %v5016
    %v5022 = vlaneseq
    %v5023 = vshrl.u32 %v5022, 7
    %v5024 = vsub.s32 %v4917, %v5023
    %v5025 = vrot.slane %v4862, %v5024
    %v5026 = vsel %vm4922, %v5025, %v5021
    %v5027 = vlaneseq
    %v5028 = vshrl.u32 %v5027, 7
    %v5029 = vsub.s32 %v4924, %v5028
    %v5030 = vrot.slane %v4865, %v5029
    %v5031 = vsel %vm4929, %v5030, %v5026
    %v5032 = vlaneseq
    %v5033 = vshrl.u32 %v5032, 7
    %v5034 = vsub.s32 %v4931, %v5033
    %v5035 = vrot.slane %v4868, %v5034
    %v5036 = vsel %vm4936, %v5035, %v5031
    %v5037 = vlaneseq
    %v5038 = vshrl.u32 %v5037, 7
    %v5039 = vsub.s32 %v4938, %v5038
    %v5040 = vrot.slane %v4871, %v5039
    %v5041 = vsel %vm4943, %v5040, %v5036
    %v5042 = vlaneseq
    %v5043 = vshrl.u32 %v5042, 7
    %v5044 = vsub.s32 %v4945, %v5043
    %v5045 = vrot.slane %v4874, %v5044
    %v5046 = vsel %vm4950, %v5045, %v5041
    %v5047 = vlaneseq
    %v5048 = vshrl.u32 %v5047, 7
    %v5049 = vsub.s32 %v4952, %v5048
    %v5050 = vrot.slane %v4877, %v5049
    %v5051 = vsel %vm4957, %v5050, %v5046
    %v5052 = vlaneseq
    %v5053 = vshrl.u32 %v5052, 7
    %v5054 = vsub.s32 %v4959, %v5053
    %v5055 = vrot.slane %v4880, %v5054
    %v5056 = vsel %vm4964, %v5055, %v5051
    %v5057 = vlaneseq
    %v5058 = vshrl.u32 %v5057, 7
    %v5059 = vsub.s32 %v4966, %v5058
    %v5060 = vrot.slane %v4883, %v5059
    %v5061 = vsel %vm4971, %v5060, %v5056
    %v5062 = vlaneseq
    %v5063 = vshrl.u32 %v5062, 7
    %v5064 = vsub.s32 %v4973, %v5063
    %v5065 = vrot.slane %v4886, %v5064
    %v5066 = vsel %vm4978, %v5065, %v5061
    %v5067 = vlaneseq
    %v5068 = vshrl.u32 %v5067, 7
    %v5069 = vsub.s32 %v4980, %v5068
    %v5070 = vrot.slane %v4889, %v5069
    %v5071 = vsel %vm4985, %v5070, %v5066
    %v5072 = vlaneseq
    %v5073 = vshrl.u32 %v5072, 7
    %v5074 = vsub.s32 %v4987, %v5073
    %v5075 = vrot.slane %v4892, %v5074
    %v5076 = vsel %vm4992, %v5075, %v5071
    %v5077 = vlaneseq
    %v5078 = vshrl.u32 %v5077, 7
    %v5079 = vsub.s32 %v4994, %v5078
    %v5080 = vrot.slane %v4895, %v5079
    %v5081 = vsel %vm4999, %v5080, %v5076
    %v5082 = vlaneseq
    %v5083 = vshrl.u32 %v5082, 7
    %v5084 = vsub.s32 %v5001, %v5083
    %v5085 = vrot.slane %v4898, %v5084
    %v5086 = vsel %vm5006, %v5085, %v5081
    %v5087 = vcombine.low %v5007, %v5086
    %v5089 = vunpack.c.l.s4 1966171168
    %v5090 = vunpack.c.0.s8 %v5089
    %v5091 = vlaneseq
    %v5092 = vshrl.u32 %v5091, 7
    %v5093 = vsub.s32 %v5090, %v5092
    %v5094 = vrot.slane %v5087, %v5093
    %v5096 = vunpack.c.l.s4 1966171168
    %v5097 = vunpack.c.0.s8 %v5096
    %v5098 = vlaneseq
    %v5099 = vshrl.u32 %v5098, 7
    %v5100 = vsub.s32 %v5097, %v5099
    %v5101 = vrot.slane %v5094, %v5100
    %v5103 = vlaneseq
    %vm5104 = vcmp.ge.s32.totalorder %v5103, 0
    %vm5105 = vcmp.lt.s32.totalorder %v5103, 256
    %vm5106 = vmand %vm5104, %vm5105
    %5107 = vst.msk [vmem:[#allocation2] ss:$4 sm:$0x3] %vm5106, %v5101
    %v5140 = vlaneseq
    %v5141 = vshrl.u32 %v5140, 7
    %v5142 = vsub.s32 0, %v5141
    %v5143 = vrot.slane %v1861, %v5142
    %v5144 = vlaneseq
    %v5145 = vshrl.u32 %v5144, 7
    %v5146 = vsub.s32 1, %v5145
    %v5147 = vrot.slane %v1861, %v5146
    %v5148 = vlaneseq
    %v5149 = vshrl.u32 %v5148, 7
    %v5150 = vsub.s32 2, %v5149
    %v5151 = vrot.slane %v1861, %v5150
    %v5152 = vlaneseq
    %v5153 = vshrl.u32 %v5152, 7
    %v5154 = vsub.s32 3, %v5153
    %v5155 = vrot.slane %v1861, %v5154
    %v5156 = vlaneseq
    %v5157 = vshrl.u32 %v5156, 7
    %v5158 = vsub.s32 4, %v5157
    %v5159 = vrot.slane %v1861, %v5158
    %v5160 = vlaneseq
    %v5161 = vshrl.u32 %v5160, 7
    %v5162 = vsub.s32 5, %v5161
    %v5163 = vrot.slane %v1861, %v5162
    %v5164 = vlaneseq
    %v5165 = vshrl.u32 %v5164, 7
    %v5166 = vsub.s32 6, %v5165
    %v5167 = vrot.slane %v1861, %v5166
    %v5168 = vlaneseq
    %v5169 = vshrl.u32 %v5168, 7
    %v5170 = vsub.s32 7, %v5169
    %v5171 = vrot.slane %v1861, %v5170
    %v5172 = vlaneseq
    %v5173 = vshrl.u32 %v5172, 7
    %v5174 = vsub.s32 0, %v5173
    %v5175 = vrot.slane %v1864, %v5174
    %v5176 = vlaneseq
    %v5177 = vshrl.u32 %v5176, 7
    %v5178 = vsub.s32 1, %v5177
    %v5179 = vrot.slane %v1864, %v5178
    %v5180 = vlaneseq
    %v5181 = vshrl.u32 %v5180, 7
    %v5182 = vsub.s32 2, %v5181
    %v5183 = vrot.slane %v1864, %v5182
    %v5184 = vlaneseq
    %v5185 = vshrl.u32 %v5184, 7
    %v5186 = vsub.s32 3, %v5185
    %v5187 = vrot.slane %v1864, %v5186
    %v5188 = vlaneseq
    %v5189 = vshrl.u32 %v5188, 7
    %v5190 = vsub.s32 4, %v5189
    %v5191 = vrot.slane %v1864, %v5190
    %v5192 = vlaneseq
    %v5193 = vshrl.u32 %v5192, 7
    %v5194 = vsub.s32 5, %v5193
    %v5195 = vrot.slane %v1864, %v5194
    %v5196 = vlaneseq
    %v5197 = vshrl.u32 %v5196, 7
    %v5198 = vsub.s32 6, %v5197
    %v5199 = vrot.slane %v1864, %v5198
    %v5200 = vlaneseq
    %v5201 = vshrl.u32 %v5200, 7
    %v5202 = vsub.s32 7, %v5201
    %v5203 = vrot.slane %v1864, %v5202
    %v5204 = vlaneseq
    %v5205 = vshrl.u32 %v5204, 7
    %v5206 = vsub.s32 0, %v5205
    %v5207 = vrot.slane %v1867, %v5206
    %v5208 = vlaneseq
    %v5209 = vshrl.u32 %v5208, 7
    %v5210 = vsub.s32 1, %v5209
    %v5211 = vrot.slane %v1867, %v5210
    %v5212 = vlaneseq
    %v5213 = vshrl.u32 %v5212, 7
    %v5214 = vsub.s32 2, %v5213
    %v5215 = vrot.slane %v1867, %v5214
    %v5216 = vlaneseq
    %v5217 = vshrl.u32 %v5216, 7
    %v5218 = vsub.s32 3, %v5217
    %v5219 = vrot.slane %v1867, %v5218
    %v5220 = vlaneseq
    %v5221 = vshrl.u32 %v5220, 7
    %v5222 = vsub.s32 4, %v5221
    %v5223 = vrot.slane %v1867, %v5222
    %v5224 = vlaneseq
    %v5225 = vshrl.u32 %v5224, 7
    %v5226 = vsub.s32 5, %v5225
    %v5227 = vrot.slane %v1867, %v5226
    %v5228 = vlaneseq
    %v5229 = vshrl.u32 %v5228, 7
    %v5230 = vsub.s32 6, %v5229
    %v5231 = vrot.slane %v1867, %v5230
    %v5232 = vlaneseq
    %v5233 = vshrl.u32 %v5232, 7
    %v5234 = vsub.s32 7, %v5233
    %v5235 = vrot.slane %v1867, %v5234
    %v5236 = vlaneseq
    %v5237 = vshrl.u32 %v5236, 7
    %v5238 = vsub.s32 0, %v5237
    %v5239 = vrot.slane %v1870, %v5238
    %v5240 = vlaneseq
    %v5241 = vshrl.u32 %v5240, 7
    %v5242 = vsub.s32 1, %v5241
    %v5243 = vrot.slane %v1870, %v5242
    %v5244 = vlaneseq
    %v5245 = vshrl.u32 %v5244, 7
    %v5246 = vsub.s32 2, %v5245
    %v5247 = vrot.slane %v1870, %v5246
    %v5248 = vlaneseq
    %v5249 = vshrl.u32 %v5248, 7
    %v5250 = vsub.s32 3, %v5249
    %v5251 = vrot.slane %v1870, %v5250
    %v5252 = vlaneseq
    %v5253 = vshrl.u32 %v5252, 7
    %v5254 = vsub.s32 4, %v5253
    %v5255 = vrot.slane %v1870, %v5254
    %v5256 = vlaneseq
    %v5257 = vshrl.u32 %v5256, 7
    %v5258 = vsub.s32 5, %v5257
    %v5259 = vrot.slane %v1870, %v5258
    %v5260 = vlaneseq
    %v5261 = vshrl.u32 %v5260, 7
    %v5262 = vsub.s32 6, %v5261
    %v5263 = vrot.slane %v1870, %v5262
    %v5264 = vlaneseq
    %v5265 = vshrl.u32 %v5264, 7
    %v5266 = vsub.s32 7, %v5265
    %v5267 = vrot.slane %v1870, %v5266
    %v5268 = vlaneseq
    %v5269 = vshrl.u32 %v5268, 7
    %v5270 = vsub.s32 0, %v5269
    %v5271 = vrot.slane %v1873, %v5270
    %v5272 = vlaneseq
    %v5273 = vshrl.u32 %v5272, 7
    %v5274 = vsub.s32 1, %v5273
    %v5275 = vrot.slane %v1873, %v5274
    %v5276 = vlaneseq
    %v5277 = vshrl.u32 %v5276, 7
    %v5278 = vsub.s32 2, %v5277
    %v5279 = vrot.slane %v1873, %v5278
    %v5280 = vlaneseq
    %v5281 = vshrl.u32 %v5280, 7
    %v5282 = vsub.s32 3, %v5281
    %v5283 = vrot.slane %v1873, %v5282
    %v5284 = vlaneseq
    %v5285 = vshrl.u32 %v5284, 7
    %v5286 = vsub.s32 4, %v5285
    %v5287 = vrot.slane %v1873, %v5286
    %v5288 = vlaneseq
    %v5289 = vshrl.u32 %v5288, 7
    %v5290 = vsub.s32 5, %v5289
    %v5291 = vrot.slane %v1873, %v5290
    %v5292 = vlaneseq
    %v5293 = vshrl.u32 %v5292, 7
    %v5294 = vsub.s32 6, %v5293
    %v5295 = vrot.slane %v1873, %v5294
    %v5296 = vlaneseq
    %v5297 = vshrl.u32 %v5296, 7
    %v5298 = vsub.s32 7, %v5297
    %v5299 = vrot.slane %v1873, %v5298
    %v5300 = vlaneseq
    %v5301 = vshrl.u32 %v5300, 7
    %v5302 = vsub.s32 0, %v5301
    %v5303 = vrot.slane %v1876, %v5302
    %v5304 = vlaneseq
    %v5305 = vshrl.u32 %v5304, 7
    %v5306 = vsub.s32 1, %v5305
    %v5307 = vrot.slane %v1876, %v5306
    %v5308 = vlaneseq
    %v5309 = vshrl.u32 %v5308, 7
    %v5310 = vsub.s32 2, %v5309
    %v5311 = vrot.slane %v1876, %v5310
    %v5312 = vlaneseq
    %v5313 = vshrl.u32 %v5312, 7
    %v5314 = vsub.s32 3, %v5313
    %v5315 = vrot.slane %v1876, %v5314
    %v5316 = vlaneseq
    %v5317 = vshrl.u32 %v5316, 7
    %v5318 = vsub.s32 4, %v5317
    %v5319 = vrot.slane %v1876, %v5318
    %v5320 = vlaneseq
    %v5321 = vshrl.u32 %v5320, 7
    %v5322 = vsub.s32 5, %v5321
    %v5323 = vrot.slane %v1876, %v5322
    %v5324 = vlaneseq
    %v5325 = vshrl.u32 %v5324, 7
    %v5326 = vsub.s32 6, %v5325
    %v5327 = vrot.slane %v1876, %v5326
    %v5328 = vlaneseq
    %v5329 = vshrl.u32 %v5328, 7
    %v5330 = vsub.s32 7, %v5329
    %v5331 = vrot.slane %v1876, %v5330
    %v5332 = vlaneseq
    %v5333 = vshrl.u32 %v5332, 7
    %v5334 = vsub.s32 0, %v5333
    %v5335 = vrot.slane %v1879, %v5334
    %v5336 = vlaneseq
    %v5337 = vshrl.u32 %v5336, 7
    %v5338 = vsub.s32 1, %v5337
    %v5339 = vrot.slane %v1879, %v5338
    %v5340 = vlaneseq
    %v5341 = vshrl.u32 %v5340, 7
    %v5342 = vsub.s32 2, %v5341
    %v5343 = vrot.slane %v1879, %v5342
    %v5344 = vlaneseq
    %v5345 = vshrl.u32 %v5344, 7
    %v5346 = vsub.s32 3, %v5345
    %v5347 = vrot.slane %v1879, %v5346
    %v5348 = vlaneseq
    %v5349 = vshrl.u32 %v5348, 7
    %v5350 = vsub.s32 4, %v5349
    %v5351 = vrot.slane %v1879, %v5350
    %v5352 = vlaneseq
    %v5353 = vshrl.u32 %v5352, 7
    %v5354 = vsub.s32 5, %v5353
    %v5355 = vrot.slane %v1879, %v5354
    %v5356 = vlaneseq
    %v5357 = vshrl.u32 %v5356, 7
    %v5358 = vsub.s32 6, %v5357
    %v5359 = vrot.slane %v1879, %v5358
    %v5360 = vlaneseq
    %v5361 = vshrl.u32 %v5360, 7
    %v5362 = vsub.s32 7, %v5361
    %v5363 = vrot.slane %v1879, %v5362
    %v5364 = vlaneseq
    %v5365 = vshrl.u32 %v5364, 7
    %v5366 = vsub.s32 0, %v5365
    %v5367 = vrot.slane %v1882, %v5366
    %v5368 = vlaneseq
    %v5369 = vshrl.u32 %v5368, 7
    %v5370 = vsub.s32 1, %v5369
    %v5371 = vrot.slane %v1882, %v5370
    %v5372 = vlaneseq
    %v5373 = vshrl.u32 %v5372, 7
    %v5374 = vsub.s32 2, %v5373
    %v5375 = vrot.slane %v1882, %v5374
    %v5376 = vlaneseq
    %v5377 = vshrl.u32 %v5376, 7
    %v5378 = vsub.s32 3, %v5377
    %v5379 = vrot.slane %v1882, %v5378
    %v5380 = vlaneseq
    %v5381 = vshrl.u32 %v5380, 7
    %v5382 = vsub.s32 4, %v5381
    %v5383 = vrot.slane %v1882, %v5382
    %v5384 = vlaneseq
    %v5385 = vshrl.u32 %v5384, 7
    %v5386 = vsub.s32 5, %v5385
    %v5387 = vrot.slane %v1882, %v5386
    %v5388 = vlaneseq
    %v5389 = vshrl.u32 %v5388, 7
    %v5390 = vsub.s32 6, %v5389
    %v5391 = vrot.slane %v1882, %v5390
    %v5392 = vlaneseq
    %v5393 = vshrl.u32 %v5392, 7
    %v5394 = vsub.s32 7, %v5393
    %v5395 = vrot.slane %v1882, %v5394
    %v5396 = vlaneseq
    %v5397 = vshrl.u32 %v5396, 7
    %v5398 = vsub.s32 0, %v5397
    %v5399 = vrot.slane %v1885, %v5398
    %v5400 = vlaneseq
    %v5401 = vshrl.u32 %v5400, 7
    %v5402 = vsub.s32 1, %v5401
    %v5403 = vrot.slane %v1885, %v5402
    %v5404 = vlaneseq
    %v5405 = vshrl.u32 %v5404, 7
    %v5406 = vsub.s32 2, %v5405
    %v5407 = vrot.slane %v1885, %v5406
    %v5408 = vlaneseq
    %v5409 = vshrl.u32 %v5408, 7
    %v5410 = vsub.s32 3, %v5409
    %v5411 = vrot.slane %v1885, %v5410
    %v5412 = vlaneseq
    %v5413 = vshrl.u32 %v5412, 7
    %v5414 = vsub.s32 4, %v5413
    %v5415 = vrot.slane %v1885, %v5414
    %v5416 = vlaneseq
    %v5417 = vshrl.u32 %v5416, 7
    %v5418 = vsub.s32 5, %v5417
    %v5419 = vrot.slane %v1885, %v5418
    %v5420 = vlaneseq
    %v5421 = vshrl.u32 %v5420, 7
    %v5422 = vsub.s32 6, %v5421
    %v5423 = vrot.slane %v1885, %v5422
    %v5424 = vlaneseq
    %v5425 = vshrl.u32 %v5424, 7
    %v5426 = vsub.s32 7, %v5425
    %v5427 = vrot.slane %v1885, %v5426
    %v5428 = vlaneseq
    %v5429 = vshrl.u32 %v5428, 7
    %v5430 = vsub.s32 0, %v5429
    %v5431 = vrot.slane %v1888, %v5430
    %v5432 = vlaneseq
    %v5433 = vshrl.u32 %v5432, 7
    %v5434 = vsub.s32 1, %v5433
    %v5435 = vrot.slane %v1888, %v5434
    %v5436 = vlaneseq
    %v5437 = vshrl.u32 %v5436, 7
    %v5438 = vsub.s32 2, %v5437
    %v5439 = vrot.slane %v1888, %v5438
    %v5440 = vlaneseq
    %v5441 = vshrl.u32 %v5440, 7
    %v5442 = vsub.s32 3, %v5441
    %v5443 = vrot.slane %v1888, %v5442
    %v5444 = vlaneseq
    %v5445 = vshrl.u32 %v5444, 7
    %v5446 = vsub.s32 4, %v5445
    %v5447 = vrot.slane %v1888, %v5446
    %v5448 = vlaneseq
    %v5449 = vshrl.u32 %v5448, 7
    %v5450 = vsub.s32 5, %v5449
    %v5451 = vrot.slane %v1888, %v5450
    %v5452 = vlaneseq
    %v5453 = vshrl.u32 %v5452, 7
    %v5454 = vsub.s32 6, %v5453
    %v5455 = vrot.slane %v1888, %v5454
    %v5456 = vlaneseq
    %v5457 = vshrl.u32 %v5456, 7
    %v5458 = vsub.s32 7, %v5457
    %v5459 = vrot.slane %v1888, %v5458
    %v5460 = vlaneseq
    %v5461 = vshrl.u32 %v5460, 7
    %v5462 = vsub.s32 0, %v5461
    %v5463 = vrot.slane %v1891, %v5462
    %v5464 = vlaneseq
    %v5465 = vshrl.u32 %v5464, 7
    %v5466 = vsub.s32 1, %v5465
    %v5467 = vrot.slane %v1891, %v5466
    %v5468 = vlaneseq
    %v5469 = vshrl.u32 %v5468, 7
    %v5470 = vsub.s32 2, %v5469
    %v5471 = vrot.slane %v1891, %v5470
    %v5472 = vlaneseq
    %v5473 = vshrl.u32 %v5472, 7
    %v5474 = vsub.s32 3, %v5473
    %v5475 = vrot.slane %v1891, %v5474
    %v5476 = vlaneseq
    %v5477 = vshrl.u32 %v5476, 7
    %v5478 = vsub.s32 4, %v5477
    %v5479 = vrot.slane %v1891, %v5478
    %v5480 = vlaneseq
    %v5481 = vshrl.u32 %v5480, 7
    %v5482 = vsub.s32 5, %v5481
    %v5483 = vrot.slane %v1891, %v5482
    %v5484 = vlaneseq
    %v5485 = vshrl.u32 %v5484, 7
    %v5486 = vsub.s32 6, %v5485
    %v5487 = vrot.slane %v1891, %v5486
    %v5488 = vlaneseq
    %v5489 = vshrl.u32 %v5488, 7
    %v5490 = vsub.s32 7, %v5489
    %v5491 = vrot.slane %v1891, %v5490
    %v5492 = vlaneseq
    %v5493 = vshrl.u32 %v5492, 7
    %v5494 = vsub.s32 0, %v5493
    %v5495 = vrot.slane %v1894, %v5494
    %v5496 = vlaneseq
    %v5497 = vshrl.u32 %v5496, 7
    %v5498 = vsub.s32 1, %v5497
    %v5499 = vrot.slane %v1894, %v5498
    %v5500 = vlaneseq
    %v5501 = vshrl.u32 %v5500, 7
    %v5502 = vsub.s32 2, %v5501
    %v5503 = vrot.slane %v1894, %v5502
    %v5504 = vlaneseq
    %v5505 = vshrl.u32 %v5504, 7
    %v5506 = vsub.s32 3, %v5505
    %v5507 = vrot.slane %v1894, %v5506
    %v5508 = vlaneseq
    %v5509 = vshrl.u32 %v5508, 7
    %v5510 = vsub.s32 4, %v5509
    %v5511 = vrot.slane %v1894, %v5510
    %v5512 = vlaneseq
    %v5513 = vshrl.u32 %v5512, 7
    %v5514 = vsub.s32 5, %v5513
    %v5515 = vrot.slane %v1894, %v5514
    %v5516 = vlaneseq
    %v5517 = vshrl.u32 %v5516, 7
    %v5518 = vsub.s32 6, %v5517
    %v5519 = vrot.slane %v1894, %v5518
    %v5520 = vlaneseq
    %v5521 = vshrl.u32 %v5520, 7
    %v5522 = vsub.s32 7, %v5521
    %v5523 = vrot.slane %v1894, %v5522
    %v5524 = vlaneseq
    %v5525 = vshrl.u32 %v5524, 7
    %v5526 = vsub.s32 0, %v5525
    %v5527 = vrot.slane %v1897, %v5526
    %v5528 = vlaneseq
    %v5529 = vshrl.u32 %v5528, 7
    %v5530 = vsub.s32 1, %v5529
    %v5531 = vrot.slane %v1897, %v5530
    %v5532 = vlaneseq
    %v5533 = vshrl.u32 %v5532, 7
    %v5534 = vsub.s32 2, %v5533
    %v5535 = vrot.slane %v1897, %v5534
    %v5536 = vlaneseq
    %v5537 = vshrl.u32 %v5536, 7
    %v5538 = vsub.s32 3, %v5537
    %v5539 = vrot.slane %v1897, %v5538
    %v5540 = vlaneseq
    %v5541 = vshrl.u32 %v5540, 7
    %v5542 = vsub.s32 4, %v5541
    %v5543 = vrot.slane %v1897, %v5542
    %v5544 = vlaneseq
    %v5545 = vshrl.u32 %v5544, 7
    %v5546 = vsub.s32 5, %v5545
    %v5547 = vrot.slane %v1897, %v5546
    %v5548 = vlaneseq
    %v5549 = vshrl.u32 %v5548, 7
    %v5550 = vsub.s32 6, %v5549
    %v5551 = vrot.slane %v1897, %v5550
    %v5552 = vlaneseq
    %v5553 = vshrl.u32 %v5552, 7
    %v5554 = vsub.s32 7, %v5553
    %v5555 = vrot.slane %v1897, %v5554
    %v5556 = vlaneseq
    %v5557 = vshrl.u32 %v5556, 7
    %v5558 = vsub.s32 0, %v5557
    %v5559 = vrot.slane %v1900, %v5558
    %v5560 = vlaneseq
    %v5561 = vshrl.u32 %v5560, 7
    %v5562 = vsub.s32 1, %v5561
    %v5563 = vrot.slane %v1900, %v5562
    %v5564 = vlaneseq
    %v5565 = vshrl.u32 %v5564, 7
    %v5566 = vsub.s32 2, %v5565
    %v5567 = vrot.slane %v1900, %v5566
    %v5568 = vlaneseq
    %v5569 = vshrl.u32 %v5568, 7
    %v5570 = vsub.s32 3, %v5569
    %v5571 = vrot.slane %v1900, %v5570
    %v5572 = vlaneseq
    %v5573 = vshrl.u32 %v5572, 7
    %v5574 = vsub.s32 4, %v5573
    %v5575 = vrot.slane %v1900, %v5574
    %v5576 = vlaneseq
    %v5577 = vshrl.u32 %v5576, 7
    %v5578 = vsub.s32 5, %v5577
    %v5579 = vrot.slane %v1900, %v5578
    %v5580 = vlaneseq
    %v5581 = vshrl.u32 %v5580, 7
    %v5582 = vsub.s32 6, %v5581
    %v5583 = vrot.slane %v1900, %v5582
    %v5584 = vlaneseq
    %v5585 = vshrl.u32 %v5584, 7
    %v5586 = vsub.s32 7, %v5585
    %v5587 = vrot.slane %v1900, %v5586
    %v5588 = vlaneseq
    %v5589 = vshrl.u32 %v5588, 7
    %v5590 = vsub.s32 0, %v5589
    %v5591 = vrot.slane %v1903, %v5590
    %v5592 = vlaneseq
    %v5593 = vshrl.u32 %v5592, 7
    %v5594 = vsub.s32 1, %v5593
    %v5595 = vrot.slane %v1903, %v5594
    %v5596 = vlaneseq
    %v5597 = vshrl.u32 %v5596, 7
    %v5598 = vsub.s32 2, %v5597
    %v5599 = vrot.slane %v1903, %v5598
    %v5600 = vlaneseq
    %v5601 = vshrl.u32 %v5600, 7
    %v5602 = vsub.s32 3, %v5601
    %v5603 = vrot.slane %v1903, %v5602
    %v5604 = vlaneseq
    %v5605 = vshrl.u32 %v5604, 7
    %v5606 = vsub.s32 4, %v5605
    %v5607 = vrot.slane %v1903, %v5606
    %v5608 = vlaneseq
    %v5609 = vshrl.u32 %v5608, 7
    %v5610 = vsub.s32 5, %v5609
    %v5611 = vrot.slane %v1903, %v5610
    %v5612 = vlaneseq
    %v5613 = vshrl.u32 %v5612, 7
    %v5614 = vsub.s32 6, %v5613
    %v5615 = vrot.slane %v1903, %v5614
    %v5616 = vlaneseq
    %v5617 = vshrl.u32 %v5616, 7
    %v5618 = vsub.s32 7, %v5617
    %v5619 = vrot.slane %v1903, %v5618
    %v5620 = vlaneseq
    %v5621 = vshrl.u32 %v5620, 7
    %v5622 = vsub.s32 0, %v5621
    %v5623 = vrot.slane %v1906, %v5622
    %v5624 = vlaneseq
    %v5625 = vshrl.u32 %v5624, 7
    %v5626 = vsub.s32 1, %v5625
    %v5627 = vrot.slane %v1906, %v5626
    %v5628 = vlaneseq
    %v5629 = vshrl.u32 %v5628, 7
    %v5630 = vsub.s32 2, %v5629
    %v5631 = vrot.slane %v1906, %v5630
    %v5632 = vlaneseq
    %v5633 = vshrl.u32 %v5632, 7
    %v5634 = vsub.s32 3, %v5633
    %v5635 = vrot.slane %v1906, %v5634
    %v5636 = vlaneseq
    %v5637 = vshrl.u32 %v5636, 7
    %v5638 = vsub.s32 4, %v5637
    %v5639 = vrot.slane %v1906, %v5638
    %v5640 = vlaneseq
    %v5641 = vshrl.u32 %v5640, 7
    %v5642 = vsub.s32 5, %v5641
    %v5643 = vrot.slane %v1906, %v5642
    %v5644 = vlaneseq
    %v5645 = vshrl.u32 %v5644, 7
    %v5646 = vsub.s32 6, %v5645
    %v5647 = vrot.slane %v1906, %v5646
    %v5648 = vlaneseq
    %v5649 = vshrl.u32 %v5648, 7
    %v5650 = vsub.s32 7, %v5649
    %v5651 = vrot.slane %v1906, %v5650
    %v5652 = vlaneseq
    %v5653 = vshrl.u32 %v5652, 7
    %v5654 = vsub.s32 0, %v5653
    %v5655 = vrot.slane %v1909, %v5654
    %v5656 = vlaneseq
    %v5657 = vshrl.u32 %v5656, 7
    %v5658 = vsub.s32 1, %v5657
    %v5659 = vrot.slane %v1909, %v5658
    %v5660 = vlaneseq
    %v5661 = vshrl.u32 %v5660, 7
    %v5662 = vsub.s32 2, %v5661
    %v5663 = vrot.slane %v1909, %v5662
    %v5664 = vlaneseq
    %v5665 = vshrl.u32 %v5664, 7
    %v5666 = vsub.s32 3, %v5665
    %v5667 = vrot.slane %v1909, %v5666
    %v5668 = vlaneseq
    %v5669 = vshrl.u32 %v5668, 7
    %v5670 = vsub.s32 4, %v5669
    %v5671 = vrot.slane %v1909, %v5670
    %v5672 = vlaneseq
    %v5673 = vshrl.u32 %v5672, 7
    %v5674 = vsub.s32 5, %v5673
    %v5675 = vrot.slane %v1909, %v5674
    %v5676 = vlaneseq
    %v5677 = vshrl.u32 %v5676, 7
    %v5678 = vsub.s32 6, %v5677
    %v5679 = vrot.slane %v1909, %v5678
    %v5680 = vlaneseq
    %v5681 = vshrl.u32 %v5680, 7
    %v5682 = vsub.s32 7, %v5681
    %v5683 = vrot.slane %v1909, %v5682
    %v5684 = vlaneseq
    %v5685 = vshrl.u32 %v5684, 7
    %v5686 = vsub.s32 0, %v5685
    %v5687 = vrot.slane %v1912, %v5686
    %v5688 = vlaneseq
    %v5689 = vshrl.u32 %v5688, 7
    %v5690 = vsub.s32 1, %v5689
    %v5691 = vrot.slane %v1912, %v5690
    %v5692 = vlaneseq
    %v5693 = vshrl.u32 %v5692, 7
    %v5694 = vsub.s32 2, %v5693
    %v5695 = vrot.slane %v1912, %v5694
    %v5696 = vlaneseq
    %v5697 = vshrl.u32 %v5696, 7
    %v5698 = vsub.s32 3, %v5697
    %v5699 = vrot.slane %v1912, %v5698
    %v5700 = vlaneseq
    %v5701 = vshrl.u32 %v5700, 7
    %v5702 = vsub.s32 4, %v5701
    %v5703 = vrot.slane %v1912, %v5702
    %v5704 = vlaneseq
    %v5705 = vshrl.u32 %v5704, 7
    %v5706 = vsub.s32 5, %v5705
    %v5707 = vrot.slane %v1912, %v5706
    %v5708 = vlaneseq
    %v5709 = vshrl.u32 %v5708, 7
    %v5710 = vsub.s32 6, %v5709
    %v5711 = vrot.slane %v1912, %v5710
    %v5712 = vlaneseq
    %v5713 = vshrl.u32 %v5712, 7
    %v5714 = vsub.s32 7, %v5713
    %v5715 = vrot.slane %v1912, %v5714
    %v5716 = vlaneseq
    %v5717 = vshrl.u32 %v5716, 7
    %v5718 = vsub.s32 0, %v5717
    %v5719 = vrot.slane %v1915, %v5718
    %v5720 = vlaneseq
    %v5721 = vshrl.u32 %v5720, 7
    %v5722 = vsub.s32 1, %v5721
    %v5723 = vrot.slane %v1915, %v5722
    %v5724 = vlaneseq
    %v5725 = vshrl.u32 %v5724, 7
    %v5726 = vsub.s32 2, %v5725
    %v5727 = vrot.slane %v1915, %v5726
    %v5728 = vlaneseq
    %v5729 = vshrl.u32 %v5728, 7
    %v5730 = vsub.s32 3, %v5729
    %v5731 = vrot.slane %v1915, %v5730
    %v5732 = vlaneseq
    %v5733 = vshrl.u32 %v5732, 7
    %v5734 = vsub.s32 4, %v5733
    %v5735 = vrot.slane %v1915, %v5734
    %v5736 = vlaneseq
    %v5737 = vshrl.u32 %v5736, 7
    %v5738 = vsub.s32 5, %v5737
    %v5739 = vrot.slane %v1915, %v5738
    %v5740 = vlaneseq
    %v5741 = vshrl.u32 %v5740, 7
    %v5742 = vsub.s32 6, %v5741
    %v5743 = vrot.slane %v1915, %v5742
    %v5744 = vlaneseq
    %v5745 = vshrl.u32 %v5744, 7
    %v5746 = vsub.s32 7, %v5745
    %v5747 = vrot.slane %v1915, %v5746
    %v5748 = vlaneseq
    %v5749 = vshrl.u32 %v5748, 7
    %v5750 = vsub.s32 0, %v5749
    %v5751 = vrot.slane %v1918, %v5750
    %v5752 = vlaneseq
    %v5753 = vshrl.u32 %v5752, 7
    %v5754 = vsub.s32 1, %v5753
    %v5755 = vrot.slane %v1918, %v5754
    %v5756 = vlaneseq
    %v5757 = vshrl.u32 %v5756, 7
    %v5758 = vsub.s32 2, %v5757
    %v5759 = vrot.slane %v1918, %v5758
    %v5760 = vlaneseq
    %v5761 = vshrl.u32 %v5760, 7
    %v5762 = vsub.s32 3, %v5761
    %v5763 = vrot.slane %v1918, %v5762
    %v5764 = vlaneseq
    %v5765 = vshrl.u32 %v5764, 7
    %v5766 = vsub.s32 4, %v5765
    %v5767 = vrot.slane %v1918, %v5766
    %v5768 = vlaneseq
    %v5769 = vshrl.u32 %v5768, 7
    %v5770 = vsub.s32 5, %v5769
    %v5771 = vrot.slane %v1918, %v5770
    %v5772 = vlaneseq
    %v5773 = vshrl.u32 %v5772, 7
    %v5774 = vsub.s32 6, %v5773
    %v5775 = vrot.slane %v1918, %v5774
    %v5776 = vlaneseq
    %v5777 = vshrl.u32 %v5776, 7
    %v5778 = vsub.s32 7, %v5777
    %v5779 = vrot.slane %v1918, %v5778
    %v5780 = vlaneseq
    %v5781 = vshrl.u32 %v5780, 7
    %v5782 = vsub.s32 0, %v5781
    %v5783 = vrot.slane %v1921, %v5782
    %v5784 = vlaneseq
    %v5785 = vshrl.u32 %v5784, 7
    %v5786 = vsub.s32 1, %v5785
    %v5787 = vrot.slane %v1921, %v5786
    %v5788 = vlaneseq
    %v5789 = vshrl.u32 %v5788, 7
    %v5790 = vsub.s32 2, %v5789
    %v5791 = vrot.slane %v1921, %v5790
    %v5792 = vlaneseq
    %v5793 = vshrl.u32 %v5792, 7
    %v5794 = vsub.s32 3, %v5793
    %v5795 = vrot.slane %v1921, %v5794
    %v5796 = vlaneseq
    %v5797 = vshrl.u32 %v5796, 7
    %v5798 = vsub.s32 4, %v5797
    %v5799 = vrot.slane %v1921, %v5798
    %v5800 = vlaneseq
    %v5801 = vshrl.u32 %v5800, 7
    %v5802 = vsub.s32 5, %v5801
    %v5803 = vrot.slane %v1921, %v5802
    %v5804 = vlaneseq
    %v5805 = vshrl.u32 %v5804, 7
    %v5806 = vsub.s32 6, %v5805
    %v5807 = vrot.slane %v1921, %v5806
    %v5808 = vlaneseq
    %v5809 = vshrl.u32 %v5808, 7
    %v5810 = vsub.s32 7, %v5809
    %v5811 = vrot.slane %v1921, %v5810
    %v5812 = vlaneseq
    %v5813 = vshrl.u32 %v5812, 7
    %v5814 = vsub.s32 0, %v5813
    %v5815 = vrot.slane %v1924, %v5814
    %v5816 = vlaneseq
    %v5817 = vshrl.u32 %v5816, 7
    %v5818 = vsub.s32 1, %v5817
    %v5819 = vrot.slane %v1924, %v5818
    %v5820 = vlaneseq
    %v5821 = vshrl.u32 %v5820, 7
    %v5822 = vsub.s32 2, %v5821
    %v5823 = vrot.slane %v1924, %v5822
    %v5824 = vlaneseq
    %v5825 = vshrl.u32 %v5824, 7
    %v5826 = vsub.s32 3, %v5825
    %v5827 = vrot.slane %v1924, %v5826
    %v5828 = vlaneseq
    %v5829 = vshrl.u32 %v5828, 7
    %v5830 = vsub.s32 4, %v5829
    %v5831 = vrot.slane %v1924, %v5830
    %v5832 = vlaneseq
    %v5833 = vshrl.u32 %v5832, 7
    %v5834 = vsub.s32 5, %v5833
    %v5835 = vrot.slane %v1924, %v5834
    %v5836 = vlaneseq
    %v5837 = vshrl.u32 %v5836, 7
    %v5838 = vsub.s32 6, %v5837
    %v5839 = vrot.slane %v1924, %v5838
    %v5840 = vlaneseq
    %v5841 = vshrl.u32 %v5840, 7
    %v5842 = vsub.s32 7, %v5841
    %v5843 = vrot.slane %v1924, %v5842
    %v5844 = vlaneseq
    %v5845 = vshrl.u32 %v5844, 7
    %v5846 = vsub.s32 0, %v5845
    %v5847 = vrot.slane %v1927, %v5846
    %v5848 = vlaneseq
    %v5849 = vshrl.u32 %v5848, 7
    %v5850 = vsub.s32 1, %v5849
    %v5851 = vrot.slane %v1927, %v5850
    %v5852 = vlaneseq
    %v5853 = vshrl.u32 %v5852, 7
    %v5854 = vsub.s32 2, %v5853
    %v5855 = vrot.slane %v1927, %v5854
    %v5856 = vlaneseq
    %v5857 = vshrl.u32 %v5856, 7
    %v5858 = vsub.s32 3, %v5857
    %v5859 = vrot.slane %v1927, %v5858
    %v5860 = vlaneseq
    %v5861 = vshrl.u32 %v5860, 7
    %v5862 = vsub.s32 4, %v5861
    %v5863 = vrot.slane %v1927, %v5862
    %v5864 = vlaneseq
    %v5865 = vshrl.u32 %v5864, 7
    %v5866 = vsub.s32 5, %v5865
    %v5867 = vrot.slane %v1927, %v5866
    %v5868 = vlaneseq
    %v5869 = vshrl.u32 %v5868, 7
    %v5870 = vsub.s32 6, %v5869
    %v5871 = vrot.slane %v1927, %v5870
    %v5872 = vlaneseq
    %v5873 = vshrl.u32 %v5872, 7
    %v5874 = vsub.s32 7, %v5873
    %v5875 = vrot.slane %v1927, %v5874
    %v5876 = vlaneseq
    %v5877 = vshrl.u32 %v5876, 7
    %v5878 = vsub.s32 0, %v5877
    %v5879 = vrot.slane %v1930, %v5878
    %v5880 = vlaneseq
    %v5881 = vshrl.u32 %v5880, 7
    %v5882 = vsub.s32 1, %v5881
    %v5883 = vrot.slane %v1930, %v5882
    %v5884 = vlaneseq
    %v5885 = vshrl.u32 %v5884, 7
    %v5886 = vsub.s32 2, %v5885
    %v5887 = vrot.slane %v1930, %v5886
    %v5888 = vlaneseq
    %v5889 = vshrl.u32 %v5888, 7
    %v5890 = vsub.s32 3, %v5889
    %v5891 = vrot.slane %v1930, %v5890
    %v5892 = vlaneseq
    %v5893 = vshrl.u32 %v5892, 7
    %v5894 = vsub.s32 4, %v5893
    %v5895 = vrot.slane %v1930, %v5894
    %v5896 = vlaneseq
    %v5897 = vshrl.u32 %v5896, 7
    %v5898 = vsub.s32 5, %v5897
    %v5899 = vrot.slane %v1930, %v5898
    %v5900 = vlaneseq
    %v5901 = vshrl.u32 %v5900, 7
    %v5902 = vsub.s32 6, %v5901
    %v5903 = vrot.slane %v1930, %v5902
    %v5904 = vlaneseq
    %v5905 = vshrl.u32 %v5904, 7
    %v5906 = vsub.s32 7, %v5905
    %v5907 = vrot.slane %v1930, %v5906
    %v5908 = vlaneseq
    %v5909 = vshrl.u32 %v5908, 7
    %v5910 = vsub.s32 0, %v5909
    %v5911 = vrot.slane %v1933, %v5910
    %v5912 = vlaneseq
    %v5913 = vshrl.u32 %v5912, 7
    %v5914 = vsub.s32 1, %v5913
    %v5915 = vrot.slane %v1933, %v5914
    %v5916 = vlaneseq
    %v5917 = vshrl.u32 %v5916, 7
    %v5918 = vsub.s32 2, %v5917
    %v5919 = vrot.slane %v1933, %v5918
    %v5920 = vlaneseq
    %v5921 = vshrl.u32 %v5920, 7
    %v5922 = vsub.s32 3, %v5921
    %v5923 = vrot.slane %v1933, %v5922
    %v5924 = vlaneseq
    %v5925 = vshrl.u32 %v5924, 7
    %v5926 = vsub.s32 4, %v5925
    %v5927 = vrot.slane %v1933, %v5926
    %v5928 = vlaneseq
    %v5929 = vshrl.u32 %v5928, 7
    %v5930 = vsub.s32 5, %v5929
    %v5931 = vrot.slane %v1933, %v5930
    %v5932 = vlaneseq
    %v5933 = vshrl.u32 %v5932, 7
    %v5934 = vsub.s32 6, %v5933
    %v5935 = vrot.slane %v1933, %v5934
    %v5936 = vlaneseq
    %v5937 = vshrl.u32 %v5936, 7
    %v5938 = vsub.s32 7, %v5937
    %v5939 = vrot.slane %v1933, %v5938
    %v5940 = vlaneseq
    %v5941 = vshrl.u32 %v5940, 7
    %v5942 = vsub.s32 0, %v5941
    %v5943 = vrot.slane %v1936, %v5942
    %v5944 = vlaneseq
    %v5945 = vshrl.u32 %v5944, 7
    %v5946 = vsub.s32 1, %v5945
    %v5947 = vrot.slane %v1936, %v5946
    %v5948 = vlaneseq
    %v5949 = vshrl.u32 %v5948, 7
    %v5950 = vsub.s32 2, %v5949
    %v5951 = vrot.slane %v1936, %v5950
    %v5952 = vlaneseq
    %v5953 = vshrl.u32 %v5952, 7
    %v5954 = vsub.s32 3, %v5953
    %v5955 = vrot.slane %v1936, %v5954
    %v5956 = vlaneseq
    %v5957 = vshrl.u32 %v5956, 7
    %v5958 = vsub.s32 4, %v5957
    %v5959 = vrot.slane %v1936, %v5958
    %v5960 = vlaneseq
    %v5961 = vshrl.u32 %v5960, 7
    %v5962 = vsub.s32 5, %v5961
    %v5963 = vrot.slane %v1936, %v5962
    %v5964 = vlaneseq
    %v5965 = vshrl.u32 %v5964, 7
    %v5966 = vsub.s32 6, %v5965
    %v5967 = vrot.slane %v1936, %v5966
    %v5968 = vlaneseq
    %v5969 = vshrl.u32 %v5968, 7
    %v5970 = vsub.s32 7, %v5969
    %v5971 = vrot.slane %v1936, %v5970
    %v5972 = vlaneseq
    %v5973 = vshrl.u32 %v5972, 7
    %v5974 = vsub.s32 0, %v5973
    %v5975 = vrot.slane %v1939, %v5974
    %v5976 = vlaneseq
    %v5977 = vshrl.u32 %v5976, 7
    %v5978 = vsub.s32 1, %v5977
    %v5979 = vrot.slane %v1939, %v5978
    %v5980 = vlaneseq
    %v5981 = vshrl.u32 %v5980, 7
    %v5982 = vsub.s32 2, %v5981
    %v5983 = vrot.slane %v1939, %v5982
    %v5984 = vlaneseq
    %v5985 = vshrl.u32 %v5984, 7
    %v5986 = vsub.s32 3, %v5985
    %v5987 = vrot.slane %v1939, %v5986
    %v5988 = vlaneseq
    %v5989 = vshrl.u32 %v5988, 7
    %v5990 = vsub.s32 4, %v5989
    %v5991 = vrot.slane %v1939, %v5990
    %v5992 = vlaneseq
    %v5993 = vshrl.u32 %v5992, 7
    %v5994 = vsub.s32 5, %v5993
    %v5995 = vrot.slane %v1939, %v5994
    %v5996 = vlaneseq
    %v5997 = vshrl.u32 %v5996, 7
    %v5998 = vsub.s32 6, %v5997
    %v5999 = vrot.slane %v1939, %v5998
    %v6000 = vlaneseq
    %v6001 = vshrl.u32 %v6000, 7
    %v6002 = vsub.s32 7, %v6001
    %v6003 = vrot.slane %v1939, %v6002
    %v6004 = vlaneseq
    %v6005 = vshrl.u32 %v6004, 7
    %v6006 = vsub.s32 0, %v6005
    %v6007 = vrot.slane %v1942, %v6006
    %v6008 = vlaneseq
    %v6009 = vshrl.u32 %v6008, 7
    %v6010 = vsub.s32 1, %v6009
    %v6011 = vrot.slane %v1942, %v6010
    %v6012 = vlaneseq
    %v6013 = vshrl.u32 %v6012, 7
    %v6014 = vsub.s32 2, %v6013
    %v6015 = vrot.slane %v1942, %v6014
    %v6016 = vlaneseq
    %v6017 = vshrl.u32 %v6016, 7
    %v6018 = vsub.s32 3, %v6017
    %v6019 = vrot.slane %v1942, %v6018
    %v6020 = vlaneseq
    %v6021 = vshrl.u32 %v6020, 7
    %v6022 = vsub.s32 4, %v6021
    %v6023 = vrot.slane %v1942, %v6022
    %v6024 = vlaneseq
    %v6025 = vshrl.u32 %v6024, 7
    %v6026 = vsub.s32 5, %v6025
    %v6027 = vrot.slane %v1942, %v6026
    %v6028 = vlaneseq
    %v6029 = vshrl.u32 %v6028, 7
    %v6030 = vsub.s32 6, %v6029
    %v6031 = vrot.slane %v1942, %v6030
    %v6032 = vlaneseq
    %v6033 = vshrl.u32 %v6032, 7
    %v6034 = vsub.s32 7, %v6033
    %v6035 = vrot.slane %v1942, %v6034
    %v6036 = vlaneseq
    %v6037 = vshrl.u32 %v6036, 7
    %v6038 = vsub.s32 0, %v6037
    %v6039 = vrot.slane %v1945, %v6038
    %v6040 = vlaneseq
    %v6041 = vshrl.u32 %v6040, 7
    %v6042 = vsub.s32 1, %v6041
    %v6043 = vrot.slane %v1945, %v6042
    %v6044 = vlaneseq
    %v6045 = vshrl.u32 %v6044, 7
    %v6046 = vsub.s32 2, %v6045
    %v6047 = vrot.slane %v1945, %v6046
    %v6048 = vlaneseq
    %v6049 = vshrl.u32 %v6048, 7
    %v6050 = vsub.s32 3, %v6049
    %v6051 = vrot.slane %v1945, %v6050
    %v6052 = vlaneseq
    %v6053 = vshrl.u32 %v6052, 7
    %v6054 = vsub.s32 4, %v6053
    %v6055 = vrot.slane %v1945, %v6054
    %v6056 = vlaneseq
    %v6057 = vshrl.u32 %v6056, 7
    %v6058 = vsub.s32 5, %v6057
    %v6059 = vrot.slane %v1945, %v6058
    %v6060 = vlaneseq
    %v6061 = vshrl.u32 %v6060, 7
    %v6062 = vsub.s32 6, %v6061
    %v6063 = vrot.slane %v1945, %v6062
    %v6064 = vlaneseq
    %v6065 = vshrl.u32 %v6064, 7
    %v6066 = vsub.s32 7, %v6065
    %v6067 = vrot.slane %v1945, %v6066
    %v6068 = vlaneseq
    %v6069 = vshrl.u32 %v6068, 7
    %v6070 = vsub.s32 0, %v6069
    %v6071 = vrot.slane %v1948, %v6070
    %v6072 = vlaneseq
    %v6073 = vshrl.u32 %v6072, 7
    %v6074 = vsub.s32 1, %v6073
    %v6075 = vrot.slane %v1948, %v6074
    %v6076 = vlaneseq
    %v6077 = vshrl.u32 %v6076, 7
    %v6078 = vsub.s32 2, %v6077
    %v6079 = vrot.slane %v1948, %v6078
    %v6080 = vlaneseq
    %v6081 = vshrl.u32 %v6080, 7
    %v6082 = vsub.s32 3, %v6081
    %v6083 = vrot.slane %v1948, %v6082
    %v6084 = vlaneseq
    %v6085 = vshrl.u32 %v6084, 7
    %v6086 = vsub.s32 4, %v6085
    %v6087 = vrot.slane %v1948, %v6086
    %v6088 = vlaneseq
    %v6089 = vshrl.u32 %v6088, 7
    %v6090 = vsub.s32 5, %v6089
    %v6091 = vrot.slane %v1948, %v6090
    %v6092 = vlaneseq
    %v6093 = vshrl.u32 %v6092, 7
    %v6094 = vsub.s32 6, %v6093
    %v6095 = vrot.slane %v1948, %v6094
    %v6096 = vlaneseq
    %v6097 = vshrl.u32 %v6096, 7
    %v6098 = vsub.s32 7, %v6097
    %v6099 = vrot.slane %v1948, %v6098
    %v6100 = vlaneseq
    %v6101 = vshrl.u32 %v6100, 7
    %v6102 = vsub.s32 0, %v6101
    %v6103 = vrot.slane %v1951, %v6102
    %v6104 = vlaneseq
    %v6105 = vshrl.u32 %v6104, 7
    %v6106 = vsub.s32 1, %v6105
    %v6107 = vrot.slane %v1951, %v6106
    %v6108 = vlaneseq
    %v6109 = vshrl.u32 %v6108, 7
    %v6110 = vsub.s32 2, %v6109
    %v6111 = vrot.slane %v1951, %v6110
    %v6112 = vlaneseq
    %v6113 = vshrl.u32 %v6112, 7
    %v6114 = vsub.s32 3, %v6113
    %v6115 = vrot.slane %v1951, %v6114
    %v6116 = vlaneseq
    %v6117 = vshrl.u32 %v6116, 7
    %v6118 = vsub.s32 4, %v6117
    %v6119 = vrot.slane %v1951, %v6118
    %v6120 = vlaneseq
    %v6121 = vshrl.u32 %v6120, 7
    %v6122 = vsub.s32 5, %v6121
    %v6123 = vrot.slane %v1951, %v6122
    %v6124 = vlaneseq
    %v6125 = vshrl.u32 %v6124, 7
    %v6126 = vsub.s32 6, %v6125
    %v6127 = vrot.slane %v1951, %v6126
    %v6128 = vlaneseq
    %v6129 = vshrl.u32 %v6128, 7
    %v6130 = vsub.s32 7, %v6129
    %v6131 = vrot.slane %v1951, %v6130
    %v6132 = vlaneseq
    %v6133 = vshrl.u32 %v6132, 7
    %v6134 = vsub.s32 0, %v6133
    %v6135 = vrot.slane %v1954, %v6134
    %v6136 = vlaneseq
    %v6137 = vshrl.u32 %v6136, 7
    %v6138 = vsub.s32 1, %v6137
    %v6139 = vrot.slane %v1954, %v6138
    %v6140 = vlaneseq
    %v6141 = vshrl.u32 %v6140, 7
    %v6142 = vsub.s32 2, %v6141
    %v6143 = vrot.slane %v1954, %v6142
    %v6144 = vlaneseq
    %v6145 = vshrl.u32 %v6144, 7
    %v6146 = vsub.s32 3, %v6145
    %v6147 = vrot.slane %v1954, %v6146
    %v6148 = vlaneseq
    %v6149 = vshrl.u32 %v6148, 7
    %v6150 = vsub.s32 4, %v6149
    %v6151 = vrot.slane %v1954, %v6150
    %v6152 = vlaneseq
    %v6153 = vshrl.u32 %v6152, 7
    %v6154 = vsub.s32 5, %v6153
    %v6155 = vrot.slane %v1954, %v6154
    %v6156 = vlaneseq
    %v6157 = vshrl.u32 %v6156, 7
    %v6158 = vsub.s32 6, %v6157
    %v6159 = vrot.slane %v1954, %v6158
    %v6160 = vlaneseq
    %v6161 = vshrl.u32 %v6160, 7
    %v6162 = vsub.s32 7, %v6161
    %v6163 = vrot.slane %v1954, %v6162
    %v6164 = vcombine.low %v5143, %v5147
    %v6165 = vcombine.low %v5151, %v5155
    %v6166 = vcombine.low %v5159, %v5163
    %v6167 = vcombine.low %v5167, %v5171
    %v6169 = vunpack.c.l.s4 1966171168
    %v6170 = vunpack.c.0.s8 %v6169
    %v6171 = vlaneseq
    %v6172 = vshrl.u32 %v6171, 7
    %v6173 = vsub.s32 %v6170, %v6172
    %v6174 = vrot.slane %v6164, %v6173
    %v6176 = vunpack.c.l.s4 1966171168
    %v6177 = vunpack.c.0.s8 %v6176
    %v6178 = vlaneseq
    %v6179 = vshrl.u32 %v6178, 7
    %v6180 = vsub.s32 %v6177, %v6179
    %v6181 = vrot.slane %v6165, %v6180
    %v6183 = vunpack.c.l.s4 1966171168
    %v6184 = vunpack.c.0.s8 %v6183
    %v6185 = vlaneseq
    %v6186 = vshrl.u32 %v6185, 7
    %v6187 = vsub.s32 %v6184, %v6186
    %v6188 = vrot.slane %v6166, %v6187
    %v6190 = vunpack.c.l.s4 1966171168
    %v6191 = vunpack.c.0.s8 %v6190
    %v6192 = vlaneseq
    %v6193 = vshrl.u32 %v6192, 7
    %v6194 = vsub.s32 %v6191, %v6193
    %v6195 = vrot.slane %v6167, %v6194
    %v6196 = vcombine.low %v6174, %v6181
    %v6197 = vcombine.low %v6188, %v6195
    %v6199 = vunpack.c.l.s4 1966171168
    %v6200 = vunpack.c.0.s8 %v6199
    %v6201 = vlaneseq
    %v6202 = vshrl.u32 %v6201, 7
    %v6203 = vsub.s32 %v6200, %v6202
    %v6204 = vrot.slane %v6196, %v6203
    %v6206 = vunpack.c.l.s4 1966171168
    %v6207 = vunpack.c.0.s8 %v6206
    %v6208 = vlaneseq
    %v6209 = vshrl.u32 %v6208, 7
    %v6210 = vsub.s32 %v6207, %v6209
    %v6211 = vrot.slane %v6197, %v6210
    %v6212 = vcombine.low %v6204, %v6211
    %v6213 = vcombine.low %v5175, %v5179
    %v6214 = vcombine.low %v5183, %v5187
    %v6215 = vcombine.low %v5191, %v5195
    %v6216 = vcombine.low %v5199, %v5203
    %v6218 = vunpack.c.l.s4 1966171168
    %v6219 = vunpack.c.0.s8 %v6218
    %v6220 = vlaneseq
    %v6221 = vshrl.u32 %v6220, 7
    %v6222 = vsub.s32 %v6219, %v6221
    %v6223 = vrot.slane %v6213, %v6222
    %v6225 = vunpack.c.l.s4 1966171168
    %v6226 = vunpack.c.0.s8 %v6225
    %v6227 = vlaneseq
    %v6228 = vshrl.u32 %v6227, 7
    %v6229 = vsub.s32 %v6226, %v6228
    %v6230 = vrot.slane %v6214, %v6229
    %v6232 = vunpack.c.l.s4 1966171168
    %v6233 = vunpack.c.0.s8 %v6232
    %v6234 = vlaneseq
    %v6235 = vshrl.u32 %v6234, 7
    %v6236 = vsub.s32 %v6233, %v6235
    %v6237 = vrot.slane %v6215, %v6236
    %v6239 = vunpack.c.l.s4 1966171168
    %v6240 = vunpack.c.0.s8 %v6239
    %v6241 = vlaneseq
    %v6242 = vshrl.u32 %v6241, 7
    %v6243 = vsub.s32 %v6240, %v6242
    %v6244 = vrot.slane %v6216, %v6243
    %v6245 = vcombine.low %v6223, %v6230
    %v6246 = vcombine.low %v6237, %v6244
    %v6248 = vunpack.c.l.s4 1966171168
    %v6249 = vunpack.c.0.s8 %v6248
    %v6250 = vlaneseq
    %v6251 = vshrl.u32 %v6250, 7
    %v6252 = vsub.s32 %v6249, %v6251
    %v6253 = vrot.slane %v6245, %v6252
    %v6255 = vunpack.c.l.s4 1966171168
    %v6256 = vunpack.c.0.s8 %v6255
    %v6257 = vlaneseq
    %v6258 = vshrl.u32 %v6257, 7
    %v6259 = vsub.s32 %v6256, %v6258
    %v6260 = vrot.slane %v6246, %v6259
    %v6261 = vcombine.low %v6253, %v6260
    %v6262 = vcombine.low %v5207, %v5211
    %v6263 = vcombine.low %v5215, %v5219
    %v6264 = vcombine.low %v5223, %v5227
    %v6265 = vcombine.low %v5231, %v5235
    %v6267 = vunpack.c.l.s4 1966171168
    %v6268 = vunpack.c.0.s8 %v6267
    %v6269 = vlaneseq
    %v6270 = vshrl.u32 %v6269, 7
    %v6271 = vsub.s32 %v6268, %v6270
    %v6272 = vrot.slane %v6262, %v6271
    %v6274 = vunpack.c.l.s4 1966171168
    %v6275 = vunpack.c.0.s8 %v6274
    %v6276 = vlaneseq
    %v6277 = vshrl.u32 %v6276, 7
    %v6278 = vsub.s32 %v6275, %v6277
    %v6279 = vrot.slane %v6263, %v6278
    %v6281 = vunpack.c.l.s4 1966171168
    %v6282 = vunpack.c.0.s8 %v6281
    %v6283 = vlaneseq
    %v6284 = vshrl.u32 %v6283, 7
    %v6285 = vsub.s32 %v6282, %v6284
    %v6286 = vrot.slane %v6264, %v6285
    %v6288 = vunpack.c.l.s4 1966171168
    %v6289 = vunpack.c.0.s8 %v6288
    %v6290 = vlaneseq
    %v6291 = vshrl.u32 %v6290, 7
    %v6292 = vsub.s32 %v6289, %v6291
    %v6293 = vrot.slane %v6265, %v6292
    %v6294 = vcombine.low %v6272, %v6279
    %v6295 = vcombine.low %v6286, %v6293
    %v6297 = vunpack.c.l.s4 1966171168
    %v6298 = vunpack.c.0.s8 %v6297
    %v6299 = vlaneseq
    %v6300 = vshrl.u32 %v6299, 7
    %v6301 = vsub.s32 %v6298, %v6300
    %v6302 = vrot.slane %v6294, %v6301
    %v6304 = vunpack.c.l.s4 1966171168
    %v6305 = vunpack.c.0.s8 %v6304
    %v6306 = vlaneseq
    %v6307 = vshrl.u32 %v6306, 7
    %v6308 = vsub.s32 %v6305, %v6307
    %v6309 = vrot.slane %v6295, %v6308
    %v6310 = vcombine.low %v6302, %v6309
    %v6311 = vcombine.low %v5239, %v5243
    %v6312 = vcombine.low %v5247, %v5251
    %v6313 = vcombine.low %v5255, %v5259
    %v6314 = vcombine.low %v5263, %v5267
    %v6316 = vunpack.c.l.s4 1966171168
    %v6317 = vunpack.c.0.s8 %v6316
    %v6318 = vlaneseq
    %v6319 = vshrl.u32 %v6318, 7
    %v6320 = vsub.s32 %v6317, %v6319
    %v6321 = vrot.slane %v6311, %v6320
    %v6323 = vunpack.c.l.s4 1966171168
    %v6324 = vunpack.c.0.s8 %v6323
    %v6325 = vlaneseq
    %v6326 = vshrl.u32 %v6325, 7
    %v6327 = vsub.s32 %v6324, %v6326
    %v6328 = vrot.slane %v6312, %v6327
    %v6330 = vunpack.c.l.s4 1966171168
    %v6331 = vunpack.c.0.s8 %v6330
    %v6332 = vlaneseq
    %v6333 = vshrl.u32 %v6332, 7
    %v6334 = vsub.s32 %v6331, %v6333
    %v6335 = vrot.slane %v6313, %v6334
    %v6337 = vunpack.c.l.s4 1966171168
    %v6338 = vunpack.c.0.s8 %v6337
    %v6339 = vlaneseq
    %v6340 = vshrl.u32 %v6339, 7
    %v6341 = vsub.s32 %v6338, %v6340
    %v6342 = vrot.slane %v6314, %v6341
    %v6343 = vcombine.low %v6321, %v6328
    %v6344 = vcombine.low %v6335, %v6342
    %v6346 = vunpack.c.l.s4 1966171168
    %v6347 = vunpack.c.0.s8 %v6346
    %v6348 = vlaneseq
    %v6349 = vshrl.u32 %v6348, 7
    %v6350 = vsub.s32 %v6347, %v6349
    %v6351 = vrot.slane %v6343, %v6350
    %v6353 = vunpack.c.l.s4 1966171168
    %v6354 = vunpack.c.0.s8 %v6353
    %v6355 = vlaneseq
    %v6356 = vshrl.u32 %v6355, 7
    %v6357 = vsub.s32 %v6354, %v6356
    %v6358 = vrot.slane %v6344, %v6357
    %v6359 = vcombine.low %v6351, %v6358
    %v6360 = vcombine.low %v5271, %v5275
    %v6361 = vcombine.low %v5279, %v5283
    %v6362 = vcombine.low %v5287, %v5291
    %v6363 = vcombine.low %v5295, %v5299
    %v6365 = vunpack.c.l.s4 1966171168
    %v6366 = vunpack.c.0.s8 %v6365
    %v6367 = vlaneseq
    %v6368 = vshrl.u32 %v6367, 7
    %v6369 = vsub.s32 %v6366, %v6368
    %v6370 = vrot.slane %v6360, %v6369
    %v6372 = vunpack.c.l.s4 1966171168
    %v6373 = vunpack.c.0.s8 %v6372
    %v6374 = vlaneseq
    %v6375 = vshrl.u32 %v6374, 7
    %v6376 = vsub.s32 %v6373, %v6375
    %v6377 = vrot.slane %v6361, %v6376
    %v6379 = vunpack.c.l.s4 1966171168
    %v6380 = vunpack.c.0.s8 %v6379
    %v6381 = vlaneseq
    %v6382 = vshrl.u32 %v6381, 7
    %v6383 = vsub.s32 %v6380, %v6382
    %v6384 = vrot.slane %v6362, %v6383
    %v6386 = vunpack.c.l.s4 1966171168
    %v6387 = vunpack.c.0.s8 %v6386
    %v6388 = vlaneseq
    %v6389 = vshrl.u32 %v6388, 7
    %v6390 = vsub.s32 %v6387, %v6389
    %v6391 = vrot.slane %v6363, %v6390
    %v6392 = vcombine.low %v6370, %v6377
    %v6393 = vcombine.low %v6384, %v6391
    %v6395 = vunpack.c.l.s4 1966171168
    %v6396 = vunpack.c.0.s8 %v6395
    %v6397 = vlaneseq
    %v6398 = vshrl.u32 %v6397, 7
    %v6399 = vsub.s32 %v6396, %v6398
    %v6400 = vrot.slane %v6392, %v6399
    %v6402 = vunpack.c.l.s4 1966171168
    %v6403 = vunpack.c.0.s8 %v6402
    %v6404 = vlaneseq
    %v6405 = vshrl.u32 %v6404, 7
    %v6406 = vsub.s32 %v6403, %v6405
    %v6407 = vrot.slane %v6393, %v6406
    %v6408 = vcombine.low %v6400, %v6407
    %v6409 = vcombine.low %v5303, %v5307
    %v6410 = vcombine.low %v5311, %v5315
    %v6411 = vcombine.low %v5319, %v5323
    %v6412 = vcombine.low %v5327, %v5331
    %v6414 = vunpack.c.l.s4 1966171168
    %v6415 = vunpack.c.0.s8 %v6414
    %v6416 = vlaneseq
    %v6417 = vshrl.u32 %v6416, 7
    %v6418 = vsub.s32 %v6415, %v6417
    %v6419 = vrot.slane %v6409, %v6418
    %v6421 = vunpack.c.l.s4 1966171168
    %v6422 = vunpack.c.0.s8 %v6421
    %v6423 = vlaneseq
    %v6424 = vshrl.u32 %v6423, 7
    %v6425 = vsub.s32 %v6422, %v6424
    %v6426 = vrot.slane %v6410, %v6425
    %v6428 = vunpack.c.l.s4 1966171168
    %v6429 = vunpack.c.0.s8 %v6428
    %v6430 = vlaneseq
    %v6431 = vshrl.u32 %v6430, 7
    %v6432 = vsub.s32 %v6429, %v6431
    %v6433 = vrot.slane %v6411, %v6432
    %v6435 = vunpack.c.l.s4 1966171168
    %v6436 = vunpack.c.0.s8 %v6435
    %v6437 = vlaneseq
    %v6438 = vshrl.u32 %v6437, 7
    %v6439 = vsub.s32 %v6436, %v6438
    %v6440 = vrot.slane %v6412, %v6439
    %v6441 = vcombine.low %v6419, %v6426
    %v6442 = vcombine.low %v6433, %v6440
    %v6444 = vunpack.c.l.s4 1966171168
    %v6445 = vunpack.c.0.s8 %v6444
    %v6446 = vlaneseq
    %v6447 = vshrl.u32 %v6446, 7
    %v6448 = vsub.s32 %v6445, %v6447
    %v6449 = vrot.slane %v6441, %v6448
    %v6451 = vunpack.c.l.s4 1966171168
    %v6452 = vunpack.c.0.s8 %v6451
    %v6453 = vlaneseq
    %v6454 = vshrl.u32 %v6453, 7
    %v6455 = vsub.s32 %v6452, %v6454
    %v6456 = vrot.slane %v6442, %v6455
    %v6457 = vcombine.low %v6449, %v6456
    %v6458 = vcombine.low %v5335, %v5339
    %v6459 = vcombine.low %v5343, %v5347
    %v6460 = vcombine.low %v5351, %v5355
    %v6461 = vcombine.low %v5359, %v5363
    %v6463 = vunpack.c.l.s4 1966171168
    %v6464 = vunpack.c.0.s8 %v6463
    %v6465 = vlaneseq
    %v6466 = vshrl.u32 %v6465, 7
    %v6467 = vsub.s32 %v6464, %v6466
    %v6468 = vrot.slane %v6458, %v6467
    %v6470 = vunpack.c.l.s4 1966171168
    %v6471 = vunpack.c.0.s8 %v6470
    %v6472 = vlaneseq
    %v6473 = vshrl.u32 %v6472, 7
    %v6474 = vsub.s32 %v6471, %v6473
    %v6475 = vrot.slane %v6459, %v6474
    %v6477 = vunpack.c.l.s4 1966171168
    %v6478 = vunpack.c.0.s8 %v6477
    %v6479 = vlaneseq
    %v6480 = vshrl.u32 %v6479, 7
    %v6481 = vsub.s32 %v6478, %v6480
    %v6482 = vrot.slane %v6460, %v6481
    %v6484 = vunpack.c.l.s4 1966171168
    %v6485 = vunpack.c.0.s8 %v6484
    %v6486 = vlaneseq
    %v6487 = vshrl.u32 %v6486, 7
    %v6488 = vsub.s32 %v6485, %v6487
    %v6489 = vrot.slane %v6461, %v6488
    %v6490 = vcombine.low %v6468, %v6475
    %v6491 = vcombine.low %v6482, %v6489
    %v6493 = vunpack.c.l.s4 1966171168
    %v6494 = vunpack.c.0.s8 %v6493
    %v6495 = vlaneseq
    %v6496 = vshrl.u32 %v6495, 7
    %v6497 = vsub.s32 %v6494, %v6496
    %v6498 = vrot.slane %v6490, %v6497
    %v6500 = vunpack.c.l.s4 1966171168
    %v6501 = vunpack.c.0.s8 %v6500
    %v6502 = vlaneseq
    %v6503 = vshrl.u32 %v6502, 7
    %v6504 = vsub.s32 %v6501, %v6503
    %v6505 = vrot.slane %v6491, %v6504
    %v6506 = vcombine.low %v6498, %v6505
    %v6507 = vcombine.low %v5367, %v5371
    %v6508 = vcombine.low %v5375, %v5379
    %v6509 = vcombine.low %v5383, %v5387
    %v6510 = vcombine.low %v5391, %v5395
    %v6512 = vunpack.c.l.s4 1966171168
    %v6513 = vunpack.c.0.s8 %v6512
    %v6514 = vlaneseq
    %v6515 = vshrl.u32 %v6514, 7
    %v6516 = vsub.s32 %v6513, %v6515
    %v6517 = vrot.slane %v6507, %v6516
    %v6519 = vunpack.c.l.s4 1966171168
    %v6520 = vunpack.c.0.s8 %v6519
    %v6521 = vlaneseq
    %v6522 = vshrl.u32 %v6521, 7
    %v6523 = vsub.s32 %v6520, %v6522
    %v6524 = vrot.slane %v6508, %v6523
    %v6526 = vunpack.c.l.s4 1966171168
    %v6527 = vunpack.c.0.s8 %v6526
    %v6528 = vlaneseq
    %v6529 = vshrl.u32 %v6528, 7
    %v6530 = vsub.s32 %v6527, %v6529
    %v6531 = vrot.slane %v6509, %v6530
    %v6533 = vunpack.c.l.s4 1966171168
    %v6534 = vunpack.c.0.s8 %v6533
    %v6535 = vlaneseq
    %v6536 = vshrl.u32 %v6535, 7
    %v6537 = vsub.s32 %v6534, %v6536
    %v6538 = vrot.slane %v6510, %v6537
    %v6539 = vcombine.low %v6517, %v6524
    %v6540 = vcombine.low %v6531, %v6538
    %v6542 = vunpack.c.l.s4 1966171168
    %v6543 = vunpack.c.0.s8 %v6542
    %v6544 = vlaneseq
    %v6545 = vshrl.u32 %v6544, 7
    %v6546 = vsub.s32 %v6543, %v6545
    %v6547 = vrot.slane %v6539, %v6546
    %v6549 = vunpack.c.l.s4 1966171168
    %v6550 = vunpack.c.0.s8 %v6549
    %v6551 = vlaneseq
    %v6552 = vshrl.u32 %v6551, 7
    %v6553 = vsub.s32 %v6550, %v6552
    %v6554 = vrot.slane %v6540, %v6553
    %v6555 = vcombine.low %v6547, %v6554
    %v6556 = vcombine.low %v5399, %v5403
    %v6557 = vcombine.low %v5407, %v5411
    %v6558 = vcombine.low %v5415, %v5419
    %v6559 = vcombine.low %v5423, %v5427
    %v6561 = vunpack.c.l.s4 1966171168
    %v6562 = vunpack.c.0.s8 %v6561
    %v6563 = vlaneseq
    %v6564 = vshrl.u32 %v6563, 7
    %v6565 = vsub.s32 %v6562, %v6564
    %v6566 = vrot.slane %v6556, %v6565
    %v6568 = vunpack.c.l.s4 1966171168
    %v6569 = vunpack.c.0.s8 %v6568
    %v6570 = vlaneseq
    %v6571 = vshrl.u32 %v6570, 7
    %v6572 = vsub.s32 %v6569, %v6571
    %v6573 = vrot.slane %v6557, %v6572
    %v6575 = vunpack.c.l.s4 1966171168
    %v6576 = vunpack.c.0.s8 %v6575
    %v6577 = vlaneseq
    %v6578 = vshrl.u32 %v6577, 7
    %v6579 = vsub.s32 %v6576, %v6578
    %v6580 = vrot.slane %v6558, %v6579
    %v6582 = vunpack.c.l.s4 1966171168
    %v6583 = vunpack.c.0.s8 %v6582
    %v6584 = vlaneseq
    %v6585 = vshrl.u32 %v6584, 7
    %v6586 = vsub.s32 %v6583, %v6585
    %v6587 = vrot.slane %v6559, %v6586
    %v6588 = vcombine.low %v6566, %v6573
    %v6589 = vcombine.low %v6580, %v6587
    %v6591 = vunpack.c.l.s4 1966171168
    %v6592 = vunpack.c.0.s8 %v6591
    %v6593 = vlaneseq
    %v6594 = vshrl.u32 %v6593, 7
    %v6595 = vsub.s32 %v6592, %v6594
    %v6596 = vrot.slane %v6588, %v6595
    %v6598 = vunpack.c.l.s4 1966171168
    %v6599 = vunpack.c.0.s8 %v6598
    %v6600 = vlaneseq
    %v6601 = vshrl.u32 %v6600, 7
    %v6602 = vsub.s32 %v6599, %v6601
    %v6603 = vrot.slane %v6589, %v6602
    %v6604 = vcombine.low %v6596, %v6603
    %v6605 = vcombine.low %v5431, %v5435
    %v6606 = vcombine.low %v5439, %v5443
    %v6607 = vcombine.low %v5447, %v5451
    %v6608 = vcombine.low %v5455, %v5459
    %v6610 = vunpack.c.l.s4 1966171168
    %v6611 = vunpack.c.0.s8 %v6610
    %v6612 = vlaneseq
    %v6613 = vshrl.u32 %v6612, 7
    %v6614 = vsub.s32 %v6611, %v6613
    %v6615 = vrot.slane %v6605, %v6614
    %v6617 = vunpack.c.l.s4 1966171168
    %v6618 = vunpack.c.0.s8 %v6617
    %v6619 = vlaneseq
    %v6620 = vshrl.u32 %v6619, 7
    %v6621 = vsub.s32 %v6618, %v6620
    %v6622 = vrot.slane %v6606, %v6621
    %v6624 = vunpack.c.l.s4 1966171168
    %v6625 = vunpack.c.0.s8 %v6624
    %v6626 = vlaneseq
    %v6627 = vshrl.u32 %v6626, 7
    %v6628 = vsub.s32 %v6625, %v6627
    %v6629 = vrot.slane %v6607, %v6628
    %v6631 = vunpack.c.l.s4 1966171168
    %v6632 = vunpack.c.0.s8 %v6631
    %v6633 = vlaneseq
    %v6634 = vshrl.u32 %v6633, 7
    %v6635 = vsub.s32 %v6632, %v6634
    %v6636 = vrot.slane %v6608, %v6635
    %v6637 = vcombine.low %v6615, %v6622
    %v6638 = vcombine.low %v6629, %v6636
    %v6640 = vunpack.c.l.s4 1966171168
    %v6641 = vunpack.c.0.s8 %v6640
    %v6642 = vlaneseq
    %v6643 = vshrl.u32 %v6642, 7
    %v6644 = vsub.s32 %v6641, %v6643
    %v6645 = vrot.slane %v6637, %v6644
    %v6647 = vunpack.c.l.s4 1966171168
    %v6648 = vunpack.c.0.s8 %v6647
    %v6649 = vlaneseq
    %v6650 = vshrl.u32 %v6649, 7
    %v6651 = vsub.s32 %v6648, %v6650
    %v6652 = vrot.slane %v6638, %v6651
    %v6653 = vcombine.low %v6645, %v6652
    %v6654 = vcombine.low %v5463, %v5467
    %v6655 = vcombine.low %v5471, %v5475
    %v6656 = vcombine.low %v5479, %v5483
    %v6657 = vcombine.low %v5487, %v5491
    %v6659 = vunpack.c.l.s4 1966171168
    %v6660 = vunpack.c.0.s8 %v6659
    %v6661 = vlaneseq
    %v6662 = vshrl.u32 %v6661, 7
    %v6663 = vsub.s32 %v6660, %v6662
    %v6664 = vrot.slane %v6654, %v6663
    %v6666 = vunpack.c.l.s4 1966171168
    %v6667 = vunpack.c.0.s8 %v6666
    %v6668 = vlaneseq
    %v6669 = vshrl.u32 %v6668, 7
    %v6670 = vsub.s32 %v6667, %v6669
    %v6671 = vrot.slane %v6655, %v6670
    %v6673 = vunpack.c.l.s4 1966171168
    %v6674 = vunpack.c.0.s8 %v6673
    %v6675 = vlaneseq
    %v6676 = vshrl.u32 %v6675, 7
    %v6677 = vsub.s32 %v6674, %v6676
    %v6678 = vrot.slane %v6656, %v6677
    %v6680 = vunpack.c.l.s4 1966171168
    %v6681 = vunpack.c.0.s8 %v6680
    %v6682 = vlaneseq
    %v6683 = vshrl.u32 %v6682, 7
    %v6684 = vsub.s32 %v6681, %v6683
    %v6685 = vrot.slane %v6657, %v6684
    %v6686 = vcombine.low %v6664, %v6671
    %v6687 = vcombine.low %v6678, %v6685
    %v6689 = vunpack.c.l.s4 1966171168
    %v6690 = vunpack.c.0.s8 %v6689
    %v6691 = vlaneseq
    %v6692 = vshrl.u32 %v6691, 7
    %v6693 = vsub.s32 %v6690, %v6692
    %v6694 = vrot.slane %v6686, %v6693
    %v6696 = vunpack.c.l.s4 1966171168
    %v6697 = vunpack.c.0.s8 %v6696
    %v6698 = vlaneseq
    %v6699 = vshrl.u32 %v6698, 7
    %v6700 = vsub.s32 %v6697, %v6699
    %v6701 = vrot.slane %v6687, %v6700
    %v6702 = vcombine.low %v6694, %v6701
    %v6703 = vcombine.low %v5495, %v5499
    %v6704 = vcombine.low %v5503, %v5507
    %v6705 = vcombine.low %v5511, %v5515
    %v6706 = vcombine.low %v5519, %v5523
    %v6708 = vunpack.c.l.s4 1966171168
    %v6709 = vunpack.c.0.s8 %v6708
    %v6710 = vlaneseq
    %v6711 = vshrl.u32 %v6710, 7
    %v6712 = vsub.s32 %v6709, %v6711
    %v6713 = vrot.slane %v6703, %v6712
    %v6715 = vunpack.c.l.s4 1966171168
    %v6716 = vunpack.c.0.s8 %v6715
    %v6717 = vlaneseq
    %v6718 = vshrl.u32 %v6717, 7
    %v6719 = vsub.s32 %v6716, %v6718
    %v6720 = vrot.slane %v6704, %v6719
    %v6722 = vunpack.c.l.s4 1966171168
    %v6723 = vunpack.c.0.s8 %v6722
    %v6724 = vlaneseq
    %v6725 = vshrl.u32 %v6724, 7
    %v6726 = vsub.s32 %v6723, %v6725
    %v6727 = vrot.slane %v6705, %v6726
    %v6729 = vunpack.c.l.s4 1966171168
    %v6730 = vunpack.c.0.s8 %v6729
    %v6731 = vlaneseq
    %v6732 = vshrl.u32 %v6731, 7
    %v6733 = vsub.s32 %v6730, %v6732
    %v6734 = vrot.slane %v6706, %v6733
    %v6735 = vcombine.low %v6713, %v6720
    %v6736 = vcombine.low %v6727, %v6734
    %v6738 = vunpack.c.l.s4 1966171168
    %v6739 = vunpack.c.0.s8 %v6738
    %v6740 = vlaneseq
    %v6741 = vshrl.u32 %v6740, 7
    %v6742 = vsub.s32 %v6739, %v6741
    %v6743 = vrot.slane %v6735, %v6742
    %v6745 = vunpack.c.l.s4 1966171168
    %v6746 = vunpack.c.0.s8 %v6745
    %v6747 = vlaneseq
    %v6748 = vshrl.u32 %v6747, 7
    %v6749 = vsub.s32 %v6746, %v6748
    %v6750 = vrot.slane %v6736, %v6749
    %v6751 = vcombine.low %v6743, %v6750
    %v6752 = vcombine.low %v5527, %v5531
    %v6753 = vcombine.low %v5535, %v5539
    %v6754 = vcombine.low %v5543, %v5547
    %v6755 = vcombine.low %v5551, %v5555
    %v6757 = vunpack.c.l.s4 1966171168
    %v6758 = vunpack.c.0.s8 %v6757
    %v6759 = vlaneseq
    %v6760 = vshrl.u32 %v6759, 7
    %v6761 = vsub.s32 %v6758, %v6760
    %v6762 = vrot.slane %v6752, %v6761
    %v6764 = vunpack.c.l.s4 1966171168
    %v6765 = vunpack.c.0.s8 %v6764
    %v6766 = vlaneseq
    %v6767 = vshrl.u32 %v6766, 7
    %v6768 = vsub.s32 %v6765, %v6767
    %v6769 = vrot.slane %v6753, %v6768
    %v6771 = vunpack.c.l.s4 1966171168
    %v6772 = vunpack.c.0.s8 %v6771
    %v6773 = vlaneseq
    %v6774 = vshrl.u32 %v6773, 7
    %v6775 = vsub.s32 %v6772, %v6774
    %v6776 = vrot.slane %v6754, %v6775
    %v6778 = vunpack.c.l.s4 1966171168
    %v6779 = vunpack.c.0.s8 %v6778
    %v6780 = vlaneseq
    %v6781 = vshrl.u32 %v6780, 7
    %v6782 = vsub.s32 %v6779, %v6781
    %v6783 = vrot.slane %v6755, %v6782
    %v6784 = vcombine.low %v6762, %v6769
    %v6785 = vcombine.low %v6776, %v6783
    %v6787 = vunpack.c.l.s4 1966171168
    %v6788 = vunpack.c.0.s8 %v6787
    %v6789 = vlaneseq
    %v6790 = vshrl.u32 %v6789, 7
    %v6791 = vsub.s32 %v6788, %v6790
    %v6792 = vrot.slane %v6784, %v6791
    %v6794 = vunpack.c.l.s4 1966171168
    %v6795 = vunpack.c.0.s8 %v6794
    %v6796 = vlaneseq
    %v6797 = vshrl.u32 %v6796, 7
    %v6798 = vsub.s32 %v6795, %v6797
    %v6799 = vrot.slane %v6785, %v6798
    %v6800 = vcombine.low %v6792, %v6799
    %v6801 = vcombine.low %v5559, %v5563
    %v6802 = vcombine.low %v5567, %v5571
    %v6803 = vcombine.low %v5575, %v5579
    %v6804 = vcombine.low %v5583, %v5587
    %v6806 = vunpack.c.l.s4 1966171168
    %v6807 = vunpack.c.0.s8 %v6806
    %v6808 = vlaneseq
    %v6809 = vshrl.u32 %v6808, 7
    %v6810 = vsub.s32 %v6807, %v6809
    %v6811 = vrot.slane %v6801, %v6810
    %v6813 = vunpack.c.l.s4 1966171168
    %v6814 = vunpack.c.0.s8 %v6813
    %v6815 = vlaneseq
    %v6816 = vshrl.u32 %v6815, 7
    %v6817 = vsub.s32 %v6814, %v6816
    %v6818 = vrot.slane %v6802, %v6817
    %v6820 = vunpack.c.l.s4 1966171168
    %v6821 = vunpack.c.0.s8 %v6820
    %v6822 = vlaneseq
    %v6823 = vshrl.u32 %v6822, 7
    %v6824 = vsub.s32 %v6821, %v6823
    %v6825 = vrot.slane %v6803, %v6824
    %v6827 = vunpack.c.l.s4 1966171168
    %v6828 = vunpack.c.0.s8 %v6827
    %v6829 = vlaneseq
    %v6830 = vshrl.u32 %v6829, 7
    %v6831 = vsub.s32 %v6828, %v6830
    %v6832 = vrot.slane %v6804, %v6831
    %v6833 = vcombine.low %v6811, %v6818
    %v6834 = vcombine.low %v6825, %v6832
    %v6836 = vunpack.c.l.s4 1966171168
    %v6837 = vunpack.c.0.s8 %v6836
    %v6838 = vlaneseq
    %v6839 = vshrl.u32 %v6838, 7
    %v6840 = vsub.s32 %v6837, %v6839
    %v6841 = vrot.slane %v6833, %v6840
    %v6843 = vunpack.c.l.s4 1966171168
    %v6844 = vunpack.c.0.s8 %v6843
    %v6845 = vlaneseq
    %v6846 = vshrl.u32 %v6845, 7
    %v6847 = vsub.s32 %v6844, %v6846
    %v6848 = vrot.slane %v6834, %v6847
    %v6849 = vcombine.low %v6841, %v6848
    %v6850 = vcombine.low %v5591, %v5595
    %v6851 = vcombine.low %v5599, %v5603
    %v6852 = vcombine.low %v5607, %v5611
    %v6853 = vcombine.low %v5615, %v5619
    %v6855 = vunpack.c.l.s4 1966171168
    %v6856 = vunpack.c.0.s8 %v6855
    %v6857 = vlaneseq
    %v6858 = vshrl.u32 %v6857, 7
    %v6859 = vsub.s32 %v6856, %v6858
    %v6860 = vrot.slane %v6850, %v6859
    %v6862 = vunpack.c.l.s4 1966171168
    %v6863 = vunpack.c.0.s8 %v6862
    %v6864 = vlaneseq
    %v6865 = vshrl.u32 %v6864, 7
    %v6866 = vsub.s32 %v6863, %v6865
    %v6867 = vrot.slane %v6851, %v6866
    %v6869 = vunpack.c.l.s4 1966171168
    %v6870 = vunpack.c.0.s8 %v6869
    %v6871 = vlaneseq
    %v6872 = vshrl.u32 %v6871, 7
    %v6873 = vsub.s32 %v6870, %v6872
    %v6874 = vrot.slane %v6852, %v6873
    %v6876 = vunpack.c.l.s4 1966171168
    %v6877 = vunpack.c.0.s8 %v6876
    %v6878 = vlaneseq
    %v6879 = vshrl.u32 %v6878, 7
    %v6880 = vsub.s32 %v6877, %v6879
    %v6881 = vrot.slane %v6853, %v6880
    %v6882 = vcombine.low %v6860, %v6867
    %v6883 = vcombine.low %v6874, %v6881
    %v6885 = vunpack.c.l.s4 1966171168
    %v6886 = vunpack.c.0.s8 %v6885
    %v6887 = vlaneseq
    %v6888 = vshrl.u32 %v6887, 7
    %v6889 = vsub.s32 %v6886, %v6888
    %v6890 = vrot.slane %v6882, %v6889
    %v6892 = vunpack.c.l.s4 1966171168
    %v6893 = vunpack.c.0.s8 %v6892
    %v6894 = vlaneseq
    %v6895 = vshrl.u32 %v6894, 7
    %v6896 = vsub.s32 %v6893, %v6895
    %v6897 = vrot.slane %v6883, %v6896
    %v6898 = vcombine.low %v6890, %v6897
    %v6899 = vcombine.low %v5623, %v5627
    %v6900 = vcombine.low %v5631, %v5635
    %v6901 = vcombine.low %v5639, %v5643
    %v6902 = vcombine.low %v5647, %v5651
    %v6904 = vunpack.c.l.s4 1966171168
    %v6905 = vunpack.c.0.s8 %v6904
    %v6906 = vlaneseq
    %v6907 = vshrl.u32 %v6906, 7
    %v6908 = vsub.s32 %v6905, %v6907
    %v6909 = vrot.slane %v6899, %v6908
    %v6911 = vunpack.c.l.s4 1966171168
    %v6912 = vunpack.c.0.s8 %v6911
    %v6913 = vlaneseq
    %v6914 = vshrl.u32 %v6913, 7
    %v6915 = vsub.s32 %v6912, %v6914
    %v6916 = vrot.slane %v6900, %v6915
    %v6918 = vunpack.c.l.s4 1966171168
    %v6919 = vunpack.c.0.s8 %v6918
    %v6920 = vlaneseq
    %v6921 = vshrl.u32 %v6920, 7
    %v6922 = vsub.s32 %v6919, %v6921
    %v6923 = vrot.slane %v6901, %v6922
    %v6925 = vunpack.c.l.s4 1966171168
    %v6926 = vunpack.c.0.s8 %v6925
    %v6927 = vlaneseq
    %v6928 = vshrl.u32 %v6927, 7
    %v6929 = vsub.s32 %v6926, %v6928
    %v6930 = vrot.slane %v6902, %v6929
    %v6931 = vcombine.low %v6909, %v6916
    %v6932 = vcombine.low %v6923, %v6930
    %v6934 = vunpack.c.l.s4 1966171168
    %v6935 = vunpack.c.0.s8 %v6934
    %v6936 = vlaneseq
    %v6937 = vshrl.u32 %v6936, 7
    %v6938 = vsub.s32 %v6935, %v6937
    %v6939 = vrot.slane %v6931, %v6938
    %v6941 = vunpack.c.l.s4 1966171168
    %v6942 = vunpack.c.0.s8 %v6941
    %v6943 = vlaneseq
    %v6944 = vshrl.u32 %v6943, 7
    %v6945 = vsub.s32 %v6942, %v6944
    %v6946 = vrot.slane %v6932, %v6945
    %v6947 = vcombine.low %v6939, %v6946
    %v6948 = vcombine.low %v5655, %v5659
    %v6949 = vcombine.low %v5663, %v5667
    %v6950 = vcombine.low %v5671, %v5675
    %v6951 = vcombine.low %v5679, %v5683
    %v6953 = vunpack.c.l.s4 1966171168
    %v6954 = vunpack.c.0.s8 %v6953
    %v6955 = vlaneseq
    %v6956 = vshrl.u32 %v6955, 7
    %v6957 = vsub.s32 %v6954, %v6956
    %v6958 = vrot.slane %v6948, %v6957
    %v6960 = vunpack.c.l.s4 1966171168
    %v6961 = vunpack.c.0.s8 %v6960
    %v6962 = vlaneseq
    %v6963 = vshrl.u32 %v6962, 7
    %v6964 = vsub.s32 %v6961, %v6963
    %v6965 = vrot.slane %v6949, %v6964
    %v6967 = vunpack.c.l.s4 1966171168
    %v6968 = vunpack.c.0.s8 %v6967
    %v6969 = vlaneseq
    %v6970 = vshrl.u32 %v6969, 7
    %v6971 = vsub.s32 %v6968, %v6970
    %v6972 = vrot.slane %v6950, %v6971
    %v6974 = vunpack.c.l.s4 1966171168
    %v6975 = vunpack.c.0.s8 %v6974
    %v6976 = vlaneseq
    %v6977 = vshrl.u32 %v6976, 7
    %v6978 = vsub.s32 %v6975, %v6977
    %v6979 = vrot.slane %v6951, %v6978
    %v6980 = vcombine.low %v6958, %v6965
    %v6981 = vcombine.low %v6972, %v6979
    %v6983 = vunpack.c.l.s4 1966171168
    %v6984 = vunpack.c.0.s8 %v6983
    %v6985 = vlaneseq
    %v6986 = vshrl.u32 %v6985, 7
    %v6987 = vsub.s32 %v6984, %v6986
    %v6988 = vrot.slane %v6980, %v6987
    %v6990 = vunpack.c.l.s4 1966171168
    %v6991 = vunpack.c.0.s8 %v6990
    %v6992 = vlaneseq
    %v6993 = vshrl.u32 %v6992, 7
    %v6994 = vsub.s32 %v6991, %v6993
    %v6995 = vrot.slane %v6981, %v6994
    %v6996 = vcombine.low %v6988, %v6995
    %v6997 = vcombine.low %v5687, %v5691
    %v6998 = vcombine.low %v5695, %v5699
    %v6999 = vcombine.low %v5703, %v5707
    %v7000 = vcombine.low %v5711, %v5715
    %v7002 = vunpack.c.l.s4 1966171168
    %v7003 = vunpack.c.0.s8 %v7002
    %v7004 = vlaneseq
    %v7005 = vshrl.u32 %v7004, 7
    %v7006 = vsub.s32 %v7003, %v7005
    %v7007 = vrot.slane %v6997, %v7006
    %v7009 = vunpack.c.l.s4 1966171168
    %v7010 = vunpack.c.0.s8 %v7009
    %v7011 = vlaneseq
    %v7012 = vshrl.u32 %v7011, 7
    %v7013 = vsub.s32 %v7010, %v7012
    %v7014 = vrot.slane %v6998, %v7013
    %v7016 = vunpack.c.l.s4 1966171168
    %v7017 = vunpack.c.0.s8 %v7016
    %v7018 = vlaneseq
    %v7019 = vshrl.u32 %v7018, 7
    %v7020 = vsub.s32 %v7017, %v7019
    %v7021 = vrot.slane %v6999, %v7020
    %v7023 = vunpack.c.l.s4 1966171168
    %v7024 = vunpack.c.0.s8 %v7023
    %v7025 = vlaneseq
    %v7026 = vshrl.u32 %v7025, 7
    %v7027 = vsub.s32 %v7024, %v7026
    %v7028 = vrot.slane %v7000, %v7027
    %v7029 = vcombine.low %v7007, %v7014
    %v7030 = vcombine.low %v7021, %v7028
    %v7032 = vunpack.c.l.s4 1966171168
    %v7033 = vunpack.c.0.s8 %v7032
    %v7034 = vlaneseq
    %v7035 = vshrl.u32 %v7034, 7
    %v7036 = vsub.s32 %v7033, %v7035
    %v7037 = vrot.slane %v7029, %v7036
    %v7039 = vunpack.c.l.s4 1966171168
    %v7040 = vunpack.c.0.s8 %v7039
    %v7041 = vlaneseq
    %v7042 = vshrl.u32 %v7041, 7
    %v7043 = vsub.s32 %v7040, %v7042
    %v7044 = vrot.slane %v7030, %v7043
    %v7045 = vcombine.low %v7037, %v7044
    %v7046 = vcombine.low %v5719, %v5723
    %v7047 = vcombine.low %v5727, %v5731
    %v7048 = vcombine.low %v5735, %v5739
    %v7049 = vcombine.low %v5743, %v5747
    %v7051 = vunpack.c.l.s4 1966171168
    %v7052 = vunpack.c.0.s8 %v7051
    %v7053 = vlaneseq
    %v7054 = vshrl.u32 %v7053, 7
    %v7055 = vsub.s32 %v7052, %v7054
    %v7056 = vrot.slane %v7046, %v7055
    %v7058 = vunpack.c.l.s4 1966171168
    %v7059 = vunpack.c.0.s8 %v7058
    %v7060 = vlaneseq
    %v7061 = vshrl.u32 %v7060, 7
    %v7062 = vsub.s32 %v7059, %v7061
    %v7063 = vrot.slane %v7047, %v7062
    %v7065 = vunpack.c.l.s4 1966171168
    %v7066 = vunpack.c.0.s8 %v7065
    %v7067 = vlaneseq
    %v7068 = vshrl.u32 %v7067, 7
    %v7069 = vsub.s32 %v7066, %v7068
    %v7070 = vrot.slane %v7048, %v7069
    %v7072 = vunpack.c.l.s4 1966171168
    %v7073 = vunpack.c.0.s8 %v7072
    %v7074 = vlaneseq
    %v7075 = vshrl.u32 %v7074, 7
    %v7076 = vsub.s32 %v7073, %v7075
    %v7077 = vrot.slane %v7049, %v7076
    %v7078 = vcombine.low %v7056, %v7063
    %v7079 = vcombine.low %v7070, %v7077
    %v7081 = vunpack.c.l.s4 1966171168
    %v7082 = vunpack.c.0.s8 %v7081
    %v7083 = vlaneseq
    %v7084 = vshrl.u32 %v7083, 7
    %v7085 = vsub.s32 %v7082, %v7084
    %v7086 = vrot.slane %v7078, %v7085
    %v7088 = vunpack.c.l.s4 1966171168
    %v7089 = vunpack.c.0.s8 %v7088
    %v7090 = vlaneseq
    %v7091 = vshrl.u32 %v7090, 7
    %v7092 = vsub.s32 %v7089, %v7091
    %v7093 = vrot.slane %v7079, %v7092
    %v7094 = vcombine.low %v7086, %v7093
    %v7095 = vcombine.low %v5751, %v5755
    %v7096 = vcombine.low %v5759, %v5763
    %v7097 = vcombine.low %v5767, %v5771
    %v7098 = vcombine.low %v5775, %v5779
    %v7100 = vunpack.c.l.s4 1966171168
    %v7101 = vunpack.c.0.s8 %v7100
    %v7102 = vlaneseq
    %v7103 = vshrl.u32 %v7102, 7
    %v7104 = vsub.s32 %v7101, %v7103
    %v7105 = vrot.slane %v7095, %v7104
    %v7107 = vunpack.c.l.s4 1966171168
    %v7108 = vunpack.c.0.s8 %v7107
    %v7109 = vlaneseq
    %v7110 = vshrl.u32 %v7109, 7
    %v7111 = vsub.s32 %v7108, %v7110
    %v7112 = vrot.slane %v7096, %v7111
    %v7114 = vunpack.c.l.s4 1966171168
    %v7115 = vunpack.c.0.s8 %v7114
    %v7116 = vlaneseq
    %v7117 = vshrl.u32 %v7116, 7
    %v7118 = vsub.s32 %v7115, %v7117
    %v7119 = vrot.slane %v7097, %v7118
    %v7121 = vunpack.c.l.s4 1966171168
    %v7122 = vunpack.c.0.s8 %v7121
    %v7123 = vlaneseq
    %v7124 = vshrl.u32 %v7123, 7
    %v7125 = vsub.s32 %v7122, %v7124
    %v7126 = vrot.slane %v7098, %v7125
    %v7127 = vcombine.low %v7105, %v7112
    %v7128 = vcombine.low %v7119, %v7126
    %v7130 = vunpack.c.l.s4 1966171168
    %v7131 = vunpack.c.0.s8 %v7130
    %v7132 = vlaneseq
    %v7133 = vshrl.u32 %v7132, 7
    %v7134 = vsub.s32 %v7131, %v7133
    %v7135 = vrot.slane %v7127, %v7134
    %v7137 = vunpack.c.l.s4 1966171168
    %v7138 = vunpack.c.0.s8 %v7137
    %v7139 = vlaneseq
    %v7140 = vshrl.u32 %v7139, 7
    %v7141 = vsub.s32 %v7138, %v7140
    %v7142 = vrot.slane %v7128, %v7141
    %v7143 = vcombine.low %v7135, %v7142
    %v7144 = vcombine.low %v5783, %v5787
    %v7145 = vcombine.low %v5791, %v5795
    %v7146 = vcombine.low %v5799, %v5803
    %v7147 = vcombine.low %v5807, %v5811
    %v7149 = vunpack.c.l.s4 1966171168
    %v7150 = vunpack.c.0.s8 %v7149
    %v7151 = vlaneseq
    %v7152 = vshrl.u32 %v7151, 7
    %v7153 = vsub.s32 %v7150, %v7152
    %v7154 = vrot.slane %v7144, %v7153
    %v7156 = vunpack.c.l.s4 1966171168
    %v7157 = vunpack.c.0.s8 %v7156
    %v7158 = vlaneseq
    %v7159 = vshrl.u32 %v7158, 7
    %v7160 = vsub.s32 %v7157, %v7159
    %v7161 = vrot.slane %v7145, %v7160
    %v7163 = vunpack.c.l.s4 1966171168
    %v7164 = vunpack.c.0.s8 %v7163
    %v7165 = vlaneseq
    %v7166 = vshrl.u32 %v7165, 7
    %v7167 = vsub.s32 %v7164, %v7166
    %v7168 = vrot.slane %v7146, %v7167
    %v7170 = vunpack.c.l.s4 1966171168
    %v7171 = vunpack.c.0.s8 %v7170
    %v7172 = vlaneseq
    %v7173 = vshrl.u32 %v7172, 7
    %v7174 = vsub.s32 %v7171, %v7173
    %v7175 = vrot.slane %v7147, %v7174
    %v7176 = vcombine.low %v7154, %v7161
    %v7177 = vcombine.low %v7168, %v7175
    %v7179 = vunpack.c.l.s4 1966171168
    %v7180 = vunpack.c.0.s8 %v7179
    %v7181 = vlaneseq
    %v7182 = vshrl.u32 %v7181, 7
    %v7183 = vsub.s32 %v7180, %v7182
    %v7184 = vrot.slane %v7176, %v7183
    %v7186 = vunpack.c.l.s4 1966171168
    %v7187 = vunpack.c.0.s8 %v7186
    %v7188 = vlaneseq
    %v7189 = vshrl.u32 %v7188, 7
    %v7190 = vsub.s32 %v7187, %v7189
    %v7191 = vrot.slane %v7177, %v7190
    %v7192 = vcombine.low %v7184, %v7191
    %v7193 = vcombine.low %v5815, %v5819
    %v7194 = vcombine.low %v5823, %v5827
    %v7195 = vcombine.low %v5831, %v5835
    %v7196 = vcombine.low %v5839, %v5843
    %v7198 = vunpack.c.l.s4 1966171168
    %v7199 = vunpack.c.0.s8 %v7198
    %v7200 = vlaneseq
    %v7201 = vshrl.u32 %v7200, 7
    %v7202 = vsub.s32 %v7199, %v7201
    %v7203 = vrot.slane %v7193, %v7202
    %v7205 = vunpack.c.l.s4 1966171168
    %v7206 = vunpack.c.0.s8 %v7205
    %v7207 = vlaneseq
    %v7208 = vshrl.u32 %v7207, 7
    %v7209 = vsub.s32 %v7206, %v7208
    %v7210 = vrot.slane %v7194, %v7209
    %v7212 = vunpack.c.l.s4 1966171168
    %v7213 = vunpack.c.0.s8 %v7212
    %v7214 = vlaneseq
    %v7215 = vshrl.u32 %v7214, 7
    %v7216 = vsub.s32 %v7213, %v7215
    %v7217 = vrot.slane %v7195, %v7216
    %v7219 = vunpack.c.l.s4 1966171168
    %v7220 = vunpack.c.0.s8 %v7219
    %v7221 = vlaneseq
    %v7222 = vshrl.u32 %v7221, 7
    %v7223 = vsub.s32 %v7220, %v7222
    %v7224 = vrot.slane %v7196, %v7223
    %v7225 = vcombine.low %v7203, %v7210
    %v7226 = vcombine.low %v7217, %v7224
    %v7228 = vunpack.c.l.s4 1966171168
    %v7229 = vunpack.c.0.s8 %v7228
    %v7230 = vlaneseq
    %v7231 = vshrl.u32 %v7230, 7
    %v7232 = vsub.s32 %v7229, %v7231
    %v7233 = vrot.slane %v7225, %v7232
    %v7235 = vunpack.c.l.s4 1966171168
    %v7236 = vunpack.c.0.s8 %v7235
    %v7237 = vlaneseq
    %v7238 = vshrl.u32 %v7237, 7
    %v7239 = vsub.s32 %v7236, %v7238
    %v7240 = vrot.slane %v7226, %v7239
    %v7241 = vcombine.low %v7233, %v7240
    %v7242 = vcombine.low %v5847, %v5851
    %v7243 = vcombine.low %v5855, %v5859
    %v7244 = vcombine.low %v5863, %v5867
    %v7245 = vcombine.low %v5871, %v5875
    %v7247 = vunpack.c.l.s4 1966171168
    %v7248 = vunpack.c.0.s8 %v7247
    %v7249 = vlaneseq
    %v7250 = vshrl.u32 %v7249, 7
    %v7251 = vsub.s32 %v7248, %v7250
    %v7252 = vrot.slane %v7242, %v7251
    %v7254 = vunpack.c.l.s4 1966171168
    %v7255 = vunpack.c.0.s8 %v7254
    %v7256 = vlaneseq
    %v7257 = vshrl.u32 %v7256, 7
    %v7258 = vsub.s32 %v7255, %v7257
    %v7259 = vrot.slane %v7243, %v7258
    %v7261 = vunpack.c.l.s4 1966171168
    %v7262 = vunpack.c.0.s8 %v7261
    %v7263 = vlaneseq
    %v7264 = vshrl.u32 %v7263, 7
    %v7265 = vsub.s32 %v7262, %v7264
    %v7266 = vrot.slane %v7244, %v7265
    %v7268 = vunpack.c.l.s4 1966171168
    %v7269 = vunpack.c.0.s8 %v7268
    %v7270 = vlaneseq
    %v7271 = vshrl.u32 %v7270, 7
    %v7272 = vsub.s32 %v7269, %v7271
    %v7273 = vrot.slane %v7245, %v7272
    %v7274 = vcombine.low %v7252, %v7259
    %v7275 = vcombine.low %v7266, %v7273
    %v7277 = vunpack.c.l.s4 1966171168
    %v7278 = vunpack.c.0.s8 %v7277
    %v7279 = vlaneseq
    %v7280 = vshrl.u32 %v7279, 7
    %v7281 = vsub.s32 %v7278, %v7280
    %v7282 = vrot.slane %v7274, %v7281
    %v7284 = vunpack.c.l.s4 1966171168
    %v7285 = vunpack.c.0.s8 %v7284
    %v7286 = vlaneseq
    %v7287 = vshrl.u32 %v7286, 7
    %v7288 = vsub.s32 %v7285, %v7287
    %v7289 = vrot.slane %v7275, %v7288
    %v7290 = vcombine.low %v7282, %v7289
    %v7291 = vcombine.low %v5879, %v5883
    %v7292 = vcombine.low %v5887, %v5891
    %v7293 = vcombine.low %v5895, %v5899
    %v7294 = vcombine.low %v5903, %v5907
    %v7296 = vunpack.c.l.s4 1966171168
    %v7297 = vunpack.c.0.s8 %v7296
    %v7298 = vlaneseq
    %v7299 = vshrl.u32 %v7298, 7
    %v7300 = vsub.s32 %v7297, %v7299
    %v7301 = vrot.slane %v7291, %v7300
    %v7303 = vunpack.c.l.s4 1966171168
    %v7304 = vunpack.c.0.s8 %v7303
    %v7305 = vlaneseq
    %v7306 = vshrl.u32 %v7305, 7
    %v7307 = vsub.s32 %v7304, %v7306
    %v7308 = vrot.slane %v7292, %v7307
    %v7310 = vunpack.c.l.s4 1966171168
    %v7311 = vunpack.c.0.s8 %v7310
    %v7312 = vlaneseq
    %v7313 = vshrl.u32 %v7312, 7
    %v7314 = vsub.s32 %v7311, %v7313
    %v7315 = vrot.slane %v7293, %v7314
    %v7317 = vunpack.c.l.s4 1966171168
    %v7318 = vunpack.c.0.s8 %v7317
    %v7319 = vlaneseq
    %v7320 = vshrl.u32 %v7319, 7
    %v7321 = vsub.s32 %v7318, %v7320
    %v7322 = vrot.slane %v7294, %v7321
    %v7323 = vcombine.low %v7301, %v7308
    %v7324 = vcombine.low %v7315, %v7322
    %v7326 = vunpack.c.l.s4 1966171168
    %v7327 = vunpack.c.0.s8 %v7326
    %v7328 = vlaneseq
    %v7329 = vshrl.u32 %v7328, 7
    %v7330 = vsub.s32 %v7327, %v7329
    %v7331 = vrot.slane %v7323, %v7330
    %v7333 = vunpack.c.l.s4 1966171168
    %v7334 = vunpack.c.0.s8 %v7333
    %v7335 = vlaneseq
    %v7336 = vshrl.u32 %v7335, 7
    %v7337 = vsub.s32 %v7334, %v7336
    %v7338 = vrot.slane %v7324, %v7337
    %v7339 = vcombine.low %v7331, %v7338
    %v7340 = vcombine.low %v5911, %v5915
    %v7341 = vcombine.low %v5919, %v5923
    %v7342 = vcombine.low %v5927, %v5931
    %v7343 = vcombine.low %v5935, %v5939
    %v7345 = vunpack.c.l.s4 1966171168
    %v7346 = vunpack.c.0.s8 %v7345
    %v7347 = vlaneseq
    %v7348 = vshrl.u32 %v7347, 7
    %v7349 = vsub.s32 %v7346, %v7348
    %v7350 = vrot.slane %v7340, %v7349
    %v7352 = vunpack.c.l.s4 1966171168
    %v7353 = vunpack.c.0.s8 %v7352
    %v7354 = vlaneseq
    %v7355 = vshrl.u32 %v7354, 7
    %v7356 = vsub.s32 %v7353, %v7355
    %v7357 = vrot.slane %v7341, %v7356
    %v7359 = vunpack.c.l.s4 1966171168
    %v7360 = vunpack.c.0.s8 %v7359
    %v7361 = vlaneseq
    %v7362 = vshrl.u32 %v7361, 7
    %v7363 = vsub.s32 %v7360, %v7362
    %v7364 = vrot.slane %v7342, %v7363
    %v7366 = vunpack.c.l.s4 1966171168
    %v7367 = vunpack.c.0.s8 %v7366
    %v7368 = vlaneseq
    %v7369 = vshrl.u32 %v7368, 7
    %v7370 = vsub.s32 %v7367, %v7369
    %v7371 = vrot.slane %v7343, %v7370
    %v7372 = vcombine.low %v7350, %v7357
    %v7373 = vcombine.low %v7364, %v7371
    %v7375 = vunpack.c.l.s4 1966171168
    %v7376 = vunpack.c.0.s8 %v7375
    %v7377 = vlaneseq
    %v7378 = vshrl.u32 %v7377, 7
    %v7379 = vsub.s32 %v7376, %v7378
    %v7380 = vrot.slane %v7372, %v7379
    %v7382 = vunpack.c.l.s4 1966171168
    %v7383 = vunpack.c.0.s8 %v7382
    %v7384 = vlaneseq
    %v7385 = vshrl.u32 %v7384, 7
    %v7386 = vsub.s32 %v7383, %v7385
    %v7387 = vrot.slane %v7373, %v7386
    %v7388 = vcombine.low %v7380, %v7387
    %v7389 = vcombine.low %v5943, %v5947
    %v7390 = vcombine.low %v5951, %v5955
    %v7391 = vcombine.low %v5959, %v5963
    %v7392 = vcombine.low %v5967, %v5971
    %v7394 = vunpack.c.l.s4 1966171168
    %v7395 = vunpack.c.0.s8 %v7394
    %v7396 = vlaneseq
    %v7397 = vshrl.u32 %v7396, 7
    %v7398 = vsub.s32 %v7395, %v7397
    %v7399 = vrot.slane %v7389, %v7398
    %v7401 = vunpack.c.l.s4 1966171168
    %v7402 = vunpack.c.0.s8 %v7401
    %v7403 = vlaneseq
    %v7404 = vshrl.u32 %v7403, 7
    %v7405 = vsub.s32 %v7402, %v7404
    %v7406 = vrot.slane %v7390, %v7405
    %v7408 = vunpack.c.l.s4 1966171168
    %v7409 = vunpack.c.0.s8 %v7408
    %v7410 = vlaneseq
    %v7411 = vshrl.u32 %v7410, 7
    %v7412 = vsub.s32 %v7409, %v7411
    %v7413 = vrot.slane %v7391, %v7412
    %v7415 = vunpack.c.l.s4 1966171168
    %v7416 = vunpack.c.0.s8 %v7415
    %v7417 = vlaneseq
    %v7418 = vshrl.u32 %v7417, 7
    %v7419 = vsub.s32 %v7416, %v7418
    %v7420 = vrot.slane %v7392, %v7419
    %v7421 = vcombine.low %v7399, %v7406
    %v7422 = vcombine.low %v7413, %v7420
    %v7424 = vunpack.c.l.s4 1966171168
    %v7425 = vunpack.c.0.s8 %v7424
    %v7426 = vlaneseq
    %v7427 = vshrl.u32 %v7426, 7
    %v7428 = vsub.s32 %v7425, %v7427
    %v7429 = vrot.slane %v7421, %v7428
    %v7431 = vunpack.c.l.s4 1966171168
    %v7432 = vunpack.c.0.s8 %v7431
    %v7433 = vlaneseq
    %v7434 = vshrl.u32 %v7433, 7
    %v7435 = vsub.s32 %v7432, %v7434
    %v7436 = vrot.slane %v7422, %v7435
    %v7437 = vcombine.low %v7429, %v7436
    %v7438 = vcombine.low %v5975, %v5979
    %v7439 = vcombine.low %v5983, %v5987
    %v7440 = vcombine.low %v5991, %v5995
    %v7441 = vcombine.low %v5999, %v6003
    %v7443 = vunpack.c.l.s4 1966171168
    %v7444 = vunpack.c.0.s8 %v7443
    %v7445 = vlaneseq
    %v7446 = vshrl.u32 %v7445, 7
    %v7447 = vsub.s32 %v7444, %v7446
    %v7448 = vrot.slane %v7438, %v7447
    %v7450 = vunpack.c.l.s4 1966171168
    %v7451 = vunpack.c.0.s8 %v7450
    %v7452 = vlaneseq
    %v7453 = vshrl.u32 %v7452, 7
    %v7454 = vsub.s32 %v7451, %v7453
    %v7455 = vrot.slane %v7439, %v7454
    %v7457 = vunpack.c.l.s4 1966171168
    %v7458 = vunpack.c.0.s8 %v7457
    %v7459 = vlaneseq
    %v7460 = vshrl.u32 %v7459, 7
    %v7461 = vsub.s32 %v7458, %v7460
    %v7462 = vrot.slane %v7440, %v7461
    %v7464 = vunpack.c.l.s4 1966171168
    %v7465 = vunpack.c.0.s8 %v7464
    %v7466 = vlaneseq
    %v7467 = vshrl.u32 %v7466, 7
    %v7468 = vsub.s32 %v7465, %v7467
    %v7469 = vrot.slane %v7441, %v7468
    %v7470 = vcombine.low %v7448, %v7455
    %v7471 = vcombine.low %v7462, %v7469
    %v7473 = vunpack.c.l.s4 1966171168
    %v7474 = vunpack.c.0.s8 %v7473
    %v7475 = vlaneseq
    %v7476 = vshrl.u32 %v7475, 7
    %v7477 = vsub.s32 %v7474, %v7476
    %v7478 = vrot.slane %v7470, %v7477
    %v7480 = vunpack.c.l.s4 1966171168
    %v7481 = vunpack.c.0.s8 %v7480
    %v7482 = vlaneseq
    %v7483 = vshrl.u32 %v7482, 7
    %v7484 = vsub.s32 %v7481, %v7483
    %v7485 = vrot.slane %v7471, %v7484
    %v7486 = vcombine.low %v7478, %v7485
    %v7487 = vcombine.low %v6007, %v6011
    %v7488 = vcombine.low %v6015, %v6019
    %v7489 = vcombine.low %v6023, %v6027
    %v7490 = vcombine.low %v6031, %v6035
    %v7492 = vunpack.c.l.s4 1966171168
    %v7493 = vunpack.c.0.s8 %v7492
    %v7494 = vlaneseq
    %v7495 = vshrl.u32 %v7494, 7
    %v7496 = vsub.s32 %v7493, %v7495
    %v7497 = vrot.slane %v7487, %v7496
    %v7499 = vunpack.c.l.s4 1966171168
    %v7500 = vunpack.c.0.s8 %v7499
    %v7501 = vlaneseq
    %v7502 = vshrl.u32 %v7501, 7
    %v7503 = vsub.s32 %v7500, %v7502
    %v7504 = vrot.slane %v7488, %v7503
    %v7506 = vunpack.c.l.s4 1966171168
    %v7507 = vunpack.c.0.s8 %v7506
    %v7508 = vlaneseq
    %v7509 = vshrl.u32 %v7508, 7
    %v7510 = vsub.s32 %v7507, %v7509
    %v7511 = vrot.slane %v7489, %v7510
    %v7513 = vunpack.c.l.s4 1966171168
    %v7514 = vunpack.c.0.s8 %v7513
    %v7515 = vlaneseq
    %v7516 = vshrl.u32 %v7515, 7
    %v7517 = vsub.s32 %v7514, %v7516
    %v7518 = vrot.slane %v7490, %v7517
    %v7519 = vcombine.low %v7497, %v7504
    %v7520 = vcombine.low %v7511, %v7518
    %v7522 = vunpack.c.l.s4 1966171168
    %v7523 = vunpack.c.0.s8 %v7522
    %v7524 = vlaneseq
    %v7525 = vshrl.u32 %v7524, 7
    %v7526 = vsub.s32 %v7523, %v7525
    %v7527 = vrot.slane %v7519, %v7526
    %v7529 = vunpack.c.l.s4 1966171168
    %v7530 = vunpack.c.0.s8 %v7529
    %v7531 = vlaneseq
    %v7532 = vshrl.u32 %v7531, 7
    %v7533 = vsub.s32 %v7530, %v7532
    %v7534 = vrot.slane %v7520, %v7533
    %v7535 = vcombine.low %v7527, %v7534
    %v7536 = vcombine.low %v6039, %v6043
    %v7537 = vcombine.low %v6047, %v6051
    %v7538 = vcombine.low %v6055, %v6059
    %v7539 = vcombine.low %v6063, %v6067
    %v7541 = vunpack.c.l.s4 1966171168
    %v7542 = vunpack.c.0.s8 %v7541
    %v7543 = vlaneseq
    %v7544 = vshrl.u32 %v7543, 7
    %v7545 = vsub.s32 %v7542, %v7544
    %v7546 = vrot.slane %v7536, %v7545
    %v7548 = vunpack.c.l.s4 1966171168
    %v7549 = vunpack.c.0.s8 %v7548
    %v7550 = vlaneseq
    %v7551 = vshrl.u32 %v7550, 7
    %v7552 = vsub.s32 %v7549, %v7551
    %v7553 = vrot.slane %v7537, %v7552
    %v7555 = vunpack.c.l.s4 1966171168
    %v7556 = vunpack.c.0.s8 %v7555
    %v7557 = vlaneseq
    %v7558 = vshrl.u32 %v7557, 7
    %v7559 = vsub.s32 %v7556, %v7558
    %v7560 = vrot.slane %v7538, %v7559
    %v7562 = vunpack.c.l.s4 1966171168
    %v7563 = vunpack.c.0.s8 %v7562
    %v7564 = vlaneseq
    %v7565 = vshrl.u32 %v7564, 7
    %v7566 = vsub.s32 %v7563, %v7565
    %v7567 = vrot.slane %v7539, %v7566
    %v7568 = vcombine.low %v7546, %v7553
    %v7569 = vcombine.low %v7560, %v7567
    %v7571 = vunpack.c.l.s4 1966171168
    %v7572 = vunpack.c.0.s8 %v7571
    %v7573 = vlaneseq
    %v7574 = vshrl.u32 %v7573, 7
    %v7575 = vsub.s32 %v7572, %v7574
    %v7576 = vrot.slane %v7568, %v7575
    %v7578 = vunpack.c.l.s4 1966171168
    %v7579 = vunpack.c.0.s8 %v7578
    %v7580 = vlaneseq
    %v7581 = vshrl.u32 %v7580, 7
    %v7582 = vsub.s32 %v7579, %v7581
    %v7583 = vrot.slane %v7569, %v7582
    %v7584 = vcombine.low %v7576, %v7583
    %v7585 = vcombine.low %v6071, %v6075
    %v7586 = vcombine.low %v6079, %v6083
    %v7587 = vcombine.low %v6087, %v6091
    %v7588 = vcombine.low %v6095, %v6099
    %v7590 = vunpack.c.l.s4 1966171168
    %v7591 = vunpack.c.0.s8 %v7590
    %v7592 = vlaneseq
    %v7593 = vshrl.u32 %v7592, 7
    %v7594 = vsub.s32 %v7591, %v7593
    %v7595 = vrot.slane %v7585, %v7594
    %v7597 = vunpack.c.l.s4 1966171168
    %v7598 = vunpack.c.0.s8 %v7597
    %v7599 = vlaneseq
    %v7600 = vshrl.u32 %v7599, 7
    %v7601 = vsub.s32 %v7598, %v7600
    %v7602 = vrot.slane %v7586, %v7601
    %v7604 = vunpack.c.l.s4 1966171168
    %v7605 = vunpack.c.0.s8 %v7604
    %v7606 = vlaneseq
    %v7607 = vshrl.u32 %v7606, 7
    %v7608 = vsub.s32 %v7605, %v7607
    %v7609 = vrot.slane %v7587, %v7608
    %v7611 = vunpack.c.l.s4 1966171168
    %v7612 = vunpack.c.0.s8 %v7611
    %v7613 = vlaneseq
    %v7614 = vshrl.u32 %v7613, 7
    %v7615 = vsub.s32 %v7612, %v7614
    %v7616 = vrot.slane %v7588, %v7615
    %v7617 = vcombine.low %v7595, %v7602
    %v7618 = vcombine.low %v7609, %v7616
    %v7620 = vunpack.c.l.s4 1966171168
    %v7621 = vunpack.c.0.s8 %v7620
    %v7622 = vlaneseq
    %v7623 = vshrl.u32 %v7622, 7
    %v7624 = vsub.s32 %v7621, %v7623
    %v7625 = vrot.slane %v7617, %v7624
    %v7627 = vunpack.c.l.s4 1966171168
    %v7628 = vunpack.c.0.s8 %v7627
    %v7629 = vlaneseq
    %v7630 = vshrl.u32 %v7629, 7
    %v7631 = vsub.s32 %v7628, %v7630
    %v7632 = vrot.slane %v7618, %v7631
    %v7633 = vcombine.low %v7625, %v7632
    %v7634 = vcombine.low %v6103, %v6107
    %v7635 = vcombine.low %v6111, %v6115
    %v7636 = vcombine.low %v6119, %v6123
    %v7637 = vcombine.low %v6127, %v6131
    %v7639 = vunpack.c.l.s4 1966171168
    %v7640 = vunpack.c.0.s8 %v7639
    %v7641 = vlaneseq
    %v7642 = vshrl.u32 %v7641, 7
    %v7643 = vsub.s32 %v7640, %v7642
    %v7644 = vrot.slane %v7634, %v7643
    %v7646 = vunpack.c.l.s4 1966171168
    %v7647 = vunpack.c.0.s8 %v7646
    %v7648 = vlaneseq
    %v7649 = vshrl.u32 %v7648, 7
    %v7650 = vsub.s32 %v7647, %v7649
    %v7651 = vrot.slane %v7635, %v7650
    %v7653 = vunpack.c.l.s4 1966171168
    %v7654 = vunpack.c.0.s8 %v7653
    %v7655 = vlaneseq
    %v7656 = vshrl.u32 %v7655, 7
    %v7657 = vsub.s32 %v7654, %v7656
    %v7658 = vrot.slane %v7636, %v7657
    %v7660 = vunpack.c.l.s4 1966171168
    %v7661 = vunpack.c.0.s8 %v7660
    %v7662 = vlaneseq
    %v7663 = vshrl.u32 %v7662, 7
    %v7664 = vsub.s32 %v7661, %v7663
    %v7665 = vrot.slane %v7637, %v7664
    %v7666 = vcombine.low %v7644, %v7651
    %v7667 = vcombine.low %v7658, %v7665
    %v7669 = vunpack.c.l.s4 1966171168
    %v7670 = vunpack.c.0.s8 %v7669
    %v7671 = vlaneseq
    %v7672 = vshrl.u32 %v7671, 7
    %v7673 = vsub.s32 %v7670, %v7672
    %v7674 = vrot.slane %v7666, %v7673
    %v7676 = vunpack.c.l.s4 1966171168
    %v7677 = vunpack.c.0.s8 %v7676
    %v7678 = vlaneseq
    %v7679 = vshrl.u32 %v7678, 7
    %v7680 = vsub.s32 %v7677, %v7679
    %v7681 = vrot.slane %v7667, %v7680
    %v7682 = vcombine.low %v7674, %v7681
    %v7683 = vcombine.low %v6135, %v6139
    %v7684 = vcombine.low %v6143, %v6147
    %v7685 = vcombine.low %v6151, %v6155
    %v7686 = vcombine.low %v6159, %v6163
    %v7688 = vunpack.c.l.s4 1966171168
    %v7689 = vunpack.c.0.s8 %v7688
    %v7690 = vlaneseq
    %v7691 = vshrl.u32 %v7690, 7
    %v7692 = vsub.s32 %v7689, %v7691
    %v7693 = vrot.slane %v7683, %v7692
    %v7695 = vunpack.c.l.s4 1966171168
    %v7696 = vunpack.c.0.s8 %v7695
    %v7697 = vlaneseq
    %v7698 = vshrl.u32 %v7697, 7
    %v7699 = vsub.s32 %v7696, %v7698
    %v7700 = vrot.slane %v7684, %v7699
    %v7702 = vunpack.c.l.s4 1966171168
    %v7703 = vunpack.c.0.s8 %v7702
    %v7704 = vlaneseq
    %v7705 = vshrl.u32 %v7704, 7
    %v7706 = vsub.s32 %v7703, %v7705
    %v7707 = vrot.slane %v7685, %v7706
    %v7709 = vunpack.c.l.s4 1966171168
    %v7710 = vunpack.c.0.s8 %v7709
    %v7711 = vlaneseq
    %v7712 = vshrl.u32 %v7711, 7
    %v7713 = vsub.s32 %v7710, %v7712
    %v7714 = vrot.slane %v7686, %v7713
    %v7715 = vcombine.low %v7693, %v7700
    %v7716 = vcombine.low %v7707, %v7714
    %v7718 = vunpack.c.l.s4 1966171168
    %v7719 = vunpack.c.0.s8 %v7718
    %v7720 = vlaneseq
    %v7721 = vshrl.u32 %v7720, 7
    %v7722 = vsub.s32 %v7719, %v7721
    %v7723 = vrot.slane %v7715, %v7722
    %v7725 = vunpack.c.l.s4 1966171168
    %v7726 = vunpack.c.0.s8 %v7725
    %v7727 = vlaneseq
    %v7728 = vshrl.u32 %v7727, 7
    %v7729 = vsub.s32 %v7726, %v7728
    %v7730 = vrot.slane %v7716, %v7729
    %v7731 = vcombine.low %v7723, %v7730
    %7732 = vset.pattern.permute.xlu0 0
    %7733 = vperm.xlu0 %7732, %v6212
    %v7734 = vpop.permute.xlu0 %7733
    %7735 = vset.pattern.permute.xlu0 0
    %7736 = vperm.xlu0 %7735, %v6261
    %v7737 = vpop.permute.xlu0 %7736
    %7738 = vset.pattern.permute.xlu0 0
    %7739 = vperm.xlu0 %7738, %v6310
    %v7740 = vpop.permute.xlu0 %7739
    %7741 = vset.pattern.permute.xlu0 0
    %7742 = vperm.xlu0 %7741, %v6359
    %v7743 = vpop.permute.xlu0 %7742
    %7744 = vset.pattern.permute.xlu0 0
    %7745 = vperm.xlu0 %7744, %v6408
    %v7746 = vpop.permute.xlu0 %7745
    %7747 = vset.pattern.permute.xlu0 0
    %7748 = vperm.xlu0 %7747, %v6457
    %v7749 = vpop.permute.xlu0 %7748
    %7750 = vset.pattern.permute.xlu0 0
    %7751 = vperm.xlu0 %7750, %v6506
    %v7752 = vpop.permute.xlu0 %7751
    %7753 = vset.pattern.permute.xlu0 0
    %7754 = vperm.xlu0 %7753, %v6555
    %v7755 = vpop.permute.xlu0 %7754
    %7756 = vset.pattern.permute.xlu0 0
    %7757 = vperm.xlu0 %7756, %v6604
    %v7758 = vpop.permute.xlu0 %7757
    %7759 = vset.pattern.permute.xlu0 0
    %7760 = vperm.xlu0 %7759, %v6653
    %v7761 = vpop.permute.xlu0 %7760
    %7762 = vset.pattern.permute.xlu0 0
    %7763 = vperm.xlu0 %7762, %v6702
    %v7764 = vpop.permute.xlu0 %7763
    %7765 = vset.pattern.permute.xlu0 0
    %7766 = vperm.xlu0 %7765, %v6751
    %v7767 = vpop.permute.xlu0 %7766
    %7768 = vset.pattern.permute.xlu0 0
    %7769 = vperm.xlu0 %7768, %v6800
    %v7770 = vpop.permute.xlu0 %7769
    %7771 = vset.pattern.permute.xlu0 0
    %7772 = vperm.xlu0 %7771, %v6849
    %v7773 = vpop.permute.xlu0 %7772
    %7774 = vset.pattern.permute.xlu0 0
    %7775 = vperm.xlu0 %7774, %v6898
    %v7776 = vpop.permute.xlu0 %7775
    %7777 = vset.pattern.permute.xlu0 0
    %7778 = vperm.xlu0 %7777, %v6947
    %v7779 = vpop.permute.xlu0 %7778
    %7780 = vset.pattern.permute.xlu0 0
    %7781 = vperm.xlu0 %7780, %v6996
    %v7782 = vpop.permute.xlu0 %7781
    %7783 = vset.pattern.permute.xlu0 0
    %7784 = vperm.xlu0 %7783, %v7045
    %v7785 = vpop.permute.xlu0 %7784
    %7786 = vset.pattern.permute.xlu0 0
    %7787 = vperm.xlu0 %7786, %v7094
    %v7788 = vpop.permute.xlu0 %7787
    %7789 = vset.pattern.permute.xlu0 0
    %7790 = vperm.xlu0 %7789, %v7143
    %v7791 = vpop.permute.xlu0 %7790
    %7792 = vset.pattern.permute.xlu0 0
    %7793 = vperm.xlu0 %7792, %v7192
    %v7794 = vpop.permute.xlu0 %7793
    %7795 = vset.pattern.permute.xlu0 0
    %7796 = vperm.xlu0 %7795, %v7241
    %v7797 = vpop.permute.xlu0 %7796
    %7798 = vset.pattern.permute.xlu0 0
    %7799 = vperm.xlu0 %7798, %v7290
    %v7800 = vpop.permute.xlu0 %7799
    %7801 = vset.pattern.permute.xlu0 0
    %7802 = vperm.xlu0 %7801, %v7339
    %v7803 = vpop.permute.xlu0 %7802
    %7804 = vset.pattern.permute.xlu0 0
    %7805 = vperm.xlu0 %7804, %v7388
    %v7806 = vpop.permute.xlu0 %7805
    %7807 = vset.pattern.permute.xlu0 0
    %7808 = vperm.xlu0 %7807, %v7437
    %v7809 = vpop.permute.xlu0 %7808
    %7810 = vset.pattern.permute.xlu0 0
    %7811 = vperm.xlu0 %7810, %v7486
    %v7812 = vpop.permute.xlu0 %7811
    %7813 = vset.pattern.permute.xlu0 0
    %7814 = vperm.xlu0 %7813, %v7535
    %v7815 = vpop.permute.xlu0 %7814
    %7816 = vset.pattern.permute.xlu0 0
    %7817 = vperm.xlu0 %7816, %v7584
    %v7818 = vpop.permute.xlu0 %7817
    %7819 = vset.pattern.permute.xlu0 0
    %7820 = vperm.xlu0 %7819, %v7633
    %v7821 = vpop.permute.xlu0 %7820
    %7822 = vset.pattern.permute.xlu0 0
    %7823 = vperm.xlu0 %7822, %v7682
    %v7824 = vpop.permute.xlu0 %7823
    %7825 = vset.pattern.permute.xlu0 0
    %7826 = vperm.xlu0 %7825, %v7731
    %v7827 = vpop.permute.xlu0 %7826
    %v7828 = vlaneseq
    %v7829 = vshrl.u32 %v7828, 7
    %v7830 = vsub.s32 %v160, %v7829
    %v7831 = vrot.slane %v7734, %v7830
    %v7832 = vlaneseq
    %v7833 = vshrl.u32 %v7832, 7
    %v7834 = vsub.s32 %v4903, %v7833
    %v7835 = vrot.slane %v7737, %v7834
    %v7836 = vsel %vm4908, %v7835, %v7831
    %v7837 = vlaneseq
    %v7838 = vshrl.u32 %v7837, 7
    %v7839 = vsub.s32 %v4910, %v7838
    %v7840 = vrot.slane %v7740, %v7839
    %v7841 = vsel %vm4915, %v7840, %v7836
    %v7842 = vlaneseq
    %v7843 = vshrl.u32 %v7842, 7
    %v7844 = vsub.s32 %v4917, %v7843
    %v7845 = vrot.slane %v7743, %v7844
    %v7846 = vsel %vm4922, %v7845, %v7841
    %v7847 = vlaneseq
    %v7848 = vshrl.u32 %v7847, 7
    %v7849 = vsub.s32 %v4924, %v7848
    %v7850 = vrot.slane %v7746, %v7849
    %v7851 = vsel %vm4929, %v7850, %v7846
    %v7852 = vlaneseq
    %v7853 = vshrl.u32 %v7852, 7
    %v7854 = vsub.s32 %v4931, %v7853
    %v7855 = vrot.slane %v7749, %v7854
    %v7856 = vsel %vm4936, %v7855, %v7851
    %v7857 = vlaneseq
    %v7858 = vshrl.u32 %v7857, 7
    %v7859 = vsub.s32 %v4938, %v7858
    %v7860 = vrot.slane %v7752, %v7859
    %v7861 = vsel %vm4943, %v7860, %v7856
    %v7862 = vlaneseq
    %v7863 = vshrl.u32 %v7862, 7
    %v7864 = vsub.s32 %v4945, %v7863
    %v7865 = vrot.slane %v7755, %v7864
    %v7866 = vsel %vm4950, %v7865, %v7861
    %v7867 = vlaneseq
    %v7868 = vshrl.u32 %v7867, 7
    %v7869 = vsub.s32 %v4952, %v7868
    %v7870 = vrot.slane %v7758, %v7869
    %v7871 = vsel %vm4957, %v7870, %v7866
    %v7872 = vlaneseq
    %v7873 = vshrl.u32 %v7872, 7
    %v7874 = vsub.s32 %v4959, %v7873
    %v7875 = vrot.slane %v7761, %v7874
    %v7876 = vsel %vm4964, %v7875, %v7871
    %v7877 = vlaneseq
    %v7878 = vshrl.u32 %v7877, 7
    %v7879 = vsub.s32 %v4966, %v7878
    %v7880 = vrot.slane %v7764, %v7879
    %v7881 = vsel %vm4971, %v7880, %v7876
    %v7882 = vlaneseq
    %v7883 = vshrl.u32 %v7882, 7
    %v7884 = vsub.s32 %v4973, %v7883
    %v7885 = vrot.slane %v7767, %v7884
    %v7886 = vsel %vm4978, %v7885, %v7881
    %v7887 = vlaneseq
    %v7888 = vshrl.u32 %v7887, 7
    %v7889 = vsub.s32 %v4980, %v7888
    %v7890 = vrot.slane %v7770, %v7889
    %v7891 = vsel %vm4985, %v7890, %v7886
    %v7892 = vlaneseq
    %v7893 = vshrl.u32 %v7892, 7
    %v7894 = vsub.s32 %v4987, %v7893
    %v7895 = vrot.slane %v7773, %v7894
    %v7896 = vsel %vm4992, %v7895, %v7891
    %v7897 = vlaneseq
    %v7898 = vshrl.u32 %v7897, 7
    %v7899 = vsub.s32 %v4994, %v7898
    %v7900 = vrot.slane %v7776, %v7899
    %v7901 = vsel %vm4999, %v7900, %v7896
    %v7902 = vlaneseq
    %v7903 = vshrl.u32 %v7902, 7
    %v7904 = vsub.s32 %v5001, %v7903
    %v7905 = vrot.slane %v7779, %v7904
    %v7906 = vsel %vm5006, %v7905, %v7901
    %v7907 = vlaneseq
    %v7908 = vshrl.u32 %v7907, 7
    %v7909 = vsub.s32 %v160, %v7908
    %v7910 = vrot.slane %v7782, %v7909
    %v7911 = vlaneseq
    %v7912 = vshrl.u32 %v7911, 7
    %v7913 = vsub.s32 %v4903, %v7912
    %v7914 = vrot.slane %v7785, %v7913
    %v7915 = vsel %vm4908, %v7914, %v7910
    %v7916 = vlaneseq
    %v7917 = vshrl.u32 %v7916, 7
    %v7918 = vsub.s32 %v4910, %v7917
    %v7919 = vrot.slane %v7788, %v7918
    %v7920 = vsel %vm4915, %v7919, %v7915
    %v7921 = vlaneseq
    %v7922 = vshrl.u32 %v7921, 7
    %v7923 = vsub.s32 %v4917, %v7922
    %v7924 = vrot.slane %v7791, %v7923
    %v7925 = vsel %vm4922, %v7924, %v7920
    %v7926 = vlaneseq
    %v7927 = vshrl.u32 %v7926, 7
    %v7928 = vsub.s32 %v4924, %v7927
    %v7929 = vrot.slane %v7794, %v7928
    %v7930 = vsel %vm4929, %v7929, %v7925
    %v7931 = vlaneseq
    %v7932 = vshrl.u32 %v7931, 7
    %v7933 = vsub.s32 %v4931, %v7932
    %v7934 = vrot.slane %v7797, %v7933
    %v7935 = vsel %vm4936, %v7934, %v7930
    %v7936 = vlaneseq
    %v7937 = vshrl.u32 %v7936, 7
    %v7938 = vsub.s32 %v4938, %v7937
    %v7939 = vrot.slane %v7800, %v7938
    %v7940 = vsel %vm4943, %v7939, %v7935
    %v7941 = vlaneseq
    %v7942 = vshrl.u32 %v7941, 7
    %v7943 = vsub.s32 %v4945, %v7942
    %v7944 = vrot.slane %v7803, %v7943
    %v7945 = vsel %vm4950, %v7944, %v7940
    %v7946 = vlaneseq
    %v7947 = vshrl.u32 %v7946, 7
    %v7948 = vsub.s32 %v4952, %v7947
    %v7949 = vrot.slane %v7806, %v7948
    %v7950 = vsel %vm4957, %v7949, %v7945
    %v7951 = vlaneseq
    %v7952 = vshrl.u32 %v7951, 7
    %v7953 = vsub.s32 %v4959, %v7952
    %v7954 = vrot.slane %v7809, %v7953
    %v7955 = vsel %vm4964, %v7954, %v7950
    %v7956 = vlaneseq
    %v7957 = vshrl.u32 %v7956, 7
    %v7958 = vsub.s32 %v4966, %v7957
    %v7959 = vrot.slane %v7812, %v7958
    %v7960 = vsel %vm4971, %v7959, %v7955
    %v7961 = vlaneseq
    %v7962 = vshrl.u32 %v7961, 7
    %v7963 = vsub.s32 %v4973, %v7962
    %v7964 = vrot.slane %v7815, %v7963
    %v7965 = vsel %vm4978, %v7964, %v7960
    %v7966 = vlaneseq
    %v7967 = vshrl.u32 %v7966, 7
    %v7968 = vsub.s32 %v4980, %v7967
    %v7969 = vrot.slane %v7818, %v7968
    %v7970 = vsel %vm4985, %v7969, %v7965
    %v7971 = vlaneseq
    %v7972 = vshrl.u32 %v7971, 7
    %v7973 = vsub.s32 %v4987, %v7972
    %v7974 = vrot.slane %v7821, %v7973
    %v7975 = vsel %vm4992, %v7974, %v7970
    %v7976 = vlaneseq
    %v7977 = vshrl.u32 %v7976, 7
    %v7978 = vsub.s32 %v4994, %v7977
    %v7979 = vrot.slane %v7824, %v7978
    %v7980 = vsel %vm4999, %v7979, %v7975
    %v7981 = vlaneseq
    %v7982 = vshrl.u32 %v7981, 7
    %v7983 = vsub.s32 %v5001, %v7982
    %v7984 = vrot.slane %v7827, %v7983
    %v7985 = vsel %vm5006, %v7984, %v7980
    %v7986 = vcombine.low %v7906, %v7985
    %v7988 = vunpack.c.l.s4 1966171168
    %v7989 = vunpack.c.0.s8 %v7988
    %v7990 = vlaneseq
    %v7991 = vshrl.u32 %v7990, 7
    %v7992 = vsub.s32 %v7989, %v7991
    %v7993 = vrot.slane %v7986, %v7992
    %v7995 = vunpack.c.l.s4 1966171168
    %v7996 = vunpack.c.0.s8 %v7995
    %v7997 = vlaneseq
    %v7998 = vshrl.u32 %v7997, 7
    %v7999 = vsub.s32 %v7996, %v7998
    %v8000 = vrot.slane %v7993, %v7999
    %s8002 = scalar_lea.vmem [#allocation2], 1
    %8003 = vst.msk [vmem:[%s8002] ss:$4 sm:$0x3] %vm5106, %v8000
    %v8036 = vlaneseq
    %v8037 = vshrl.u32 %v8036, 7
    %v8038 = vsub.s32 0, %v8037
    %v8039 = vrot.slane %v1989, %v8038
    %v8040 = vlaneseq
    %v8041 = vshrl.u32 %v8040, 7
    %v8042 = vsub.s32 1, %v8041
    %v8043 = vrot.slane %v1989, %v8042
    %v8044 = vlaneseq
    %v8045 = vshrl.u32 %v8044, 7
    %v8046 = vsub.s32 2, %v8045
    %v8047 = vrot.slane %v1989, %v8046
    %v8048 = vlaneseq
    %v8049 = vshrl.u32 %v8048, 7
    %v8050 = vsub.s32 3, %v8049
    %v8051 = vrot.slane %v1989, %v8050
    %v8052 = vlaneseq
    %v8053 = vshrl.u32 %v8052, 7
    %v8054 = vsub.s32 4, %v8053
    %v8055 = vrot.slane %v1989, %v8054
    %v8056 = vlaneseq
    %v8057 = vshrl.u32 %v8056, 7
    %v8058 = vsub.s32 5, %v8057
    %v8059 = vrot.slane %v1989, %v8058
    %v8060 = vlaneseq
    %v8061 = vshrl.u32 %v8060, 7
    %v8062 = vsub.s32 6, %v8061
    %v8063 = vrot.slane %v1989, %v8062
    %v8064 = vlaneseq
    %v8065 = vshrl.u32 %v8064, 7
    %v8066 = vsub.s32 7, %v8065
    %v8067 = vrot.slane %v1989, %v8066
    %v8068 = vlaneseq
    %v8069 = vshrl.u32 %v8068, 7
    %v8070 = vsub.s32 0, %v8069
    %v8071 = vrot.slane %v1992, %v8070
    %v8072 = vlaneseq
    %v8073 = vshrl.u32 %v8072, 7
    %v8074 = vsub.s32 1, %v8073
    %v8075 = vrot.slane %v1992, %v8074
    %v8076 = vlaneseq
    %v8077 = vshrl.u32 %v8076, 7
    %v8078 = vsub.s32 2, %v8077
    %v8079 = vrot.slane %v1992, %v8078
    %v8080 = vlaneseq
    %v8081 = vshrl.u32 %v8080, 7
    %v8082 = vsub.s32 3, %v8081
    %v8083 = vrot.slane %v1992, %v8082
    %v8084 = vlaneseq
    %v8085 = vshrl.u32 %v8084, 7
    %v8086 = vsub.s32 4, %v8085
    %v8087 = vrot.slane %v1992, %v8086
    %v8088 = vlaneseq
    %v8089 = vshrl.u32 %v8088, 7
    %v8090 = vsub.s32 5, %v8089
    %v8091 = vrot.slane %v1992, %v8090
    %v8092 = vlaneseq
    %v8093 = vshrl.u32 %v8092, 7
    %v8094 = vsub.s32 6, %v8093
    %v8095 = vrot.slane %v1992, %v8094
    %v8096 = vlaneseq
    %v8097 = vshrl.u32 %v8096, 7
    %v8098 = vsub.s32 7, %v8097
    %v8099 = vrot.slane %v1992, %v8098
    %v8100 = vlaneseq
    %v8101 = vshrl.u32 %v8100, 7
    %v8102 = vsub.s32 0, %v8101
    %v8103 = vrot.slane %v1995, %v8102
    %v8104 = vlaneseq
    %v8105 = vshrl.u32 %v8104, 7
    %v8106 = vsub.s32 1, %v8105
    %v8107 = vrot.slane %v1995, %v8106
    %v8108 = vlaneseq
    %v8109 = vshrl.u32 %v8108, 7
    %v8110 = vsub.s32 2, %v8109
    %v8111 = vrot.slane %v1995, %v8110
    %v8112 = vlaneseq
    %v8113 = vshrl.u32 %v8112, 7
    %v8114 = vsub.s32 3, %v8113
    %v8115 = vrot.slane %v1995, %v8114
    %v8116 = vlaneseq
    %v8117 = vshrl.u32 %v8116, 7
    %v8118 = vsub.s32 4, %v8117
    %v8119 = vrot.slane %v1995, %v8118
    %v8120 = vlaneseq
    %v8121 = vshrl.u32 %v8120, 7
    %v8122 = vsub.s32 5, %v8121
    %v8123 = vrot.slane %v1995, %v8122
    %v8124 = vlaneseq
    %v8125 = vshrl.u32 %v8124, 7
    %v8126 = vsub.s32 6, %v8125
    %v8127 = vrot.slane %v1995, %v8126
    %v8128 = vlaneseq
    %v8129 = vshrl.u32 %v8128, 7
    %v8130 = vsub.s32 7, %v8129
    %v8131 = vrot.slane %v1995, %v8130
    %v8132 = vlaneseq
    %v8133 = vshrl.u32 %v8132, 7
    %v8134 = vsub.s32 0, %v8133
    %v8135 = vrot.slane %v1998, %v8134
    %v8136 = vlaneseq
    %v8137 = vshrl.u32 %v8136, 7
    %v8138 = vsub.s32 1, %v8137
    %v8139 = vrot.slane %v1998, %v8138
    %v8140 = vlaneseq
    %v8141 = vshrl.u32 %v8140, 7
    %v8142 = vsub.s32 2, %v8141
    %v8143 = vrot.slane %v1998, %v8142
    %v8144 = vlaneseq
    %v8145 = vshrl.u32 %v8144, 7
    %v8146 = vsub.s32 3, %v8145
    %v8147 = vrot.slane %v1998, %v8146
    %v8148 = vlaneseq
    %v8149 = vshrl.u32 %v8148, 7
    %v8150 = vsub.s32 4, %v8149
    %v8151 = vrot.slane %v1998, %v8150
    %v8152 = vlaneseq
    %v8153 = vshrl.u32 %v8152, 7
    %v8154 = vsub.s32 5, %v8153
    %v8155 = vrot.slane %v1998, %v8154
    %v8156 = vlaneseq
    %v8157 = vshrl.u32 %v8156, 7
    %v8158 = vsub.s32 6, %v8157
    %v8159 = vrot.slane %v1998, %v8158
    %v8160 = vlaneseq
    %v8161 = vshrl.u32 %v8160, 7
    %v8162 = vsub.s32 7, %v8161
    %v8163 = vrot.slane %v1998, %v8162
    %v8164 = vlaneseq
    %v8165 = vshrl.u32 %v8164, 7
    %v8166 = vsub.s32 0, %v8165
    %v8167 = vrot.slane %v2001, %v8166
    %v8168 = vlaneseq
    %v8169 = vshrl.u32 %v8168, 7
    %v8170 = vsub.s32 1, %v8169
    %v8171 = vrot.slane %v2001, %v8170
    %v8172 = vlaneseq
    %v8173 = vshrl.u32 %v8172, 7
    %v8174 = vsub.s32 2, %v8173
    %v8175 = vrot.slane %v2001, %v8174
    %v8176 = vlaneseq
    %v8177 = vshrl.u32 %v8176, 7
    %v8178 = vsub.s32 3, %v8177
    %v8179 = vrot.slane %v2001, %v8178
    %v8180 = vlaneseq
    %v8181 = vshrl.u32 %v8180, 7
    %v8182 = vsub.s32 4, %v8181
    %v8183 = vrot.slane %v2001, %v8182
    %v8184 = vlaneseq
    %v8185 = vshrl.u32 %v8184, 7
    %v8186 = vsub.s32 5, %v8185
    %v8187 = vrot.slane %v2001, %v8186
    %v8188 = vlaneseq
    %v8189 = vshrl.u32 %v8188, 7
    %v8190 = vsub.s32 6, %v8189
    %v8191 = vrot.slane %v2001, %v8190
    %v8192 = vlaneseq
    %v8193 = vshrl.u32 %v8192, 7
    %v8194 = vsub.s32 7, %v8193
    %v8195 = vrot.slane %v2001, %v8194
    %v8196 = vlaneseq
    %v8197 = vshrl.u32 %v8196, 7
    %v8198 = vsub.s32 0, %v8197
    %v8199 = vrot.slane %v2004, %v8198
    %v8200 = vlaneseq
    %v8201 = vshrl.u32 %v8200, 7
    %v8202 = vsub.s32 1, %v8201
    %v8203 = vrot.slane %v2004, %v8202
    %v8204 = vlaneseq
    %v8205 = vshrl.u32 %v8204, 7
    %v8206 = vsub.s32 2, %v8205
    %v8207 = vrot.slane %v2004, %v8206
    %v8208 = vlaneseq
    %v8209 = vshrl.u32 %v8208, 7
    %v8210 = vsub.s32 3, %v8209
    %v8211 = vrot.slane %v2004, %v8210
    %v8212 = vlaneseq
    %v8213 = vshrl.u32 %v8212, 7
    %v8214 = vsub.s32 4, %v8213
    %v8215 = vrot.slane %v2004, %v8214
    %v8216 = vlaneseq
    %v8217 = vshrl.u32 %v8216, 7
    %v8218 = vsub.s32 5, %v8217
    %v8219 = vrot.slane %v2004, %v8218
    %v8220 = vlaneseq
    %v8221 = vshrl.u32 %v8220, 7
    %v8222 = vsub.s32 6, %v8221
    %v8223 = vrot.slane %v2004, %v8222
    %v8224 = vlaneseq
    %v8225 = vshrl.u32 %v8224, 7
    %v8226 = vsub.s32 7, %v8225
    %v8227 = vrot.slane %v2004, %v8226
    %v8228 = vlaneseq
    %v8229 = vshrl.u32 %v8228, 7
    %v8230 = vsub.s32 0, %v8229
    %v8231 = vrot.slane %v2007, %v8230
    %v8232 = vlaneseq
    %v8233 = vshrl.u32 %v8232, 7
    %v8234 = vsub.s32 1, %v8233
    %v8235 = vrot.slane %v2007, %v8234
    %v8236 = vlaneseq
    %v8237 = vshrl.u32 %v8236, 7
    %v8238 = vsub.s32 2, %v8237
    %v8239 = vrot.slane %v2007, %v8238
    %v8240 = vlaneseq
    %v8241 = vshrl.u32 %v8240, 7
    %v8242 = vsub.s32 3, %v8241
    %v8243 = vrot.slane %v2007, %v8242
    %v8244 = vlaneseq
    %v8245 = vshrl.u32 %v8244, 7
    %v8246 = vsub.s32 4, %v8245
    %v8247 = vrot.slane %v2007, %v8246
    %v8248 = vlaneseq
    %v8249 = vshrl.u32 %v8248, 7
    %v8250 = vsub.s32 5, %v8249
    %v8251 = vrot.slane %v2007, %v8250
    %v8252 = vlaneseq
    %v8253 = vshrl.u32 %v8252, 7
    %v8254 = vsub.s32 6, %v8253
    %v8255 = vrot.slane %v2007, %v8254
    %v8256 = vlaneseq
    %v8257 = vshrl.u32 %v8256, 7
    %v8258 = vsub.s32 7, %v8257
    %v8259 = vrot.slane %v2007, %v8258
    %v8260 = vlaneseq
    %v8261 = vshrl.u32 %v8260, 7
    %v8262 = vsub.s32 0, %v8261
    %v8263 = vrot.slane %v2010, %v8262
    %v8264 = vlaneseq
    %v8265 = vshrl.u32 %v8264, 7
    %v8266 = vsub.s32 1, %v8265
    %v8267 = vrot.slane %v2010, %v8266
    %v8268 = vlaneseq
    %v8269 = vshrl.u32 %v8268, 7
    %v8270 = vsub.s32 2, %v8269
    %v8271 = vrot.slane %v2010, %v8270
    %v8272 = vlaneseq
    %v8273 = vshrl.u32 %v8272, 7
    %v8274 = vsub.s32 3, %v8273
    %v8275 = vrot.slane %v2010, %v8274
    %v8276 = vlaneseq
    %v8277 = vshrl.u32 %v8276, 7
    %v8278 = vsub.s32 4, %v8277
    %v8279 = vrot.slane %v2010, %v8278
    %v8280 = vlaneseq
    %v8281 = vshrl.u32 %v8280, 7
    %v8282 = vsub.s32 5, %v8281
    %v8283 = vrot.slane %v2010, %v8282
    %v8284 = vlaneseq
    %v8285 = vshrl.u32 %v8284, 7
    %v8286 = vsub.s32 6, %v8285
    %v8287 = vrot.slane %v2010, %v8286
    %v8288 = vlaneseq
    %v8289 = vshrl.u32 %v8288, 7
    %v8290 = vsub.s32 7, %v8289
    %v8291 = vrot.slane %v2010, %v8290
    %v8292 = vlaneseq
    %v8293 = vshrl.u32 %v8292, 7
    %v8294 = vsub.s32 0, %v8293
    %v8295 = vrot.slane %v2013, %v8294
    %v8296 = vlaneseq
    %v8297 = vshrl.u32 %v8296, 7
    %v8298 = vsub.s32 1, %v8297
    %v8299 = vrot.slane %v2013, %v8298
    %v8300 = vlaneseq
    %v8301 = vshrl.u32 %v8300, 7
    %v8302 = vsub.s32 2, %v8301
    %v8303 = vrot.slane %v2013, %v8302
    %v8304 = vlaneseq
    %v8305 = vshrl.u32 %v8304, 7
    %v8306 = vsub.s32 3, %v8305
    %v8307 = vrot.slane %v2013, %v8306
    %v8308 = vlaneseq
    %v8309 = vshrl.u32 %v8308, 7
    %v8310 = vsub.s32 4, %v8309
    %v8311 = vrot.slane %v2013, %v8310
    %v8312 = vlaneseq
    %v8313 = vshrl.u32 %v8312, 7
    %v8314 = vsub.s32 5, %v8313
    %v8315 = vrot.slane %v2013, %v8314
    %v8316 = vlaneseq
    %v8317 = vshrl.u32 %v8316, 7
    %v8318 = vsub.s32 6, %v8317
    %v8319 = vrot.slane %v2013, %v8318
    %v8320 = vlaneseq
    %v8321 = vshrl.u32 %v8320, 7
    %v8322 = vsub.s32 7, %v8321
    %v8323 = vrot.slane %v2013, %v8322
    %v8324 = vlaneseq
    %v8325 = vshrl.u32 %v8324, 7
    %v8326 = vsub.s32 0, %v8325
    %v8327 = vrot.slane %v2016, %v8326
    %v8328 = vlaneseq
    %v8329 = vshrl.u32 %v8328, 7
    %v8330 = vsub.s32 1, %v8329
    %v8331 = vrot.slane %v2016, %v8330
    %v8332 = vlaneseq
    %v8333 = vshrl.u32 %v8332, 7
    %v8334 = vsub.s32 2, %v8333
    %v8335 = vrot.slane %v2016, %v8334
    %v8336 = vlaneseq
    %v8337 = vshrl.u32 %v8336, 7
    %v8338 = vsub.s32 3, %v8337
    %v8339 = vrot.slane %v2016, %v8338
    %v8340 = vlaneseq
    %v8341 = vshrl.u32 %v8340, 7
    %v8342 = vsub.s32 4, %v8341
    %v8343 = vrot.slane %v2016, %v8342
    %v8344 = vlaneseq
    %v8345 = vshrl.u32 %v8344, 7
    %v8346 = vsub.s32 5, %v8345
    %v8347 = vrot.slane %v2016, %v8346
    %v8348 = vlaneseq
    %v8349 = vshrl.u32 %v8348, 7
    %v8350 = vsub.s32 6, %v8349
    %v8351 = vrot.slane %v2016, %v8350
    %v8352 = vlaneseq
    %v8353 = vshrl.u32 %v8352, 7
    %v8354 = vsub.s32 7, %v8353
    %v8355 = vrot.slane %v2016, %v8354
    %v8356 = vlaneseq
    %v8357 = vshrl.u32 %v8356, 7
    %v8358 = vsub.s32 0, %v8357
    %v8359 = vrot.slane %v2019, %v8358
    %v8360 = vlaneseq
    %v8361 = vshrl.u32 %v8360, 7
    %v8362 = vsub.s32 1, %v8361
    %v8363 = vrot.slane %v2019, %v8362
    %v8364 = vlaneseq
    %v8365 = vshrl.u32 %v8364, 7
    %v8366 = vsub.s32 2, %v8365
    %v8367 = vrot.slane %v2019, %v8366
    %v8368 = vlaneseq
    %v8369 = vshrl.u32 %v8368, 7
    %v8370 = vsub.s32 3, %v8369
    %v8371 = vrot.slane %v2019, %v8370
    %v8372 = vlaneseq
    %v8373 = vshrl.u32 %v8372, 7
    %v8374 = vsub.s32 4, %v8373
    %v8375 = vrot.slane %v2019, %v8374
    %v8376 = vlaneseq
    %v8377 = vshrl.u32 %v8376, 7
    %v8378 = vsub.s32 5, %v8377
    %v8379 = vrot.slane %v2019, %v8378
    %v8380 = vlaneseq
    %v8381 = vshrl.u32 %v8380, 7
    %v8382 = vsub.s32 6, %v8381
    %v8383 = vrot.slane %v2019, %v8382
    %v8384 = vlaneseq
    %v8385 = vshrl.u32 %v8384, 7
    %v8386 = vsub.s32 7, %v8385
    %v8387 = vrot.slane %v2019, %v8386
    %v8388 = vlaneseq
    %v8389 = vshrl.u32 %v8388, 7
    %v8390 = vsub.s32 0, %v8389
    %v8391 = vrot.slane %v2022, %v8390
    %v8392 = vlaneseq
    %v8393 = vshrl.u32 %v8392, 7
    %v8394 = vsub.s32 1, %v8393
    %v8395 = vrot.slane %v2022, %v8394
    %v8396 = vlaneseq
    %v8397 = vshrl.u32 %v8396, 7
    %v8398 = vsub.s32 2, %v8397
    %v8399 = vrot.slane %v2022, %v8398
    %v8400 = vlaneseq
    %v8401 = vshrl.u32 %v8400, 7
    %v8402 = vsub.s32 3, %v8401
    %v8403 = vrot.slane %v2022, %v8402
    %v8404 = vlaneseq
    %v8405 = vshrl.u32 %v8404, 7
    %v8406 = vsub.s32 4, %v8405
    %v8407 = vrot.slane %v2022, %v8406
    %v8408 = vlaneseq
    %v8409 = vshrl.u32 %v8408, 7
    %v8410 = vsub.s32 5, %v8409
    %v8411 = vrot.slane %v2022, %v8410
    %v8412 = vlaneseq
    %v8413 = vshrl.u32 %v8412, 7
    %v8414 = vsub.s32 6, %v8413
    %v8415 = vrot.slane %v2022, %v8414
    %v8416 = vlaneseq
    %v8417 = vshrl.u32 %v8416, 7
    %v8418 = vsub.s32 7, %v8417
    %v8419 = vrot.slane %v2022, %v8418
    %v8420 = vlaneseq
    %v8421 = vshrl.u32 %v8420, 7
    %v8422 = vsub.s32 0, %v8421
    %v8423 = vrot.slane %v2025, %v8422
    %v8424 = vlaneseq
    %v8425 = vshrl.u32 %v8424, 7
    %v8426 = vsub.s32 1, %v8425
    %v8427 = vrot.slane %v2025, %v8426
    %v8428 = vlaneseq
    %v8429 = vshrl.u32 %v8428, 7
    %v8430 = vsub.s32 2, %v8429
    %v8431 = vrot.slane %v2025, %v8430
    %v8432 = vlaneseq
    %v8433 = vshrl.u32 %v8432, 7
    %v8434 = vsub.s32 3, %v8433
    %v8435 = vrot.slane %v2025, %v8434
    %v8436 = vlaneseq
    %v8437 = vshrl.u32 %v8436, 7
    %v8438 = vsub.s32 4, %v8437
    %v8439 = vrot.slane %v2025, %v8438
    %v8440 = vlaneseq
    %v8441 = vshrl.u32 %v8440, 7
    %v8442 = vsub.s32 5, %v8441
    %v8443 = vrot.slane %v2025, %v8442
    %v8444 = vlaneseq
    %v8445 = vshrl.u32 %v8444, 7
    %v8446 = vsub.s32 6, %v8445
    %v8447 = vrot.slane %v2025, %v8446
    %v8448 = vlaneseq
    %v8449 = vshrl.u32 %v8448, 7
    %v8450 = vsub.s32 7, %v8449
    %v8451 = vrot.slane %v2025, %v8450
    %v8452 = vlaneseq
    %v8453 = vshrl.u32 %v8452, 7
    %v8454 = vsub.s32 0, %v8453
    %v8455 = vrot.slane %v2028, %v8454
    %v8456 = vlaneseq
    %v8457 = vshrl.u32 %v8456, 7
    %v8458 = vsub.s32 1, %v8457
    %v8459 = vrot.slane %v2028, %v8458
    %v8460 = vlaneseq
    %v8461 = vshrl.u32 %v8460, 7
    %v8462 = vsub.s32 2, %v8461
    %v8463 = vrot.slane %v2028, %v8462
    %v8464 = vlaneseq
    %v8465 = vshrl.u32 %v8464, 7
    %v8466 = vsub.s32 3, %v8465
    %v8467 = vrot.slane %v2028, %v8466
    %v8468 = vlaneseq
    %v8469 = vshrl.u32 %v8468, 7
    %v8470 = vsub.s32 4, %v8469
    %v8471 = vrot.slane %v2028, %v8470
    %v8472 = vlaneseq
    %v8473 = vshrl.u32 %v8472, 7
    %v8474 = vsub.s32 5, %v8473
    %v8475 = vrot.slane %v2028, %v8474
    %v8476 = vlaneseq
    %v8477 = vshrl.u32 %v8476, 7
    %v8478 = vsub.s32 6, %v8477
    %v8479 = vrot.slane %v2028, %v8478
    %v8480 = vlaneseq
    %v8481 = vshrl.u32 %v8480, 7
    %v8482 = vsub.s32 7, %v8481
    %v8483 = vrot.slane %v2028, %v8482
    %v8484 = vlaneseq
    %v8485 = vshrl.u32 %v8484, 7
    %v8486 = vsub.s32 0, %v8485
    %v8487 = vrot.slane %v2031, %v8486
    %v8488 = vlaneseq
    %v8489 = vshrl.u32 %v8488, 7
    %v8490 = vsub.s32 1, %v8489
    %v8491 = vrot.slane %v2031, %v8490
    %v8492 = vlaneseq
    %v8493 = vshrl.u32 %v8492, 7
    %v8494 = vsub.s32 2, %v8493
    %v8495 = vrot.slane %v2031, %v8494
    %v8496 = vlaneseq
    %v8497 = vshrl.u32 %v8496, 7
    %v8498 = vsub.s32 3, %v8497
    %v8499 = vrot.slane %v2031, %v8498
    %v8500 = vlaneseq
    %v8501 = vshrl.u32 %v8500, 7
    %v8502 = vsub.s32 4, %v8501
    %v8503 = vrot.slane %v2031, %v8502
    %v8504 = vlaneseq
    %v8505 = vshrl.u32 %v8504, 7
    %v8506 = vsub.s32 5, %v8505
    %v8507 = vrot.slane %v2031, %v8506
    %v8508 = vlaneseq
    %v8509 = vshrl.u32 %v8508, 7
    %v8510 = vsub.s32 6, %v8509
    %v8511 = vrot.slane %v2031, %v8510
    %v8512 = vlaneseq
    %v8513 = vshrl.u32 %v8512, 7
    %v8514 = vsub.s32 7, %v8513
    %v8515 = vrot.slane %v2031, %v8514
    %v8516 = vlaneseq
    %v8517 = vshrl.u32 %v8516, 7
    %v8518 = vsub.s32 0, %v8517
    %v8519 = vrot.slane %v2034, %v8518
    %v8520 = vlaneseq
    %v8521 = vshrl.u32 %v8520, 7
    %v8522 = vsub.s32 1, %v8521
    %v8523 = vrot.slane %v2034, %v8522
    %v8524 = vlaneseq
    %v8525 = vshrl.u32 %v8524, 7
    %v8526 = vsub.s32 2, %v8525
    %v8527 = vrot.slane %v2034, %v8526
    %v8528 = vlaneseq
    %v8529 = vshrl.u32 %v8528, 7
    %v8530 = vsub.s32 3, %v8529
    %v8531 = vrot.slane %v2034, %v8530
    %v8532 = vlaneseq
    %v8533 = vshrl.u32 %v8532, 7
    %v8534 = vsub.s32 4, %v8533
    %v8535 = vrot.slane %v2034, %v8534
    %v8536 = vlaneseq
    %v8537 = vshrl.u32 %v8536, 7
    %v8538 = vsub.s32 5, %v8537
    %v8539 = vrot.slane %v2034, %v8538
    %v8540 = vlaneseq
    %v8541 = vshrl.u32 %v8540, 7
    %v8542 = vsub.s32 6, %v8541
    %v8543 = vrot.slane %v2034, %v8542
    %v8544 = vlaneseq
    %v8545 = vshrl.u32 %v8544, 7
    %v8546 = vsub.s32 7, %v8545
    %v8547 = vrot.slane %v2034, %v8546
    %v8548 = vlaneseq
    %v8549 = vshrl.u32 %v8548, 7
    %v8550 = vsub.s32 0, %v8549
    %v8551 = vrot.slane %v2037, %v8550
    %v8552 = vlaneseq
    %v8553 = vshrl.u32 %v8552, 7
    %v8554 = vsub.s32 1, %v8553
    %v8555 = vrot.slane %v2037, %v8554
    %v8556 = vlaneseq
    %v8557 = vshrl.u32 %v8556, 7
    %v8558 = vsub.s32 2, %v8557
    %v8559 = vrot.slane %v2037, %v8558
    %v8560 = vlaneseq
    %v8561 = vshrl.u32 %v8560, 7
    %v8562 = vsub.s32 3, %v8561
    %v8563 = vrot.slane %v2037, %v8562
    %v8564 = vlaneseq
    %v8565 = vshrl.u32 %v8564, 7
    %v8566 = vsub.s32 4, %v8565
    %v8567 = vrot.slane %v2037, %v8566
    %v8568 = vlaneseq
    %v8569 = vshrl.u32 %v8568, 7
    %v8570 = vsub.s32 5, %v8569
    %v8571 = vrot.slane %v2037, %v8570
    %v8572 = vlaneseq
    %v8573 = vshrl.u32 %v8572, 7
    %v8574 = vsub.s32 6, %v8573
    %v8575 = vrot.slane %v2037, %v8574
    %v8576 = vlaneseq
    %v8577 = vshrl.u32 %v8576, 7
    %v8578 = vsub.s32 7, %v8577
    %v8579 = vrot.slane %v2037, %v8578
    %v8580 = vlaneseq
    %v8581 = vshrl.u32 %v8580, 7
    %v8582 = vsub.s32 0, %v8581
    %v8583 = vrot.slane %v2040, %v8582
    %v8584 = vlaneseq
    %v8585 = vshrl.u32 %v8584, 7
    %v8586 = vsub.s32 1, %v8585
    %v8587 = vrot.slane %v2040, %v8586
    %v8588 = vlaneseq
    %v8589 = vshrl.u32 %v8588, 7
    %v8590 = vsub.s32 2, %v8589
    %v8591 = vrot.slane %v2040, %v8590
    %v8592 = vlaneseq
    %v8593 = vshrl.u32 %v8592, 7
    %v8594 = vsub.s32 3, %v8593
    %v8595 = vrot.slane %v2040, %v8594
    %v8596 = vlaneseq
    %v8597 = vshrl.u32 %v8596, 7
    %v8598 = vsub.s32 4, %v8597
    %v8599 = vrot.slane %v2040, %v8598
    %v8600 = vlaneseq
    %v8601 = vshrl.u32 %v8600, 7
    %v8602 = vsub.s32 5, %v8601
    %v8603 = vrot.slane %v2040, %v8602
    %v8604 = vlaneseq
    %v8605 = vshrl.u32 %v8604, 7
    %v8606 = vsub.s32 6, %v8605
    %v8607 = vrot.slane %v2040, %v8606
    %v8608 = vlaneseq
    %v8609 = vshrl.u32 %v8608, 7
    %v8610 = vsub.s32 7, %v8609
    %v8611 = vrot.slane %v2040, %v8610
    %v8612 = vlaneseq
    %v8613 = vshrl.u32 %v8612, 7
    %v8614 = vsub.s32 0, %v8613
    %v8615 = vrot.slane %v2043, %v8614
    %v8616 = vlaneseq
    %v8617 = vshrl.u32 %v8616, 7
    %v8618 = vsub.s32 1, %v8617
    %v8619 = vrot.slane %v2043, %v8618
    %v8620 = vlaneseq
    %v8621 = vshrl.u32 %v8620, 7
    %v8622 = vsub.s32 2, %v8621
    %v8623 = vrot.slane %v2043, %v8622
    %v8624 = vlaneseq
    %v8625 = vshrl.u32 %v8624, 7
    %v8626 = vsub.s32 3, %v8625
    %v8627 = vrot.slane %v2043, %v8626
    %v8628 = vlaneseq
    %v8629 = vshrl.u32 %v8628, 7
    %v8630 = vsub.s32 4, %v8629
    %v8631 = vrot.slane %v2043, %v8630
    %v8632 = vlaneseq
    %v8633 = vshrl.u32 %v8632, 7
    %v8634 = vsub.s32 5, %v8633
    %v8635 = vrot.slane %v2043, %v8634
    %v8636 = vlaneseq
    %v8637 = vshrl.u32 %v8636, 7
    %v8638 = vsub.s32 6, %v8637
    %v8639 = vrot.slane %v2043, %v8638
    %v8640 = vlaneseq
    %v8641 = vshrl.u32 %v8640, 7
    %v8642 = vsub.s32 7, %v8641
    %v8643 = vrot.slane %v2043, %v8642
    %v8644 = vlaneseq
    %v8645 = vshrl.u32 %v8644, 7
    %v8646 = vsub.s32 0, %v8645
    %v8647 = vrot.slane %v2046, %v8646
    %v8648 = vlaneseq
    %v8649 = vshrl.u32 %v8648, 7
    %v8650 = vsub.s32 1, %v8649
    %v8651 = vrot.slane %v2046, %v8650
    %v8652 = vlaneseq
    %v8653 = vshrl.u32 %v8652, 7
    %v8654 = vsub.s32 2, %v8653
    %v8655 = vrot.slane %v2046, %v8654
    %v8656 = vlaneseq
    %v8657 = vshrl.u32 %v8656, 7
    %v8658 = vsub.s32 3, %v8657
    %v8659 = vrot.slane %v2046, %v8658
    %v8660 = vlaneseq
    %v8661 = vshrl.u32 %v8660, 7
    %v8662 = vsub.s32 4, %v8661
    %v8663 = vrot.slane %v2046, %v8662
    %v8664 = vlaneseq
    %v8665 = vshrl.u32 %v8664, 7
    %v8666 = vsub.s32 5, %v8665
    %v8667 = vrot.slane %v2046, %v8666
    %v8668 = vlaneseq
    %v8669 = vshrl.u32 %v8668, 7
    %v8670 = vsub.s32 6, %v8669
    %v8671 = vrot.slane %v2046, %v8670
    %v8672 = vlaneseq
    %v8673 = vshrl.u32 %v8672, 7
    %v8674 = vsub.s32 7, %v8673
    %v8675 = vrot.slane %v2046, %v8674
    %v8676 = vlaneseq
    %v8677 = vshrl.u32 %v8676, 7
    %v8678 = vsub.s32 0, %v8677
    %v8679 = vrot.slane %v2049, %v8678
    %v8680 = vlaneseq
    %v8681 = vshrl.u32 %v8680, 7
    %v8682 = vsub.s32 1, %v8681
    %v8683 = vrot.slane %v2049, %v8682
    %v8684 = vlaneseq
    %v8685 = vshrl.u32 %v8684, 7
    %v8686 = vsub.s32 2, %v8685
    %v8687 = vrot.slane %v2049, %v8686
    %v8688 = vlaneseq
    %v8689 = vshrl.u32 %v8688, 7
    %v8690 = vsub.s32 3, %v8689
    %v8691 = vrot.slane %v2049, %v8690
    %v8692 = vlaneseq
    %v8693 = vshrl.u32 %v8692, 7
    %v8694 = vsub.s32 4, %v8693
    %v8695 = vrot.slane %v2049, %v8694
    %v8696 = vlaneseq
    %v8697 = vshrl.u32 %v8696, 7
    %v8698 = vsub.s32 5, %v8697
    %v8699 = vrot.slane %v2049, %v8698
    %v8700 = vlaneseq
    %v8701 = vshrl.u32 %v8700, 7
    %v8702 = vsub.s32 6, %v8701
    %v8703 = vrot.slane %v2049, %v8702
    %v8704 = vlaneseq
    %v8705 = vshrl.u32 %v8704, 7
    %v8706 = vsub.s32 7, %v8705
    %v8707 = vrot.slane %v2049, %v8706
    %v8708 = vlaneseq
    %v8709 = vshrl.u32 %v8708, 7
    %v8710 = vsub.s32 0, %v8709
    %v8711 = vrot.slane %v2052, %v8710
    %v8712 = vlaneseq
    %v8713 = vshrl.u32 %v8712, 7
    %v8714 = vsub.s32 1, %v8713
    %v8715 = vrot.slane %v2052, %v8714
    %v8716 = vlaneseq
    %v8717 = vshrl.u32 %v8716, 7
    %v8718 = vsub.s32 2, %v8717
    %v8719 = vrot.slane %v2052, %v8718
    %v8720 = vlaneseq
    %v8721 = vshrl.u32 %v8720, 7
    %v8722 = vsub.s32 3, %v8721
    %v8723 = vrot.slane %v2052, %v8722
    %v8724 = vlaneseq
    %v8725 = vshrl.u32 %v8724, 7
    %v8726 = vsub.s32 4, %v8725
    %v8727 = vrot.slane %v2052, %v8726
    %v8728 = vlaneseq
    %v8729 = vshrl.u32 %v8728, 7
    %v8730 = vsub.s32 5, %v8729
    %v8731 = vrot.slane %v2052, %v8730
    %v8732 = vlaneseq
    %v8733 = vshrl.u32 %v8732, 7
    %v8734 = vsub.s32 6, %v8733
    %v8735 = vrot.slane %v2052, %v8734
    %v8736 = vlaneseq
    %v8737 = vshrl.u32 %v8736, 7
    %v8738 = vsub.s32 7, %v8737
    %v8739 = vrot.slane %v2052, %v8738
    %v8740 = vlaneseq
    %v8741 = vshrl.u32 %v8740, 7
    %v8742 = vsub.s32 0, %v8741
    %v8743 = vrot.slane %v2055, %v8742
    %v8744 = vlaneseq
    %v8745 = vshrl.u32 %v8744, 7
    %v8746 = vsub.s32 1, %v8745
    %v8747 = vrot.slane %v2055, %v8746
    %v8748 = vlaneseq
    %v8749 = vshrl.u32 %v8748, 7
    %v8750 = vsub.s32 2, %v8749
    %v8751 = vrot.slane %v2055, %v8750
    %v8752 = vlaneseq
    %v8753 = vshrl.u32 %v8752, 7
    %v8754 = vsub.s32 3, %v8753
    %v8755 = vrot.slane %v2055, %v8754
    %v8756 = vlaneseq
    %v8757 = vshrl.u32 %v8756, 7
    %v8758 = vsub.s32 4, %v8757
    %v8759 = vrot.slane %v2055, %v8758
    %v8760 = vlaneseq
    %v8761 = vshrl.u32 %v8760, 7
    %v8762 = vsub.s32 5, %v8761
    %v8763 = vrot.slane %v2055, %v8762
    %v8764 = vlaneseq
    %v8765 = vshrl.u32 %v8764, 7
    %v8766 = vsub.s32 6, %v8765
    %v8767 = vrot.slane %v2055, %v8766
    %v8768 = vlaneseq
    %v8769 = vshrl.u32 %v8768, 7
    %v8770 = vsub.s32 7, %v8769
    %v8771 = vrot.slane %v2055, %v8770
    %v8772 = vlaneseq
    %v8773 = vshrl.u32 %v8772, 7
    %v8774 = vsub.s32 0, %v8773
    %v8775 = vrot.slane %v2058, %v8774
    %v8776 = vlaneseq
    %v8777 = vshrl.u32 %v8776, 7
    %v8778 = vsub.s32 1, %v8777
    %v8779 = vrot.slane %v2058, %v8778
    %v8780 = vlaneseq
    %v8781 = vshrl.u32 %v8780, 7
    %v8782 = vsub.s32 2, %v8781
    %v8783 = vrot.slane %v2058, %v8782
    %v8784 = vlaneseq
    %v8785 = vshrl.u32 %v8784, 7
    %v8786 = vsub.s32 3, %v8785
    %v8787 = vrot.slane %v2058, %v8786
    %v8788 = vlaneseq
    %v8789 = vshrl.u32 %v8788, 7
    %v8790 = vsub.s32 4, %v8789
    %v8791 = vrot.slane %v2058, %v8790
    %v8792 = vlaneseq
    %v8793 = vshrl.u32 %v8792, 7
    %v8794 = vsub.s32 5, %v8793
    %v8795 = vrot.slane %v2058, %v8794
    %v8796 = vlaneseq
    %v8797 = vshrl.u32 %v8796, 7
    %v8798 = vsub.s32 6, %v8797
    %v8799 = vrot.slane %v2058, %v8798
    %v8800 = vlaneseq
    %v8801 = vshrl.u32 %v8800, 7
    %v8802 = vsub.s32 7, %v8801
    %v8803 = vrot.slane %v2058, %v8802
    %v8804 = vlaneseq
    %v8805 = vshrl.u32 %v8804, 7
    %v8806 = vsub.s32 0, %v8805
    %v8807 = vrot.slane %v2061, %v8806
    %v8808 = vlaneseq
    %v8809 = vshrl.u32 %v8808, 7
    %v8810 = vsub.s32 1, %v8809
    %v8811 = vrot.slane %v2061, %v8810
    %v8812 = vlaneseq
    %v8813 = vshrl.u32 %v8812, 7
    %v8814 = vsub.s32 2, %v8813
    %v8815 = vrot.slane %v2061, %v8814
    %v8816 = vlaneseq
    %v8817 = vshrl.u32 %v8816, 7
    %v8818 = vsub.s32 3, %v8817
    %v8819 = vrot.slane %v2061, %v8818
    %v8820 = vlaneseq
    %v8821 = vshrl.u32 %v8820, 7
    %v8822 = vsub.s32 4, %v8821
    %v8823 = vrot.slane %v2061, %v8822
    %v8824 = vlaneseq
    %v8825 = vshrl.u32 %v8824, 7
    %v8826 = vsub.s32 5, %v8825
    %v8827 = vrot.slane %v2061, %v8826
    %v8828 = vlaneseq
    %v8829 = vshrl.u32 %v8828, 7
    %v8830 = vsub.s32 6, %v8829
    %v8831 = vrot.slane %v2061, %v8830
    %v8832 = vlaneseq
    %v8833 = vshrl.u32 %v8832, 7
    %v8834 = vsub.s32 7, %v8833
    %v8835 = vrot.slane %v2061, %v8834
    %v8836 = vlaneseq
    %v8837 = vshrl.u32 %v8836, 7
    %v8838 = vsub.s32 0, %v8837
    %v8839 = vrot.slane %v2064, %v8838
    %v8840 = vlaneseq
    %v8841 = vshrl.u32 %v8840, 7
    %v8842 = vsub.s32 1, %v8841
    %v8843 = vrot.slane %v2064, %v8842
    %v8844 = vlaneseq
    %v8845 = vshrl.u32 %v8844, 7
    %v8846 = vsub.s32 2, %v8845
    %v8847 = vrot.slane %v2064, %v8846
    %v8848 = vlaneseq
    %v8849 = vshrl.u32 %v8848, 7
    %v8850 = vsub.s32 3, %v8849
    %v8851 = vrot.slane %v2064, %v8850
    %v8852 = vlaneseq
    %v8853 = vshrl.u32 %v8852, 7
    %v8854 = vsub.s32 4, %v8853
    %v8855 = vrot.slane %v2064, %v8854
    %v8856 = vlaneseq
    %v8857 = vshrl.u32 %v8856, 7
    %v8858 = vsub.s32 5, %v8857
    %v8859 = vrot.slane %v2064, %v8858
    %v8860 = vlaneseq
    %v8861 = vshrl.u32 %v8860, 7
    %v8862 = vsub.s32 6, %v8861
    %v8863 = vrot.slane %v2064, %v8862
    %v8864 = vlaneseq
    %v8865 = vshrl.u32 %v8864, 7
    %v8866 = vsub.s32 7, %v8865
    %v8867 = vrot.slane %v2064, %v8866
    %v8868 = vlaneseq
    %v8869 = vshrl.u32 %v8868, 7
    %v8870 = vsub.s32 0, %v8869
    %v8871 = vrot.slane %v2067, %v8870
    %v8872 = vlaneseq
    %v8873 = vshrl.u32 %v8872, 7
    %v8874 = vsub.s32 1, %v8873
    %v8875 = vrot.slane %v2067, %v8874
    %v8876 = vlaneseq
    %v8877 = vshrl.u32 %v8876, 7
    %v8878 = vsub.s32 2, %v8877
    %v8879 = vrot.slane %v2067, %v8878
    %v8880 = vlaneseq
    %v8881 = vshrl.u32 %v8880, 7
    %v8882 = vsub.s32 3, %v8881
    %v8883 = vrot.slane %v2067, %v8882
    %v8884 = vlaneseq
    %v8885 = vshrl.u32 %v8884, 7
    %v8886 = vsub.s32 4, %v8885
    %v8887 = vrot.slane %v2067, %v8886
    %v8888 = vlaneseq
    %v8889 = vshrl.u32 %v8888, 7
    %v8890 = vsub.s32 5, %v8889
    %v8891 = vrot.slane %v2067, %v8890
    %v8892 = vlaneseq
    %v8893 = vshrl.u32 %v8892, 7
    %v8894 = vsub.s32 6, %v8893
    %v8895 = vrot.slane %v2067, %v8894
    %v8896 = vlaneseq
    %v8897 = vshrl.u32 %v8896, 7
    %v8898 = vsub.s32 7, %v8897
    %v8899 = vrot.slane %v2067, %v8898
    %v8900 = vlaneseq
    %v8901 = vshrl.u32 %v8900, 7
    %v8902 = vsub.s32 0, %v8901
    %v8903 = vrot.slane %v2070, %v8902
    %v8904 = vlaneseq
    %v8905 = vshrl.u32 %v8904, 7
    %v8906 = vsub.s32 1, %v8905
    %v8907 = vrot.slane %v2070, %v8906
    %v8908 = vlaneseq
    %v8909 = vshrl.u32 %v8908, 7
    %v8910 = vsub.s32 2, %v8909
    %v8911 = vrot.slane %v2070, %v8910
    %v8912 = vlaneseq
    %v8913 = vshrl.u32 %v8912, 7
    %v8914 = vsub.s32 3, %v8913
    %v8915 = vrot.slane %v2070, %v8914
    %v8916 = vlaneseq
    %v8917 = vshrl.u32 %v8916, 7
    %v8918 = vsub.s32 4, %v8917
    %v8919 = vrot.slane %v2070, %v8918
    %v8920 = vlaneseq
    %v8921 = vshrl.u32 %v8920, 7
    %v8922 = vsub.s32 5, %v8921
    %v8923 = vrot.slane %v2070, %v8922
    %v8924 = vlaneseq
    %v8925 = vshrl.u32 %v8924, 7
    %v8926 = vsub.s32 6, %v8925
    %v8927 = vrot.slane %v2070, %v8926
    %v8928 = vlaneseq
    %v8929 = vshrl.u32 %v8928, 7
    %v8930 = vsub.s32 7, %v8929
    %v8931 = vrot.slane %v2070, %v8930
    %v8932 = vlaneseq
    %v8933 = vshrl.u32 %v8932, 7
    %v8934 = vsub.s32 0, %v8933
    %v8935 = vrot.slane %v2073, %v8934
    %v8936 = vlaneseq
    %v8937 = vshrl.u32 %v8936, 7
    %v8938 = vsub.s32 1, %v8937
    %v8939 = vrot.slane %v2073, %v8938
    %v8940 = vlaneseq
    %v8941 = vshrl.u32 %v8940, 7
    %v8942 = vsub.s32 2, %v8941
    %v8943 = vrot.slane %v2073, %v8942
    %v8944 = vlaneseq
    %v8945 = vshrl.u32 %v8944, 7
    %v8946 = vsub.s32 3, %v8945
    %v8947 = vrot.slane %v2073, %v8946
    %v8948 = vlaneseq
    %v8949 = vshrl.u32 %v8948, 7
    %v8950 = vsub.s32 4, %v8949
    %v8951 = vrot.slane %v2073, %v8950
    %v8952 = vlaneseq
    %v8953 = vshrl.u32 %v8952, 7
    %v8954 = vsub.s32 5, %v8953
    %v8955 = vrot.slane %v2073, %v8954
    %v8956 = vlaneseq
    %v8957 = vshrl.u32 %v8956, 7
    %v8958 = vsub.s32 6, %v8957
    %v8959 = vrot.slane %v2073, %v8958
    %v8960 = vlaneseq
    %v8961 = vshrl.u32 %v8960, 7
    %v8962 = vsub.s32 7, %v8961
    %v8963 = vrot.slane %v2073, %v8962
    %v8964 = vlaneseq
    %v8965 = vshrl.u32 %v8964, 7
    %v8966 = vsub.s32 0, %v8965
    %v8967 = vrot.slane %v2076, %v8966
    %v8968 = vlaneseq
    %v8969 = vshrl.u32 %v8968, 7
    %v8970 = vsub.s32 1, %v8969
    %v8971 = vrot.slane %v2076, %v8970
    %v8972 = vlaneseq
    %v8973 = vshrl.u32 %v8972, 7
    %v8974 = vsub.s32 2, %v8973
    %v8975 = vrot.slane %v2076, %v8974
    %v8976 = vlaneseq
    %v8977 = vshrl.u32 %v8976, 7
    %v8978 = vsub.s32 3, %v8977
    %v8979 = vrot.slane %v2076, %v8978
    %v8980 = vlaneseq
    %v8981 = vshrl.u32 %v8980, 7
    %v8982 = vsub.s32 4, %v8981
    %v8983 = vrot.slane %v2076, %v8982
    %v8984 = vlaneseq
    %v8985 = vshrl.u32 %v8984, 7
    %v8986 = vsub.s32 5, %v8985
    %v8987 = vrot.slane %v2076, %v8986
    %v8988 = vlaneseq
    %v8989 = vshrl.u32 %v8988, 7
    %v8990 = vsub.s32 6, %v8989
    %v8991 = vrot.slane %v2076, %v8990
    %v8992 = vlaneseq
    %v8993 = vshrl.u32 %v8992, 7
    %v8994 = vsub.s32 7, %v8993
    %v8995 = vrot.slane %v2076, %v8994
    %v8996 = vlaneseq
    %v8997 = vshrl.u32 %v8996, 7
    %v8998 = vsub.s32 0, %v8997
    %v8999 = vrot.slane %v2079, %v8998
    %v9000 = vlaneseq
    %v9001 = vshrl.u32 %v9000, 7
    %v9002 = vsub.s32 1, %v9001
    %v9003 = vrot.slane %v2079, %v9002
    %v9004 = vlaneseq
    %v9005 = vshrl.u32 %v9004, 7
    %v9006 = vsub.s32 2, %v9005
    %v9007 = vrot.slane %v2079, %v9006
    %v9008 = vlaneseq
    %v9009 = vshrl.u32 %v9008, 7
    %v9010 = vsub.s32 3, %v9009
    %v9011 = vrot.slane %v2079, %v9010
    %v9012 = vlaneseq
    %v9013 = vshrl.u32 %v9012, 7
    %v9014 = vsub.s32 4, %v9013
    %v9015 = vrot.slane %v2079, %v9014
    %v9016 = vlaneseq
    %v9017 = vshrl.u32 %v9016, 7
    %v9018 = vsub.s32 5, %v9017
    %v9019 = vrot.slane %v2079, %v9018
    %v9020 = vlaneseq
    %v9021 = vshrl.u32 %v9020, 7
    %v9022 = vsub.s32 6, %v9021
    %v9023 = vrot.slane %v2079, %v9022
    %v9024 = vlaneseq
    %v9025 = vshrl.u32 %v9024, 7
    %v9026 = vsub.s32 7, %v9025
    %v9027 = vrot.slane %v2079, %v9026
    %v9028 = vlaneseq
    %v9029 = vshrl.u32 %v9028, 7
    %v9030 = vsub.s32 0, %v9029
    %v9031 = vrot.slane %v2082, %v9030
    %v9032 = vlaneseq
    %v9033 = vshrl.u32 %v9032, 7
    %v9034 = vsub.s32 1, %v9033
    %v9035 = vrot.slane %v2082, %v9034
    %v9036 = vlaneseq
    %v9037 = vshrl.u32 %v9036, 7
    %v9038 = vsub.s32 2, %v9037
    %v9039 = vrot.slane %v2082, %v9038
    %v9040 = vlaneseq
    %v9041 = vshrl.u32 %v9040, 7
    %v9042 = vsub.s32 3, %v9041
    %v9043 = vrot.slane %v2082, %v9042
    %v9044 = vlaneseq
    %v9045 = vshrl.u32 %v9044, 7
    %v9046 = vsub.s32 4, %v9045
    %v9047 = vrot.slane %v2082, %v9046
    %v9048 = vlaneseq
    %v9049 = vshrl.u32 %v9048, 7
    %v9050 = vsub.s32 5, %v9049
    %v9051 = vrot.slane %v2082, %v9050
    %v9052 = vlaneseq
    %v9053 = vshrl.u32 %v9052, 7
    %v9054 = vsub.s32 6, %v9053
    %v9055 = vrot.slane %v2082, %v9054
    %v9056 = vlaneseq
    %v9057 = vshrl.u32 %v9056, 7
    %v9058 = vsub.s32 7, %v9057
    %v9059 = vrot.slane %v2082, %v9058
    %v9060 = vcombine.low %v8039, %v8043
    %v9061 = vcombine.low %v8047, %v8051
    %v9062 = vcombine.low %v8055, %v8059
    %v9063 = vcombine.low %v8063, %v8067
    %v9065 = vunpack.c.l.s4 1966171168
    %v9066 = vunpack.c.0.s8 %v9065
    %v9067 = vlaneseq
    %v9068 = vshrl.u32 %v9067, 7
    %v9069 = vsub.s32 %v9066, %v9068
    %v9070 = vrot.slane %v9060, %v9069
    %v9072 = vunpack.c.l.s4 1966171168
    %v9073 = vunpack.c.0.s8 %v9072
    %v9074 = vlaneseq
    %v9075 = vshrl.u32 %v9074, 7
    %v9076 = vsub.s32 %v9073, %v9075
    %v9077 = vrot.slane %v9061, %v9076
    %v9079 = vunpack.c.l.s4 1966171168
    %v9080 = vunpack.c.0.s8 %v9079
    %v9081 = vlaneseq
    %v9082 = vshrl.u32 %v9081, 7
    %v9083 = vsub.s32 %v9080, %v9082
    %v9084 = vrot.slane %v9062, %v9083
    %v9086 = vunpack.c.l.s4 1966171168
    %v9087 = vunpack.c.0.s8 %v9086
    %v9088 = vlaneseq
    %v9089 = vshrl.u32 %v9088, 7
    %v9090 = vsub.s32 %v9087, %v9089
    %v9091 = vrot.slane %v9063, %v9090
    %v9092 = vcombine.low %v9070, %v9077
    %v9093 = vcombine.low %v9084, %v9091
    %v9095 = vunpack.c.l.s4 1966171168
    %v9096 = vunpack.c.0.s8 %v9095
    %v9097 = vlaneseq
    %v9098 = vshrl.u32 %v9097, 7
    %v9099 = vsub.s32 %v9096, %v9098
    %v9100 = vrot.slane %v9092, %v9099
    %v9102 = vunpack.c.l.s4 1966171168
    %v9103 = vunpack.c.0.s8 %v9102
    %v9104 = vlaneseq
    %v9105 = vshrl.u32 %v9104, 7
    %v9106 = vsub.s32 %v9103, %v9105
    %v9107 = vrot.slane %v9093, %v9106
    %v9108 = vcombine.low %v9100, %v9107
    %v9109 = vcombine.low %v8071, %v8075
    %v9110 = vcombine.low %v8079, %v8083
    %v9111 = vcombine.low %v8087, %v8091
    %v9112 = vcombine.low %v8095, %v8099
    %v9114 = vunpack.c.l.s4 1966171168
    %v9115 = vunpack.c.0.s8 %v9114
    %v9116 = vlaneseq
    %v9117 = vshrl.u32 %v9116, 7
    %v9118 = vsub.s32 %v9115, %v9117
    %v9119 = vrot.slane %v9109, %v9118
    %v9121 = vunpack.c.l.s4 1966171168
    %v9122 = vunpack.c.0.s8 %v9121
    %v9123 = vlaneseq
    %v9124 = vshrl.u32 %v9123, 7
    %v9125 = vsub.s32 %v9122, %v9124
    %v9126 = vrot.slane %v9110, %v9125
    %v9128 = vunpack.c.l.s4 1966171168
    %v9129 = vunpack.c.0.s8 %v9128
    %v9130 = vlaneseq
    %v9131 = vshrl.u32 %v9130, 7
    %v9132 = vsub.s32 %v9129, %v9131
    %v9133 = vrot.slane %v9111, %v9132
    %v9135 = vunpack.c.l.s4 1966171168
    %v9136 = vunpack.c.0.s8 %v9135
    %v9137 = vlaneseq
    %v9138 = vshrl.u32 %v9137, 7
    %v9139 = vsub.s32 %v9136, %v9138
    %v9140 = vrot.slane %v9112, %v9139
    %v9141 = vcombine.low %v9119, %v9126
    %v9142 = vcombine.low %v9133, %v9140
    %v9144 = vunpack.c.l.s4 1966171168
    %v9145 = vunpack.c.0.s8 %v9144
    %v9146 = vlaneseq
    %v9147 = vshrl.u32 %v9146, 7
    %v9148 = vsub.s32 %v9145, %v9147
    %v9149 = vrot.slane %v9141, %v9148
    %v9151 = vunpack.c.l.s4 1966171168
    %v9152 = vunpack.c.0.s8 %v9151
    %v9153 = vlaneseq
    %v9154 = vshrl.u32 %v9153, 7
    %v9155 = vsub.s32 %v9152, %v9154
    %v9156 = vrot.slane %v9142, %v9155
    %v9157 = vcombine.low %v9149, %v9156
    %v9158 = vcombine.low %v8103, %v8107
    %v9159 = vcombine.low %v8111, %v8115
    %v9160 = vcombine.low %v8119, %v8123
    %v9161 = vcombine.low %v8127, %v8131
    %v9163 = vunpack.c.l.s4 1966171168
    %v9164 = vunpack.c.0.s8 %v9163
    %v9165 = vlaneseq
    %v9166 = vshrl.u32 %v9165, 7
    %v9167 = vsub.s32 %v9164, %v9166
    %v9168 = vrot.slane %v9158, %v9167
    %v9170 = vunpack.c.l.s4 1966171168
    %v9171 = vunpack.c.0.s8 %v9170
    %v9172 = vlaneseq
    %v9173 = vshrl.u32 %v9172, 7
    %v9174 = vsub.s32 %v9171, %v9173
    %v9175 = vrot.slane %v9159, %v9174
    %v9177 = vunpack.c.l.s4 1966171168
    %v9178 = vunpack.c.0.s8 %v9177
    %v9179 = vlaneseq
    %v9180 = vshrl.u32 %v9179, 7
    %v9181 = vsub.s32 %v9178, %v9180
    %v9182 = vrot.slane %v9160, %v9181
    %v9184 = vunpack.c.l.s4 1966171168
    %v9185 = vunpack.c.0.s8 %v9184
    %v9186 = vlaneseq
    %v9187 = vshrl.u32 %v9186, 7
    %v9188 = vsub.s32 %v9185, %v9187
    %v9189 = vrot.slane %v9161, %v9188
    %v9190 = vcombine.low %v9168, %v9175
    %v9191 = vcombine.low %v9182, %v9189
    %v9193 = vunpack.c.l.s4 1966171168
    %v9194 = vunpack.c.0.s8 %v9193
    %v9195 = vlaneseq
    %v9196 = vshrl.u32 %v9195, 7
    %v9197 = vsub.s32 %v9194, %v9196
    %v9198 = vrot.slane %v9190, %v9197
    %v9200 = vunpack.c.l.s4 1966171168
    %v9201 = vunpack.c.0.s8 %v9200
    %v9202 = vlaneseq
    %v9203 = vshrl.u32 %v9202, 7
    %v9204 = vsub.s32 %v9201, %v9203
    %v9205 = vrot.slane %v9191, %v9204
    %v9206 = vcombine.low %v9198, %v9205
    %v9207 = vcombine.low %v8135, %v8139
    %v9208 = vcombine.low %v8143, %v8147
    %v9209 = vcombine.low %v8151, %v8155
    %v9210 = vcombine.low %v8159, %v8163
    %v9212 = vunpack.c.l.s4 1966171168
    %v9213 = vunpack.c.0.s8 %v9212
    %v9214 = vlaneseq
    %v9215 = vshrl.u32 %v9214, 7
    %v9216 = vsub.s32 %v9213, %v9215
    %v9217 = vrot.slane %v9207, %v9216
    %v9219 = vunpack.c.l.s4 1966171168
    %v9220 = vunpack.c.0.s8 %v9219
    %v9221 = vlaneseq
    %v9222 = vshrl.u32 %v9221, 7
    %v9223 = vsub.s32 %v9220, %v9222
    %v9224 = vrot.slane %v9208, %v9223
    %v9226 = vunpack.c.l.s4 1966171168
    %v9227 = vunpack.c.0.s8 %v9226
    %v9228 = vlaneseq
    %v9229 = vshrl.u32 %v9228, 7
    %v9230 = vsub.s32 %v9227, %v9229
    %v9231 = vrot.slane %v9209, %v9230
    %v9233 = vunpack.c.l.s4 1966171168
    %v9234 = vunpack.c.0.s8 %v9233
    %v9235 = vlaneseq
    %v9236 = vshrl.u32 %v9235, 7
    %v9237 = vsub.s32 %v9234, %v9236
    %v9238 = vrot.slane %v9210, %v9237
    %v9239 = vcombine.low %v9217, %v9224
    %v9240 = vcombine.low %v9231, %v9238
    %v9242 = vunpack.c.l.s4 1966171168
    %v9243 = vunpack.c.0.s8 %v9242
    %v9244 = vlaneseq
    %v9245 = vshrl.u32 %v9244, 7
    %v9246 = vsub.s32 %v9243, %v9245
    %v9247 = vrot.slane %v9239, %v9246
    %v9249 = vunpack.c.l.s4 1966171168
    %v9250 = vunpack.c.0.s8 %v9249
    %v9251 = vlaneseq
    %v9252 = vshrl.u32 %v9251, 7
    %v9253 = vsub.s32 %v9250, %v9252
    %v9254 = vrot.slane %v9240, %v9253
    %v9255 = vcombine.low %v9247, %v9254
    %v9256 = vcombine.low %v8167, %v8171
    %v9257 = vcombine.low %v8175, %v8179
    %v9258 = vcombine.low %v8183, %v8187
    %v9259 = vcombine.low %v8191, %v8195
    %v9261 = vunpack.c.l.s4 1966171168
    %v9262 = vunpack.c.0.s8 %v9261
    %v9263 = vlaneseq
    %v9264 = vshrl.u32 %v9263, 7
    %v9265 = vsub.s32 %v9262, %v9264
    %v9266 = vrot.slane %v9256, %v9265
    %v9268 = vunpack.c.l.s4 1966171168
    %v9269 = vunpack.c.0.s8 %v9268
    %v9270 = vlaneseq
    %v9271 = vshrl.u32 %v9270, 7
    %v9272 = vsub.s32 %v9269, %v9271
    %v9273 = vrot.slane %v9257, %v9272
    %v9275 = vunpack.c.l.s4 1966171168
    %v9276 = vunpack.c.0.s8 %v9275
    %v9277 = vlaneseq
    %v9278 = vshrl.u32 %v9277, 7
    %v9279 = vsub.s32 %v9276, %v9278
    %v9280 = vrot.slane %v9258, %v9279
    %v9282 = vunpack.c.l.s4 1966171168
    %v9283 = vunpack.c.0.s8 %v9282
    %v9284 = vlaneseq
    %v9285 = vshrl.u32 %v9284, 7
    %v9286 = vsub.s32 %v9283, %v9285
    %v9287 = vrot.slane %v9259, %v9286
    %v9288 = vcombine.low %v9266, %v9273
    %v9289 = vcombine.low %v9280, %v9287
    %v9291 = vunpack.c.l.s4 1966171168
    %v9292 = vunpack.c.0.s8 %v9291
    %v9293 = vlaneseq
    %v9294 = vshrl.u32 %v9293, 7
    %v9295 = vsub.s32 %v9292, %v9294
    %v9296 = vrot.slane %v9288, %v9295
    %v9298 = vunpack.c.l.s4 1966171168
    %v9299 = vunpack.c.0.s8 %v9298
    %v9300 = vlaneseq
    %v9301 = vshrl.u32 %v9300, 7
    %v9302 = vsub.s32 %v9299, %v9301
    %v9303 = vrot.slane %v9289, %v9302
    %v9304 = vcombine.low %v9296, %v9303
    %v9305 = vcombine.low %v8199, %v8203
    %v9306 = vcombine.low %v8207, %v8211
    %v9307 = vcombine.low %v8215, %v8219
    %v9308 = vcombine.low %v8223, %v8227
    %v9310 = vunpack.c.l.s4 1966171168
    %v9311 = vunpack.c.0.s8 %v9310
    %v9312 = vlaneseq
    %v9313 = vshrl.u32 %v9312, 7
    %v9314 = vsub.s32 %v9311, %v9313
    %v9315 = vrot.slane %v9305, %v9314
    %v9317 = vunpack.c.l.s4 1966171168
    %v9318 = vunpack.c.0.s8 %v9317
    %v9319 = vlaneseq
    %v9320 = vshrl.u32 %v9319, 7
    %v9321 = vsub.s32 %v9318, %v9320
    %v9322 = vrot.slane %v9306, %v9321
    %v9324 = vunpack.c.l.s4 1966171168
    %v9325 = vunpack.c.0.s8 %v9324
    %v9326 = vlaneseq
    %v9327 = vshrl.u32 %v9326, 7
    %v9328 = vsub.s32 %v9325, %v9327
    %v9329 = vrot.slane %v9307, %v9328
    %v9331 = vunpack.c.l.s4 1966171168
    %v9332 = vunpack.c.0.s8 %v9331
    %v9333 = vlaneseq
    %v9334 = vshrl.u32 %v9333, 7
    %v9335 = vsub.s32 %v9332, %v9334
    %v9336 = vrot.slane %v9308, %v9335
    %v9337 = vcombine.low %v9315, %v9322
    %v9338 = vcombine.low %v9329, %v9336
    %v9340 = vunpack.c.l.s4 1966171168
    %v9341 = vunpack.c.0.s8 %v9340
    %v9342 = vlaneseq
    %v9343 = vshrl.u32 %v9342, 7
    %v9344 = vsub.s32 %v9341, %v9343
    %v9345 = vrot.slane %v9337, %v9344
    %v9347 = vunpack.c.l.s4 1966171168
    %v9348 = vunpack.c.0.s8 %v9347
    %v9349 = vlaneseq
    %v9350 = vshrl.u32 %v9349, 7
    %v9351 = vsub.s32 %v9348, %v9350
    %v9352 = vrot.slane %v9338, %v9351
    %v9353 = vcombine.low %v9345, %v9352
    %v9354 = vcombine.low %v8231, %v8235
    %v9355 = vcombine.low %v8239, %v8243
    %v9356 = vcombine.low %v8247, %v8251
    %v9357 = vcombine.low %v8255, %v8259
    %v9359 = vunpack.c.l.s4 1966171168
    %v9360 = vunpack.c.0.s8 %v9359
    %v9361 = vlaneseq
    %v9362 = vshrl.u32 %v9361, 7
    %v9363 = vsub.s32 %v9360, %v9362
    %v9364 = vrot.slane %v9354, %v9363
    %v9366 = vunpack.c.l.s4 1966171168
    %v9367 = vunpack.c.0.s8 %v9366
    %v9368 = vlaneseq
    %v9369 = vshrl.u32 %v9368, 7
    %v9370 = vsub.s32 %v9367, %v9369
    %v9371 = vrot.slane %v9355, %v9370
    %v9373 = vunpack.c.l.s4 1966171168
    %v9374 = vunpack.c.0.s8 %v9373
    %v9375 = vlaneseq
    %v9376 = vshrl.u32 %v9375, 7
    %v9377 = vsub.s32 %v9374, %v9376
    %v9378 = vrot.slane %v9356, %v9377
    %v9380 = vunpack.c.l.s4 1966171168
    %v9381 = vunpack.c.0.s8 %v9380
    %v9382 = vlaneseq
    %v9383 = vshrl.u32 %v9382, 7
    %v9384 = vsub.s32 %v9381, %v9383
    %v9385 = vrot.slane %v9357, %v9384
    %v9386 = vcombine.low %v9364, %v9371
    %v9387 = vcombine.low %v9378, %v9385
    %v9389 = vunpack.c.l.s4 1966171168
    %v9390 = vunpack.c.0.s8 %v9389
    %v9391 = vlaneseq
    %v9392 = vshrl.u32 %v9391, 7
    %v9393 = vsub.s32 %v9390, %v9392
    %v9394 = vrot.slane %v9386, %v9393
    %v9396 = vunpack.c.l.s4 1966171168
    %v9397 = vunpack.c.0.s8 %v9396
    %v9398 = vlaneseq
    %v9399 = vshrl.u32 %v9398, 7
    %v9400 = vsub.s32 %v9397, %v9399
    %v9401 = vrot.slane %v9387, %v9400
    %v9402 = vcombine.low %v9394, %v9401
    %v9403 = vcombine.low %v8263, %v8267
    %v9404 = vcombine.low %v8271, %v8275
    %v9405 = vcombine.low %v8279, %v8283
    %v9406 = vcombine.low %v8287, %v8291
    %v9408 = vunpack.c.l.s4 1966171168
    %v9409 = vunpack.c.0.s8 %v9408
    %v9410 = vlaneseq
    %v9411 = vshrl.u32 %v9410, 7
    %v9412 = vsub.s32 %v9409, %v9411
    %v9413 = vrot.slane %v9403, %v9412
    %v9415 = vunpack.c.l.s4 1966171168
    %v9416 = vunpack.c.0.s8 %v9415
    %v9417 = vlaneseq
    %v9418 = vshrl.u32 %v9417, 7
    %v9419 = vsub.s32 %v9416, %v9418
    %v9420 = vrot.slane %v9404, %v9419
    %v9422 = vunpack.c.l.s4 1966171168
    %v9423 = vunpack.c.0.s8 %v9422
    %v9424 = vlaneseq
    %v9425 = vshrl.u32 %v9424, 7
    %v9426 = vsub.s32 %v9423, %v9425
    %v9427 = vrot.slane %v9405, %v9426
    %v9429 = vunpack.c.l.s4 1966171168
    %v9430 = vunpack.c.0.s8 %v9429
    %v9431 = vlaneseq
    %v9432 = vshrl.u32 %v9431, 7
    %v9433 = vsub.s32 %v9430, %v9432
    %v9434 = vrot.slane %v9406, %v9433
    %v9435 = vcombine.low %v9413, %v9420
    %v9436 = vcombine.low %v9427, %v9434
    %v9438 = vunpack.c.l.s4 1966171168
    %v9439 = vunpack.c.0.s8 %v9438
    %v9440 = vlaneseq
    %v9441 = vshrl.u32 %v9440, 7
    %v9442 = vsub.s32 %v9439, %v9441
    %v9443 = vrot.slane %v9435, %v9442
    %v9445 = vunpack.c.l.s4 1966171168
    %v9446 = vunpack.c.0.s8 %v9445
    %v9447 = vlaneseq
    %v9448 = vshrl.u32 %v9447, 7
    %v9449 = vsub.s32 %v9446, %v9448
    %v9450 = vrot.slane %v9436, %v9449
    %v9451 = vcombine.low %v9443, %v9450
    %v9452 = vcombine.low %v8295, %v8299
    %v9453 = vcombine.low %v8303, %v8307
    %v9454 = vcombine.low %v8311, %v8315
    %v9455 = vcombine.low %v8319, %v8323
    %v9457 = vunpack.c.l.s4 1966171168
    %v9458 = vunpack.c.0.s8 %v9457
    %v9459 = vlaneseq
    %v9460 = vshrl.u32 %v9459, 7
    %v9461 = vsub.s32 %v9458, %v9460
    %v9462 = vrot.slane %v9452, %v9461
    %v9464 = vunpack.c.l.s4 1966171168
    %v9465 = vunpack.c.0.s8 %v9464
    %v9466 = vlaneseq
    %v9467 = vshrl.u32 %v9466, 7
    %v9468 = vsub.s32 %v9465, %v9467
    %v9469 = vrot.slane %v9453, %v9468
    %v9471 = vunpack.c.l.s4 1966171168
    %v9472 = vunpack.c.0.s8 %v9471
    %v9473 = vlaneseq
    %v9474 = vshrl.u32 %v9473, 7
    %v9475 = vsub.s32 %v9472, %v9474
    %v9476 = vrot.slane %v9454, %v9475
    %v9478 = vunpack.c.l.s4 1966171168
    %v9479 = vunpack.c.0.s8 %v9478
    %v9480 = vlaneseq
    %v9481 = vshrl.u32 %v9480, 7
    %v9482 = vsub.s32 %v9479, %v9481
    %v9483 = vrot.slane %v9455, %v9482
    %v9484 = vcombine.low %v9462, %v9469
    %v9485 = vcombine.low %v9476, %v9483
    %v9487 = vunpack.c.l.s4 1966171168
    %v9488 = vunpack.c.0.s8 %v9487
    %v9489 = vlaneseq
    %v9490 = vshrl.u32 %v9489, 7
    %v9491 = vsub.s32 %v9488, %v9490
    %v9492 = vrot.slane %v9484, %v9491
    %v9494 = vunpack.c.l.s4 1966171168
    %v9495 = vunpack.c.0.s8 %v9494
    %v9496 = vlaneseq
    %v9497 = vshrl.u32 %v9496, 7
    %v9498 = vsub.s32 %v9495, %v9497
    %v9499 = vrot.slane %v9485, %v9498
    %v9500 = vcombine.low %v9492, %v9499
    %v9501 = vcombine.low %v8327, %v8331
    %v9502 = vcombine.low %v8335, %v8339
    %v9503 = vcombine.low %v8343, %v8347
    %v9504 = vcombine.low %v8351, %v8355
    %v9506 = vunpack.c.l.s4 1966171168
    %v9507 = vunpack.c.0.s8 %v9506
    %v9508 = vlaneseq
    %v9509 = vshrl.u32 %v9508, 7
    %v9510 = vsub.s32 %v9507, %v9509
    %v9511 = vrot.slane %v9501, %v9510
    %v9513 = vunpack.c.l.s4 1966171168
    %v9514 = vunpack.c.0.s8 %v9513
    %v9515 = vlaneseq
    %v9516 = vshrl.u32 %v9515, 7
    %v9517 = vsub.s32 %v9514, %v9516
    %v9518 = vrot.slane %v9502, %v9517
    %v9520 = vunpack.c.l.s4 1966171168
    %v9521 = vunpack.c.0.s8 %v9520
    %v9522 = vlaneseq
    %v9523 = vshrl.u32 %v9522, 7
    %v9524 = vsub.s32 %v9521, %v9523
    %v9525 = vrot.slane %v9503, %v9524
    %v9527 = vunpack.c.l.s4 1966171168
    %v9528 = vunpack.c.0.s8 %v9527
    %v9529 = vlaneseq
    %v9530 = vshrl.u32 %v9529, 7
    %v9531 = vsub.s32 %v9528, %v9530
    %v9532 = vrot.slane %v9504, %v9531
    %v9533 = vcombine.low %v9511, %v9518
    %v9534 = vcombine.low %v9525, %v9532
    %v9536 = vunpack.c.l.s4 1966171168
    %v9537 = vunpack.c.0.s8 %v9536
    %v9538 = vlaneseq
    %v9539 = vshrl.u32 %v9538, 7
    %v9540 = vsub.s32 %v9537, %v9539
    %v9541 = vrot.slane %v9533, %v9540
    %v9543 = vunpack.c.l.s4 1966171168
    %v9544 = vunpack.c.0.s8 %v9543
    %v9545 = vlaneseq
    %v9546 = vshrl.u32 %v9545, 7
    %v9547 = vsub.s32 %v9544, %v9546
    %v9548 = vrot.slane %v9534, %v9547
    %v9549 = vcombine.low %v9541, %v9548
    %v9550 = vcombine.low %v8359, %v8363
    %v9551 = vcombine.low %v8367, %v8371
    %v9552 = vcombine.low %v8375, %v8379
    %v9553 = vcombine.low %v8383, %v8387
    %v9555 = vunpack.c.l.s4 1966171168
    %v9556 = vunpack.c.0.s8 %v9555
    %v9557 = vlaneseq
    %v9558 = vshrl.u32 %v9557, 7
    %v9559 = vsub.s32 %v9556, %v9558
    %v9560 = vrot.slane %v9550, %v9559
    %v9562 = vunpack.c.l.s4 1966171168
    %v9563 = vunpack.c.0.s8 %v9562
    %v9564 = vlaneseq
    %v9565 = vshrl.u32 %v9564, 7
    %v9566 = vsub.s32 %v9563, %v9565
    %v9567 = vrot.slane %v9551, %v9566
    %v9569 = vunpack.c.l.s4 1966171168
    %v9570 = vunpack.c.0.s8 %v9569
    %v9571 = vlaneseq
    %v9572 = vshrl.u32 %v9571, 7
    %v9573 = vsub.s32 %v9570, %v9572
    %v9574 = vrot.slane %v9552, %v9573
    %v9576 = vunpack.c.l.s4 1966171168
    %v9577 = vunpack.c.0.s8 %v9576
    %v9578 = vlaneseq
    %v9579 = vshrl.u32 %v9578, 7
    %v9580 = vsub.s32 %v9577, %v9579
    %v9581 = vrot.slane %v9553, %v9580
    %v9582 = vcombine.low %v9560, %v9567
    %v9583 = vcombine.low %v9574, %v9581
    %v9585 = vunpack.c.l.s4 1966171168
    %v9586 = vunpack.c.0.s8 %v9585
    %v9587 = vlaneseq
    %v9588 = vshrl.u32 %v9587, 7
    %v9589 = vsub.s32 %v9586, %v9588
    %v9590 = vrot.slane %v9582, %v9589
    %v9592 = vunpack.c.l.s4 1966171168
    %v9593 = vunpack.c.0.s8 %v9592
    %v9594 = vlaneseq
    %v9595 = vshrl.u32 %v9594, 7
    %v9596 = vsub.s32 %v9593, %v9595
    %v9597 = vrot.slane %v9583, %v9596
    %v9598 = vcombine.low %v9590, %v9597
    %v9599 = vcombine.low %v8391, %v8395
    %v9600 = vcombine.low %v8399, %v8403
    %v9601 = vcombine.low %v8407, %v8411
    %v9602 = vcombine.low %v8415, %v8419
    %v9604 = vunpack.c.l.s4 1966171168
    %v9605 = vunpack.c.0.s8 %v9604
    %v9606 = vlaneseq
    %v9607 = vshrl.u32 %v9606, 7
    %v9608 = vsub.s32 %v9605, %v9607
    %v9609 = vrot.slane %v9599, %v9608
    %v9611 = vunpack.c.l.s4 1966171168
    %v9612 = vunpack.c.0.s8 %v9611
    %v9613 = vlaneseq
    %v9614 = vshrl.u32 %v9613, 7
    %v9615 = vsub.s32 %v9612, %v9614
    %v9616 = vrot.slane %v9600, %v9615
    %v9618 = vunpack.c.l.s4 1966171168
    %v9619 = vunpack.c.0.s8 %v9618
    %v9620 = vlaneseq
    %v9621 = vshrl.u32 %v9620, 7
    %v9622 = vsub.s32 %v9619, %v9621
    %v9623 = vrot.slane %v9601, %v9622
    %v9625 = vunpack.c.l.s4 1966171168
    %v9626 = vunpack.c.0.s8 %v9625
    %v9627 = vlaneseq
    %v9628 = vshrl.u32 %v9627, 7
    %v9629 = vsub.s32 %v9626, %v9628
    %v9630 = vrot.slane %v9602, %v9629
    %v9631 = vcombine.low %v9609, %v9616
    %v9632 = vcombine.low %v9623, %v9630
    %v9634 = vunpack.c.l.s4 1966171168
    %v9635 = vunpack.c.0.s8 %v9634
    %v9636 = vlaneseq
    %v9637 = vshrl.u32 %v9636, 7
    %v9638 = vsub.s32 %v9635, %v9637
    %v9639 = vrot.slane %v9631, %v9638
    %v9641 = vunpack.c.l.s4 1966171168
    %v9642 = vunpack.c.0.s8 %v9641
    %v9643 = vlaneseq
    %v9644 = vshrl.u32 %v9643, 7
    %v9645 = vsub.s32 %v9642, %v9644
    %v9646 = vrot.slane %v9632, %v9645
    %v9647 = vcombine.low %v9639, %v9646
    %v9648 = vcombine.low %v8423, %v8427
    %v9649 = vcombine.low %v8431, %v8435
    %v9650 = vcombine.low %v8439, %v8443
    %v9651 = vcombine.low %v8447, %v8451
    %v9653 = vunpack.c.l.s4 1966171168
    %v9654 = vunpack.c.0.s8 %v9653
    %v9655 = vlaneseq
    %v9656 = vshrl.u32 %v9655, 7
    %v9657 = vsub.s32 %v9654, %v9656
    %v9658 = vrot.slane %v9648, %v9657
    %v9660 = vunpack.c.l.s4 1966171168
    %v9661 = vunpack.c.0.s8 %v9660
    %v9662 = vlaneseq
    %v9663 = vshrl.u32 %v9662, 7
    %v9664 = vsub.s32 %v9661, %v9663
    %v9665 = vrot.slane %v9649, %v9664
    %v9667 = vunpack.c.l.s4 1966171168
    %v9668 = vunpack.c.0.s8 %v9667
    %v9669 = vlaneseq
    %v9670 = vshrl.u32 %v9669, 7
    %v9671 = vsub.s32 %v9668, %v9670
    %v9672 = vrot.slane %v9650, %v9671
    %v9674 = vunpack.c.l.s4 1966171168
    %v9675 = vunpack.c.0.s8 %v9674
    %v9676 = vlaneseq
    %v9677 = vshrl.u32 %v9676, 7
    %v9678 = vsub.s32 %v9675, %v9677
    %v9679 = vrot.slane %v9651, %v9678
    %v9680 = vcombine.low %v9658, %v9665
    %v9681 = vcombine.low %v9672, %v9679
    %v9683 = vunpack.c.l.s4 1966171168
    %v9684 = vunpack.c.0.s8 %v9683
    %v9685 = vlaneseq
    %v9686 = vshrl.u32 %v9685, 7
    %v9687 = vsub.s32 %v9684, %v9686
    %v9688 = vrot.slane %v9680, %v9687
    %v9690 = vunpack.c.l.s4 1966171168
    %v9691 = vunpack.c.0.s8 %v9690
    %v9692 = vlaneseq
    %v9693 = vshrl.u32 %v9692, 7
    %v9694 = vsub.s32 %v9691, %v9693
    %v9695 = vrot.slane %v9681, %v9694
    %v9696 = vcombine.low %v9688, %v9695
    %v9697 = vcombine.low %v8455, %v8459
    %v9698 = vcombine.low %v8463, %v8467
    %v9699 = vcombine.low %v8471, %v8475
    %v9700 = vcombine.low %v8479, %v8483
    %v9702 = vunpack.c.l.s4 1966171168
    %v9703 = vunpack.c.0.s8 %v9702
    %v9704 = vlaneseq
    %v9705 = vshrl.u32 %v9704, 7
    %v9706 = vsub.s32 %v9703, %v9705
    %v9707 = vrot.slane %v9697, %v9706
    %v9709 = vunpack.c.l.s4 1966171168
    %v9710 = vunpack.c.0.s8 %v9709
    %v9711 = vlaneseq
    %v9712 = vshrl.u32 %v9711, 7
    %v9713 = vsub.s32 %v9710, %v9712
    %v9714 = vrot.slane %v9698, %v9713
    %v9716 = vunpack.c.l.s4 1966171168
    %v9717 = vunpack.c.0.s8 %v9716
    %v9718 = vlaneseq
    %v9719 = vshrl.u32 %v9718, 7
    %v9720 = vsub.s32 %v9717, %v9719
    %v9721 = vrot.slane %v9699, %v9720
    %v9723 = vunpack.c.l.s4 1966171168
    %v9724 = vunpack.c.0.s8 %v9723
    %v9725 = vlaneseq
    %v9726 = vshrl.u32 %v9725, 7
    %v9727 = vsub.s32 %v9724, %v9726
    %v9728 = vrot.slane %v9700, %v9727
    %v9729 = vcombine.low %v9707, %v9714
    %v9730 = vcombine.low %v9721, %v9728
    %v9732 = vunpack.c.l.s4 1966171168
    %v9733 = vunpack.c.0.s8 %v9732
    %v9734 = vlaneseq
    %v9735 = vshrl.u32 %v9734, 7
    %v9736 = vsub.s32 %v9733, %v9735
    %v9737 = vrot.slane %v9729, %v9736
    %v9739 = vunpack.c.l.s4 1966171168
    %v9740 = vunpack.c.0.s8 %v9739
    %v9741 = vlaneseq
    %v9742 = vshrl.u32 %v9741, 7
    %v9743 = vsub.s32 %v9740, %v9742
    %v9744 = vrot.slane %v9730, %v9743
    %v9745 = vcombine.low %v9737, %v9744
    %v9746 = vcombine.low %v8487, %v8491
    %v9747 = vcombine.low %v8495, %v8499
    %v9748 = vcombine.low %v8503, %v8507
    %v9749 = vcombine.low %v8511, %v8515
    %v9751 = vunpack.c.l.s4 1966171168
    %v9752 = vunpack.c.0.s8 %v9751
    %v9753 = vlaneseq
    %v9754 = vshrl.u32 %v9753, 7
    %v9755 = vsub.s32 %v9752, %v9754
    %v9756 = vrot.slane %v9746, %v9755
    %v9758 = vunpack.c.l.s4 1966171168
    %v9759 = vunpack.c.0.s8 %v9758
    %v9760 = vlaneseq
    %v9761 = vshrl.u32 %v9760, 7
    %v9762 = vsub.s32 %v9759, %v9761
    %v9763 = vrot.slane %v9747, %v9762
    %v9765 = vunpack.c.l.s4 1966171168
    %v9766 = vunpack.c.0.s8 %v9765
    %v9767 = vlaneseq
    %v9768 = vshrl.u32 %v9767, 7
    %v9769 = vsub.s32 %v9766, %v9768
    %v9770 = vrot.slane %v9748, %v9769
    %v9772 = vunpack.c.l.s4 1966171168
    %v9773 = vunpack.c.0.s8 %v9772
    %v9774 = vlaneseq
    %v9775 = vshrl.u32 %v9774, 7
    %v9776 = vsub.s32 %v9773, %v9775
    %v9777 = vrot.slane %v9749, %v9776
    %v9778 = vcombine.low %v9756, %v9763
    %v9779 = vcombine.low %v9770, %v9777
    %v9781 = vunpack.c.l.s4 1966171168
    %v9782 = vunpack.c.0.s8 %v9781
    %v9783 = vlaneseq
    %v9784 = vshrl.u32 %v9783, 7
    %v9785 = vsub.s32 %v9782, %v9784
    %v9786 = vrot.slane %v9778, %v9785
    %v9788 = vunpack.c.l.s4 1966171168
    %v9789 = vunpack.c.0.s8 %v9788
    %v9790 = vlaneseq
    %v9791 = vshrl.u32 %v9790, 7
    %v9792 = vsub.s32 %v9789, %v9791
    %v9793 = vrot.slane %v9779, %v9792
    %v9794 = vcombine.low %v9786, %v9793
    %v9795 = vcombine.low %v8519, %v8523
    %v9796 = vcombine.low %v8527, %v8531
    %v9797 = vcombine.low %v8535, %v8539
    %v9798 = vcombine.low %v8543, %v8547
    %v9800 = vunpack.c.l.s4 1966171168
    %v9801 = vunpack.c.0.s8 %v9800
    %v9802 = vlaneseq
    %v9803 = vshrl.u32 %v9802, 7
    %v9804 = vsub.s32 %v9801, %v9803
    %v9805 = vrot.slane %v9795, %v9804
    %v9807 = vunpack.c.l.s4 1966171168
    %v9808 = vunpack.c.0.s8 %v9807
    %v9809 = vlaneseq
    %v9810 = vshrl.u32 %v9809, 7
    %v9811 = vsub.s32 %v9808, %v9810
    %v9812 = vrot.slane %v9796, %v9811
    %v9814 = vunpack.c.l.s4 1966171168
    %v9815 = vunpack.c.0.s8 %v9814
    %v9816 = vlaneseq
    %v9817 = vshrl.u32 %v9816, 7
    %v9818 = vsub.s32 %v9815, %v9817
    %v9819 = vrot.slane %v9797, %v9818
    %v9821 = vunpack.c.l.s4 1966171168
    %v9822 = vunpack.c.0.s8 %v9821
    %v9823 = vlaneseq
    %v9824 = vshrl.u32 %v9823, 7
    %v9825 = vsub.s32 %v9822, %v9824
    %v9826 = vrot.slane %v9798, %v9825
    %v9827 = vcombine.low %v9805, %v9812
    %v9828 = vcombine.low %v9819, %v9826
    %v9830 = vunpack.c.l.s4 1966171168
    %v9831 = vunpack.c.0.s8 %v9830
    %v9832 = vlaneseq
    %v9833 = vshrl.u32 %v9832, 7
    %v9834 = vsub.s32 %v9831, %v9833
    %v9835 = vrot.slane %v9827, %v9834
    %v9837 = vunpack.c.l.s4 1966171168
    %v9838 = vunpack.c.0.s8 %v9837
    %v9839 = vlaneseq
    %v9840 = vshrl.u32 %v9839, 7
    %v9841 = vsub.s32 %v9838, %v9840
    %v9842 = vrot.slane %v9828, %v9841
    %v9843 = vcombine.low %v9835, %v9842
    %v9844 = vcombine.low %v8551, %v8555
    %v9845 = vcombine.low %v8559, %v8563
    %v9846 = vcombine.low %v8567, %v8571
    %v9847 = vcombine.low %v8575, %v8579
    %v9849 = vunpack.c.l.s4 1966171168
    %v9850 = vunpack.c.0.s8 %v9849
    %v9851 = vlaneseq
    %v9852 = vshrl.u32 %v9851, 7
    %v9853 = vsub.s32 %v9850, %v9852
    %v9854 = vrot.slane %v9844, %v9853
    %v9856 = vunpack.c.l.s4 1966171168
    %v9857 = vunpack.c.0.s8 %v9856
    %v9858 = vlaneseq
    %v9859 = vshrl.u32 %v9858, 7
    %v9860 = vsub.s32 %v9857, %v9859
    %v9861 = vrot.slane %v9845, %v9860
    %v9863 = vunpack.c.l.s4 1966171168
    %v9864 = vunpack.c.0.s8 %v9863
    %v9865 = vlaneseq
    %v9866 = vshrl.u32 %v9865, 7
    %v9867 = vsub.s32 %v9864, %v9866
    %v9868 = vrot.slane %v9846, %v9867
    %v9870 = vunpack.c.l.s4 1966171168
    %v9871 = vunpack.c.0.s8 %v9870
    %v9872 = vlaneseq
    %v9873 = vshrl.u32 %v9872, 7
    %v9874 = vsub.s32 %v9871, %v9873
    %v9875 = vrot.slane %v9847, %v9874
    %v9876 = vcombine.low %v9854, %v9861
    %v9877 = vcombine.low %v9868, %v9875
    %v9879 = vunpack.c.l.s4 1966171168
    %v9880 = vunpack.c.0.s8 %v9879
    %v9881 = vlaneseq
    %v9882 = vshrl.u32 %v9881, 7
    %v9883 = vsub.s32 %v9880, %v9882
    %v9884 = vrot.slane %v9876, %v9883
    %v9886 = vunpack.c.l.s4 1966171168
    %v9887 = vunpack.c.0.s8 %v9886
    %v9888 = vlaneseq
    %v9889 = vshrl.u32 %v9888, 7
    %v9890 = vsub.s32 %v9887, %v9889
    %v9891 = vrot.slane %v9877, %v9890
    %v9892 = vcombine.low %v9884, %v9891
    %v9893 = vcombine.low %v8583, %v8587
    %v9894 = vcombine.low %v8591, %v8595
    %v9895 = vcombine.low %v8599, %v8603
    %v9896 = vcombine.low %v8607, %v8611
    %v9898 = vunpack.c.l.s4 1966171168
    %v9899 = vunpack.c.0.s8 %v9898
    %v9900 = vlaneseq
    %v9901 = vshrl.u32 %v9900, 7
    %v9902 = vsub.s32 %v9899, %v9901
    %v9903 = vrot.slane %v9893, %v9902
    %v9905 = vunpack.c.l.s4 1966171168
    %v9906 = vunpack.c.0.s8 %v9905
    %v9907 = vlaneseq
    %v9908 = vshrl.u32 %v9907, 7
    %v9909 = vsub.s32 %v9906, %v9908
    %v9910 = vrot.slane %v9894, %v9909
    %v9912 = vunpack.c.l.s4 1966171168
    %v9913 = vunpack.c.0.s8 %v9912
    %v9914 = vlaneseq
    %v9915 = vshrl.u32 %v9914, 7
    %v9916 = vsub.s32 %v9913, %v9915
    %v9917 = vrot.slane %v9895, %v9916
    %v9919 = vunpack.c.l.s4 1966171168
    %v9920 = vunpack.c.0.s8 %v9919
    %v9921 = vlaneseq
    %v9922 = vshrl.u32 %v9921, 7
    %v9923 = vsub.s32 %v9920, %v9922
    %v9924 = vrot.slane %v9896, %v9923
    %v9925 = vcombine.low %v9903, %v9910
    %v9926 = vcombine.low %v9917, %v9924
    %v9928 = vunpack.c.l.s4 1966171168
    %v9929 = vunpack.c.0.s8 %v9928
    %v9930 = vlaneseq
    %v9931 = vshrl.u32 %v9930, 7
    %v9932 = vsub.s32 %v9929, %v9931
    %v9933 = vrot.slane %v9925, %v9932
    %v9935 = vunpack.c.l.s4 1966171168
    %v9936 = vunpack.c.0.s8 %v9935
    %v9937 = vlaneseq
    %v9938 = vshrl.u32 %v9937, 7
    %v9939 = vsub.s32 %v9936, %v9938
    %v9940 = vrot.slane %v9926, %v9939
    %v9941 = vcombine.low %v9933, %v9940
    %v9942 = vcombine.low %v8615, %v8619
    %v9943 = vcombine.low %v8623, %v8627
    %v9944 = vcombine.low %v8631, %v8635
    %v9945 = vcombine.low %v8639, %v8643
    %v9947 = vunpack.c.l.s4 1966171168
    %v9948 = vunpack.c.0.s8 %v9947
    %v9949 = vlaneseq
    %v9950 = vshrl.u32 %v9949, 7
    %v9951 = vsub.s32 %v9948, %v9950
    %v9952 = vrot.slane %v9942, %v9951
    %v9954 = vunpack.c.l.s4 1966171168
    %v9955 = vunpack.c.0.s8 %v9954
    %v9956 = vlaneseq
    %v9957 = vshrl.u32 %v9956, 7
    %v9958 = vsub.s32 %v9955, %v9957
    %v9959 = vrot.slane %v9943, %v9958
    %v9961 = vunpack.c.l.s4 1966171168
    %v9962 = vunpack.c.0.s8 %v9961
    %v9963 = vlaneseq
    %v9964 = vshrl.u32 %v9963, 7
    %v9965 = vsub.s32 %v9962, %v9964
    %v9966 = vrot.slane %v9944, %v9965
    %v9968 = vunpack.c.l.s4 1966171168
    %v9969 = vunpack.c.0.s8 %v9968
    %v9970 = vlaneseq
    %v9971 = vshrl.u32 %v9970, 7
    %v9972 = vsub.s32 %v9969, %v9971
    %v9973 = vrot.slane %v9945, %v9972
    %v9974 = vcombine.low %v9952, %v9959
    %v9975 = vcombine.low %v9966, %v9973
    %v9977 = vunpack.c.l.s4 1966171168
    %v9978 = vunpack.c.0.s8 %v9977
    %v9979 = vlaneseq
    %v9980 = vshrl.u32 %v9979, 7
    %v9981 = vsub.s32 %v9978, %v9980
    %v9982 = vrot.slane %v9974, %v9981
    %v9984 = vunpack.c.l.s4 1966171168
    %v9985 = vunpack.c.0.s8 %v9984
    %v9986 = vlaneseq
    %v9987 = vshrl.u32 %v9986, 7
    %v9988 = vsub.s32 %v9985, %v9987
    %v9989 = vrot.slane %v9975, %v9988
    %v9990 = vcombine.low %v9982, %v9989
    %v9991 = vcombine.low %v8647, %v8651
    %v9992 = vcombine.low %v8655, %v8659
    %v9993 = vcombine.low %v8663, %v8667
    %v9994 = vcombine.low %v8671, %v8675
    %v9996 = vunpack.c.l.s4 1966171168
    %v9997 = vunpack.c.0.s8 %v9996
    %v9998 = vlaneseq
    %v9999 = vshrl.u32 %v9998, 7
    %v10000 = vsub.s32 %v9997, %v9999
    %v10001 = vrot.slane %v9991, %v10000
    %v10003 = vunpack.c.l.s4 1966171168
    %v10004 = vunpack.c.0.s8 %v10003
    %v10005 = vlaneseq
    %v10006 = vshrl.u32 %v10005, 7
    %v10007 = vsub.s32 %v10004, %v10006
    %v10008 = vrot.slane %v9992, %v10007
    %v10010 = vunpack.c.l.s4 1966171168
    %v10011 = vunpack.c.0.s8 %v10010
    %v10012 = vlaneseq
    %v10013 = vshrl.u32 %v10012, 7
    %v10014 = vsub.s32 %v10011, %v10013
    %v10015 = vrot.slane %v9993, %v10014
    %v10017 = vunpack.c.l.s4 1966171168
    %v10018 = vunpack.c.0.s8 %v10017
    %v10019 = vlaneseq
    %v10020 = vshrl.u32 %v10019, 7
    %v10021 = vsub.s32 %v10018, %v10020
    %v10022 = vrot.slane %v9994, %v10021
    %v10023 = vcombine.low %v10001, %v10008
    %v10024 = vcombine.low %v10015, %v10022
    %v10026 = vunpack.c.l.s4 1966171168
    %v10027 = vunpack.c.0.s8 %v10026
    %v10028 = vlaneseq
    %v10029 = vshrl.u32 %v10028, 7
    %v10030 = vsub.s32 %v10027, %v10029
    %v10031 = vrot.slane %v10023, %v10030
    %v10033 = vunpack.c.l.s4 1966171168
    %v10034 = vunpack.c.0.s8 %v10033
    %v10035 = vlaneseq
    %v10036 = vshrl.u32 %v10035, 7
    %v10037 = vsub.s32 %v10034, %v10036
    %v10038 = vrot.slane %v10024, %v10037
    %v10039 = vcombine.low %v10031, %v10038
    %v10040 = vcombine.low %v8679, %v8683
    %v10041 = vcombine.low %v8687, %v8691
    %v10042 = vcombine.low %v8695, %v8699
    %v10043 = vcombine.low %v8703, %v8707
    %v10045 = vunpack.c.l.s4 1966171168
    %v10046 = vunpack.c.0.s8 %v10045
    %v10047 = vlaneseq
    %v10048 = vshrl.u32 %v10047, 7
    %v10049 = vsub.s32 %v10046, %v10048
    %v10050 = vrot.slane %v10040, %v10049
    %v10052 = vunpack.c.l.s4 1966171168
    %v10053 = vunpack.c.0.s8 %v10052
    %v10054 = vlaneseq
    %v10055 = vshrl.u32 %v10054, 7
    %v10056 = vsub.s32 %v10053, %v10055
    %v10057 = vrot.slane %v10041, %v10056
    %v10059 = vunpack.c.l.s4 1966171168
    %v10060 = vunpack.c.0.s8 %v10059
    %v10061 = vlaneseq
    %v10062 = vshrl.u32 %v10061, 7
    %v10063 = vsub.s32 %v10060, %v10062
    %v10064 = vrot.slane %v10042, %v10063
    %v10066 = vunpack.c.l.s4 1966171168
    %v10067 = vunpack.c.0.s8 %v10066
    %v10068 = vlaneseq
    %v10069 = vshrl.u32 %v10068, 7
    %v10070 = vsub.s32 %v10067, %v10069
    %v10071 = vrot.slane %v10043, %v10070
    %v10072 = vcombine.low %v10050, %v10057
    %v10073 = vcombine.low %v10064, %v10071
    %v10075 = vunpack.c.l.s4 1966171168
    %v10076 = vunpack.c.0.s8 %v10075
    %v10077 = vlaneseq
    %v10078 = vshrl.u32 %v10077, 7
    %v10079 = vsub.s32 %v10076, %v10078
    %v10080 = vrot.slane %v10072, %v10079
    %v10082 = vunpack.c.l.s4 1966171168
    %v10083 = vunpack.c.0.s8 %v10082
    %v10084 = vlaneseq
    %v10085 = vshrl.u32 %v10084, 7
    %v10086 = vsub.s32 %v10083, %v10085
    %v10087 = vrot.slane %v10073, %v10086
    %v10088 = vcombine.low %v10080, %v10087
    %v10089 = vcombine.low %v8711, %v8715
    %v10090 = vcombine.low %v8719, %v8723
    %v10091 = vcombine.low %v8727, %v8731
    %v10092 = vcombine.low %v8735, %v8739
    %v10094 = vunpack.c.l.s4 1966171168
    %v10095 = vunpack.c.0.s8 %v10094
    %v10096 = vlaneseq
    %v10097 = vshrl.u32 %v10096, 7
    %v10098 = vsub.s32 %v10095, %v10097
    %v10099 = vrot.slane %v10089, %v10098
    %v10101 = vunpack.c.l.s4 1966171168
    %v10102 = vunpack.c.0.s8 %v10101
    %v10103 = vlaneseq
    %v10104 = vshrl.u32 %v10103, 7
    %v10105 = vsub.s32 %v10102, %v10104
    %v10106 = vrot.slane %v10090, %v10105
    %v10108 = vunpack.c.l.s4 1966171168
    %v10109 = vunpack.c.0.s8 %v10108
    %v10110 = vlaneseq
    %v10111 = vshrl.u32 %v10110, 7
    %v10112 = vsub.s32 %v10109, %v10111
    %v10113 = vrot.slane %v10091, %v10112
    %v10115 = vunpack.c.l.s4 1966171168
    %v10116 = vunpack.c.0.s8 %v10115
    %v10117 = vlaneseq
    %v10118 = vshrl.u32 %v10117, 7
    %v10119 = vsub.s32 %v10116, %v10118
    %v10120 = vrot.slane %v10092, %v10119
    %v10121 = vcombine.low %v10099, %v10106
    %v10122 = vcombine.low %v10113, %v10120
    %v10124 = vunpack.c.l.s4 1966171168
    %v10125 = vunpack.c.0.s8 %v10124
    %v10126 = vlaneseq
    %v10127 = vshrl.u32 %v10126, 7
    %v10128 = vsub.s32 %v10125, %v10127
    %v10129 = vrot.slane %v10121, %v10128
    %v10131 = vunpack.c.l.s4 1966171168
    %v10132 = vunpack.c.0.s8 %v10131
    %v10133 = vlaneseq
    %v10134 = vshrl.u32 %v10133, 7
    %v10135 = vsub.s32 %v10132, %v10134
    %v10136 = vrot.slane %v10122, %v10135
    %v10137 = vcombine.low %v10129, %v10136
    %v10138 = vcombine.low %v8743, %v8747
    %v10139 = vcombine.low %v8751, %v8755
    %v10140 = vcombine.low %v8759, %v8763
    %v10141 = vcombine.low %v8767, %v8771
    %v10143 = vunpack.c.l.s4 1966171168
    %v10144 = vunpack.c.0.s8 %v10143
    %v10145 = vlaneseq
    %v10146 = vshrl.u32 %v10145, 7
    %v10147 = vsub.s32 %v10144, %v10146
    %v10148 = vrot.slane %v10138, %v10147
    %v10150 = vunpack.c.l.s4 1966171168
    %v10151 = vunpack.c.0.s8 %v10150
    %v10152 = vlaneseq
    %v10153 = vshrl.u32 %v10152, 7
    %v10154 = vsub.s32 %v10151, %v10153
    %v10155 = vrot.slane %v10139, %v10154
    %v10157 = vunpack.c.l.s4 1966171168
    %v10158 = vunpack.c.0.s8 %v10157
    %v10159 = vlaneseq
    %v10160 = vshrl.u32 %v10159, 7
    %v10161 = vsub.s32 %v10158, %v10160
    %v10162 = vrot.slane %v10140, %v10161
    %v10164 = vunpack.c.l.s4 1966171168
    %v10165 = vunpack.c.0.s8 %v10164
    %v10166 = vlaneseq
    %v10167 = vshrl.u32 %v10166, 7
    %v10168 = vsub.s32 %v10165, %v10167
    %v10169 = vrot.slane %v10141, %v10168
    %v10170 = vcombine.low %v10148, %v10155
    %v10171 = vcombine.low %v10162, %v10169
    %v10173 = vunpack.c.l.s4 1966171168
    %v10174 = vunpack.c.0.s8 %v10173
    %v10175 = vlaneseq
    %v10176 = vshrl.u32 %v10175, 7
    %v10177 = vsub.s32 %v10174, %v10176
    %v10178 = vrot.slane %v10170, %v10177
    %v10180 = vunpack.c.l.s4 1966171168
    %v10181 = vunpack.c.0.s8 %v10180
    %v10182 = vlaneseq
    %v10183 = vshrl.u32 %v10182, 7
    %v10184 = vsub.s32 %v10181, %v10183
    %v10185 = vrot.slane %v10171, %v10184
    %v10186 = vcombine.low %v10178, %v10185
    %v10187 = vcombine.low %v8775, %v8779
    %v10188 = vcombine.low %v8783, %v8787
    %v10189 = vcombine.low %v8791, %v8795
    %v10190 = vcombine.low %v8799, %v8803
    %v10192 = vunpack.c.l.s4 1966171168
    %v10193 = vunpack.c.0.s8 %v10192
    %v10194 = vlaneseq
    %v10195 = vshrl.u32 %v10194, 7
    %v10196 = vsub.s32 %v10193, %v10195
    %v10197 = vrot.slane %v10187, %v10196
    %v10199 = vunpack.c.l.s4 1966171168
    %v10200 = vunpack.c.0.s8 %v10199
    %v10201 = vlaneseq
    %v10202 = vshrl.u32 %v10201, 7
    %v10203 = vsub.s32 %v10200, %v10202
    %v10204 = vrot.slane %v10188, %v10203
    %v10206 = vunpack.c.l.s4 1966171168
    %v10207 = vunpack.c.0.s8 %v10206
    %v10208 = vlaneseq
    %v10209 = vshrl.u32 %v10208, 7
    %v10210 = vsub.s32 %v10207, %v10209
    %v10211 = vrot.slane %v10189, %v10210
    %v10213 = vunpack.c.l.s4 1966171168
    %v10214 = vunpack.c.0.s8 %v10213
    %v10215 = vlaneseq
    %v10216 = vshrl.u32 %v10215, 7
    %v10217 = vsub.s32 %v10214, %v10216
    %v10218 = vrot.slane %v10190, %v10217
    %v10219 = vcombine.low %v10197, %v10204
    %v10220 = vcombine.low %v10211, %v10218
    %v10222 = vunpack.c.l.s4 1966171168
    %v10223 = vunpack.c.0.s8 %v10222
    %v10224 = vlaneseq
    %v10225 = vshrl.u32 %v10224, 7
    %v10226 = vsub.s32 %v10223, %v10225
    %v10227 = vrot.slane %v10219, %v10226
    %v10229 = vunpack.c.l.s4 1966171168
    %v10230 = vunpack.c.0.s8 %v10229
    %v10231 = vlaneseq
    %v10232 = vshrl.u32 %v10231, 7
    %v10233 = vsub.s32 %v10230, %v10232
    %v10234 = vrot.slane %v10220, %v10233
    %v10235 = vcombine.low %v10227, %v10234
    %v10236 = vcombine.low %v8807, %v8811
    %v10237 = vcombine.low %v8815, %v8819
    %v10238 = vcombine.low %v8823, %v8827
    %v10239 = vcombine.low %v8831, %v8835
    %v10241 = vunpack.c.l.s4 1966171168
    %v10242 = vunpack.c.0.s8 %v10241
    %v10243 = vlaneseq
    %v10244 = vshrl.u32 %v10243, 7
    %v10245 = vsub.s32 %v10242, %v10244
    %v10246 = vrot.slane %v10236, %v10245
    %v10248 = vunpack.c.l.s4 1966171168
    %v10249 = vunpack.c.0.s8 %v10248
    %v10250 = vlaneseq
    %v10251 = vshrl.u32 %v10250, 7
    %v10252 = vsub.s32 %v10249, %v10251
    %v10253 = vrot.slane %v10237, %v10252
    %v10255 = vunpack.c.l.s4 1966171168
    %v10256 = vunpack.c.0.s8 %v10255
    %v10257 = vlaneseq
    %v10258 = vshrl.u32 %v10257, 7
    %v10259 = vsub.s32 %v10256, %v10258
    %v10260 = vrot.slane %v10238, %v10259
    %v10262 = vunpack.c.l.s4 1966171168
    %v10263 = vunpack.c.0.s8 %v10262
    %v10264 = vlaneseq
    %v10265 = vshrl.u32 %v10264, 7
    %v10266 = vsub.s32 %v10263, %v10265
    %v10267 = vrot.slane %v10239, %v10266
    %v10268 = vcombine.low %v10246, %v10253
    %v10269 = vcombine.low %v10260, %v10267
    %v10271 = vunpack.c.l.s4 1966171168
    %v10272 = vunpack.c.0.s8 %v10271
    %v10273 = vlaneseq
    %v10274 = vshrl.u32 %v10273, 7
    %v10275 = vsub.s32 %v10272, %v10274
    %v10276 = vrot.slane %v10268, %v10275
    %v10278 = vunpack.c.l.s4 1966171168
    %v10279 = vunpack.c.0.s8 %v10278
    %v10280 = vlaneseq
    %v10281 = vshrl.u32 %v10280, 7
    %v10282 = vsub.s32 %v10279, %v10281
    %v10283 = vrot.slane %v10269, %v10282
    %v10284 = vcombine.low %v10276, %v10283
    %v10285 = vcombine.low %v8839, %v8843
    %v10286 = vcombine.low %v8847, %v8851
    %v10287 = vcombine.low %v8855, %v8859
    %v10288 = vcombine.low %v8863, %v8867
    %v10290 = vunpack.c.l.s4 1966171168
    %v10291 = vunpack.c.0.s8 %v10290
    %v10292 = vlaneseq
    %v10293 = vshrl.u32 %v10292, 7
    %v10294 = vsub.s32 %v10291, %v10293
    %v10295 = vrot.slane %v10285, %v10294
    %v10297 = vunpack.c.l.s4 1966171168
    %v10298 = vunpack.c.0.s8 %v10297
    %v10299 = vlaneseq
    %v10300 = vshrl.u32 %v10299, 7
    %v10301 = vsub.s32 %v10298, %v10300
    %v10302 = vrot.slane %v10286, %v10301
    %v10304 = vunpack.c.l.s4 1966171168
    %v10305 = vunpack.c.0.s8 %v10304
    %v10306 = vlaneseq
    %v10307 = vshrl.u32 %v10306, 7
    %v10308 = vsub.s32 %v10305, %v10307
    %v10309 = vrot.slane %v10287, %v10308
    %v10311 = vunpack.c.l.s4 1966171168
    %v10312 = vunpack.c.0.s8 %v10311
    %v10313 = vlaneseq
    %v10314 = vshrl.u32 %v10313, 7
    %v10315 = vsub.s32 %v10312, %v10314
    %v10316 = vrot.slane %v10288, %v10315
    %v10317 = vcombine.low %v10295, %v10302
    %v10318 = vcombine.low %v10309, %v10316
    %v10320 = vunpack.c.l.s4 1966171168
    %v10321 = vunpack.c.0.s8 %v10320
    %v10322 = vlaneseq
    %v10323 = vshrl.u32 %v10322, 7
    %v10324 = vsub.s32 %v10321, %v10323
    %v10325 = vrot.slane %v10317, %v10324
    %v10327 = vunpack.c.l.s4 1966171168
    %v10328 = vunpack.c.0.s8 %v10327
    %v10329 = vlaneseq
    %v10330 = vshrl.u32 %v10329, 7
    %v10331 = vsub.s32 %v10328, %v10330
    %v10332 = vrot.slane %v10318, %v10331
    %v10333 = vcombine.low %v10325, %v10332
    %v10334 = vcombine.low %v8871, %v8875
    %v10335 = vcombine.low %v8879, %v8883
    %v10336 = vcombine.low %v8887, %v8891
    %v10337 = vcombine.low %v8895, %v8899
    %v10339 = vunpack.c.l.s4 1966171168
    %v10340 = vunpack.c.0.s8 %v10339
    %v10341 = vlaneseq
    %v10342 = vshrl.u32 %v10341, 7
    %v10343 = vsub.s32 %v10340, %v10342
    %v10344 = vrot.slane %v10334, %v10343
    %v10346 = vunpack.c.l.s4 1966171168
    %v10347 = vunpack.c.0.s8 %v10346
    %v10348 = vlaneseq
    %v10349 = vshrl.u32 %v10348, 7
    %v10350 = vsub.s32 %v10347, %v10349
    %v10351 = vrot.slane %v10335, %v10350
    %v10353 = vunpack.c.l.s4 1966171168
    %v10354 = vunpack.c.0.s8 %v10353
    %v10355 = vlaneseq
    %v10356 = vshrl.u32 %v10355, 7
    %v10357 = vsub.s32 %v10354, %v10356
    %v10358 = vrot.slane %v10336, %v10357
    %v10360 = vunpack.c.l.s4 1966171168
    %v10361 = vunpack.c.0.s8 %v10360
    %v10362 = vlaneseq
    %v10363 = vshrl.u32 %v10362, 7
    %v10364 = vsub.s32 %v10361, %v10363
    %v10365 = vrot.slane %v10337, %v10364
    %v10366 = vcombine.low %v10344, %v10351
    %v10367 = vcombine.low %v10358, %v10365
    %v10369 = vunpack.c.l.s4 1966171168
    %v10370 = vunpack.c.0.s8 %v10369
    %v10371 = vlaneseq
    %v10372 = vshrl.u32 %v10371, 7
    %v10373 = vsub.s32 %v10370, %v10372
    %v10374 = vrot.slane %v10366, %v10373
    %v10376 = vunpack.c.l.s4 1966171168
    %v10377 = vunpack.c.0.s8 %v10376
    %v10378 = vlaneseq
    %v10379 = vshrl.u32 %v10378, 7
    %v10380 = vsub.s32 %v10377, %v10379
    %v10381 = vrot.slane %v10367, %v10380
    %v10382 = vcombine.low %v10374, %v10381
    %v10383 = vcombine.low %v8903, %v8907
    %v10384 = vcombine.low %v8911, %v8915
    %v10385 = vcombine.low %v8919, %v8923
    %v10386 = vcombine.low %v8927, %v8931
    %v10388 = vunpack.c.l.s4 1966171168
    %v10389 = vunpack.c.0.s8 %v10388
    %v10390 = vlaneseq
    %v10391 = vshrl.u32 %v10390, 7
    %v10392 = vsub.s32 %v10389, %v10391
    %v10393 = vrot.slane %v10383, %v10392
    %v10395 = vunpack.c.l.s4 1966171168
    %v10396 = vunpack.c.0.s8 %v10395
    %v10397 = vlaneseq
    %v10398 = vshrl.u32 %v10397, 7
    %v10399 = vsub.s32 %v10396, %v10398
    %v10400 = vrot.slane %v10384, %v10399
    %v10402 = vunpack.c.l.s4 1966171168
    %v10403 = vunpack.c.0.s8 %v10402
    %v10404 = vlaneseq
    %v10405 = vshrl.u32 %v10404, 7
    %v10406 = vsub.s32 %v10403, %v10405
    %v10407 = vrot.slane %v10385, %v10406
    %v10409 = vunpack.c.l.s4 1966171168
    %v10410 = vunpack.c.0.s8 %v10409
    %v10411 = vlaneseq
    %v10412 = vshrl.u32 %v10411, 7
    %v10413 = vsub.s32 %v10410, %v10412
    %v10414 = vrot.slane %v10386, %v10413
    %v10415 = vcombine.low %v10393, %v10400
    %v10416 = vcombine.low %v10407, %v10414
    %v10418 = vunpack.c.l.s4 1966171168
    %v10419 = vunpack.c.0.s8 %v10418
    %v10420 = vlaneseq
    %v10421 = vshrl.u32 %v10420, 7
    %v10422 = vsub.s32 %v10419, %v10421
    %v10423 = vrot.slane %v10415, %v10422
    %v10425 = vunpack.c.l.s4 1966171168
    %v10426 = vunpack.c.0.s8 %v10425
    %v10427 = vlaneseq
    %v10428 = vshrl.u32 %v10427, 7
    %v10429 = vsub.s32 %v10426, %v10428
    %v10430 = vrot.slane %v10416, %v10429
    %v10431 = vcombine.low %v10423, %v10430
    %v10432 = vcombine.low %v8935, %v8939
    %v10433 = vcombine.low %v8943, %v8947
    %v10434 = vcombine.low %v8951, %v8955
    %v10435 = vcombine.low %v8959, %v8963
    %v10437 = vunpack.c.l.s4 1966171168
    %v10438 = vunpack.c.0.s8 %v10437
    %v10439 = vlaneseq
    %v10440 = vshrl.u32 %v10439, 7
    %v10441 = vsub.s32 %v10438, %v10440
    %v10442 = vrot.slane %v10432, %v10441
    %v10444 = vunpack.c.l.s4 1966171168
    %v10445 = vunpack.c.0.s8 %v10444
    %v10446 = vlaneseq
    %v10447 = vshrl.u32 %v10446, 7
    %v10448 = vsub.s32 %v10445, %v10447
    %v10449 = vrot.slane %v10433, %v10448
    %v10451 = vunpack.c.l.s4 1966171168
    %v10452 = vunpack.c.0.s8 %v10451
    %v10453 = vlaneseq
    %v10454 = vshrl.u32 %v10453, 7
    %v10455 = vsub.s32 %v10452, %v10454
    %v10456 = vrot.slane %v10434, %v10455
    %v10458 = vunpack.c.l.s4 1966171168
    %v10459 = vunpack.c.0.s8 %v10458
    %v10460 = vlaneseq
    %v10461 = vshrl.u32 %v10460, 7
    %v10462 = vsub.s32 %v10459, %v10461
    %v10463 = vrot.slane %v10435, %v10462
    %v10464 = vcombine.low %v10442, %v10449
    %v10465 = vcombine.low %v10456, %v10463
    %v10467 = vunpack.c.l.s4 1966171168
    %v10468 = vunpack.c.0.s8 %v10467
    %v10469 = vlaneseq
    %v10470 = vshrl.u32 %v10469, 7
    %v10471 = vsub.s32 %v10468, %v10470
    %v10472 = vrot.slane %v10464, %v10471
    %v10474 = vunpack.c.l.s4 1966171168
    %v10475 = vunpack.c.0.s8 %v10474
    %v10476 = vlaneseq
    %v10477 = vshrl.u32 %v10476, 7
    %v10478 = vsub.s32 %v10475, %v10477
    %v10479 = vrot.slane %v10465, %v10478
    %v10480 = vcombine.low %v10472, %v10479
    %v10481 = vcombine.low %v8967, %v8971
    %v10482 = vcombine.low %v8975, %v8979
    %v10483 = vcombine.low %v8983, %v8987
    %v10484 = vcombine.low %v8991, %v8995
    %v10486 = vunpack.c.l.s4 1966171168
    %v10487 = vunpack.c.0.s8 %v10486
    %v10488 = vlaneseq
    %v10489 = vshrl.u32 %v10488, 7
    %v10490 = vsub.s32 %v10487, %v10489
    %v10491 = vrot.slane %v10481, %v10490
    %v10493 = vunpack.c.l.s4 1966171168
    %v10494 = vunpack.c.0.s8 %v10493
    %v10495 = vlaneseq
    %v10496 = vshrl.u32 %v10495, 7
    %v10497 = vsub.s32 %v10494, %v10496
    %v10498 = vrot.slane %v10482, %v10497
    %v10500 = vunpack.c.l.s4 1966171168
    %v10501 = vunpack.c.0.s8 %v10500
    %v10502 = vlaneseq
    %v10503 = vshrl.u32 %v10502, 7
    %v10504 = vsub.s32 %v10501, %v10503
    %v10505 = vrot.slane %v10483, %v10504
    %v10507 = vunpack.c.l.s4 1966171168
    %v10508 = vunpack.c.0.s8 %v10507
    %v10509 = vlaneseq
    %v10510 = vshrl.u32 %v10509, 7
    %v10511 = vsub.s32 %v10508, %v10510
    %v10512 = vrot.slane %v10484, %v10511
    %v10513 = vcombine.low %v10491, %v10498
    %v10514 = vcombine.low %v10505, %v10512
    %v10516 = vunpack.c.l.s4 1966171168
    %v10517 = vunpack.c.0.s8 %v10516
    %v10518 = vlaneseq
    %v10519 = vshrl.u32 %v10518, 7
    %v10520 = vsub.s32 %v10517, %v10519
    %v10521 = vrot.slane %v10513, %v10520
    %v10523 = vunpack.c.l.s4 1966171168
    %v10524 = vunpack.c.0.s8 %v10523
    %v10525 = vlaneseq
    %v10526 = vshrl.u32 %v10525, 7
    %v10527 = vsub.s32 %v10524, %v10526
    %v10528 = vrot.slane %v10514, %v10527
    %v10529 = vcombine.low %v10521, %v10528
    %v10530 = vcombine.low %v8999, %v9003
    %v10531 = vcombine.low %v9007, %v9011
    %v10532 = vcombine.low %v9015, %v9019
    %v10533 = vcombine.low %v9023, %v9027
    %v10535 = vunpack.c.l.s4 1966171168
    %v10536 = vunpack.c.0.s8 %v10535
    %v10537 = vlaneseq
    %v10538 = vshrl.u32 %v10537, 7
    %v10539 = vsub.s32 %v10536, %v10538
    %v10540 = vrot.slane %v10530, %v10539
    %v10542 = vunpack.c.l.s4 1966171168
    %v10543 = vunpack.c.0.s8 %v10542
    %v10544 = vlaneseq
    %v10545 = vshrl.u32 %v10544, 7
    %v10546 = vsub.s32 %v10543, %v10545
    %v10547 = vrot.slane %v10531, %v10546
    %v10549 = vunpack.c.l.s4 1966171168
    %v10550 = vunpack.c.0.s8 %v10549
    %v10551 = vlaneseq
    %v10552 = vshrl.u32 %v10551, 7
    %v10553 = vsub.s32 %v10550, %v10552
    %v10554 = vrot.slane %v10532, %v10553
    %v10556 = vunpack.c.l.s4 1966171168
    %v10557 = vunpack.c.0.s8 %v10556
    %v10558 = vlaneseq
    %v10559 = vshrl.u32 %v10558, 7
    %v10560 = vsub.s32 %v10557, %v10559
    %v10561 = vrot.slane %v10533, %v10560
    %v10562 = vcombine.low %v10540, %v10547
    %v10563 = vcombine.low %v10554, %v10561
    %v10565 = vunpack.c.l.s4 1966171168
    %v10566 = vunpack.c.0.s8 %v10565
    %v10567 = vlaneseq
    %v10568 = vshrl.u32 %v10567, 7
    %v10569 = vsub.s32 %v10566, %v10568
    %v10570 = vrot.slane %v10562, %v10569
    %v10572 = vunpack.c.l.s4 1966171168
    %v10573 = vunpack.c.0.s8 %v10572
    %v10574 = vlaneseq
    %v10575 = vshrl.u32 %v10574, 7
    %v10576 = vsub.s32 %v10573, %v10575
    %v10577 = vrot.slane %v10563, %v10576
    %v10578 = vcombine.low %v10570, %v10577
    %v10579 = vcombine.low %v9031, %v9035
    %v10580 = vcombine.low %v9039, %v9043
    %v10581 = vcombine.low %v9047, %v9051
    %v10582 = vcombine.low %v9055, %v9059
    %v10584 = vunpack.c.l.s4 1966171168
    %v10585 = vunpack.c.0.s8 %v10584
    %v10586 = vlaneseq
    %v10587 = vshrl.u32 %v10586, 7
    %v10588 = vsub.s32 %v10585, %v10587
    %v10589 = vrot.slane %v10579, %v10588
    %v10591 = vunpack.c.l.s4 1966171168
    %v10592 = vunpack.c.0.s8 %v10591
    %v10593 = vlaneseq
    %v10594 = vshrl.u32 %v10593, 7
    %v10595 = vsub.s32 %v10592, %v10594
    %v10596 = vrot.slane %v10580, %v10595
    %v10598 = vunpack.c.l.s4 1966171168
    %v10599 = vunpack.c.0.s8 %v10598
    %v10600 = vlaneseq
    %v10601 = vshrl.u32 %v10600, 7
    %v10602 = vsub.s32 %v10599, %v10601
    %v10603 = vrot.slane %v10581, %v10602
    %v10605 = vunpack.c.l.s4 1966171168
    %v10606 = vunpack.c.0.s8 %v10605
    %v10607 = vlaneseq
    %v10608 = vshrl.u32 %v10607, 7
    %v10609 = vsub.s32 %v10606, %v10608
    %v10610 = vrot.slane %v10582, %v10609
    %v10611 = vcombine.low %v10589, %v10596
    %v10612 = vcombine.low %v10603, %v10610
    %v10614 = vunpack.c.l.s4 1966171168
    %v10615 = vunpack.c.0.s8 %v10614
    %v10616 = vlaneseq
    %v10617 = vshrl.u32 %v10616, 7
    %v10618 = vsub.s32 %v10615, %v10617
    %v10619 = vrot.slane %v10611, %v10618
    %v10621 = vunpack.c.l.s4 1966171168
    %v10622 = vunpack.c.0.s8 %v10621
    %v10623 = vlaneseq
    %v10624 = vshrl.u32 %v10623, 7
    %v10625 = vsub.s32 %v10622, %v10624
    %v10626 = vrot.slane %v10612, %v10625
    %v10627 = vcombine.low %v10619, %v10626
    %10628 = vset.pattern.permute.xlu0 0
    %10629 = vperm.xlu0 %10628, %v9108
    %v10630 = vpop.permute.xlu0 %10629
    %10631 = vset.pattern.permute.xlu0 0
    %10632 = vperm.xlu0 %10631, %v9157
    %v10633 = vpop.permute.xlu0 %10632
    %10634 = vset.pattern.permute.xlu0 0
    %10635 = vperm.xlu0 %10634, %v9206
    %v10636 = vpop.permute.xlu0 %10635
    %10637 = vset.pattern.permute.xlu0 0
    %10638 = vperm.xlu0 %10637, %v9255
    %v10639 = vpop.permute.xlu0 %10638
    %10640 = vset.pattern.permute.xlu0 0
    %10641 = vperm.xlu0 %10640, %v9304
    %v10642 = vpop.permute.xlu0 %10641
    %10643 = vset.pattern.permute.xlu0 0
    %10644 = vperm.xlu0 %10643, %v9353
    %v10645 = vpop.permute.xlu0 %10644
    %10646 = vset.pattern.permute.xlu0 0
    %10647 = vperm.xlu0 %10646, %v9402
    %v10648 = vpop.permute.xlu0 %10647
    %10649 = vset.pattern.permute.xlu0 0
    %10650 = vperm.xlu0 %10649, %v9451
    %v10651 = vpop.permute.xlu0 %10650
    %10652 = vset.pattern.permute.xlu0 0
    %10653 = vperm.xlu0 %10652, %v9500
    %v10654 = vpop.permute.xlu0 %10653
    %10655 = vset.pattern.permute.xlu0 0
    %10656 = vperm.xlu0 %10655, %v9549
    %v10657 = vpop.permute.xlu0 %10656
    %10658 = vset.pattern.permute.xlu0 0
    %10659 = vperm.xlu0 %10658, %v9598
    %v10660 = vpop.permute.xlu0 %10659
    %10661 = vset.pattern.permute.xlu0 0
    %10662 = vperm.xlu0 %10661, %v9647
    %v10663 = vpop.permute.xlu0 %10662
    %10664 = vset.pattern.permute.xlu0 0
    %10665 = vperm.xlu0 %10664, %v9696
    %v10666 = vpop.permute.xlu0 %10665
    %10667 = vset.pattern.permute.xlu0 0
    %10668 = vperm.xlu0 %10667, %v9745
    %v10669 = vpop.permute.xlu0 %10668
    %10670 = vset.pattern.permute.xlu0 0
    %10671 = vperm.xlu0 %10670, %v9794
    %v10672 = vpop.permute.xlu0 %10671
    %10673 = vset.pattern.permute.xlu0 0
    %10674 = vperm.xlu0 %10673, %v9843
    %v10675 = vpop.permute.xlu0 %10674
    %10676 = vset.pattern.permute.xlu0 0
    %10677 = vperm.xlu0 %10676, %v9892
    %v10678 = vpop.permute.xlu0 %10677
    %10679 = vset.pattern.permute.xlu0 0
    %10680 = vperm.xlu0 %10679, %v9941
    %v10681 = vpop.permute.xlu0 %10680
    %10682 = vset.pattern.permute.xlu0 0
    %10683 = vperm.xlu0 %10682, %v9990
    %v10684 = vpop.permute.xlu0 %10683
    %10685 = vset.pattern.permute.xlu0 0
    %10686 = vperm.xlu0 %10685, %v10039
    %v10687 = vpop.permute.xlu0 %10686
    %10688 = vset.pattern.permute.xlu0 0
    %10689 = vperm.xlu0 %10688, %v10088
    %v10690 = vpop.permute.xlu0 %10689
    %10691 = vset.pattern.permute.xlu0 0
    %10692 = vperm.xlu0 %10691, %v10137
    %v10693 = vpop.permute.xlu0 %10692
    %10694 = vset.pattern.permute.xlu0 0
    %10695 = vperm.xlu0 %10694, %v10186
    %v10696 = vpop.permute.xlu0 %10695
    %10697 = vset.pattern.permute.xlu0 0
    %10698 = vperm.xlu0 %10697, %v10235
    %v10699 = vpop.permute.xlu0 %10698
    %10700 = vset.pattern.permute.xlu0 0
    %10701 = vperm.xlu0 %10700, %v10284
    %v10702 = vpop.permute.xlu0 %10701
    %10703 = vset.pattern.permute.xlu0 0
    %10704 = vperm.xlu0 %10703, %v10333
    %v10705 = vpop.permute.xlu0 %10704
    %10706 = vset.pattern.permute.xlu0 0
    %10707 = vperm.xlu0 %10706, %v10382
    %v10708 = vpop.permute.xlu0 %10707
    %10709 = vset.pattern.permute.xlu0 0
    %10710 = vperm.xlu0 %10709, %v10431
    %v10711 = vpop.permute.xlu0 %10710
    %10712 = vset.pattern.permute.xlu0 0
    %10713 = vperm.xlu0 %10712, %v10480
    %v10714 = vpop.permute.xlu0 %10713
    %10715 = vset.pattern.permute.xlu0 0
    %10716 = vperm.xlu0 %10715, %v10529
    %v10717 = vpop.permute.xlu0 %10716
    %10718 = vset.pattern.permute.xlu0 0
    %10719 = vperm.xlu0 %10718, %v10578
    %v10720 = vpop.permute.xlu0 %10719
    %10721 = vset.pattern.permute.xlu0 0
    %10722 = vperm.xlu0 %10721, %v10627
    %v10723 = vpop.permute.xlu0 %10722
    %v10724 = vlaneseq
    %v10725 = vshrl.u32 %v10724, 7
    %v10726 = vsub.s32 %v160, %v10725
    %v10727 = vrot.slane %v10630, %v10726
    %v10728 = vlaneseq
    %v10729 = vshrl.u32 %v10728, 7
    %v10730 = vsub.s32 %v4903, %v10729
    %v10731 = vrot.slane %v10633, %v10730
    %v10732 = vsel %vm4908, %v10731, %v10727
    %v10733 = vlaneseq
    %v10734 = vshrl.u32 %v10733, 7
    %v10735 = vsub.s32 %v4910, %v10734
    %v10736 = vrot.slane %v10636, %v10735
    %v10737 = vsel %vm4915, %v10736, %v10732
    %v10738 = vlaneseq
    %v10739 = vshrl.u32 %v10738, 7
    %v10740 = vsub.s32 %v4917, %v10739
    %v10741 = vrot.slane %v10639, %v10740
    %v10742 = vsel %vm4922, %v10741, %v10737
    %v10743 = vlaneseq
    %v10744 = vshrl.u32 %v10743, 7
    %v10745 = vsub.s32 %v4924, %v10744
    %v10746 = vrot.slane %v10642, %v10745
    %v10747 = vsel %vm4929, %v10746, %v10742
    %v10748 = vlaneseq
    %v10749 = vshrl.u32 %v10748, 7
    %v10750 = vsub.s32 %v4931, %v10749
    %v10751 = vrot.slane %v10645, %v10750
    %v10752 = vsel %vm4936, %v10751, %v10747
    %v10753 = vlaneseq
    %v10754 = vshrl.u32 %v10753, 7
    %v10755 = vsub.s32 %v4938, %v10754
    %v10756 = vrot.slane %v10648, %v10755
    %v10757 = vsel %vm4943, %v10756, %v10752
    %v10758 = vlaneseq
    %v10759 = vshrl.u32 %v10758, 7
    %v10760 = vsub.s32 %v4945, %v10759
    %v10761 = vrot.slane %v10651, %v10760
    %v10762 = vsel %vm4950, %v10761, %v10757
    %v10763 = vlaneseq
    %v10764 = vshrl.u32 %v10763, 7
    %v10765 = vsub.s32 %v4952, %v10764
    %v10766 = vrot.slane %v10654, %v10765
    %v10767 = vsel %vm4957, %v10766, %v10762
    %v10768 = vlaneseq
    %v10769 = vshrl.u32 %v10768, 7
    %v10770 = vsub.s32 %v4959, %v10769
    %v10771 = vrot.slane %v10657, %v10770
    %v10772 = vsel %vm4964, %v10771, %v10767
    %v10773 = vlaneseq
    %v10774 = vshrl.u32 %v10773, 7
    %v10775 = vsub.s32 %v4966, %v10774
    %v10776 = vrot.slane %v10660, %v10775
    %v10777 = vsel %vm4971, %v10776, %v10772
    %v10778 = vlaneseq
    %v10779 = vshrl.u32 %v10778, 7
    %v10780 = vsub.s32 %v4973, %v10779
    %v10781 = vrot.slane %v10663, %v10780
    %v10782 = vsel %vm4978, %v10781, %v10777
    %v10783 = vlaneseq
    %v10784 = vshrl.u32 %v10783, 7
    %v10785 = vsub.s32 %v4980, %v10784
    %v10786 = vrot.slane %v10666, %v10785
    %v10787 = vsel %vm4985, %v10786, %v10782
    %v10788 = vlaneseq
    %v10789 = vshrl.u32 %v10788, 7
    %v10790 = vsub.s32 %v4987, %v10789
    %v10791 = vrot.slane %v10669, %v10790
    %v10792 = vsel %vm4992, %v10791, %v10787
    %v10793 = vlaneseq
    %v10794 = vshrl.u32 %v10793, 7
    %v10795 = vsub.s32 %v4994, %v10794
    %v10796 = vrot.slane %v10672, %v10795
    %v10797 = vsel %vm4999, %v10796, %v10792
    %v10798 = vlaneseq
    %v10799 = vshrl.u32 %v10798, 7
    %v10800 = vsub.s32 %v5001, %v10799
    %v10801 = vrot.slane %v10675, %v10800
    %v10802 = vsel %vm5006, %v10801, %v10797
    %v10803 = vlaneseq
    %v10804 = vshrl.u32 %v10803, 7
    %v10805 = vsub.s32 %v160, %v10804
    %v10806 = vrot.slane %v10678, %v10805
    %v10807 = vlaneseq
    %v10808 = vshrl.u32 %v10807, 7
    %v10809 = vsub.s32 %v4903, %v10808
    %v10810 = vrot.slane %v10681, %v10809
    %v10811 = vsel %vm4908, %v10810, %v10806
    %v10812 = vlaneseq
    %v10813 = vshrl.u32 %v10812, 7
    %v10814 = vsub.s32 %v4910, %v10813
    %v10815 = vrot.slane %v10684, %v10814
    %v10816 = vsel %vm4915, %v10815, %v10811
    %v10817 = vlaneseq
    %v10818 = vshrl.u32 %v10817, 7
    %v10819 = vsub.s32 %v4917, %v10818
    %v10820 = vrot.slane %v10687, %v10819
    %v10821 = vsel %vm4922, %v10820, %v10816
    %v10822 = vlaneseq
    %v10823 = vshrl.u32 %v10822, 7
    %v10824 = vsub.s32 %v4924, %v10823
    %v10825 = vrot.slane %v10690, %v10824
    %v10826 = vsel %vm4929, %v10825, %v10821
    %v10827 = vlaneseq
    %v10828 = vshrl.u32 %v10827, 7
    %v10829 = vsub.s32 %v4931, %v10828
    %v10830 = vrot.slane %v10693, %v10829
    %v10831 = vsel %vm4936, %v10830, %v10826
    %v10832 = vlaneseq
    %v10833 = vshrl.u32 %v10832, 7
    %v10834 = vsub.s32 %v4938, %v10833
    %v10835 = vrot.slane %v10696, %v10834
    %v10836 = vsel %vm4943, %v10835, %v10831
    %v10837 = vlaneseq
    %v10838 = vshrl.u32 %v10837, 7
    %v10839 = vsub.s32 %v4945, %v10838
    %v10840 = vrot.slane %v10699, %v10839
    %v10841 = vsel %vm4950, %v10840, %v10836
    %v10842 = vlaneseq
    %v10843 = vshrl.u32 %v10842, 7
    %v10844 = vsub.s32 %v4952, %v10843
    %v10845 = vrot.slane %v10702, %v10844
    %v10846 = vsel %vm4957, %v10845, %v10841
    %v10847 = vlaneseq
    %v10848 = vshrl.u32 %v10847, 7
    %v10849 = vsub.s32 %v4959, %v10848
    %v10850 = vrot.slane %v10705, %v10849
    %v10851 = vsel %vm4964, %v10850, %v10846
    %v10852 = vlaneseq
    %v10853 = vshrl.u32 %v10852, 7
    %v10854 = vsub.s32 %v4966, %v10853
    %v10855 = vrot.slane %v10708, %v10854
    %v10856 = vsel %vm4971, %v10855, %v10851
    %v10857 = vlaneseq
    %v10858 = vshrl.u32 %v10857, 7
    %v10859 = vsub.s32 %v4973, %v10858
    %v10860 = vrot.slane %v10711, %v10859
    %v10861 = vsel %vm4978, %v10860, %v10856
    %v10862 = vlaneseq
    %v10863 = vshrl.u32 %v10862, 7
    %v10864 = vsub.s32 %v4980, %v10863
    %v10865 = vrot.slane %v10714, %v10864
    %v10866 = vsel %vm4985, %v10865, %v10861
    %v10867 = vlaneseq
    %v10868 = vshrl.u32 %v10867, 7
    %v10869 = vsub.s32 %v4987, %v10868
    %v10870 = vrot.slane %v10717, %v10869
    %v10871 = vsel %vm4992, %v10870, %v10866
    %v10872 = vlaneseq
    %v10873 = vshrl.u32 %v10872, 7
    %v10874 = vsub.s32 %v4994, %v10873
    %v10875 = vrot.slane %v10720, %v10874
    %v10876 = vsel %vm4999, %v10875, %v10871
    %v10877 = vlaneseq
    %v10878 = vshrl.u32 %v10877, 7
    %v10879 = vsub.s32 %v5001, %v10878
    %v10880 = vrot.slane %v10723, %v10879
    %v10881 = vsel %vm5006, %v10880, %v10876
    %v10882 = vcombine.low %v10802, %v10881
    %v10884 = vunpack.c.l.s4 1966171168
    %v10885 = vunpack.c.0.s8 %v10884
    %v10886 = vlaneseq
    %v10887 = vshrl.u32 %v10886, 7
    %v10888 = vsub.s32 %v10885, %v10887
    %v10889 = vrot.slane %v10882, %v10888
    %v10891 = vunpack.c.l.s4 1966171168
    %v10892 = vunpack.c.0.s8 %v10891
    %v10893 = vlaneseq
    %v10894 = vshrl.u32 %v10893, 7
    %v10895 = vsub.s32 %v10892, %v10894
    %v10896 = vrot.slane %v10889, %v10895
    %s10898 = scalar_lea.vmem [#allocation2], 2
    %10899 = vst.msk [vmem:[%s10898] ss:$4 sm:$0x3] %vm5106, %v10896
    // Predicated region
    $region14: #{tpu_custom_call.1} parent=1 // pred_check
      _
    $region15: #{tpu_custom_call.1} parent=1 // pred_check_branch
      %10901 = sbr.rel (0) target = $region17
    $region16: #{tpu_custom_call.1} parent=1 // pred_region
      %s10903 = ssub.s32 128, 128
      %10904 = vsyncadd [#allocation3], %s10903
      %s10906 = sshll.u32 [#allocation2], 4
      %s10907 = int_to_ptr.vmem [resolvable:$true] %s10906
      %10909 = dma.vmem_to_hbm [thread:$0]  %s10907, 128, %s3, [#allocation3]
    $region17: #{tpu_custom_call.1} parent=1 // pred_fallthru
      _
    // Predicated region
    $region18: #{tpu_custom_call.1} parent=1 // pred_check
      _
    $region19: #{tpu_custom_call.1} parent=1 // pred_check_branch
      %10911 = sbr.rel (0) target = $region21
    $region20: #{tpu_custom_call.1} parent=1 // pred_region
      %10912 = dma.done [#allocation3], 128
    $region21: #{tpu_custom_call.1} parent=1 // pred_fallthru
      _
    %10913 = vsyncpa [#allocation3], 1

</llo_original>
